<compile_context>
chip_gen: v7x
topology: tpu7x:2x2x1
jax: 0.10.0
libtpu: 0.0.40
codegen_flags: <defaults>
</compile_context>

<pallas_src>
import jax
import jax.numpy as jnp
from jax.experimental import pallas as pl
from jax.experimental.pallas import tpu as pltpu

D_IN = 256      # vp_features channel count (fixed by the module)
D_FEAT = 64     # per-branch feature dim == attention dim (n_head = 1)
LN_EPS = 1e-5   # torch.nn.LayerNorm default


def _local_interaction_kernel(
    x_ref,                     # (1, 256, TN)   vp_features tile
    w_proj_ref, b_proj_ref,    # (256, 256), (256, 1)  4 fused feature convs
    w_q_ref, b_q_ref,          # (64, 64), (64, 1)
    w_k_ref, b_k_ref,
    w_v_ref, b_v_ref,
    w_o_ref, b_o_ref,
    ln_g_ref, ln_b_ref,        # (64, 1)
    w_ang_ref, b_ang_ref,      # (A, 64), (A, 1)
    w_dep_ref, b_dep_ref,      # (D, 64), (D, 1)
    w_wid_ref, b_wid_ref,      # (64, 1), (1, 1)   width weight passed as a column
    w_sco_ref, b_sco_ref,      # (6, 64), (6, 1)
    angle_ref, depth_ref, width_ref, score_ref,   # outputs (1, *, TN)
):
    f32 = jnp.float32
    x = x_ref[0].astype(f32)                                  # (256, TN)

    # 1) four 1x1 feature convs fused into one matmul: rows [angle|depth|width|score]
    feat = jnp.dot(w_proj_ref[...], x, preferred_element_type=f32) + b_proj_ref[...]
    f = [feat[i * D_FEAT:(i + 1) * D_FEAT, :] for i in range(4)]        # each (64, TN)

    # 2) per-point self-attention over the length-4 sequence (1 head, head_dim=64)
    wq, bq = w_q_ref[...], b_q_ref[...]
    wk, bk = w_k_ref[...], b_k_ref[...]
    wv, bv = w_v_ref[...], b_v_ref[...]
    wo, bo = w_o_ref[...], b_o_ref[...]
    q = [jnp.dot(wq, fi, preferred_element_type=f32) + bq for fi in f]
    k = [jnp.dot(wk, fi, preferred_element_type=f32) + bk for fi in f]
    v = [jnp.dot(wv, fi, preferred_element_type=f32) + bv for fi in f]

    inv_sqrt_d = 1.0 / (D_FEAT ** 0.5)
    ln_g, ln_b = ln_g_ref[...], ln_b_ref[...]
    # TODO(synk): attention-weight dropout (p=0.05) is train-time only; omitted here.

    y = []
    for i in range(4):
        # 4 scores per point (lanes): sublane reductions of (64, TN) products
        s = [jnp.sum(q[i] * k[j], axis=0, keepdims=True) * inv_sqrt_d for j in range(4)]
        m = jnp.maximum(jnp.maximum(s[0], s[1]), jnp.maximum(s[2], s[3]))
        e = [jnp.exp(sj - m) for sj in s]
        inv_denom = 1.0 / (e[0] + e[1] + e[2] + e[3])
        attn = (e[0] * inv_denom) * v[0]
        for j in range(1, 4):
            attn = attn + (e[j] * inv_denom) * v[j]                     # (64, TN)
        msa = jnp.dot(wo, attn, preferred_element_type=f32) + bo
        res = f[i] + msa            # residual uses the pre-attention interaction feature
        mu = jnp.mean(res, axis=0, keepdims=True)
        d = res - mu
        var = jnp.mean(d * d, axis=0, keepdims=True)
        y.append(d * jax.lax.rsqrt(var + LN_EPS) * ln_g + ln_b)

    # 3) prediction heads (1x1 convs); outputs stay lane-dense over points.
    angle_ref[0] = (jnp.dot(w_ang_ref[...], y[0], preferred_element_type=f32)
                    + b_ang_ref[...]).astype(angle_ref.dtype)
    depth_ref[0] = (jnp.dot(w_dep_ref[...], y[1], preferred_element_type=f32)
                    + b_dep_ref[...]).astype(depth_ref.dtype)
    width_ref[0] = (jnp.sum(w_wid_ref[...] * y[2], axis=0, keepdims=True)
                    + b_wid_ref[...]).astype(width_ref.dtype)
    score_ref[0] = (jnp.dot(w_sco_ref[...], y[3], preferred_element_type=f32)
                    + b_sco_ref[...]).astype(score_ref.dtype)


def local_interaction_forward(vp_features, params, end_points=None, *,
                              tn_max=1024, vmem_limit_bytes=32 * 1024 * 1024):
    """Pallas equivalent of LocalInteraction.forward (inference).

    vp_features: (B, 256, N) float32 (or bf16)
    params:      dict from init_params(); Conv1d weights with k=1 squeezed.
    Returns the updated end_points dict.
    """
    if end_points is None:
        end_points = {}
    B, C, N = vp_features.shape
    assert C == D_IN, f"expected {D_IN} input channels, got {C}"

    num_angle_p1 = params["w_angle"].shape[0]
    num_depth_p1 = params["w_depth"].shape[0]

    # Pad points to a multiple of 128 so stores stay unmasked; slice back at the end.
    n_pad = pl.cdiv(N, 128) * 128
    vp = vp_features
    if n_pad != N:
        vp = jnp.pad(vp_features, ((0, 0), (0, 0), (0, n_pad - N)))

    # Largest 128-multiple tile <= tn_max that divides the padded point count.
    tn = max(128, (min(tn_max, n_pad) // 128) * 128)
    while n_pad % tn:
        tn -= 128

    col = lambda a: a.reshape(-1, 1)
    w_proj = jnp.concatenate([params["w_afeat"], params["w_dfeat"],
                              params["w_wfeat"], params["w_sfeat"]], axis=0)
    b_proj = col(jnp.concatenate([params["b_afeat"], params["b_dfeat"],
                                  params["b_wfeat"], params["b_sfeat"]], axis=0))

    weights = [
        w_proj, b_proj,
        params["w_q"], col(params["b_q"]),
        params["w_k"], col(params["b_k"]),
        params["w_v"], col(params["b_v"]),
        params["w_o"], col(params["b_o"]),
        col(params["ln_g"]), col(params["ln_b"]),
        params["w_angle"], col(params["b_angle"]),
        params["w_depth"], col(params["b_depth"]),
        params["w_width"].reshape(D_FEAT, 1), col(params["b_width"]),
        params["w_score"], col(params["b_score"]),
    ]

    grid = (B, n_pad // tn)
    point_spec = lambda ch: pl.BlockSpec((1, ch, tn), lambda b, n: (b, 0, n))
    in_specs = [point_spec(D_IN)] + [
        pl.BlockSpec(w.shape, lambda b, n: (0, 0)) for w in weights
    ]

    dtype = vp_features.dtype
    out_shape = (
        jax.ShapeDtypeStruct((B, num_angle_p1, n_pad), dtype),
        jax.ShapeDtypeStruct((B, num_depth_p1, n_pad), dtype),
        jax.ShapeDtypeStruct((B, 1, n_pad), dtype),
        jax.ShapeDtypeStruct((B, 6, n_pad), dtype),
    )
    out_specs = (point_spec(num_angle_p1), point_spec(num_depth_p1),
                 point_spec(1), point_spec(6))

    angle, depth, width, score = pl.pallas_call(
        _local_interaction_kernel,
        out_shape=out_shape,
        grid=grid,
        in_specs=in_specs,
        out_specs=out_specs,
        compiler_params=pltpu.CompilerParams(
            dimension_semantics=("parallel", "parallel"),
            vmem_limit_bytes=vmem_limit_bytes,
        ),
    )(vp, *weights)

    if n_pad != N:
        angle, depth, width, score = (t[:, :, :N] for t in (angle, depth, width, score))

    end_points["grasp_angle_pred"] = angle
    end_points["grasp_depth_pred"] = depth
    end_points["grasp_score_pred"] = score
    end_points["grasp_width_pred"] = width
    return end_points


def init_params(key, num_angle, num_depth):
    """Deterministic synthetic init matching the PyTorch module's parameter shapes."""
    keys = iter(jax.random.split(key, 32))

    def u(shape, fan_in):
        bound = 1.0 / (fan_in ** 0.5)
        return jax.random.uniform(next(keys), shape, jnp.float32, -bound, bound)

    p = {}
    for name in ("afeat", "dfeat", "wfeat", "sfeat"):      # Conv1d(256, 64, 1)
        p[f"w_{name}"] = u((D_FEAT, D_IN), D_IN)
        p[f"b_{name}"] = u((D_FEAT,), D_IN)
    for name in ("q", "k", "v", "o"):                      # Linear(64, 64)
        p[f"w_{name}"] = u((D_FEAT, D_FEAT), D_FEAT)
        p[f"b_{name}"] = u((D_FEAT,), D_FEAT)
    p["ln_g"] = jnp.ones((D_FEAT,), jnp.float32)           # LayerNorm(64)
    p["ln_b"] = jnp.zeros((D_FEAT,), jnp.float32)
    p["w_angle"] = u((num_angle + 1, D_FEAT), D_FEAT)      # Conv1d(64, num_angle+1, 1)
    p["b_angle"] = u((num_angle + 1,), D_FEAT)
    p["w_depth"] = u((num_depth + 1, D_FEAT), D_FEAT)      # Conv1d(64, num_depth+1, 1)
    p["b_depth"] = u((num_depth + 1,), D_FEAT)
    p["w_width"] = u((1, D_FEAT), D_FEAT)                  # Conv1d(64, 1, 1)
    p["b_width"] = u((1,), D_FEAT)
    p["w_score"] = u((6, D_FEAT), D_FEAT)                  # Conv1d(64, 6, 1)
    p["b_score"] = u((6,), D_FEAT)
    return p


def _reference_forward(vp, p):
    """Pure-JAX translation of the PyTorch forward (inference), for validation."""
    B, _, N = vp.shape
    hp = "highest"
    conv = lambda w, b, x: jnp.einsum("oc,bcn->bon", w, x, precision=hp) + b[None, :, None]
    fa, fd, fw, fs = (conv(p[f"w_{n}"], p[f"b_{n}"], vp)
                      for n in ("afeat", "dfeat", "wfeat", "sfeat"))
    to_seq = lambda t: t.transpose(0, 2, 1).reshape(-1, D_FEAT)
    X = jnp.stack([to_seq(fa), to_seq(fd), to_seq(fw), to_seq(fs)], axis=1)  # (B*N,4,64)
    lin = lambda w, b, t: jnp.einsum("...i,oi->...o", t, w, precision=hp) + b
    Q, K, V = (lin(p[f"w_{n}"], p[f"b_{n}"], X) for n in ("q", "k", "v"))
    scores = jnp.einsum("psd,pld->psl", Q, K, precision=hp) / (D_FEAT ** 0.5)
    attn = jax.nn.softmax(scores, axis=-1)
    ctx = jnp.einsum("psl,pld->psd", attn, V, precision=hp)
    msa = lin(p["w_o"], p["b_o"], ctx)
    h = X + msa
    mu = h.mean(-1, keepdims=True)
    var = ((h - mu) ** 2).mean(-1, keepdims=True)
    y = (h - mu) / jnp.sqrt(var + LN_EPS) * p["ln_g"] + p["ln_b"]
    back = lambda t: t.reshape(B, N, D_FEAT).transpose(0, 2, 1)
    angle = conv(p["w_angle"], p["b_angle"], back(y[:, 0]))
    depth = conv(p["w_depth"], p["b_depth"], back(y[:, 1]))
    width = conv(p["w_width"], p["b_width"], back(y[:, 2]))
    score = conv(p["w_score"], p["b_score"], back(y[:, 3]))
    return angle, depth, width, score


if __name__ == "__main__":
    B, N = 2, 256                 # batch, number of seed points (small demo)
    num_angle, num_depth = 12, 4  # typical finegrasp settings

    key = jax.random.PRNGKey(0)
    kx, kp = jax.random.split(key)
    vp = jax.random.normal(kx, (B, D_IN, N), jnp.float32)
    params = init_params(kp, num_angle, num_depth)

    end_points = local_interaction_forward(vp, params, {})
    angle = jax.block_until_ready(end_points["grasp_angle_pred"])
    depth = jax.block_until_ready(end_points["grasp_depth_pred"])
    score = jax.block_until_ready(end_points["grasp_score_pred"])
    width = jax.block_until_ready(end_points["grasp_width_pred"])

    assert angle.shape == (B, num_angle + 1, N)
    assert depth.shape == (B, num_depth + 1, N)
    assert width.shape == (B, 1, N)
    assert score.shape == (B, 6, N)

    ref_angle, ref_depth, ref_width, ref_score = _reference_forward(vp, params)
    for got, ref in ((angle, ref_angle), (depth, ref_depth),
                     (width, ref_width), (score, ref_score)):
        assert jnp.allclose(got, ref, atol=2e-2, rtol=2e-2), \
            float(jnp.max(jnp.abs(got - ref)))

    print("KERNEL_OK")
</pallas_src>

<mosaic_0001>
module attributes {stable_mosaic.version = 11 : i64} {
  func.func @_local_interaction_kernel(%arg0: i32, %arg1: i32, %arg2: memref<1x256x256xf32, #tpu.memory_space<vmem>>, %arg3: memref<256x256xf32, #tpu.memory_space<vmem>>, %arg4: memref<256x1xf32, #tpu.memory_space<vmem>>, %arg5: memref<64x64xf32, #tpu.memory_space<vmem>>, %arg6: memref<64x1xf32, #tpu.memory_space<vmem>>, %arg7: memref<64x64xf32, #tpu.memory_space<vmem>>, %arg8: memref<64x1xf32, #tpu.memory_space<vmem>>, %arg9: memref<64x64xf32, #tpu.memory_space<vmem>>, %arg10: memref<64x1xf32, #tpu.memory_space<vmem>>, %arg11: memref<64x64xf32, #tpu.memory_space<vmem>>, %arg12: memref<64x1xf32, #tpu.memory_space<vmem>>, %arg13: memref<64x1xf32, #tpu.memory_space<vmem>>, %arg14: memref<64x1xf32, #tpu.memory_space<vmem>>, %arg15: memref<13x64xf32, #tpu.memory_space<vmem>>, %arg16: memref<13x1xf32, #tpu.memory_space<vmem>>, %arg17: memref<5x64xf32, #tpu.memory_space<vmem>>, %arg18: memref<5x1xf32, #tpu.memory_space<vmem>>, %arg19: memref<64x1xf32, #tpu.memory_space<vmem>>, %arg20: memref<1x1xf32, #tpu.memory_space<vmem>>, %arg21: memref<6x64xf32, #tpu.memory_space<vmem>>, %arg22: memref<6x1xf32, #tpu.memory_space<vmem>>, %arg23: memref<1x13x256xf32, #tpu.memory_space<vmem>>, %arg24: memref<1x5x256xf32, #tpu.memory_space<vmem>>, %arg25: memref<1x1x256xf32, #tpu.memory_space<vmem>>, %arg26: memref<1x6x256xf32, #tpu.memory_space<vmem>>) attributes {dimension_semantics = [#tpu.dimension_semantics<parallel>, #tpu.dimension_semantics<parallel>], iteration_bounds = array<i64: 2, 1>, scalar_prefetch = 0 : i64, scratch_operands = 0 : i64, tpu.core_type = #tpu.core_type<tc>, window_params = [{transform_indices = @transform_0, window_bounds = array<i64: 1, 256, 256>}, {pipeline_mode = #tpu.pipeline_mode<synchronous>, transform_indices = @transform_1, window_bounds = array<i64: 256, 256>}, {pipeline_mode = #tpu.pipeline_mode<synchronous>, transform_indices = @transform_2, window_bounds = array<i64: 256, 1>}, {pipeline_mode = #tpu.pipeline_mode<synchronous>, transform_indices = @transform_3, window_bounds = array<i64: 64, 64>}, {pipeline_mode = #tpu.pipeline_mode<synchronous>, transform_indices = @transform_4, window_bounds = array<i64: 64, 1>}, {pipeline_mode = #tpu.pipeline_mode<synchronous>, transform_indices = @transform_5, window_bounds = array<i64: 64, 64>}, {pipeline_mode = #tpu.pipeline_mode<synchronous>, transform_indices = @transform_6, window_bounds = array<i64: 64, 1>}, {pipeline_mode = #tpu.pipeline_mode<synchronous>, transform_indices = @transform_7, window_bounds = array<i64: 64, 64>}, {pipeline_mode = #tpu.pipeline_mode<synchronous>, transform_indices = @transform_8, window_bounds = array<i64: 64, 1>}, {pipeline_mode = #tpu.pipeline_mode<synchronous>, transform_indices = @transform_9, window_bounds = array<i64: 64, 64>}, {pipeline_mode = #tpu.pipeline_mode<synchronous>, transform_indices = @transform_10, window_bounds = array<i64: 64, 1>}, {pipeline_mode = #tpu.pipeline_mode<synchronous>, transform_indices = @transform_11, window_bounds = array<i64: 64, 1>}, {pipeline_mode = #tpu.pipeline_mode<synchronous>, transform_indices = @transform_12, window_bounds = array<i64: 64, 1>}, {pipeline_mode = #tpu.pipeline_mode<synchronous>, transform_indices = @transform_13, window_bounds = array<i64: 13, 64>}, {pipeline_mode = #tpu.pipeline_mode<synchronous>, transform_indices = @transform_14, window_bounds = array<i64: 13, 1>}, {pipeline_mode = #tpu.pipeline_mode<synchronous>, transform_indices = @transform_15, window_bounds = array<i64: 5, 64>}, {pipeline_mode = #tpu.pipeline_mode<synchronous>, transform_indices = @transform_16, window_bounds = array<i64: 5, 1>}, {pipeline_mode = #tpu.pipeline_mode<synchronous>, transform_indices = @transform_17, window_bounds = array<i64: 64, 1>}, {pipeline_mode = #tpu.pipeline_mode<synchronous>, transform_indices = @transform_18, window_bounds = array<i64: 1, 1>}, {pipeline_mode = #tpu.pipeline_mode<synchronous>, transform_indices = @transform_19, window_bounds = array<i64: 6, 64>}, {pipeline_mode = #tpu.pipeline_mode<synchronous>, transform_indices = @transform_20, window_bounds = array<i64: 6, 1>}, {transform_indices = @transform_21, window_bounds = array<i64: 1, 13, 256>}, {transform_indices = @transform_22, window_bounds = array<i64: 1, 5, 256>}, {transform_indices = @transform_23, window_bounds = array<i64: 1, 1, 256>}, {transform_indices = @transform_24, window_bounds = array<i64: 1, 6, 256>}]} {
    %c0 = arith.constant 0 : index
    %c0_0 = arith.constant 0 : index
    %c0_1 = arith.constant 0 : index
    %0 = vector.load %arg2[%c0, %c0_0, %c0_1] : memref<1x256x256xf32, #tpu.memory_space<vmem>>, vector<1x256x256xf32>
    %1 = vector.shape_cast %0 : vector<1x256x256xf32> to vector<256x256xf32>
    %c0_2 = arith.constant 0 : index
    %c0_3 = arith.constant 0 : index
    %2 = vector.load %arg3[%c0_2, %c0_3] : memref<256x256xf32, #tpu.memory_space<vmem>>, vector<256x256xf32>
    %cst = arith.constant dense<0.000000e+00> : vector<256x256xf32>
    %3 = tpu.matmul %2, %1, %cst {dimension_numbers = #tpu.dot_dimension_numbers<[1], [0], [0], [1], [0, 0, 1, 1], [], []>} : vector<256x256xf32>, vector<256x256xf32>, vector<256x256xf32> -> vector<256x256xf32>
    %c0_4 = arith.constant 0 : index
    %c0_5 = arith.constant 0 : index
    %4 = vector.load %arg4[%c0_4, %c0_5] : memref<256x1xf32, #tpu.memory_space<vmem>>, vector<256x1xf32>
    %5 = vector.broadcast %4 : vector<256x1xf32> to vector<256x256xf32>
    %6 = arith.addf %3, %5 : vector<256x256xf32>
    %7 = vector.extract_strided_slice %6 {offsets = [0, 0], sizes = [64, 256], strides = [1, 1]} : vector<256x256xf32> to vector<64x256xf32>
    %8 = vector.extract_strided_slice %6 {offsets = [64, 0], sizes = [64, 256], strides = [1, 1]} : vector<256x256xf32> to vector<64x256xf32>
    %9 = vector.extract_strided_slice %6 {offsets = [128, 0], sizes = [64, 256], strides = [1, 1]} : vector<256x256xf32> to vector<64x256xf32>
    %10 = vector.extract_strided_slice %6 {offsets = [192, 0], sizes = [64, 256], strides = [1, 1]} : vector<256x256xf32> to vector<64x256xf32>
    %c0_6 = arith.constant 0 : index
    %c0_7 = arith.constant 0 : index
    %11 = vector.load %arg5[%c0_6, %c0_7] : memref<64x64xf32, #tpu.memory_space<vmem>>, vector<64x64xf32>
    %c0_8 = arith.constant 0 : index
    %c0_9 = arith.constant 0 : index
    %12 = vector.load %arg6[%c0_8, %c0_9] : memref<64x1xf32, #tpu.memory_space<vmem>>, vector<64x1xf32>
    %c0_10 = arith.constant 0 : index
    %c0_11 = arith.constant 0 : index
    %13 = vector.load %arg7[%c0_10, %c0_11] : memref<64x64xf32, #tpu.memory_space<vmem>>, vector<64x64xf32>
    %c0_12 = arith.constant 0 : index
    %c0_13 = arith.constant 0 : index
    %14 = vector.load %arg8[%c0_12, %c0_13] : memref<64x1xf32, #tpu.memory_space<vmem>>, vector<64x1xf32>
    %c0_14 = arith.constant 0 : index
    %c0_15 = arith.constant 0 : index
    %15 = vector.load %arg9[%c0_14, %c0_15] : memref<64x64xf32, #tpu.memory_space<vmem>>, vector<64x64xf32>
    %c0_16 = arith.constant 0 : index
    %c0_17 = arith.constant 0 : index
    %16 = vector.load %arg10[%c0_16, %c0_17] : memref<64x1xf32, #tpu.memory_space<vmem>>, vector<64x1xf32>
    %c0_18 = arith.constant 0 : index
    %c0_19 = arith.constant 0 : index
    %17 = vector.load %arg11[%c0_18, %c0_19] : memref<64x64xf32, #tpu.memory_space<vmem>>, vector<64x64xf32>
    %c0_20 = arith.constant 0 : index
    %c0_21 = arith.constant 0 : index
    %18 = vector.load %arg12[%c0_20, %c0_21] : memref<64x1xf32, #tpu.memory_space<vmem>>, vector<64x1xf32>
    %cst_22 = arith.constant dense<0.000000e+00> : vector<64x256xf32>
    %19 = tpu.matmul %11, %7, %cst_22 {dimension_numbers = #tpu.dot_dimension_numbers<[1], [0], [0], [1], [0, 0, 1, 1], [], []>} : vector<64x64xf32>, vector<64x256xf32>, vector<64x256xf32> -> vector<64x256xf32>
    %20 = vector.broadcast %12 : vector<64x1xf32> to vector<64x256xf32>
    %21 = arith.addf %19, %20 : vector<64x256xf32>
    %cst_23 = arith.constant dense<0.000000e+00> : vector<64x256xf32>
    %22 = tpu.matmul %11, %8, %cst_23 {dimension_numbers = #tpu.dot_dimension_numbers<[1], [0], [0], [1], [0, 0, 1, 1], [], []>} : vector<64x64xf32>, vector<64x256xf32>, vector<64x256xf32> -> vector<64x256xf32>
    %23 = vector.broadcast %12 : vector<64x1xf32> to vector<64x256xf32>
    %24 = arith.addf %22, %23 : vector<64x256xf32>
    %cst_24 = arith.constant dense<0.000000e+00> : vector<64x256xf32>
    %25 = tpu.matmul %11, %9, %cst_24 {dimension_numbers = #tpu.dot_dimension_numbers<[1], [0], [0], [1], [0, 0, 1, 1], [], []>} : vector<64x64xf32>, vector<64x256xf32>, vector<64x256xf32> -> vector<64x256xf32>
    %26 = vector.broadcast %12 : vector<64x1xf32> to vector<64x256xf32>
    %27 = arith.addf %25, %26 : vector<64x256xf32>
    %cst_25 = arith.constant dense<0.000000e+00> : vector<64x256xf32>
    %28 = tpu.matmul %11, %10, %cst_25 {dimension_numbers = #tpu.dot_dimension_numbers<[1], [0], [0], [1], [0, 0, 1, 1], [], []>} : vector<64x64xf32>, vector<64x256xf32>, vector<64x256xf32> -> vector<64x256xf32>
    %29 = vector.broadcast %12 : vector<64x1xf32> to vector<64x256xf32>
    %30 = arith.addf %28, %29 : vector<64x256xf32>
    %cst_26 = arith.constant dense<0.000000e+00> : vector<64x256xf32>
    %31 = tpu.matmul %13, %7, %cst_26 {dimension_numbers = #tpu.dot_dimension_numbers<[1], [0], [0], [1], [0, 0, 1, 1], [], []>} : vector<64x64xf32>, vector<64x256xf32>, vector<64x256xf32> -> vector<64x256xf32>
    %32 = vector.broadcast %14 : vector<64x1xf32> to vector<64x256xf32>
    %33 = arith.addf %31, %32 : vector<64x256xf32>
    %cst_27 = arith.constant dense<0.000000e+00> : vector<64x256xf32>
    %34 = tpu.matmul %13, %8, %cst_27 {dimension_numbers = #tpu.dot_dimension_numbers<[1], [0], [0], [1], [0, 0, 1, 1], [], []>} : vector<64x64xf32>, vector<64x256xf32>, vector<64x256xf32> -> vector<64x256xf32>
    %35 = vector.broadcast %14 : vector<64x1xf32> to vector<64x256xf32>
    %36 = arith.addf %34, %35 : vector<64x256xf32>
    %cst_28 = arith.constant dense<0.000000e+00> : vector<64x256xf32>
    %37 = tpu.matmul %13, %9, %cst_28 {dimension_numbers = #tpu.dot_dimension_numbers<[1], [0], [0], [1], [0, 0, 1, 1], [], []>} : vector<64x64xf32>, vector<64x256xf32>, vector<64x256xf32> -> vector<64x256xf32>
    %38 = vector.broadcast %14 : vector<64x1xf32> to vector<64x256xf32>
    %39 = arith.addf %37, %38 : vector<64x256xf32>
    %cst_29 = arith.constant dense<0.000000e+00> : vector<64x256xf32>
    %40 = tpu.matmul %13, %10, %cst_29 {dimension_numbers = #tpu.dot_dimension_numbers<[1], [0], [0], [1], [0, 0, 1, 1], [], []>} : vector<64x64xf32>, vector<64x256xf32>, vector<64x256xf32> -> vector<64x256xf32>
    %41 = vector.broadcast %14 : vector<64x1xf32> to vector<64x256xf32>
    %42 = arith.addf %40, %41 : vector<64x256xf32>
    %cst_30 = arith.constant dense<0.000000e+00> : vector<64x256xf32>
    %43 = tpu.matmul %15, %7, %cst_30 {dimension_numbers = #tpu.dot_dimension_numbers<[1], [0], [0], [1], [0, 0, 1, 1], [], []>} : vector<64x64xf32>, vector<64x256xf32>, vector<64x256xf32> -> vector<64x256xf32>
    %44 = vector.broadcast %16 : vector<64x1xf32> to vector<64x256xf32>
    %45 = arith.addf %43, %44 : vector<64x256xf32>
    %cst_31 = arith.constant dense<0.000000e+00> : vector<64x256xf32>
    %46 = tpu.matmul %15, %8, %cst_31 {dimension_numbers = #tpu.dot_dimension_numbers<[1], [0], [0], [1], [0, 0, 1, 1], [], []>} : vector<64x64xf32>, vector<64x256xf32>, vector<64x256xf32> -> vector<64x256xf32>
    %47 = vector.broadcast %16 : vector<64x1xf32> to vector<64x256xf32>
    %48 = arith.addf %46, %47 : vector<64x256xf32>
    %cst_32 = arith.constant dense<0.000000e+00> : vector<64x256xf32>
    %49 = tpu.matmul %15, %9, %cst_32 {dimension_numbers = #tpu.dot_dimension_numbers<[1], [0], [0], [1], [0, 0, 1, 1], [], []>} : vector<64x64xf32>, vector<64x256xf32>, vector<64x256xf32> -> vector<64x256xf32>
    %50 = vector.broadcast %16 : vector<64x1xf32> to vector<64x256xf32>
    %51 = arith.addf %49, %50 : vector<64x256xf32>
    %cst_33 = arith.constant dense<0.000000e+00> : vector<64x256xf32>
    %52 = tpu.matmul %15, %10, %cst_33 {dimension_numbers = #tpu.dot_dimension_numbers<[1], [0], [0], [1], [0, 0, 1, 1], [], []>} : vector<64x64xf32>, vector<64x256xf32>, vector<64x256xf32> -> vector<64x256xf32>
    %53 = vector.broadcast %16 : vector<64x1xf32> to vector<64x256xf32>
    %54 = arith.addf %52, %53 : vector<64x256xf32>
    %c0_34 = arith.constant 0 : index
    %c0_35 = arith.constant 0 : index
    %55 = vector.load %arg13[%c0_34, %c0_35] : memref<64x1xf32, #tpu.memory_space<vmem>>, vector<64x1xf32>
    %c0_36 = arith.constant 0 : index
    %c0_37 = arith.constant 0 : index
    %56 = vector.load %arg14[%c0_36, %c0_37] : memref<64x1xf32, #tpu.memory_space<vmem>>, vector<64x1xf32>
    %57 = arith.mulf %21, %33 : vector<64x256xf32>
    %cst_38 = arith.constant dense<0.000000e+00> : vector<256xf32>
    %58 = vector.multi_reduction <add>, %57, %cst_38 [0] : vector<64x256xf32> to vector<256xf32>
    %59 = vector.shape_cast %58 : vector<256xf32> to vector<1x256xf32>
    %cst_39 = arith.constant 1.250000e-01 : f32
    %60 = vector.broadcast %cst_39 : f32 to vector<1x256xf32>
    %61 = arith.mulf %59, %60 : vector<1x256xf32>
    %62 = arith.mulf %21, %36 : vector<64x256xf32>
    %cst_40 = arith.constant dense<0.000000e+00> : vector<256xf32>
    %63 = vector.multi_reduction <add>, %62, %cst_40 [0] : vector<64x256xf32> to vector<256xf32>
    %64 = vector.shape_cast %63 : vector<256xf32> to vector<1x256xf32>
    %cst_41 = arith.constant 1.250000e-01 : f32
    %65 = vector.broadcast %cst_41 : f32 to vector<1x256xf32>
    %66 = arith.mulf %64, %65 : vector<1x256xf32>
    %67 = arith.mulf %21, %39 : vector<64x256xf32>
    %cst_42 = arith.constant dense<0.000000e+00> : vector<256xf32>
    %68 = vector.multi_reduction <add>, %67, %cst_42 [0] : vector<64x256xf32> to vector<256xf32>
    %69 = vector.shape_cast %68 : vector<256xf32> to vector<1x256xf32>
    %cst_43 = arith.constant 1.250000e-01 : f32
    %70 = vector.broadcast %cst_43 : f32 to vector<1x256xf32>
    %71 = arith.mulf %69, %70 : vector<1x256xf32>
    %72 = arith.mulf %21, %42 : vector<64x256xf32>
    %cst_44 = arith.constant dense<0.000000e+00> : vector<256xf32>
    %73 = vector.multi_reduction <add>, %72, %cst_44 [0] : vector<64x256xf32> to vector<256xf32>
    %74 = vector.shape_cast %73 : vector<256xf32> to vector<1x256xf32>
    %cst_45 = arith.constant 1.250000e-01 : f32
    %75 = vector.broadcast %cst_45 : f32 to vector<1x256xf32>
    %76 = arith.mulf %74, %75 : vector<1x256xf32>
    %77 = arith.maximumf %61, %66 : vector<1x256xf32>
    %78 = arith.maximumf %71, %76 : vector<1x256xf32>
    %79 = arith.maximumf %77, %78 : vector<1x256xf32>
    %80 = arith.subf %61, %79 : vector<1x256xf32>
    %81 = math.exp %80 : vector<1x256xf32>
    %82 = arith.subf %66, %79 : vector<1x256xf32>
    %83 = math.exp %82 : vector<1x256xf32>
    %84 = arith.subf %71, %79 : vector<1x256xf32>
    %85 = math.exp %84 : vector<1x256xf32>
    %86 = arith.subf %76, %79 : vector<1x256xf32>
    %87 = math.exp %86 : vector<1x256xf32>
    %88 = arith.addf %81, %83 : vector<1x256xf32>
    %89 = arith.addf %88, %85 : vector<1x256xf32>
    %90 = arith.addf %89, %87 : vector<1x256xf32>
    %cst_46 = arith.constant 1.000000e+00 : f32
    %91 = vector.broadcast %cst_46 : f32 to vector<1x256xf32>
    %92 = arith.divf %91, %90 : vector<1x256xf32>
    %93 = arith.mulf %81, %92 : vector<1x256xf32>
    %94 = vector.broadcast %93 : vector<1x256xf32> to vector<64x256xf32>
    %95 = arith.mulf %94, %45 : vector<64x256xf32>
    %96 = arith.mulf %83, %92 : vector<1x256xf32>
    %97 = vector.broadcast %96 : vector<1x256xf32> to vector<64x256xf32>
    %98 = arith.mulf %97, %48 : vector<64x256xf32>
    %99 = arith.addf %95, %98 : vector<64x256xf32>
    %100 = arith.mulf %85, %92 : vector<1x256xf32>
    %101 = vector.broadcast %100 : vector<1x256xf32> to vector<64x256xf32>
    %102 = arith.mulf %101, %51 : vector<64x256xf32>
    %103 = arith.addf %99, %102 : vector<64x256xf32>
    %104 = arith.mulf %87, %92 : vector<1x256xf32>
    %105 = vector.broadcast %104 : vector<1x256xf32> to vector<64x256xf32>
    %106 = arith.mulf %105, %54 : vector<64x256xf32>
    %107 = arith.addf %103, %106 : vector<64x256xf32>
    %cst_47 = arith.constant dense<0.000000e+00> : vector<64x256xf32>
    %108 = tpu.matmul %17, %107, %cst_47 {dimension_numbers = #tpu.dot_dimension_numbers<[1], [0], [0], [1], [0, 0, 1, 1], [], []>} : vector<64x64xf32>, vector<64x256xf32>, vector<64x256xf32> -> vector<64x256xf32>
    %109 = vector.broadcast %18 : vector<64x1xf32> to vector<64x256xf32>
    %110 = arith.addf %108, %109 : vector<64x256xf32>
    %111 = arith.addf %7, %110 : vector<64x256xf32>
    %cst_48 = arith.constant dense<0.000000e+00> : vector<256xf32>
    %112 = vector.multi_reduction <add>, %111, %cst_48 [0] : vector<64x256xf32> to vector<256xf32>
    %113 = vector.shape_cast %112 : vector<256xf32> to vector<1x256xf32>
    %cst_49 = arith.constant 6.400000e+01 : f32
    %114 = vector.broadcast %cst_49 : f32 to vector<1x256xf32>
    %115 = arith.divf %113, %114 : vector<1x256xf32>
    %116 = vector.broadcast %115 : vector<1x256xf32> to vector<64x256xf32>
    %117 = arith.subf %111, %116 : vector<64x256xf32>
    %118 = arith.mulf %117, %117 : vector<64x256xf32>
    %cst_50 = arith.constant dense<0.000000e+00> : vector<256xf32>
    %119 = vector.multi_reduction <add>, %118, %cst_50 [0] : vector<64x256xf32> to vector<256xf32>
    %120 = vector.shape_cast %119 : vector<256xf32> to vector<1x256xf32>
    %cst_51 = arith.constant 6.400000e+01 : f32
    %121 = vector.broadcast %cst_51 : f32 to vector<1x256xf32>
    %122 = arith.divf %120, %121 : vector<1x256xf32>
    %cst_52 = arith.constant 9.99999974E-6 : f32
    %123 = vector.broadcast %cst_52 : f32 to vector<1x256xf32>
    %124 = arith.addf %122, %123 : vector<1x256xf32>
    %125 = math.rsqrt %124 : vector<1x256xf32>
    %126 = vector.broadcast %125 : vector<1x256xf32> to vector<64x256xf32>
    %127 = arith.mulf %117, %126 : vector<64x256xf32>
    %128 = vector.broadcast %55 : vector<64x1xf32> to vector<64x256xf32>
    %129 = arith.mulf %127, %128 : vector<64x256xf32>
    %130 = vector.broadcast %56 : vector<64x1xf32> to vector<64x256xf32>
    %131 = arith.addf %129, %130 : vector<64x256xf32>
    %132 = arith.mulf %24, %33 : vector<64x256xf32>
    %cst_53 = arith.constant dense<0.000000e+00> : vector<256xf32>
    %133 = vector.multi_reduction <add>, %132, %cst_53 [0] : vector<64x256xf32> to vector<256xf32>
    %134 = vector.shape_cast %133 : vector<256xf32> to vector<1x256xf32>
    %cst_54 = arith.constant 1.250000e-01 : f32
    %135 = vector.broadcast %cst_54 : f32 to vector<1x256xf32>
    %136 = arith.mulf %134, %135 : vector<1x256xf32>
    %137 = arith.mulf %24, %36 : vector<64x256xf32>
    %cst_55 = arith.constant dense<0.000000e+00> : vector<256xf32>
    %138 = vector.multi_reduction <add>, %137, %cst_55 [0] : vector<64x256xf32> to vector<256xf32>
    %139 = vector.shape_cast %138 : vector<256xf32> to vector<1x256xf32>
    %cst_56 = arith.constant 1.250000e-01 : f32
    %140 = vector.broadcast %cst_56 : f32 to vector<1x256xf32>
    %141 = arith.mulf %139, %140 : vector<1x256xf32>
    %142 = arith.mulf %24, %39 : vector<64x256xf32>
    %cst_57 = arith.constant dense<0.000000e+00> : vector<256xf32>
    %143 = vector.multi_reduction <add>, %142, %cst_57 [0] : vector<64x256xf32> to vector<256xf32>
    %144 = vector.shape_cast %143 : vector<256xf32> to vector<1x256xf32>
    %cst_58 = arith.constant 1.250000e-01 : f32
    %145 = vector.broadcast %cst_58 : f32 to vector<1x256xf32>
    %146 = arith.mulf %144, %145 : vector<1x256xf32>
    %147 = arith.mulf %24, %42 : vector<64x256xf32>
    %cst_59 = arith.constant dense<0.000000e+00> : vector<256xf32>
    %148 = vector.multi_reduction <add>, %147, %cst_59 [0] : vector<64x256xf32> to vector<256xf32>
    %149 = vector.shape_cast %148 : vector<256xf32> to vector<1x256xf32>
    %cst_60 = arith.constant 1.250000e-01 : f32
    %150 = vector.broadcast %cst_60 : f32 to vector<1x256xf32>
    %151 = arith.mulf %149, %150 : vector<1x256xf32>
    %152 = arith.maximumf %136, %141 : vector<1x256xf32>
    %153 = arith.maximumf %146, %151 : vector<1x256xf32>
    %154 = arith.maximumf %152, %153 : vector<1x256xf32>
    %155 = arith.subf %136, %154 : vector<1x256xf32>
    %156 = math.exp %155 : vector<1x256xf32>
    %157 = arith.subf %141, %154 : vector<1x256xf32>
    %158 = math.exp %157 : vector<1x256xf32>
    %159 = arith.subf %146, %154 : vector<1x256xf32>
    %160 = math.exp %159 : vector<1x256xf32>
    %161 = arith.subf %151, %154 : vector<1x256xf32>
    %162 = math.exp %161 : vector<1x256xf32>
    %163 = arith.addf %156, %158 : vector<1x256xf32>
    %164 = arith.addf %163, %160 : vector<1x256xf32>
    %165 = arith.addf %164, %162 : vector<1x256xf32>
    %cst_61 = arith.constant 1.000000e+00 : f32
    %166 = vector.broadcast %cst_61 : f32 to vector<1x256xf32>
    %167 = arith.divf %166, %165 : vector<1x256xf32>
    %168 = arith.mulf %156, %167 : vector<1x256xf32>
    %169 = vector.broadcast %168 : vector<1x256xf32> to vector<64x256xf32>
    %170 = arith.mulf %169, %45 : vector<64x256xf32>
    %171 = arith.mulf %158, %167 : vector<1x256xf32>
    %172 = vector.broadcast %171 : vector<1x256xf32> to vector<64x256xf32>
    %173 = arith.mulf %172, %48 : vector<64x256xf32>
    %174 = arith.addf %170, %173 : vector<64x256xf32>
    %175 = arith.mulf %160, %167 : vector<1x256xf32>
    %176 = vector.broadcast %175 : vector<1x256xf32> to vector<64x256xf32>
    %177 = arith.mulf %176, %51 : vector<64x256xf32>
    %178 = arith.addf %174, %177 : vector<64x256xf32>
    %179 = arith.mulf %162, %167 : vector<1x256xf32>
    %180 = vector.broadcast %179 : vector<1x256xf32> to vector<64x256xf32>
    %181 = arith.mulf %180, %54 : vector<64x256xf32>
    %182 = arith.addf %178, %181 : vector<64x256xf32>
    %cst_62 = arith.constant dense<0.000000e+00> : vector<64x256xf32>
    %183 = tpu.matmul %17, %182, %cst_62 {dimension_numbers = #tpu.dot_dimension_numbers<[1], [0], [0], [1], [0, 0, 1, 1], [], []>} : vector<64x64xf32>, vector<64x256xf32>, vector<64x256xf32> -> vector<64x256xf32>
    %184 = vector.broadcast %18 : vector<64x1xf32> to vector<64x256xf32>
    %185 = arith.addf %183, %184 : vector<64x256xf32>
    %186 = arith.addf %8, %185 : vector<64x256xf32>
    %cst_63 = arith.constant dense<0.000000e+00> : vector<256xf32>
    %187 = vector.multi_reduction <add>, %186, %cst_63 [0] : vector<64x256xf32> to vector<256xf32>
    %188 = vector.shape_cast %187 : vector<256xf32> to vector<1x256xf32>
    %cst_64 = arith.constant 6.400000e+01 : f32
    %189 = vector.broadcast %cst_64 : f32 to vector<1x256xf32>
    %190 = arith.divf %188, %189 : vector<1x256xf32>
    %191 = vector.broadcast %190 : vector<1x256xf32> to vector<64x256xf32>
    %192 = arith.subf %186, %191 : vector<64x256xf32>
    %193 = arith.mulf %192, %192 : vector<64x256xf32>
    %cst_65 = arith.constant dense<0.000000e+00> : vector<256xf32>
    %194 = vector.multi_reduction <add>, %193, %cst_65 [0] : vector<64x256xf32> to vector<256xf32>
    %195 = vector.shape_cast %194 : vector<256xf32> to vector<1x256xf32>
    %cst_66 = arith.constant 6.400000e+01 : f32
    %196 = vector.broadcast %cst_66 : f32 to vector<1x256xf32>
    %197 = arith.divf %195, %196 : vector<1x256xf32>
    %cst_67 = arith.constant 9.99999974E-6 : f32
    %198 = vector.broadcast %cst_67 : f32 to vector<1x256xf32>
    %199 = arith.addf %197, %198 : vector<1x256xf32>
    %200 = math.rsqrt %199 : vector<1x256xf32>
    %201 = vector.broadcast %200 : vector<1x256xf32> to vector<64x256xf32>
    %202 = arith.mulf %192, %201 : vector<64x256xf32>
    %203 = vector.broadcast %55 : vector<64x1xf32> to vector<64x256xf32>
    %204 = arith.mulf %202, %203 : vector<64x256xf32>
    %205 = vector.broadcast %56 : vector<64x1xf32> to vector<64x256xf32>
    %206 = arith.addf %204, %205 : vector<64x256xf32>
    %207 = arith.mulf %27, %33 : vector<64x256xf32>
    %cst_68 = arith.constant dense<0.000000e+00> : vector<256xf32>
    %208 = vector.multi_reduction <add>, %207, %cst_68 [0] : vector<64x256xf32> to vector<256xf32>
    %209 = vector.shape_cast %208 : vector<256xf32> to vector<1x256xf32>
    %cst_69 = arith.constant 1.250000e-01 : f32
    %210 = vector.broadcast %cst_69 : f32 to vector<1x256xf32>
    %211 = arith.mulf %209, %210 : vector<1x256xf32>
    %212 = arith.mulf %27, %36 : vector<64x256xf32>
    %cst_70 = arith.constant dense<0.000000e+00> : vector<256xf32>
    %213 = vector.multi_reduction <add>, %212, %cst_70 [0] : vector<64x256xf32> to vector<256xf32>
    %214 = vector.shape_cast %213 : vector<256xf32> to vector<1x256xf32>
    %cst_71 = arith.constant 1.250000e-01 : f32
    %215 = vector.broadcast %cst_71 : f32 to vector<1x256xf32>
    %216 = arith.mulf %214, %215 : vector<1x256xf32>
    %217 = arith.mulf %27, %39 : vector<64x256xf32>
    %cst_72 = arith.constant dense<0.000000e+00> : vector<256xf32>
    %218 = vector.multi_reduction <add>, %217, %cst_72 [0] : vector<64x256xf32> to vector<256xf32>
    %219 = vector.shape_cast %218 : vector<256xf32> to vector<1x256xf32>
    %cst_73 = arith.constant 1.250000e-01 : f32
    %220 = vector.broadcast %cst_73 : f32 to vector<1x256xf32>
    %221 = arith.mulf %219, %220 : vector<1x256xf32>
    %222 = arith.mulf %27, %42 : vector<64x256xf32>
    %cst_74 = arith.constant dense<0.000000e+00> : vector<256xf32>
    %223 = vector.multi_reduction <add>, %222, %cst_74 [0] : vector<64x256xf32> to vector<256xf32>
    %224 = vector.shape_cast %223 : vector<256xf32> to vector<1x256xf32>
    %cst_75 = arith.constant 1.250000e-01 : f32
    %225 = vector.broadcast %cst_75 : f32 to vector<1x256xf32>
    %226 = arith.mulf %224, %225 : vector<1x256xf32>
    %227 = arith.maximumf %211, %216 : vector<1x256xf32>
    %228 = arith.maximumf %221, %226 : vector<1x256xf32>
    %229 = arith.maximumf %227, %228 : vector<1x256xf32>
    %230 = arith.subf %211, %229 : vector<1x256xf32>
    %231 = math.exp %230 : vector<1x256xf32>
    %232 = arith.subf %216, %229 : vector<1x256xf32>
    %233 = math.exp %232 : vector<1x256xf32>
    %234 = arith.subf %221, %229 : vector<1x256xf32>
    %235 = math.exp %234 : vector<1x256xf32>
    %236 = arith.subf %226, %229 : vector<1x256xf32>
    %237 = math.exp %236 : vector<1x256xf32>
    %238 = arith.addf %231, %233 : vector<1x256xf32>
    %239 = arith.addf %238, %235 : vector<1x256xf32>
    %240 = arith.addf %239, %237 : vector<1x256xf32>
    %cst_76 = arith.constant 1.000000e+00 : f32
    %241 = vector.broadcast %cst_76 : f32 to vector<1x256xf32>
    %242 = arith.divf %241, %240 : vector<1x256xf32>
    %243 = arith.mulf %231, %242 : vector<1x256xf32>
    %244 = vector.broadcast %243 : vector<1x256xf32> to vector<64x256xf32>
    %245 = arith.mulf %244, %45 : vector<64x256xf32>
    %246 = arith.mulf %233, %242 : vector<1x256xf32>
    %247 = vector.broadcast %246 : vector<1x256xf32> to vector<64x256xf32>
    %248 = arith.mulf %247, %48 : vector<64x256xf32>
    %249 = arith.addf %245, %248 : vector<64x256xf32>
    %250 = arith.mulf %235, %242 : vector<1x256xf32>
    %251 = vector.broadcast %250 : vector<1x256xf32> to vector<64x256xf32>
    %252 = arith.mulf %251, %51 : vector<64x256xf32>
    %253 = arith.addf %249, %252 : vector<64x256xf32>
    %254 = arith.mulf %237, %242 : vector<1x256xf32>
    %255 = vector.broadcast %254 : vector<1x256xf32> to vector<64x256xf32>
    %256 = arith.mulf %255, %54 : vector<64x256xf32>
    %257 = arith.addf %253, %256 : vector<64x256xf32>
    %cst_77 = arith.constant dense<0.000000e+00> : vector<64x256xf32>
    %258 = tpu.matmul %17, %257, %cst_77 {dimension_numbers = #tpu.dot_dimension_numbers<[1], [0], [0], [1], [0, 0, 1, 1], [], []>} : vector<64x64xf32>, vector<64x256xf32>, vector<64x256xf32> -> vector<64x256xf32>
    %259 = vector.broadcast %18 : vector<64x1xf32> to vector<64x256xf32>
    %260 = arith.addf %258, %259 : vector<64x256xf32>
    %261 = arith.addf %9, %260 : vector<64x256xf32>
    %cst_78 = arith.constant dense<0.000000e+00> : vector<256xf32>
    %262 = vector.multi_reduction <add>, %261, %cst_78 [0] : vector<64x256xf32> to vector<256xf32>
    %263 = vector.shape_cast %262 : vector<256xf32> to vector<1x256xf32>
    %cst_79 = arith.constant 6.400000e+01 : f32
    %264 = vector.broadcast %cst_79 : f32 to vector<1x256xf32>
    %265 = arith.divf %263, %264 : vector<1x256xf32>
    %266 = vector.broadcast %265 : vector<1x256xf32> to vector<64x256xf32>
    %267 = arith.subf %261, %266 : vector<64x256xf32>
    %268 = arith.mulf %267, %267 : vector<64x256xf32>
    %cst_80 = arith.constant dense<0.000000e+00> : vector<256xf32>
    %269 = vector.multi_reduction <add>, %268, %cst_80 [0] : vector<64x256xf32> to vector<256xf32>
    %270 = vector.shape_cast %269 : vector<256xf32> to vector<1x256xf32>
    %cst_81 = arith.constant 6.400000e+01 : f32
    %271 = vector.broadcast %cst_81 : f32 to vector<1x256xf32>
    %272 = arith.divf %270, %271 : vector<1x256xf32>
    %cst_82 = arith.constant 9.99999974E-6 : f32
    %273 = vector.broadcast %cst_82 : f32 to vector<1x256xf32>
    %274 = arith.addf %272, %273 : vector<1x256xf32>
    %275 = math.rsqrt %274 : vector<1x256xf32>
    %276 = vector.broadcast %275 : vector<1x256xf32> to vector<64x256xf32>
    %277 = arith.mulf %267, %276 : vector<64x256xf32>
    %278 = vector.broadcast %55 : vector<64x1xf32> to vector<64x256xf32>
    %279 = arith.mulf %277, %278 : vector<64x256xf32>
    %280 = vector.broadcast %56 : vector<64x1xf32> to vector<64x256xf32>
    %281 = arith.addf %279, %280 : vector<64x256xf32>
    %282 = arith.mulf %30, %33 : vector<64x256xf32>
    %cst_83 = arith.constant dense<0.000000e+00> : vector<256xf32>
    %283 = vector.multi_reduction <add>, %282, %cst_83 [0] : vector<64x256xf32> to vector<256xf32>
    %284 = vector.shape_cast %283 : vector<256xf32> to vector<1x256xf32>
    %cst_84 = arith.constant 1.250000e-01 : f32
    %285 = vector.broadcast %cst_84 : f32 to vector<1x256xf32>
    %286 = arith.mulf %284, %285 : vector<1x256xf32>
    %287 = arith.mulf %30, %36 : vector<64x256xf32>
    %cst_85 = arith.constant dense<0.000000e+00> : vector<256xf32>
    %288 = vector.multi_reduction <add>, %287, %cst_85 [0] : vector<64x256xf32> to vector<256xf32>
    %289 = vector.shape_cast %288 : vector<256xf32> to vector<1x256xf32>
    %cst_86 = arith.constant 1.250000e-01 : f32
    %290 = vector.broadcast %cst_86 : f32 to vector<1x256xf32>
    %291 = arith.mulf %289, %290 : vector<1x256xf32>
    %292 = arith.mulf %30, %39 : vector<64x256xf32>
    %cst_87 = arith.constant dense<0.000000e+00> : vector<256xf32>
    %293 = vector.multi_reduction <add>, %292, %cst_87 [0] : vector<64x256xf32> to vector<256xf32>
    %294 = vector.shape_cast %293 : vector<256xf32> to vector<1x256xf32>
    %cst_88 = arith.constant 1.250000e-01 : f32
    %295 = vector.broadcast %cst_88 : f32 to vector<1x256xf32>
    %296 = arith.mulf %294, %295 : vector<1x256xf32>
    %297 = arith.mulf %30, %42 : vector<64x256xf32>
    %cst_89 = arith.constant dense<0.000000e+00> : vector<256xf32>
    %298 = vector.multi_reduction <add>, %297, %cst_89 [0] : vector<64x256xf32> to vector<256xf32>
    %299 = vector.shape_cast %298 : vector<256xf32> to vector<1x256xf32>
    %cst_90 = arith.constant 1.250000e-01 : f32
    %300 = vector.broadcast %cst_90 : f32 to vector<1x256xf32>
    %301 = arith.mulf %299, %300 : vector<1x256xf32>
    %302 = arith.maximumf %286, %291 : vector<1x256xf32>
    %303 = arith.maximumf %296, %301 : vector<1x256xf32>
    %304 = arith.maximumf %302, %303 : vector<1x256xf32>
    %305 = arith.subf %286, %304 : vector<1x256xf32>
    %306 = math.exp %305 : vector<1x256xf32>
    %307 = arith.subf %291, %304 : vector<1x256xf32>
    %308 = math.exp %307 : vector<1x256xf32>
    %309 = arith.subf %296, %304 : vector<1x256xf32>
    %310 = math.exp %309 : vector<1x256xf32>
    %311 = arith.subf %301, %304 : vector<1x256xf32>
    %312 = math.exp %311 : vector<1x256xf32>
    %313 = arith.addf %306, %308 : vector<1x256xf32>
    %314 = arith.addf %313, %310 : vector<1x256xf32>
    %315 = arith.addf %314, %312 : vector<1x256xf32>
    %cst_91 = arith.constant 1.000000e+00 : f32
    %316 = vector.broadcast %cst_91 : f32 to vector<1x256xf32>
    %317 = arith.divf %316, %315 : vector<1x256xf32>
    %318 = arith.mulf %306, %317 : vector<1x256xf32>
    %319 = vector.broadcast %318 : vector<1x256xf32> to vector<64x256xf32>
    %320 = arith.mulf %319, %45 : vector<64x256xf32>
    %321 = arith.mulf %308, %317 : vector<1x256xf32>
    %322 = vector.broadcast %321 : vector<1x256xf32> to vector<64x256xf32>
    %323 = arith.mulf %322, %48 : vector<64x256xf32>
    %324 = arith.addf %320, %323 : vector<64x256xf32>
    %325 = arith.mulf %310, %317 : vector<1x256xf32>
    %326 = vector.broadcast %325 : vector<1x256xf32> to vector<64x256xf32>
    %327 = arith.mulf %326, %51 : vector<64x256xf32>
    %328 = arith.addf %324, %327 : vector<64x256xf32>
    %329 = arith.mulf %312, %317 : vector<1x256xf32>
    %330 = vector.broadcast %329 : vector<1x256xf32> to vector<64x256xf32>
    %331 = arith.mulf %330, %54 : vector<64x256xf32>
    %332 = arith.addf %328, %331 : vector<64x256xf32>
    %cst_92 = arith.constant dense<0.000000e+00> : vector<64x256xf32>
    %333 = tpu.matmul %17, %332, %cst_92 {dimension_numbers = #tpu.dot_dimension_numbers<[1], [0], [0], [1], [0, 0, 1, 1], [], []>} : vector<64x64xf32>, vector<64x256xf32>, vector<64x256xf32> -> vector<64x256xf32>
    %334 = vector.broadcast %18 : vector<64x1xf32> to vector<64x256xf32>
    %335 = arith.addf %333, %334 : vector<64x256xf32>
    %336 = arith.addf %10, %335 : vector<64x256xf32>
    %cst_93 = arith.constant dense<0.000000e+00> : vector<256xf32>
    %337 = vector.multi_reduction <add>, %336, %cst_93 [0] : vector<64x256xf32> to vector<256xf32>
    %338 = vector.shape_cast %337 : vector<256xf32> to vector<1x256xf32>
    %cst_94 = arith.constant 6.400000e+01 : f32
    %339 = vector.broadcast %cst_94 : f32 to vector<1x256xf32>
    %340 = arith.divf %338, %339 : vector<1x256xf32>
    %341 = vector.broadcast %340 : vector<1x256xf32> to vector<64x256xf32>
    %342 = arith.subf %336, %341 : vector<64x256xf32>
    %343 = arith.mulf %342, %342 : vector<64x256xf32>
    %cst_95 = arith.constant dense<0.000000e+00> : vector<256xf32>
    %344 = vector.multi_reduction <add>, %343, %cst_95 [0] : vector<64x256xf32> to vector<256xf32>
    %345 = vector.shape_cast %344 : vector<256xf32> to vector<1x256xf32>
    %cst_96 = arith.constant 6.400000e+01 : f32
    %346 = vector.broadcast %cst_96 : f32 to vector<1x256xf32>
    %347 = arith.divf %345, %346 : vector<1x256xf32>
    %cst_97 = arith.constant 9.99999974E-6 : f32
    %348 = vector.broadcast %cst_97 : f32 to vector<1x256xf32>
    %349 = arith.addf %347, %348 : vector<1x256xf32>
    %350 = math.rsqrt %349 : vector<1x256xf32>
    %351 = vector.broadcast %350 : vector<1x256xf32> to vector<64x256xf32>
    %352 = arith.mulf %342, %351 : vector<64x256xf32>
    %353 = vector.broadcast %55 : vector<64x1xf32> to vector<64x256xf32>
    %354 = arith.mulf %352, %353 : vector<64x256xf32>
    %355 = vector.broadcast %56 : vector<64x1xf32> to vector<64x256xf32>
    %356 = arith.addf %354, %355 : vector<64x256xf32>
    %c0_98 = arith.constant 0 : index
    %c0_99 = arith.constant 0 : index
    %357 = vector.load %arg15[%c0_98, %c0_99] : memref<13x64xf32, #tpu.memory_space<vmem>>, vector<13x64xf32>
    %cst_100 = arith.constant dense<0.000000e+00> : vector<13x256xf32>
    %358 = tpu.matmul %357, %131, %cst_100 {dimension_numbers = #tpu.dot_dimension_numbers<[1], [0], [0], [1], [0, 0, 1, 1], [], []>} : vector<13x64xf32>, vector<64x256xf32>, vector<13x256xf32> -> vector<13x256xf32>
    %c0_101 = arith.constant 0 : index
    %c0_102 = arith.constant 0 : index
    %359 = vector.load %arg16[%c0_101, %c0_102] : memref<13x1xf32, #tpu.memory_space<vmem>>, vector<13x1xf32>
    %360 = vector.broadcast %359 : vector<13x1xf32> to vector<13x256xf32>
    %361 = arith.addf %358, %360 : vector<13x256xf32>
    %c0_103 = arith.constant 0 : index
    %c0_104 = arith.constant 0 : index
    %c0_105 = arith.constant 0 : index
    %362 = vector.load %arg23[%c0_103, %c0_104, %c0_105] : memref<1x13x256xf32, #tpu.memory_space<vmem>>, vector<1x13x256xf32>
    %363 = vector.shape_cast %362 : vector<1x13x256xf32> to vector<13x256xf32>
    %364 = vector.shape_cast %361 : vector<13x256xf32> to vector<1x13x256xf32>
    tpu.vector_store %arg23[%c0_103, %c0_104, %c0_105], %364 {strides = array<i32>} : memref<1x13x256xf32, #tpu.memory_space<vmem>>, vector<1x13x256xf32>,
    %c0_106 = arith.constant 0 : index
    %c0_107 = arith.constant 0 : index
    %365 = vector.load %arg17[%c0_106, %c0_107] : memref<5x64xf32, #tpu.memory_space<vmem>>, vector<5x64xf32>
    %cst_108 = arith.constant dense<0.000000e+00> : vector<5x256xf32>
    %366 = tpu.matmul %365, %206, %cst_108 {dimension_numbers = #tpu.dot_dimension_numbers<[1], [0], [0], [1], [0, 0, 1, 1], [], []>} : vector<5x64xf32>, vector<64x256xf32>, vector<5x256xf32> -> vector<5x256xf32>
    %c0_109 = arith.constant 0 : index
    %c0_110 = arith.constant 0 : index
    %367 = vector.load %arg18[%c0_109, %c0_110] : memref<5x1xf32, #tpu.memory_space<vmem>>, vector<5x1xf32>
    %368 = vector.broadcast %367 : vector<5x1xf32> to vector<5x256xf32>
    %369 = arith.addf %366, %368 : vector<5x256xf32>
    %c0_111 = arith.constant 0 : index
    %c0_112 = arith.constant 0 : index
    %c0_113 = arith.constant 0 : index
    %370 = vector.load %arg24[%c0_111, %c0_112, %c0_113] : memref<1x5x256xf32, #tpu.memory_space<vmem>>, vector<1x5x256xf32>
    %371 = vector.shape_cast %370 : vector<1x5x256xf32> to vector<5x256xf32>
    %372 = vector.shape_cast %369 : vector<5x256xf32> to vector<1x5x256xf32>
    tpu.vector_store %arg24[%c0_111, %c0_112, %c0_113], %372 {strides = array<i32>} : memref<1x5x256xf32, #tpu.memory_space<vmem>>, vector<1x5x256xf32>,
    %c0_114 = arith.constant 0 : index
    %c0_115 = arith.constant 0 : index
    %373 = vector.load %arg19[%c0_114, %c0_115] : memref<64x1xf32, #tpu.memory_space<vmem>>, vector<64x1xf32>
    %374 = vector.broadcast %373 : vector<64x1xf32> to vector<64x256xf32>
    %375 = arith.mulf %374, %281 : vector<64x256xf32>
    %cst_116 = arith.constant dense<0.000000e+00> : vector<256xf32>
    %376 = vector.multi_reduction <add>, %375, %cst_116 [0] : vector<64x256xf32> to vector<256xf32>
    %377 = vector.shape_cast %376 : vector<256xf32> to vector<1x256xf32>
    %c0_117 = arith.constant 0 : index
    %c0_118 = arith.constant 0 : index
    %378 = vector.load %arg20[%c0_117, %c0_118] : memref<1x1xf32, #tpu.memory_space<vmem>>, vector<1x1xf32>
    %379 = vector.broadcast %378 : vector<1x1xf32> to vector<1x256xf32>
    %380 = arith.addf %377, %379 : vector<1x256xf32>
    %c0_119 = arith.constant 0 : index
    %c0_120 = arith.constant 0 : index
    %c0_121 = arith.constant 0 : index
    %381 = vector.load %arg25[%c0_119, %c0_120, %c0_121] : memref<1x1x256xf32, #tpu.memory_space<vmem>>, vector<1x1x256xf32>
    %382 = vector.shape_cast %381 : vector<1x1x256xf32> to vector<1x256xf32>
    %383 = vector.shape_cast %380 : vector<1x256xf32> to vector<1x1x256xf32>
    tpu.vector_store %arg25[%c0_119, %c0_120, %c0_121], %383 {strides = array<i32>} : memref<1x1x256xf32, #tpu.memory_space<vmem>>, vector<1x1x256xf32>,
    %c0_122 = arith.constant 0 : index
    %c0_123 = arith.constant 0 : index
    %384 = vector.load %arg21[%c0_122, %c0_123] : memref<6x64xf32, #tpu.memory_space<vmem>>, vector<6x64xf32>
    %cst_124 = arith.constant dense<0.000000e+00> : vector<6x256xf32>
    %385 = tpu.matmul %384, %356, %cst_124 {dimension_numbers = #tpu.dot_dimension_numbers<[1], [0], [0], [1], [0, 0, 1, 1], [], []>} : vector<6x64xf32>, vector<64x256xf32>, vector<6x256xf32> -> vector<6x256xf32>
    %c0_125 = arith.constant 0 : index
    %c0_126 = arith.constant 0 : index
    %386 = vector.load %arg22[%c0_125, %c0_126] : memref<6x1xf32, #tpu.memory_space<vmem>>, vector<6x1xf32>
    %387 = vector.broadcast %386 : vector<6x1xf32> to vector<6x256xf32>
    %388 = arith.addf %385, %387 : vector<6x256xf32>
    %c0_127 = arith.constant 0 : index
    %c0_128 = arith.constant 0 : index
    %c0_129 = arith.constant 0 : index
    %389 = vector.load %arg26[%c0_127, %c0_128, %c0_129] : memref<1x6x256xf32, #tpu.memory_space<vmem>>, vector<1x6x256xf32>
    %390 = vector.shape_cast %389 : vector<1x6x256xf32> to vector<6x256xf32>
    %391 = vector.shape_cast %388 : vector<6x256xf32> to vector<1x6x256xf32>
    tpu.vector_store %arg26[%c0_127, %c0_128, %c0_129], %391 {strides = array<i32>} : memref<1x6x256xf32, #tpu.memory_space<vmem>>, vector<1x6x256xf32>,
    return
  }
  func.func @transform_0(%arg0: i32, %arg1: i32) -> (i32, i32, i32) {
    %c0_i32 = arith.constant 0 : i32
    %c0_i32_0 = arith.constant 0 : i32
    return %arg0, %c0_i32, %arg1 : i32, i32, i32
  }
  func.func @transform_1(%arg0: i32, %arg1: i32) -> (i32, i32) {
    %c0_i32 = arith.constant 0 : i32
    %c0_i32_0 = arith.constant 0 : i32
    %c0_i32_1 = arith.constant 0 : i32
    return %c0_i32, %c0_i32_0 : i32, i32
  }
  func.func @transform_2(%arg0: i32, %arg1: i32) -> (i32, i32) {
    %c0_i32 = arith.constant 0 : i32
    %c0_i32_0 = arith.constant 0 : i32
    %c0_i32_1 = arith.constant 0 : i32
    return %c0_i32, %c0_i32_0 : i32, i32
  }
  func.func @transform_3(%arg0: i32, %arg1: i32) -> (i32, i32) {
    %c0_i32 = arith.constant 0 : i32
    %c0_i32_0 = arith.constant 0 : i32
    %c0_i32_1 = arith.constant 0 : i32
    return %c0_i32, %c0_i32_0 : i32, i32
  }
  func.func @transform_4(%arg0: i32, %arg1: i32) -> (i32, i32) {
    %c0_i32 = arith.constant 0 : i32
    %c0_i32_0 = arith.constant 0 : i32
    %c0_i32_1 = arith.constant 0 : i32
    return %c0_i32, %c0_i32_0 : i32, i32
  }
  func.func @transform_5(%arg0: i32, %arg1: i32) -> (i32, i32) {
    %c0_i32 = arith.constant 0 : i32
    %c0_i32_0 = arith.constant 0 : i32
    %c0_i32_1 = arith.constant 0 : i32
    return %c0_i32, %c0_i32_0 : i32, i32
  }
  func.func @transform_6(%arg0: i32, %arg1: i32) -> (i32, i32) {
    %c0_i32 = arith.constant 0 : i32
    %c0_i32_0 = arith.constant 0 : i32
    %c0_i32_1 = arith.constant 0 : i32
    return %c0_i32, %c0_i32_0 : i32, i32
  }
  func.func @transform_7(%arg0: i32, %arg1: i32) -> (i32, i32) {
    %c0_i32 = arith.constant 0 : i32
    %c0_i32_0 = arith.constant 0 : i32
    %c0_i32_1 = arith.constant 0 : i32
    return %c0_i32, %c0_i32_0 : i32, i32
  }
  func.func @transform_8(%arg0: i32, %arg1: i32) -> (i32, i32) {
    %c0_i32 = arith.constant 0 : i32
    %c0_i32_0 = arith.constant 0 : i32
    %c0_i32_1 = arith.constant 0 : i32
    return %c0_i32, %c0_i32_0 : i32, i32
  }
  func.func @transform_9(%arg0: i32, %arg1: i32) -> (i32, i32) {
    %c0_i32 = arith.constant 0 : i32
    %c0_i32_0 = arith.constant 0 : i32
    %c0_i32_1 = arith.constant 0 : i32
    return %c0_i32, %c0_i32_0 : i32, i32
  }
  func.func @transform_10(%arg0: i32, %arg1: i32) -> (i32, i32) {
    %c0_i32 = arith.constant 0 : i32
    %c0_i32_0 = arith.constant 0 : i32
    %c0_i32_1 = arith.constant 0 : i32
    return %c0_i32, %c0_i32_0 : i32, i32
  }
  func.func @transform_11(%arg0: i32, %arg1: i32) -> (i32, i32) {
    %c0_i32 = arith.constant 0 : i32
    %c0_i32_0 = arith.constant 0 : i32
    %c0_i32_1 = arith.constant 0 : i32
    return %c0_i32, %c0_i32_0 : i32, i32
  }
  func.func @transform_12(%arg0: i32, %arg1: i32) -> (i32, i32) {
    %c0_i32 = arith.constant 0 : i32
    %c0_i32_0 = arith.constant 0 : i32
    %c0_i32_1 = arith.constant 0 : i32
    return %c0_i32, %c0_i32_0 : i32, i32
  }
  func.func @transform_13(%arg0: i32, %arg1: i32) -> (i32, i32) {
    %c0_i32 = arith.constant 0 : i32
    %c0_i32_0 = arith.constant 0 : i32
    %c0_i32_1 = arith.constant 0 : i32
    return %c0_i32, %c0_i32_0 : i32, i32
  }
  func.func @transform_14(%arg0: i32, %arg1: i32) -> (i32, i32) {
    %c0_i32 = arith.constant 0 : i32
    %c0_i32_0 = arith.constant 0 : i32
    %c0_i32_1 = arith.constant 0 : i32
    return %c0_i32, %c0_i32_0 : i32, i32
  }
  func.func @transform_15(%arg0: i32, %arg1: i32) -> (i32, i32) {
    %c0_i32 = arith.constant 0 : i32
    %c0_i32_0 = arith.constant 0 : i32
    %c0_i32_1 = arith.constant 0 : i32
    return %c0_i32, %c0_i32_0 : i32, i32
  }
  func.func @transform_16(%arg0: i32, %arg1: i32) -> (i32, i32) {
    %c0_i32 = arith.constant 0 : i32
    %c0_i32_0 = arith.constant 0 : i32
    %c0_i32_1 = arith.constant 0 : i32
    return %c0_i32, %c0_i32_0 : i32, i32
  }
  func.func @transform_17(%arg0: i32, %arg1: i32) -> (i32, i32) {
    %c0_i32 = arith.constant 0 : i32
    %c0_i32_0 = arith.constant 0 : i32
    %c0_i32_1 = arith.constant 0 : i32
    return %c0_i32, %c0_i32_0 : i32, i32
  }
  func.func @transform_18(%arg0: i32, %arg1: i32) -> (i32, i32) {
    %c0_i32 = arith.constant 0 : i32
    %c0_i32_0 = arith.constant 0 : i32
    %c0_i32_1 = arith.constant 0 : i32
    return %c0_i32, %c0_i32_0 : i32, i32
  }
  func.func @transform_19(%arg0: i32, %arg1: i32) -> (i32, i32) {
    %c0_i32 = arith.constant 0 : i32
    %c0_i32_0 = arith.constant 0 : i32
    %c0_i32_1 = arith.constant 0 : i32
    return %c0_i32, %c0_i32_0 : i32, i32
  }
  func.func @transform_20(%arg0: i32, %arg1: i32) -> (i32, i32) {
    %c0_i32 = arith.constant 0 : i32
    %c0_i32_0 = arith.constant 0 : i32
    %c0_i32_1 = arith.constant 0 : i32
    return %c0_i32, %c0_i32_0 : i32, i32
  }
  func.func @transform_21(%arg0: i32, %arg1: i32) -> (i32, i32, i32) {
    %c0_i32 = arith.constant 0 : i32
    %c0_i32_0 = arith.constant 0 : i32
    return %arg0, %c0_i32, %arg1 : i32, i32, i32
  }
  func.func @transform_22(%arg0: i32, %arg1: i32) -> (i32, i32, i32) {
    %c0_i32 = arith.constant 0 : i32
    %c0_i32_0 = arith.constant 0 : i32
    return %arg0, %c0_i32, %arg1 : i32, i32, i32
  }
  func.func @transform_23(%arg0: i32, %arg1: i32) -> (i32, i32, i32) {
    %c0_i32 = arith.constant 0 : i32
    %c0_i32_0 = arith.constant 0 : i32
    return %arg0, %c0_i32, %arg1 : i32, i32, i32
  }
  func.func @transform_24(%arg0: i32, %arg1: i32) -> (i32, i32, i32) {
    %c0_i32 = arith.constant 0 : i32
    %c0_i32_0 = arith.constant 0 : i32
    return %arg0, %c0_i32, %arg1 : i32, i32, i32
  }
}

</mosaic_0001>

<llo_original>
// kernel: tpu_custom_call.1
$region0: #{tpu_custom_call.1}
  #allocation0 [shape = 'u32[]', space=smem, size = 0x4, offset = 0x4, fixed_abs, tag = 'smem constant byte address 0x4 - core index']
  #allocation1 [shape = 'u32[144,128]{1,0:T(1,128)}', space=vmem, size = 0x12000, scoped, tag = 'internal scratch']
  #allocation2 [shape = 'f32[1,1]{1,0:T(1,128)S(1)}', space=vmem, size = 0x200, scoped, tag = 'scoped memory for tpu_custom_call.1']
  %s0 = inlined_call_operand.hbm [shape: f32[2,256,256], index: 0, kind: input, shape index: {}]
  %s1 = inlined_call_operand.vmem [shape: f32[256,256], index: 1, kind: input, shape index: {}]
  %s2 = inlined_call_operand.vmem [shape: f32[256,1], index: 2, kind: input, shape index: {}]
  %s3 = inlined_call_operand.vmem [shape: f32[64,64], index: 3, kind: input, shape index: {}]
  %s4 = inlined_call_operand.vmem [shape: f32[64,1], index: 4, kind: input, shape index: {}]
  %s5 = inlined_call_operand.vmem [shape: f32[64,64], index: 5, kind: input, shape index: {}]
  %s6 = inlined_call_operand.vmem [shape: f32[64,1], index: 6, kind: input, shape index: {}]
  %s7 = inlined_call_operand.vmem [shape: f32[64,64], index: 7, kind: input, shape index: {}]
  %s8 = inlined_call_operand.vmem [shape: f32[64,1], index: 8, kind: input, shape index: {}]
  %s9 = inlined_call_operand.vmem [shape: f32[64,64], index: 9, kind: input, shape index: {}]
  %s10 = inlined_call_operand.vmem [shape: f32[64,1], index: 10, kind: input, shape index: {}]
  %s11 = inlined_call_operand.vmem [shape: f32[64,1], index: 11, kind: input, shape index: {}]
  %s12 = inlined_call_operand.vmem [shape: f32[64,1], index: 12, kind: input, shape index: {}]
  %s13 = inlined_call_operand.vmem [shape: f32[13,64], index: 13, kind: input, shape index: {}]
  %s14 = inlined_call_operand.vmem [shape: f32[13,1], index: 14, kind: input, shape index: {}]
  %s15 = inlined_call_operand.vmem [shape: f32[5,64], index: 15, kind: input, shape index: {}]
  %s16 = inlined_call_operand.vmem [shape: f32[5,1], index: 16, kind: input, shape index: {}]
  %s17 = inlined_call_operand.vmem [shape: f32[64,1], index: 17, kind: input, shape index: {}]
  %s18 = inlined_call_operand.<no memory space> [shape: f32[1,1], index: 18, kind: input, shape index: {}]
  %s19 = inlined_call_operand.vmem [shape: f32[6,64], index: 19, kind: input, shape index: {}]
  %s20 = inlined_call_operand.vmem [shape: f32[6,1], index: 20, kind: input, shape index: {}]
  %s21 = inlined_call_operand.vmem [shape: f32[2,13,256], index: 21, kind: output, shape index: {0}]
  %s22 = inlined_call_operand.vmem [shape: f32[2,5,256], index: 22, kind: output, shape index: {1}]
  %s23 = inlined_call_operand.hbm [shape: f32[2,1,256], index: 23, kind: output, shape index: {2}]
  %s24 = inlined_call_operand.vmem [shape: f32[2,6,256], index: 24, kind: output, shape index: {3}]
  %25 = xla_tuple %s21, %s22, %s23, %s24
  %s26 = sld [smem:[#allocation0]]
  $region145: #{tpu_custom_call.1} parent=0
    _
  %s28 = ssub.s32 1, %s26
  %s29 = scalar_select 0, %s28, %s26
  %v30 = vstv %s18
  %31 = vst [vmem:[#allocation2] sm:$0x1] %v30
  $region1: #{tpu_custom_call.1} parent=0
    #allocation3 [shape = 'u8[524288]{0}', space=vmem, size = 0x80000, scoped, tag = 'input window, operand 0']
    #allocation4 [shape = 's32[2]{0}', space=sflag, size = 0x8, scoped, tag = 'scoped memory for tpu_custom_call.1']
    #allocation5 [shape = 's32[2]{0}', space=sflag, size = 0x8, scoped, tag = 'scoped memory for tpu_custom_call.1']
    #allocation6 [shape = 'u8[2048]{0}', space=vmem, size = 0x800, scoped, tag = 'output window, operand 2']
    %32 = vsyncpa [#allocation4], 0
    %s33 = scalar_lea.sflag [#allocation4], 1
    %34 = vsyncpa %s33, 0
    %35 = vsyncpa [#allocation5], 0
    %s36 = scalar_lea.sflag [#allocation5], 1
    %37 = vsyncpa %s36, 0
    loop: start=0, step=1, limit=4
    $region2: #{tpu_custom_call.1} parent=1 // loop_pre_header
      _
    $region3: #{tpu_custom_call.1} parent=1 // loop_header
      %s39 = sphi 0, %s43
      %p40 = scmp.ge.s32.totalorder %s39, 4
      %s46 = sphi 0, %s58
      %s47 = sphi 0, %s54
      %s48 = sphi 0, %s46
      %s49 = sphi 0, %s47
      %s50 = sphi 0, %s48
      %s51 = sphi 0, %s49
      %s63 = sphi 0, %s65
      %s66 = sphi 0, %s63
      %s67 = sphi 0, %s66
      %s83 = sphi 0, %s67
      %s87 = sphi 0, %s87
      %s89 = sphi 0, %s87
      %s90 = sphi 0, %s89
      %s104 = sphi 0, %s90
      %s108 = sphi 0, %s108
      %s110 = sphi 0, %s108
      %s111 = sphi 0, %s110
      %s125 = sphi 0, %s111
      %s129 = sphi 0, %s129
      %s131 = sphi 0, %s129
      %s132 = sphi 0, %s131
      %s146 = sphi 0, %s132
      %s150 = sphi 0, %s150
      %s152 = sphi 0, %s150
      %s153 = sphi 0, %s152
      %s167 = sphi 0, %s153
      %s171 = sphi 0, %s171
      %s173 = sphi 0, %s171
      %s174 = sphi 0, %s173
      %s188 = sphi 0, %s174
      %s192 = sphi 0, %s192
      %s194 = sphi 0, %s192
      %s195 = sphi 0, %s194
      %s209 = sphi 0, %s195
      %s213 = sphi 0, %s213
      %s215 = sphi 0, %s213
      %s216 = sphi 0, %s215
      %s230 = sphi 0, %s216
      %s234 = sphi 0, %s234
      %s236 = sphi 0, %s234
      %s237 = sphi 0, %s236
      %s251 = sphi 0, %s237
      %s255 = sphi 0, %s255
      %s257 = sphi 0, %s255
      %s258 = sphi 0, %s257
      %s272 = sphi 0, %s258
      %s276 = sphi 0, %s276
      %s278 = sphi 0, %s276
      %s279 = sphi 0, %s278
      %s293 = sphi 0, %s279
      %s297 = sphi 0, %s297
      %s299 = sphi 0, %s297
      %s300 = sphi 0, %s299
      %s314 = sphi 0, %s300
      %s318 = sphi 0, %s318
      %s320 = sphi 0, %s318
      %s321 = sphi 0, %s320
      %s335 = sphi 0, %s321
      %s339 = sphi 0, %s339
      %s341 = sphi 0, %s339
      %s342 = sphi 0, %s341
      %s356 = sphi 0, %s342
      %s360 = sphi 0, %s360
      %s362 = sphi 0, %s360
      %s363 = sphi 0, %s362
      %s377 = sphi 0, %s363
      %s381 = sphi 0, %s381
      %s383 = sphi 0, %s381
      %s384 = sphi 0, %s383
      %s398 = sphi 0, %s384
      %s402 = sphi 0, %s402
      %s404 = sphi 0, %s402
      %s405 = sphi 0, %s404
      %s419 = sphi 0, %s405
      %s423 = sphi 0, %s423
      %s425 = sphi 0, %s423
      %s426 = sphi 0, %s425
      %s440 = sphi 0, %s426
      %s444 = sphi 0, %s444
      %s446 = sphi 0, %s444
      %s447 = sphi 0, %s446
      %s461 = sphi 0, %s447
      %s465 = sphi 0, %s465
      %s467 = sphi 0, %s465
      %s468 = sphi 0, %s467
      %s482 = sphi 0, %s468
      %s486 = sphi 0, %s486
      %s488 = sphi 0, %s486
      %s489 = sphi 0, %s488
      %s503 = sphi 0, %s489
      %s511 = sphi 0, %s513
      %s514 = sphi 0, %s511
      %s515 = sphi 0, %s514
      %s531 = sphi 0, %s515
      %s539 = sphi 0, %s541
      %s542 = sphi 0, %s539
      %s543 = sphi 0, %s542
      %s559 = sphi 0, %s543
      %s567 = sphi 0, %s569
      %s570 = sphi 0, %s567
      %s571 = sphi 0, %s570
      %s587 = sphi 0, %s571
      %s595 = sphi 0, %s597
      %s598 = sphi 0, %s595
      %s599 = sphi 0, %s598
      %s615 = sphi 0, %s599
    $region4: #{tpu_custom_call.1} parent=1 // loop_header_branch
      %42 = sbr.rel (%p40) target = $region8
    $region5: #{tpu_custom_call.1} parent=1 // loop_body
      %s44 = ssub.s32 %s39, 1
      %s45 = ssub.s32 %s39, 2
      %s52 = sadd.s32 1, %s47
      %p53 = scmp.ge.s32.totalorder %s52, 1
      %s54 = scalar_select %p53, 0, %s52
      %s55 = sadd.s32 1, %s46
      %s56 = scalar_select %p53, %s55, %s46
      %p57 = scmp.ge.s32.totalorder %s56, 2
      %s58 = scalar_select %p57, 0, %s56
      %s59 = ssub.s32 %s46, %s58
      %s60 = ssub.s32 %s47, %s54
      %s61 = sor.u32 %s59, %s60
      %p62 = scmp.eq.s32.totalorder %s61, 0
      %s64 = sadd.s32 %s63, 1
      %s65 = scalar_select %p62, %s63, %s64
      %p68 = pneg %p62
      %p69 = scmp.eq.s32.totalorder %s39, 1
      %p70 = por %p68, %p69
      %p71 = scmp.ne.s32.totalorder %s63, %s66
      %p72 = scmp.eq.s32.totalorder %s39, 0
      %p73 = por %p71, %p72
      %p74 = scmp.ne.s32.totalorder %s63, %s66
      %p75 = scmp.eq.s32.totalorder %s44, 1
      %p76 = por %p74, %p75
      %p77 = scmp.ne.s32.totalorder %s66, %s67
      %p78 = scmp.eq.s32.totalorder %s44, 0
      %p79 = por %p77, %p78
      %p80 = scmp.ne.s32.totalorder %s66, %s67
      %p81 = scmp.eq.s32.totalorder %s45, 1
      %p82 = por %p80, %p81
      %p84 = scmp.ne.s32.totalorder %s67, %s83
      %p85 = scmp.eq.s32.totalorder %s45, 0
      %p86 = por %p84, %p85
      %s88 = sadd.s32 %s87, 1
      %p91 = scmp.eq.s32.totalorder %s39, 1
      %p92 = scmp.ne.s32.totalorder %s87, %s89
      %p93 = scmp.eq.s32.totalorder %s39, 0
      %p94 = por %p92, %p93
      %p95 = scmp.ne.s32.totalorder %s87, %s89
      %p96 = scmp.eq.s32.totalorder %s44, 1
      %p97 = por %p95, %p96
      %p98 = scmp.ne.s32.totalorder %s89, %s90
      %p99 = scmp.eq.s32.totalorder %s44, 0
      %p100 = por %p98, %p99
      %p101 = scmp.ne.s32.totalorder %s89, %s90
      %p102 = scmp.eq.s32.totalorder %s45, 1
      %p103 = por %p101, %p102
      %p105 = scmp.ne.s32.totalorder %s90, %s104
      %p106 = scmp.eq.s32.totalorder %s45, 0
      %p107 = por %p105, %p106
      %s109 = sadd.s32 %s108, 1
      %p112 = scmp.eq.s32.totalorder %s39, 1
      %p113 = scmp.ne.s32.totalorder %s108, %s110
      %p114 = scmp.eq.s32.totalorder %s39, 0
      %p115 = por %p113, %p114
      %p116 = scmp.ne.s32.totalorder %s108, %s110
      %p117 = scmp.eq.s32.totalorder %s44, 1
      %p118 = por %p116, %p117
      %p119 = scmp.ne.s32.totalorder %s110, %s111
      %p120 = scmp.eq.s32.totalorder %s44, 0
      %p121 = por %p119, %p120
      %p122 = scmp.ne.s32.totalorder %s110, %s111
      %p123 = scmp.eq.s32.totalorder %s45, 1
      %p124 = por %p122, %p123
      %p126 = scmp.ne.s32.totalorder %s111, %s125
      %p127 = scmp.eq.s32.totalorder %s45, 0
      %p128 = por %p126, %p127
      %s130 = sadd.s32 %s129, 1
      %p133 = scmp.eq.s32.totalorder %s39, 1
      %p134 = scmp.ne.s32.totalorder %s129, %s131
      %p135 = scmp.eq.s32.totalorder %s39, 0
      %p136 = por %p134, %p135
      %p137 = scmp.ne.s32.totalorder %s129, %s131
      %p138 = scmp.eq.s32.totalorder %s44, 1
      %p139 = por %p137, %p138
      %p140 = scmp.ne.s32.totalorder %s131, %s132
      %p141 = scmp.eq.s32.totalorder %s44, 0
      %p142 = por %p140, %p141
      %p143 = scmp.ne.s32.totalorder %s131, %s132
      %p144 = scmp.eq.s32.totalorder %s45, 1
      %p145 = por %p143, %p144
      %p147 = scmp.ne.s32.totalorder %s132, %s146
      %p148 = scmp.eq.s32.totalorder %s45, 0
      %p149 = por %p147, %p148
      %s151 = sadd.s32 %s150, 1
      %p154 = scmp.eq.s32.totalorder %s39, 1
      %p155 = scmp.ne.s32.totalorder %s150, %s152
      %p156 = scmp.eq.s32.totalorder %s39, 0
      %p157 = por %p155, %p156
      %p158 = scmp.ne.s32.totalorder %s150, %s152
      %p159 = scmp.eq.s32.totalorder %s44, 1
      %p160 = por %p158, %p159
      %p161 = scmp.ne.s32.totalorder %s152, %s153
      %p162 = scmp.eq.s32.totalorder %s44, 0
      %p163 = por %p161, %p162
      %p164 = scmp.ne.s32.totalorder %s152, %s153
      %p165 = scmp.eq.s32.totalorder %s45, 1
      %p166 = por %p164, %p165
      %p168 = scmp.ne.s32.totalorder %s153, %s167
      %p169 = scmp.eq.s32.totalorder %s45, 0
      %p170 = por %p168, %p169
      %s172 = sadd.s32 %s171, 1
      %p175 = scmp.eq.s32.totalorder %s39, 1
      %p176 = scmp.ne.s32.totalorder %s171, %s173
      %p177 = scmp.eq.s32.totalorder %s39, 0
      %p178 = por %p176, %p177
      %p179 = scmp.ne.s32.totalorder %s171, %s173
      %p180 = scmp.eq.s32.totalorder %s44, 1
      %p181 = por %p179, %p180
      %p182 = scmp.ne.s32.totalorder %s173, %s174
      %p183 = scmp.eq.s32.totalorder %s44, 0
      %p184 = por %p182, %p183
      %p185 = scmp.ne.s32.totalorder %s173, %s174
      %p186 = scmp.eq.s32.totalorder %s45, 1
      %p187 = por %p185, %p186
      %p189 = scmp.ne.s32.totalorder %s174, %s188
      %p190 = scmp.eq.s32.totalorder %s45, 0
      %p191 = por %p189, %p190
      %s193 = sadd.s32 %s192, 1
      %p196 = scmp.eq.s32.totalorder %s39, 1
      %p197 = scmp.ne.s32.totalorder %s192, %s194
      %p198 = scmp.eq.s32.totalorder %s39, 0
      %p199 = por %p197, %p198
      %p200 = scmp.ne.s32.totalorder %s192, %s194
      %p201 = scmp.eq.s32.totalorder %s44, 1
      %p202 = por %p200, %p201
      %p203 = scmp.ne.s32.totalorder %s194, %s195
      %p204 = scmp.eq.s32.totalorder %s44, 0
      %p205 = por %p203, %p204
      %p206 = scmp.ne.s32.totalorder %s194, %s195
      %p207 = scmp.eq.s32.totalorder %s45, 1
      %p208 = por %p206, %p207
      %p210 = scmp.ne.s32.totalorder %s195, %s209
      %p211 = scmp.eq.s32.totalorder %s45, 0
      %p212 = por %p210, %p211
      %s214 = sadd.s32 %s213, 1
      %p217 = scmp.eq.s32.totalorder %s39, 1
      %p218 = scmp.ne.s32.totalorder %s213, %s215
      %p219 = scmp.eq.s32.totalorder %s39, 0
      %p220 = por %p218, %p219
      %p221 = scmp.ne.s32.totalorder %s213, %s215
      %p222 = scmp.eq.s32.totalorder %s44, 1
      %p223 = por %p221, %p222
      %p224 = scmp.ne.s32.totalorder %s215, %s216
      %p225 = scmp.eq.s32.totalorder %s44, 0
      %p226 = por %p224, %p225
      %p227 = scmp.ne.s32.totalorder %s215, %s216
      %p228 = scmp.eq.s32.totalorder %s45, 1
      %p229 = por %p227, %p228
      %p231 = scmp.ne.s32.totalorder %s216, %s230
      %p232 = scmp.eq.s32.totalorder %s45, 0
      %p233 = por %p231, %p232
      %s235 = sadd.s32 %s234, 1
      %p238 = scmp.eq.s32.totalorder %s39, 1
      %p239 = scmp.ne.s32.totalorder %s234, %s236
      %p240 = scmp.eq.s32.totalorder %s39, 0
      %p241 = por %p239, %p240
      %p242 = scmp.ne.s32.totalorder %s234, %s236
      %p243 = scmp.eq.s32.totalorder %s44, 1
      %p244 = por %p242, %p243
      %p245 = scmp.ne.s32.totalorder %s236, %s237
      %p246 = scmp.eq.s32.totalorder %s44, 0
      %p247 = por %p245, %p246
      %p248 = scmp.ne.s32.totalorder %s236, %s237
      %p249 = scmp.eq.s32.totalorder %s45, 1
      %p250 = por %p248, %p249
      %p252 = scmp.ne.s32.totalorder %s237, %s251
      %p253 = scmp.eq.s32.totalorder %s45, 0
      %p254 = por %p252, %p253
      %s256 = sadd.s32 %s255, 1
      %p259 = scmp.eq.s32.totalorder %s39, 1
      %p260 = scmp.ne.s32.totalorder %s255, %s257
      %p261 = scmp.eq.s32.totalorder %s39, 0
      %p262 = por %p260, %p261
      %p263 = scmp.ne.s32.totalorder %s255, %s257
      %p264 = scmp.eq.s32.totalorder %s44, 1
      %p265 = por %p263, %p264
      %p266 = scmp.ne.s32.totalorder %s257, %s258
      %p267 = scmp.eq.s32.totalorder %s44, 0
      %p268 = por %p266, %p267
      %p269 = scmp.ne.s32.totalorder %s257, %s258
      %p270 = scmp.eq.s32.totalorder %s45, 1
      %p271 = por %p269, %p270
      %p273 = scmp.ne.s32.totalorder %s258, %s272
      %p274 = scmp.eq.s32.totalorder %s45, 0
      %p275 = por %p273, %p274
      %s277 = sadd.s32 %s276, 1
      %p280 = scmp.eq.s32.totalorder %s39, 1
      %p281 = scmp.ne.s32.totalorder %s276, %s278
      %p282 = scmp.eq.s32.totalorder %s39, 0
      %p283 = por %p281, %p282
      %p284 = scmp.ne.s32.totalorder %s276, %s278
      %p285 = scmp.eq.s32.totalorder %s44, 1
      %p286 = por %p284, %p285
      %p287 = scmp.ne.s32.totalorder %s278, %s279
      %p288 = scmp.eq.s32.totalorder %s44, 0
      %p289 = por %p287, %p288
      %p290 = scmp.ne.s32.totalorder %s278, %s279
      %p291 = scmp.eq.s32.totalorder %s45, 1
      %p292 = por %p290, %p291
      %p294 = scmp.ne.s32.totalorder %s279, %s293
      %p295 = scmp.eq.s32.totalorder %s45, 0
      %p296 = por %p294, %p295
      %s298 = sadd.s32 %s297, 1
      %p301 = scmp.eq.s32.totalorder %s39, 1
      %p302 = scmp.ne.s32.totalorder %s297, %s299
      %p303 = scmp.eq.s32.totalorder %s39, 0
      %p304 = por %p302, %p303
      %p305 = scmp.ne.s32.totalorder %s297, %s299
      %p306 = scmp.eq.s32.totalorder %s44, 1
      %p307 = por %p305, %p306
      %p308 = scmp.ne.s32.totalorder %s299, %s300
      %p309 = scmp.eq.s32.totalorder %s44, 0
      %p310 = por %p308, %p309
      %p311 = scmp.ne.s32.totalorder %s299, %s300
      %p312 = scmp.eq.s32.totalorder %s45, 1
      %p313 = por %p311, %p312
      %p315 = scmp.ne.s32.totalorder %s300, %s314
      %p316 = scmp.eq.s32.totalorder %s45, 0
      %p317 = por %p315, %p316
      %s319 = sadd.s32 %s318, 1
      %p322 = scmp.eq.s32.totalorder %s39, 1
      %p323 = scmp.ne.s32.totalorder %s318, %s320
      %p324 = scmp.eq.s32.totalorder %s39, 0
      %p325 = por %p323, %p324
      %p326 = scmp.ne.s32.totalorder %s318, %s320
      %p327 = scmp.eq.s32.totalorder %s44, 1
      %p328 = por %p326, %p327
      %p329 = scmp.ne.s32.totalorder %s320, %s321
      %p330 = scmp.eq.s32.totalorder %s44, 0
      %p331 = por %p329, %p330
      %p332 = scmp.ne.s32.totalorder %s320, %s321
      %p333 = scmp.eq.s32.totalorder %s45, 1
      %p334 = por %p332, %p333
      %p336 = scmp.ne.s32.totalorder %s321, %s335
      %p337 = scmp.eq.s32.totalorder %s45, 0
      %p338 = por %p336, %p337
      %s340 = sadd.s32 %s339, 1
      %p343 = scmp.eq.s32.totalorder %s39, 1
      %p344 = scmp.ne.s32.totalorder %s339, %s341
      %p345 = scmp.eq.s32.totalorder %s39, 0
      %p346 = por %p344, %p345
      %p347 = scmp.ne.s32.totalorder %s339, %s341
      %p348 = scmp.eq.s32.totalorder %s44, 1
      %p349 = por %p347, %p348
      %p350 = scmp.ne.s32.totalorder %s341, %s342
      %p351 = scmp.eq.s32.totalorder %s44, 0
      %p352 = por %p350, %p351
      %p353 = scmp.ne.s32.totalorder %s341, %s342
      %p354 = scmp.eq.s32.totalorder %s45, 1
      %p355 = por %p353, %p354
      %p357 = scmp.ne.s32.totalorder %s342, %s356
      %p358 = scmp.eq.s32.totalorder %s45, 0
      %p359 = por %p357, %p358
      %s361 = sadd.s32 %s360, 1
      %p364 = scmp.eq.s32.totalorder %s39, 1
      %p365 = scmp.ne.s32.totalorder %s360, %s362
      %p366 = scmp.eq.s32.totalorder %s39, 0
      %p367 = por %p365, %p366
      %p368 = scmp.ne.s32.totalorder %s360, %s362
      %p369 = scmp.eq.s32.totalorder %s44, 1
      %p370 = por %p368, %p369
      %p371 = scmp.ne.s32.totalorder %s362, %s363
      %p372 = scmp.eq.s32.totalorder %s44, 0
      %p373 = por %p371, %p372
      %p374 = scmp.ne.s32.totalorder %s362, %s363
      %p375 = scmp.eq.s32.totalorder %s45, 1
      %p376 = por %p374, %p375
      %p378 = scmp.ne.s32.totalorder %s363, %s377
      %p379 = scmp.eq.s32.totalorder %s45, 0
      %p380 = por %p378, %p379
      %s382 = sadd.s32 %s381, 1
      %p385 = scmp.eq.s32.totalorder %s39, 1
      %p386 = scmp.ne.s32.totalorder %s381, %s383
      %p387 = scmp.eq.s32.totalorder %s39, 0
      %p388 = por %p386, %p387
      %p389 = scmp.ne.s32.totalorder %s381, %s383
      %p390 = scmp.eq.s32.totalorder %s44, 1
      %p391 = por %p389, %p390
      %p392 = scmp.ne.s32.totalorder %s383, %s384
      %p393 = scmp.eq.s32.totalorder %s44, 0
      %p394 = por %p392, %p393
      %p395 = scmp.ne.s32.totalorder %s383, %s384
      %p396 = scmp.eq.s32.totalorder %s45, 1
      %p397 = por %p395, %p396
      %p399 = scmp.ne.s32.totalorder %s384, %s398
      %p400 = scmp.eq.s32.totalorder %s45, 0
      %p401 = por %p399, %p400
      %s403 = sadd.s32 %s402, 1
      %p406 = scmp.eq.s32.totalorder %s39, 1
      %p407 = scmp.ne.s32.totalorder %s402, %s404
      %p408 = scmp.eq.s32.totalorder %s39, 0
      %p409 = por %p407, %p408
      %p410 = scmp.ne.s32.totalorder %s402, %s404
      %p411 = scmp.eq.s32.totalorder %s44, 1
      %p412 = por %p410, %p411
      %p413 = scmp.ne.s32.totalorder %s404, %s405
      %p414 = scmp.eq.s32.totalorder %s44, 0
      %p415 = por %p413, %p414
      %p416 = scmp.ne.s32.totalorder %s404, %s405
      %p417 = scmp.eq.s32.totalorder %s45, 1
      %p418 = por %p416, %p417
      %p420 = scmp.ne.s32.totalorder %s405, %s419
      %p421 = scmp.eq.s32.totalorder %s45, 0
      %p422 = por %p420, %p421
      %s424 = sadd.s32 %s423, 1
      %p427 = scmp.eq.s32.totalorder %s39, 1
      %p428 = scmp.ne.s32.totalorder %s423, %s425
      %p429 = scmp.eq.s32.totalorder %s39, 0
      %p430 = por %p428, %p429
      %p431 = scmp.ne.s32.totalorder %s423, %s425
      %p432 = scmp.eq.s32.totalorder %s44, 1
      %p433 = por %p431, %p432
      %p434 = scmp.ne.s32.totalorder %s425, %s426
      %p435 = scmp.eq.s32.totalorder %s44, 0
      %p436 = por %p434, %p435
      %p437 = scmp.ne.s32.totalorder %s425, %s426
      %p438 = scmp.eq.s32.totalorder %s45, 1
      %p439 = por %p437, %p438
      %p441 = scmp.ne.s32.totalorder %s426, %s440
      %p442 = scmp.eq.s32.totalorder %s45, 0
      %p443 = por %p441, %p442
      %s445 = sadd.s32 %s444, 1
      %p448 = scmp.eq.s32.totalorder %s39, 1
      %p449 = scmp.ne.s32.totalorder %s444, %s446
      %p450 = scmp.eq.s32.totalorder %s39, 0
      %p451 = por %p449, %p450
      %p452 = scmp.ne.s32.totalorder %s444, %s446
      %p453 = scmp.eq.s32.totalorder %s44, 1
      %p454 = por %p452, %p453
      %p455 = scmp.ne.s32.totalorder %s446, %s447
      %p456 = scmp.eq.s32.totalorder %s44, 0
      %p457 = por %p455, %p456
      %p458 = scmp.ne.s32.totalorder %s446, %s447
      %p459 = scmp.eq.s32.totalorder %s45, 1
      %p460 = por %p458, %p459
      %p462 = scmp.ne.s32.totalorder %s447, %s461
      %p463 = scmp.eq.s32.totalorder %s45, 0
      %p464 = por %p462, %p463
      %s466 = sadd.s32 %s465, 1
      %p469 = scmp.eq.s32.totalorder %s39, 1
      %p470 = scmp.ne.s32.totalorder %s465, %s467
      %p471 = scmp.eq.s32.totalorder %s39, 0
      %p472 = por %p470, %p471
      %p473 = scmp.ne.s32.totalorder %s465, %s467
      %p474 = scmp.eq.s32.totalorder %s44, 1
      %p475 = por %p473, %p474
      %p476 = scmp.ne.s32.totalorder %s467, %s468
      %p477 = scmp.eq.s32.totalorder %s44, 0
      %p478 = por %p476, %p477
      %p479 = scmp.ne.s32.totalorder %s467, %s468
      %p480 = scmp.eq.s32.totalorder %s45, 1
      %p481 = por %p479, %p480
      %p483 = scmp.ne.s32.totalorder %s468, %s482
      %p484 = scmp.eq.s32.totalorder %s45, 0
      %p485 = por %p483, %p484
      %s487 = sadd.s32 %s486, 1
      %p490 = scmp.eq.s32.totalorder %s39, 1
      %p491 = scmp.ne.s32.totalorder %s486, %s488
      %p492 = scmp.eq.s32.totalorder %s39, 0
      %p493 = por %p491, %p492
      %p494 = scmp.ne.s32.totalorder %s486, %s488
      %p495 = scmp.eq.s32.totalorder %s44, 1
      %p496 = por %p494, %p495
      %p497 = scmp.ne.s32.totalorder %s488, %s489
      %p498 = scmp.eq.s32.totalorder %s44, 0
      %p499 = por %p497, %p498
      %p500 = scmp.ne.s32.totalorder %s488, %s489
      %p501 = scmp.eq.s32.totalorder %s45, 1
      %p502 = por %p500, %p501
      %p504 = scmp.ne.s32.totalorder %s489, %s503
      %p505 = scmp.eq.s32.totalorder %s45, 0
      %p506 = por %p504, %p505
      %s507 = ssub.s32 %s46, %s58
      %s508 = ssub.s32 %s47, %s54
      %s509 = sor.u32 %s507, %s508
      %p510 = scmp.eq.s32.totalorder %s509, 0
      %s512 = sadd.s32 %s511, 1
      %s513 = scalar_select %p510, %s511, %s512
      %p516 = pneg %p510
      %p517 = scmp.eq.s32.totalorder %s39, 1
      %p518 = por %p516, %p517
      %p519 = scmp.ne.s32.totalorder %s511, %s514
      %p520 = scmp.eq.s32.totalorder %s39, 0
      %p521 = por %p519, %p520
      %p522 = scmp.ne.s32.totalorder %s511, %s514
      %p523 = scmp.eq.s32.totalorder %s44, 1
      %p524 = por %p522, %p523
      %p525 = scmp.ne.s32.totalorder %s514, %s515
      %p526 = scmp.eq.s32.totalorder %s44, 0
      %p527 = por %p525, %p526
      %p528 = scmp.ne.s32.totalorder %s514, %s515
      %p529 = scmp.eq.s32.totalorder %s45, 1
      %p530 = por %p528, %p529
      %p532 = scmp.ne.s32.totalorder %s515, %s531
      %p533 = scmp.eq.s32.totalorder %s45, 0
      %p534 = por %p532, %p533
      %s535 = ssub.s32 %s46, %s58
      %s536 = ssub.s32 %s47, %s54
      %s537 = sor.u32 %s535, %s536
      %p538 = scmp.eq.s32.totalorder %s537, 0
      %s540 = sadd.s32 %s539, 1
      %s541 = scalar_select %p538, %s539, %s540
      %p544 = pneg %p538
      %p545 = scmp.eq.s32.totalorder %s39, 1
      %p546 = por %p544, %p545
      %p547 = scmp.ne.s32.totalorder %s539, %s542
      %p548 = scmp.eq.s32.totalorder %s39, 0
      %p549 = por %p547, %p548
      %p550 = scmp.ne.s32.totalorder %s539, %s542
      %p551 = scmp.eq.s32.totalorder %s44, 1
      %p552 = por %p550, %p551
      %p553 = scmp.ne.s32.totalorder %s542, %s543
      %p554 = scmp.eq.s32.totalorder %s44, 0
      %p555 = por %p553, %p554
      %p556 = scmp.ne.s32.totalorder %s542, %s543
      %p557 = scmp.eq.s32.totalorder %s45, 1
      %p558 = por %p556, %p557
      %p560 = scmp.ne.s32.totalorder %s543, %s559
      %p561 = scmp.eq.s32.totalorder %s45, 0
      %p562 = por %p560, %p561
      %s563 = ssub.s32 %s46, %s58
      %s564 = ssub.s32 %s47, %s54
      %s565 = sor.u32 %s563, %s564
      %p566 = scmp.eq.s32.totalorder %s565, 0
      %s568 = sadd.s32 %s567, 1
      %s569 = scalar_select %p566, %s567, %s568
      %p572 = pneg %p566
      %p573 = scmp.eq.s32.totalorder %s39, 1
      %p574 = por %p572, %p573
      %p575 = scmp.ne.s32.totalorder %s567, %s570
      %p576 = scmp.eq.s32.totalorder %s39, 0
      %p577 = por %p575, %p576
      %p578 = scmp.ne.s32.totalorder %s567, %s570
      %p579 = scmp.eq.s32.totalorder %s44, 1
      %p580 = por %p578, %p579
      %p581 = scmp.ne.s32.totalorder %s570, %s571
      %p582 = scmp.eq.s32.totalorder %s44, 0
      %p583 = por %p581, %p582
      %p584 = scmp.ne.s32.totalorder %s570, %s571
      %p585 = scmp.eq.s32.totalorder %s45, 1
      %p586 = por %p584, %p585
      %p588 = scmp.ne.s32.totalorder %s571, %s587
      %p589 = scmp.eq.s32.totalorder %s45, 0
      %p590 = por %p588, %p589
      %s591 = ssub.s32 %s46, %s58
      %s592 = ssub.s32 %s47, %s54
      %s593 = sor.u32 %s591, %s592
      %p594 = scmp.eq.s32.totalorder %s593, 0
      %s596 = sadd.s32 %s595, 1
      %s597 = scalar_select %p594, %s595, %s596
      %p600 = pneg %p594
      %p601 = scmp.eq.s32.totalorder %s39, 1
      %p602 = por %p600, %p601
      %p603 = scmp.ne.s32.totalorder %s595, %s598
      %p604 = scmp.eq.s32.totalorder %s39, 0
      %p605 = por %p603, %p604
      %p606 = scmp.ne.s32.totalorder %s595, %s598
      %p607 = scmp.eq.s32.totalorder %s44, 1
      %p608 = por %p606, %p607
      %p609 = scmp.ne.s32.totalorder %s598, %s599
      %p610 = scmp.eq.s32.totalorder %s44, 0
      %p611 = por %p609, %p610
      %p612 = scmp.ne.s32.totalorder %s598, %s599
      %p613 = scmp.eq.s32.totalorder %s45, 1
      %p614 = por %p612, %p613
      %p616 = scmp.ne.s32.totalorder %s599, %s615
      %p617 = scmp.eq.s32.totalorder %s45, 0
      %p618 = por %p616, %p617
      %p619 = scmp.le.s32.totalorder 1, %s39
      %p620 = scmp.lt.s32.totalorder %s39, 3
      %p621 = pnand %p619, %p620
      %p622 = pneg %p621
      // Predicated region
      $region9: #{tpu_custom_call.1} parent=5 // pred_check
        _
      $region10: #{tpu_custom_call.1} parent=5 // pred_check_branch
        %624 = sbr.rel (%p621) target = $region12
      $region11: #{tpu_custom_call.1} parent=5 // pred_region
        %s625 = ssub.s32 %s39, 1
        // Predicated region
        $region13: #{tpu_custom_call.1} parent=11 // pred_check
          %p626 = pneg %p100
        $region14: #{tpu_custom_call.1} parent=11 // pred_check_branch
          %628 = sbr.rel (%p626) target = $region16
        $region15: #{tpu_custom_call.1} parent=11 // pred_region
          _
        $region16: #{tpu_custom_call.1} parent=11 // pred_fallthru
          _
        // Predicated region
        $region17: #{tpu_custom_call.1} parent=11 // pred_check
          %p629 = pneg %p121
        $region18: #{tpu_custom_call.1} parent=11 // pred_check_branch
          %631 = sbr.rel (%p629) target = $region20
        $region19: #{tpu_custom_call.1} parent=11 // pred_region
          _
        $region20: #{tpu_custom_call.1} parent=11 // pred_fallthru
          _
        // Predicated region
        $region21: #{tpu_custom_call.1} parent=11 // pred_check
          %p632 = pneg %p142
        $region22: #{tpu_custom_call.1} parent=11 // pred_check_branch
          %634 = sbr.rel (%p632) target = $region24
        $region23: #{tpu_custom_call.1} parent=11 // pred_region
          _
        $region24: #{tpu_custom_call.1} parent=11 // pred_fallthru
          _
        // Predicated region
        $region25: #{tpu_custom_call.1} parent=11 // pred_check
          %p635 = pneg %p163
        $region26: #{tpu_custom_call.1} parent=11 // pred_check_branch
          %637 = sbr.rel (%p635) target = $region28
        $region27: #{tpu_custom_call.1} parent=11 // pred_region
          _
        $region28: #{tpu_custom_call.1} parent=11 // pred_fallthru
          _
        // Predicated region
        $region29: #{tpu_custom_call.1} parent=11 // pred_check
          %p638 = pneg %p184
        $region30: #{tpu_custom_call.1} parent=11 // pred_check_branch
          %640 = sbr.rel (%p638) target = $region32
        $region31: #{tpu_custom_call.1} parent=11 // pred_region
          _
        $region32: #{tpu_custom_call.1} parent=11 // pred_fallthru
          _
        // Predicated region
        $region33: #{tpu_custom_call.1} parent=11 // pred_check
          %p641 = pneg %p205
        $region34: #{tpu_custom_call.1} parent=11 // pred_check_branch
          %643 = sbr.rel (%p641) target = $region36
        $region35: #{tpu_custom_call.1} parent=11 // pred_region
          _
        $region36: #{tpu_custom_call.1} parent=11 // pred_fallthru
          _
        // Predicated region
        $region37: #{tpu_custom_call.1} parent=11 // pred_check
          %p644 = pneg %p226
        $region38: #{tpu_custom_call.1} parent=11 // pred_check_branch
          %646 = sbr.rel (%p644) target = $region40
        $region39: #{tpu_custom_call.1} parent=11 // pred_region
          _
        $region40: #{tpu_custom_call.1} parent=11 // pred_fallthru
          _
        // Predicated region
        $region41: #{tpu_custom_call.1} parent=11 // pred_check
          %p647 = pneg %p247
        $region42: #{tpu_custom_call.1} parent=11 // pred_check_branch
          %649 = sbr.rel (%p647) target = $region44
        $region43: #{tpu_custom_call.1} parent=11 // pred_region
          _
        $region44: #{tpu_custom_call.1} parent=11 // pred_fallthru
          _
        // Predicated region
        $region45: #{tpu_custom_call.1} parent=11 // pred_check
          %p650 = pneg %p268
        $region46: #{tpu_custom_call.1} parent=11 // pred_check_branch
          %652 = sbr.rel (%p650) target = $region48
        $region47: #{tpu_custom_call.1} parent=11 // pred_region
          _
        $region48: #{tpu_custom_call.1} parent=11 // pred_fallthru
          _
        // Predicated region
        $region49: #{tpu_custom_call.1} parent=11 // pred_check
          %p653 = pneg %p289
        $region50: #{tpu_custom_call.1} parent=11 // pred_check_branch
          %655 = sbr.rel (%p653) target = $region52
        $region51: #{tpu_custom_call.1} parent=11 // pred_region
          _
        $region52: #{tpu_custom_call.1} parent=11 // pred_fallthru
          _
        // Predicated region
        $region53: #{tpu_custom_call.1} parent=11 // pred_check
          %p656 = pneg %p310
        $region54: #{tpu_custom_call.1} parent=11 // pred_check_branch
          %658 = sbr.rel (%p656) target = $region56
        $region55: #{tpu_custom_call.1} parent=11 // pred_region
          _
        $region56: #{tpu_custom_call.1} parent=11 // pred_fallthru
          _
        // Predicated region
        $region57: #{tpu_custom_call.1} parent=11 // pred_check
          %p659 = pneg %p331
        $region58: #{tpu_custom_call.1} parent=11 // pred_check_branch
          %661 = sbr.rel (%p659) target = $region60
        $region59: #{tpu_custom_call.1} parent=11 // pred_region
          _
        $region60: #{tpu_custom_call.1} parent=11 // pred_fallthru
          _
        // Predicated region
        $region61: #{tpu_custom_call.1} parent=11 // pred_check
          %p662 = pneg %p352
        $region62: #{tpu_custom_call.1} parent=11 // pred_check_branch
          %664 = sbr.rel (%p662) target = $region64
        $region63: #{tpu_custom_call.1} parent=11 // pred_region
          _
        $region64: #{tpu_custom_call.1} parent=11 // pred_fallthru
          _
        // Predicated region
        $region65: #{tpu_custom_call.1} parent=11 // pred_check
          %p665 = pneg %p373
        $region66: #{tpu_custom_call.1} parent=11 // pred_check_branch
          %667 = sbr.rel (%p665) target = $region68
        $region67: #{tpu_custom_call.1} parent=11 // pred_region
          _
        $region68: #{tpu_custom_call.1} parent=11 // pred_fallthru
          _
        // Predicated region
        $region69: #{tpu_custom_call.1} parent=11 // pred_check
          %p668 = pneg %p394
        $region70: #{tpu_custom_call.1} parent=11 // pred_check_branch
          %670 = sbr.rel (%p668) target = $region72
        $region71: #{tpu_custom_call.1} parent=11 // pred_region
          _
        $region72: #{tpu_custom_call.1} parent=11 // pred_fallthru
          _
        // Predicated region
        $region73: #{tpu_custom_call.1} parent=11 // pred_check
          %p671 = pneg %p415
        $region74: #{tpu_custom_call.1} parent=11 // pred_check_branch
          %673 = sbr.rel (%p671) target = $region76
        $region75: #{tpu_custom_call.1} parent=11 // pred_region
          _
        $region76: #{tpu_custom_call.1} parent=11 // pred_fallthru
          _
        // Predicated region
        $region77: #{tpu_custom_call.1} parent=11 // pred_check
          %p674 = pneg %p436
        $region78: #{tpu_custom_call.1} parent=11 // pred_check_branch
          %676 = sbr.rel (%p674) target = $region80
        $region79: #{tpu_custom_call.1} parent=11 // pred_region
          _
        $region80: #{tpu_custom_call.1} parent=11 // pred_fallthru
          _
        // Predicated region
        $region81: #{tpu_custom_call.1} parent=11 // pred_check
          %p677 = pneg %p457
        $region82: #{tpu_custom_call.1} parent=11 // pred_check_branch
          %679 = sbr.rel (%p677) target = $region84
        $region83: #{tpu_custom_call.1} parent=11 // pred_region
          _
        $region84: #{tpu_custom_call.1} parent=11 // pred_fallthru
          _
        // Predicated region
        $region85: #{tpu_custom_call.1} parent=11 // pred_check
          %p680 = pneg %p478
        $region86: #{tpu_custom_call.1} parent=11 // pred_check_branch
          %682 = sbr.rel (%p680) target = $region88
        $region87: #{tpu_custom_call.1} parent=11 // pred_region
          _
        $region88: #{tpu_custom_call.1} parent=11 // pred_fallthru
          _
        // Predicated region
        $region89: #{tpu_custom_call.1} parent=11 // pred_check
          %p683 = pneg %p499
        $region90: #{tpu_custom_call.1} parent=11 // pred_check_branch
          %685 = sbr.rel (%p683) target = $region92
        $region91: #{tpu_custom_call.1} parent=11 // pred_region
          _
        $region92: #{tpu_custom_call.1} parent=11 // pred_fallthru
          _
      $region12: #{tpu_custom_call.1} parent=5 // pred_fallthru
        _
      %p686 = scmp.lt.s32.totalorder %s39, 2
      // Predicated region
      $region93: #{tpu_custom_call.1} parent=5 // pred_check
        %p687 = pneg %p686
      $region94: #{tpu_custom_call.1} parent=5 // pred_check_branch
        %689 = sbr.rel (%p687) target = $region96
      $region95: #{tpu_custom_call.1} parent=5 // pred_region
        // Predicated region
        $region97: #{tpu_custom_call.1} parent=95 // pred_check
          %p690 = pneg %p73
        $region98: #{tpu_custom_call.1} parent=95 // pred_check_branch
          %692 = sbr.rel (%p690) target = $region100
        $region99: #{tpu_custom_call.1} parent=95 // pred_region
          %s693 = sand.u32 %s63, 1
          %s694 = scalar_lea.sflag [#allocation4], %s693
          %s695 = sand.u32 %s63, 1
          %s696 = smul.addr %s695, 512
          %s697 = scalar_lea.vmem [#allocation3], %s696
          %s698 = smul.u32 2, %s47
          %s700 = ssub.s32 8192, 8192
          %701 = vsyncadd %s694, %s700
          %s702 = smul.addr %s46, 64
          %s703 = sadd.s32 %s698, %s702
          %s704 = smul.addr %s703, 128
          %s705 = scalar_lea.hbm %s0, %s704
          %s706 = sshll.u32 %s697, 4
          %s707 = int_to_ptr.vmem [resolvable:$true] %s706
          %712 = dma.hbm_to_vmem [thread:$0]  %s705, 8192, %s707, %s694, 256, 256, 16
        $region100: #{tpu_custom_call.1} parent=95 // pred_fallthru
          _
      $region96: #{tpu_custom_call.1} parent=5 // pred_fallthru
        _
      %p713 = scmp.le.s32.totalorder 1, %s39
      %p714 = scmp.lt.s32.totalorder %s39, 3
      %p715 = pnand %p713, %p714
      %p716 = pneg %p715
      // Predicated region
      $region101: #{tpu_custom_call.1} parent=5 // pred_check
        _
      $region102: #{tpu_custom_call.1} parent=5 // pred_check_branch
        %718 = sbr.rel (%p715) target = $region104
      $region103: #{tpu_custom_call.1} parent=5 // pred_region
        %s719 = ssub.s32 %s39, 1
        %s720 = sand.u32 %s66, 1
        %s721 = scalar_lea.sflag [#allocation4], %s720
        %s722 = sand.u32 %s66, 1
        %s723 = smul.addr %s722, 512
        %s724 = scalar_lea.vmem [#allocation3], %s723
        // Predicated region
        $region105: #{tpu_custom_call.1} parent=103 // pred_check
          %p725 = pneg %p79
        $region106: #{tpu_custom_call.1} parent=103 // pred_check_branch
          %727 = sbr.rel (%p725) target = $region108
        $region107: #{tpu_custom_call.1} parent=103 // pred_region
          %728 = dma.done %s721, 8192
        $region108: #{tpu_custom_call.1} parent=103 // pred_fallthru
          _
        %s729 = sand.u32 %s66, 1
        %s730 = scalar_lea.sflag [#allocation4], %s729
        %s731 = sand.u32 %s66, 1
        %s732 = smul.addr %s731, 512
        %s733 = scalar_lea.vmem [#allocation3], %s732
        %p734 = pneg %p79
        %p735 = pneg %p76
        %p736 = pneg %p100
        %p737 = pneg %p97
        %p738 = pneg %p121
        %p739 = pneg %p118
        %p740 = pneg %p142
        %p741 = pneg %p139
        %p742 = pneg %p163
        %p743 = pneg %p160
        %p744 = pneg %p184
        %p745 = pneg %p181
        %p746 = pneg %p205
        %p747 = pneg %p202
        %p748 = pneg %p226
        %p749 = pneg %p223
        %p750 = pneg %p247
        %p751 = pneg %p244
        %p752 = pneg %p268
        %p753 = pneg %p265
        %p754 = pneg %p289
        %p755 = pneg %p286
        %p756 = pneg %p310
        %p757 = pneg %p307
        %p758 = pneg %p331
        %p759 = pneg %p328
        %p760 = pneg %p352
        %p761 = pneg %p349
        %p762 = pneg %p373
        %p763 = pneg %p370
        %p764 = pneg %p394
        %p765 = pneg %p391
        %p766 = pneg %p415
        %p767 = pneg %p412
        %p768 = pneg %p436
        %p769 = pneg %p433
        %p770 = pneg %p457
        %p771 = pneg %p454
        %p772 = pneg %p478
        %p773 = pneg %p475
        %p774 = pneg %p499
        %p775 = pneg %p496
        %p776 = pneg %p527
        %p777 = pneg %p524
        %s778 = smul.u32 2, %s49
        %p779 = scmp.lt.s32.totalorder %s48, 1
        %s780 = scalar_select %p779, %s48, 1
        %p781 = scmp.lt.s32.totalorder %s778, 1
        %s782 = scalar_select %p781, %s778, 1
        %s783 = smul.addr %s780, 4
        %s784 = sadd.s32 %s782, %s783
        %s785 = smul.addr %s784, 8
        %s786 = scalar_lea.vmem %s21, %s785
        %p787 = pneg %p555
        %p788 = pneg %p552
        %s789 = smul.u32 2, %s49
        %p790 = scmp.lt.s32.totalorder %s48, 1
        %s791 = scalar_select %p790, %s48, 1
        %p792 = scmp.lt.s32.totalorder %s789, 1
        %s793 = scalar_select %p792, %s789, 1
        %s794 = smul.addr %s791, 2
        %s795 = sadd.s32 %s793, %s794
        %s796 = smul.addr %s795, 8
        %s797 = scalar_lea.vmem %s22, %s796
        %p798 = pneg %p583
        %p799 = pneg %p580
        %s800 = sand.u32 %s570, 1
        %s801 = scalar_lea.sflag [#allocation5], %s800
        %s802 = sand.u32 %s570, 1
        %s803 = smul.addr %s802, 2
        %s804 = scalar_lea.vmem [#allocation6], %s803
        %p805 = pneg %p611
        %p806 = pneg %p608
        %s807 = smul.u32 2, %s49
        %p808 = scmp.lt.s32.totalorder %s48, 1
        %s809 = scalar_select %p808, %s48, 1
        %p810 = scmp.lt.s32.totalorder %s807, 1
        %s811 = scalar_select %p810, %s807, 1
        %s812 = smul.addr %s809, 2
        %s813 = sadd.s32 %s811, %s812
        %s814 = smul.addr %s813, 8
        %s815 = scalar_lea.vmem %s24, %s814
        %s816 = smul.u32 2, %s49
        %s817 = smul.u32 2, %s49
        %p818 = scmp.lt.s32.totalorder %s48, 1
        %s819 = scalar_select %p818, %s48, 1
        %p820 = scmp.lt.s32.totalorder %s817, 1
        %s821 = scalar_select %p820, %s817, 1
        %s822 = smul.addr %s819, 4
        %s823 = sadd.s32 %s821, %s822
        %s824 = smul.addr %s823, 8
        %s825 = scalar_lea.vmem %s21, %s824
        %s826 = smul.u32 2, %s49
        %s827 = smul.u32 2, %s49
        %p828 = scmp.lt.s32.totalorder %s48, 1
        %s829 = scalar_select %p828, %s48, 1
        %p830 = scmp.lt.s32.totalorder %s827, 1
        %s831 = scalar_select %p830, %s827, 1
        %s832 = smul.addr %s829, 2
        %s833 = sadd.s32 %s831, %s832
        %s834 = smul.addr %s833, 8
        %s835 = scalar_lea.vmem %s22, %s834
        %s836 = smul.u32 2, %s49
        %s837 = smul.u32 2, %s49
        %s838 = smul.u32 2, %s49
        %p839 = scmp.lt.s32.totalorder %s48, 1
        %s840 = scalar_select %p839, %s48, 1
        %p841 = scmp.lt.s32.totalorder %s838, 1
        %s842 = scalar_select %p841, %s838, 1
        %s843 = smul.addr %s840, 2
        %s844 = sadd.s32 %s842, %s843
        %s845 = smul.addr %s844, 8
        %s846 = scalar_lea.vmem %s24, %s845
        %s847 = smul.u32 2, %s49
        %v848 = vld [vmem:[%s724] sm:$0xff]
        %v849 = vld [vmem:[%s724 + $0x8] sm:$0xff]
        %v850 = vld [vmem:[%s724 + $0x10] sm:$0xff]
        %v851 = vld [vmem:[%s724 + $0x18] sm:$0xff]
        %v852 = vld [vmem:[%s724 + $0x20] sm:$0xff]
        %v853 = vld [vmem:[%s724 + $0x28] sm:$0xff]
        %v854 = vld [vmem:[%s724 + $0x30] sm:$0xff]
        %v855 = vld [vmem:[%s724 + $0x38] sm:$0xff]
        %v856 = vld [vmem:[%s724 + $0x40] sm:$0xff]
        %v857 = vld [vmem:[%s724 + $0x48] sm:$0xff]
        %v858 = vld [vmem:[%s724 + $0x50] sm:$0xff]
        %v859 = vld [vmem:[%s724 + $0x58] sm:$0xff]
        %v860 = vld [vmem:[%s724 + $0x60] sm:$0xff]
        %v861 = vld [vmem:[%s724 + $0x68] sm:$0xff]
        %v862 = vld [vmem:[%s724 + $0x70] sm:$0xff]
        %v863 = vld [vmem:[%s724 + $0x78] sm:$0xff]
        %v864 = vld [vmem:[%s724 + $0x80] sm:$0xff]
        %v865 = vld [vmem:[%s724 + $0x88] sm:$0xff]
        %v866 = vld [vmem:[%s724 + $0x90] sm:$0xff]
        %v867 = vld [vmem:[%s724 + $0x98] sm:$0xff]
        %v868 = vld [vmem:[%s724 + $0xa0] sm:$0xff]
        %v869 = vld [vmem:[%s724 + $0xa8] sm:$0xff]
        %v870 = vld [vmem:[%s724 + $0xb0] sm:$0xff]
        %v871 = vld [vmem:[%s724 + $0xb8] sm:$0xff]
        %v872 = vld [vmem:[%s724 + $0xc0] sm:$0xff]
        %v873 = vld [vmem:[%s724 + $0xc8] sm:$0xff]
        %v874 = vld [vmem:[%s724 + $0xd0] sm:$0xff]
        %v875 = vld [vmem:[%s724 + $0xd8] sm:$0xff]
        %v876 = vld [vmem:[%s724 + $0xe0] sm:$0xff]
        %v877 = vld [vmem:[%s724 + $0xe8] sm:$0xff]
        %v878 = vld [vmem:[%s724 + $0xf0] sm:$0xff]
        %v879 = vld [vmem:[%s724 + $0xf8] sm:$0xff]
        %v880 = vld [vmem:[%s724 + $0x100] sm:$0xff]
        %v881 = vld [vmem:[%s724 + $0x108] sm:$0xff]
        %v882 = vld [vmem:[%s724 + $0x110] sm:$0xff]
        %v883 = vld [vmem:[%s724 + $0x118] sm:$0xff]
        %v884 = vld [vmem:[%s724 + $0x120] sm:$0xff]
        %v885 = vld [vmem:[%s724 + $0x128] sm:$0xff]
        %v886 = vld [vmem:[%s724 + $0x130] sm:$0xff]
        %v887 = vld [vmem:[%s724 + $0x138] sm:$0xff]
        %v888 = vld [vmem:[%s724 + $0x140] sm:$0xff]
        %v889 = vld [vmem:[%s724 + $0x148] sm:$0xff]
        %v890 = vld [vmem:[%s724 + $0x150] sm:$0xff]
        %v891 = vld [vmem:[%s724 + $0x158] sm:$0xff]
        %v892 = vld [vmem:[%s724 + $0x160] sm:$0xff]
        %v893 = vld [vmem:[%s724 + $0x168] sm:$0xff]
        %v894 = vld [vmem:[%s724 + $0x170] sm:$0xff]
        %v895 = vld [vmem:[%s724 + $0x178] sm:$0xff]
        %v896 = vld [vmem:[%s724 + $0x180] sm:$0xff]
        %v897 = vld [vmem:[%s724 + $0x188] sm:$0xff]
        %v898 = vld [vmem:[%s724 + $0x190] sm:$0xff]
        %v899 = vld [vmem:[%s724 + $0x198] sm:$0xff]
        %v900 = vld [vmem:[%s724 + $0x1a0] sm:$0xff]
        %v901 = vld [vmem:[%s724 + $0x1a8] sm:$0xff]
        %v902 = vld [vmem:[%s724 + $0x1b0] sm:$0xff]
        %v903 = vld [vmem:[%s724 + $0x1b8] sm:$0xff]
        %v904 = vld [vmem:[%s724 + $0x1c0] sm:$0xff]
        %v905 = vld [vmem:[%s724 + $0x1c8] sm:$0xff]
        %v906 = vld [vmem:[%s724 + $0x1d0] sm:$0xff]
        %v907 = vld [vmem:[%s724 + $0x1d8] sm:$0xff]
        %v908 = vld [vmem:[%s724 + $0x1e0] sm:$0xff]
        %v909 = vld [vmem:[%s724 + $0x1e8] sm:$0xff]
        %v910 = vld [vmem:[%s724 + $0x1f0] sm:$0xff]
        %v911 = vld [vmem:[%s724 + $0x1f8] sm:$0xff]
        %v912 = vld [vmem:[%s1] sm:$0xff]
        %v913 = vld [vmem:[%s1 + $0x8] sm:$0xff]
        %v914 = vld [vmem:[%s1 + $0x10] sm:$0xff]
        %v915 = vld [vmem:[%s1 + $0x18] sm:$0xff]
        %v916 = vld [vmem:[%s1 + $0x20] sm:$0xff]
        %v917 = vld [vmem:[%s1 + $0x28] sm:$0xff]
        %v918 = vld [vmem:[%s1 + $0x30] sm:$0xff]
        %v919 = vld [vmem:[%s1 + $0x38] sm:$0xff]
        %v920 = vld [vmem:[%s1 + $0x40] sm:$0xff]
        %v921 = vld [vmem:[%s1 + $0x48] sm:$0xff]
        %v922 = vld [vmem:[%s1 + $0x50] sm:$0xff]
        %v923 = vld [vmem:[%s1 + $0x58] sm:$0xff]
        %v924 = vld [vmem:[%s1 + $0x60] sm:$0xff]
        %v925 = vld [vmem:[%s1 + $0x68] sm:$0xff]
        %v926 = vld [vmem:[%s1 + $0x70] sm:$0xff]
        %v927 = vld [vmem:[%s1 + $0x78] sm:$0xff]
        %v928 = vld [vmem:[%s1 + $0x80] sm:$0xff]
        %v929 = vld [vmem:[%s1 + $0x88] sm:$0xff]
        %v930 = vld [vmem:[%s1 + $0x90] sm:$0xff]
        %v931 = vld [vmem:[%s1 + $0x98] sm:$0xff]
        %v932 = vld [vmem:[%s1 + $0xa0] sm:$0xff]
        %v933 = vld [vmem:[%s1 + $0xa8] sm:$0xff]
        %v934 = vld [vmem:[%s1 + $0xb0] sm:$0xff]
        %v935 = vld [vmem:[%s1 + $0xb8] sm:$0xff]
        %v936 = vld [vmem:[%s1 + $0xc0] sm:$0xff]
        %v937 = vld [vmem:[%s1 + $0xc8] sm:$0xff]
        %v938 = vld [vmem:[%s1 + $0xd0] sm:$0xff]
        %v939 = vld [vmem:[%s1 + $0xd8] sm:$0xff]
        %v940 = vld [vmem:[%s1 + $0xe0] sm:$0xff]
        %v941 = vld [vmem:[%s1 + $0xe8] sm:$0xff]
        %v942 = vld [vmem:[%s1 + $0xf0] sm:$0xff]
        %v943 = vld [vmem:[%s1 + $0xf8] sm:$0xff]
        %v944 = vld [vmem:[%s1 + $0x100] sm:$0xff]
        %v945 = vld [vmem:[%s1 + $0x108] sm:$0xff]
        %v946 = vld [vmem:[%s1 + $0x110] sm:$0xff]
        %v947 = vld [vmem:[%s1 + $0x118] sm:$0xff]
        %v948 = vld [vmem:[%s1 + $0x120] sm:$0xff]
        %v949 = vld [vmem:[%s1 + $0x128] sm:$0xff]
        %v950 = vld [vmem:[%s1 + $0x130] sm:$0xff]
        %v951 = vld [vmem:[%s1 + $0x138] sm:$0xff]
        %v952 = vld [vmem:[%s1 + $0x140] sm:$0xff]
        %v953 = vld [vmem:[%s1 + $0x148] sm:$0xff]
        %v954 = vld [vmem:[%s1 + $0x150] sm:$0xff]
        %v955 = vld [vmem:[%s1 + $0x158] sm:$0xff]
        %v956 = vld [vmem:[%s1 + $0x160] sm:$0xff]
        %v957 = vld [vmem:[%s1 + $0x168] sm:$0xff]
        %v958 = vld [vmem:[%s1 + $0x170] sm:$0xff]
        %v959 = vld [vmem:[%s1 + $0x178] sm:$0xff]
        %v960 = vld [vmem:[%s1 + $0x180] sm:$0xff]
        %v961 = vld [vmem:[%s1 + $0x188] sm:$0xff]
        %v962 = vld [vmem:[%s1 + $0x190] sm:$0xff]
        %v963 = vld [vmem:[%s1 + $0x198] sm:$0xff]
        %v964 = vld [vmem:[%s1 + $0x1a0] sm:$0xff]
        %v965 = vld [vmem:[%s1 + $0x1a8] sm:$0xff]
        %v966 = vld [vmem:[%s1 + $0x1b0] sm:$0xff]
        %v967 = vld [vmem:[%s1 + $0x1b8] sm:$0xff]
        %v968 = vld [vmem:[%s1 + $0x1c0] sm:$0xff]
        %v969 = vld [vmem:[%s1 + $0x1c8] sm:$0xff]
        %v970 = vld [vmem:[%s1 + $0x1d0] sm:$0xff]
        %v971 = vld [vmem:[%s1 + $0x1d8] sm:$0xff]
        %v972 = vld [vmem:[%s1 + $0x1e0] sm:$0xff]
        %v973 = vld [vmem:[%s1 + $0x1e8] sm:$0xff]
        %v974 = vld [vmem:[%s1 + $0x1f0] sm:$0xff]
        %v975 = vld [vmem:[%s1 + $0x1f8] sm:$0xff]
        %v976 = vld [vmem:[%s2] sm:$0xff]
        %v977 = vld [vmem:[%s2 + $0x8] sm:$0xff]
        %v978 = vld [vmem:[%s2 + $0x10] sm:$0xff]
        %v979 = vld [vmem:[%s2 + $0x18] sm:$0xff]
        %v980 = vld [vmem:[%s2 + $0x20] sm:$0xff]
        %v981 = vld [vmem:[%s2 + $0x28] sm:$0xff]
        %v982 = vld [vmem:[%s2 + $0x30] sm:$0xff]
        %v983 = vld [vmem:[%s2 + $0x38] sm:$0xff]
        %v984 = vld [vmem:[%s2 + $0x40] sm:$0xff]
        %v985 = vld [vmem:[%s2 + $0x48] sm:$0xff]
        %v986 = vld [vmem:[%s2 + $0x50] sm:$0xff]
        %v987 = vld [vmem:[%s2 + $0x58] sm:$0xff]
        %v988 = vld [vmem:[%s2 + $0x60] sm:$0xff]
        %v989 = vld [vmem:[%s2 + $0x68] sm:$0xff]
        %v990 = vld [vmem:[%s2 + $0x70] sm:$0xff]
        %v991 = vld [vmem:[%s2 + $0x78] sm:$0xff]
        %v992 = vld [vmem:[%s2 + $0x80] sm:$0xff]
        %v993 = vld [vmem:[%s2 + $0x88] sm:$0xff]
        %v994 = vld [vmem:[%s2 + $0x90] sm:$0xff]
        %v995 = vld [vmem:[%s2 + $0x98] sm:$0xff]
        %v996 = vld [vmem:[%s2 + $0xa0] sm:$0xff]
        %v997 = vld [vmem:[%s2 + $0xa8] sm:$0xff]
        %v998 = vld [vmem:[%s2 + $0xb0] sm:$0xff]
        %v999 = vld [vmem:[%s2 + $0xb8] sm:$0xff]
        %v1000 = vld [vmem:[%s2 + $0xc0] sm:$0xff]
        %v1001 = vld [vmem:[%s2 + $0xc8] sm:$0xff]
        %v1002 = vld [vmem:[%s2 + $0xd0] sm:$0xff]
        %v1003 = vld [vmem:[%s2 + $0xd8] sm:$0xff]
        %v1004 = vld [vmem:[%s2 + $0xe0] sm:$0xff]
        %v1005 = vld [vmem:[%s2 + $0xe8] sm:$0xff]
        %v1006 = vld [vmem:[%s2 + $0xf0] sm:$0xff]
        %v1007 = vld [vmem:[%s2 + $0xf8] sm:$0xff]
        %1009 = vset.pattern.permute.xlu0 0
        %1010 = vperm.xlu0 %1009, %v976
        %v1011 = vpop.permute.xlu0 %1010
        %1014 = vset.pattern.permute.xlu0 0
        %1015 = vperm.xlu0 %1014, %v977
        %v1016 = vpop.permute.xlu0 %1015
        %1019 = vset.pattern.permute.xlu0 0
        %1020 = vperm.xlu0 %1019, %v978
        %v1021 = vpop.permute.xlu0 %1020
        %1024 = vset.pattern.permute.xlu0 0
        %1025 = vperm.xlu0 %1024, %v979
        %v1026 = vpop.permute.xlu0 %1025
        %1029 = vset.pattern.permute.xlu0 0
        %1030 = vperm.xlu0 %1029, %v980
        %v1031 = vpop.permute.xlu0 %1030
        %1034 = vset.pattern.permute.xlu0 0
        %1035 = vperm.xlu0 %1034, %v981
        %v1036 = vpop.permute.xlu0 %1035
        %1039 = vset.pattern.permute.xlu0 0
        %1040 = vperm.xlu0 %1039, %v982
        %v1041 = vpop.permute.xlu0 %1040
        %1044 = vset.pattern.permute.xlu0 0
        %1045 = vperm.xlu0 %1044, %v983
        %v1046 = vpop.permute.xlu0 %1045
        %1049 = vset.pattern.permute.xlu0 0
        %1050 = vperm.xlu0 %1049, %v984
        %v1051 = vpop.permute.xlu0 %1050
        %1054 = vset.pattern.permute.xlu0 0
        %1055 = vperm.xlu0 %1054, %v985
        %v1056 = vpop.permute.xlu0 %1055
        %1059 = vset.pattern.permute.xlu0 0
        %1060 = vperm.xlu0 %1059, %v986
        %v1061 = vpop.permute.xlu0 %1060
        %1064 = vset.pattern.permute.xlu0 0
        %1065 = vperm.xlu0 %1064, %v987
        %v1066 = vpop.permute.xlu0 %1065
        %1069 = vset.pattern.permute.xlu0 0
        %1070 = vperm.xlu0 %1069, %v988
        %v1071 = vpop.permute.xlu0 %1070
        %1074 = vset.pattern.permute.xlu0 0
        %1075 = vperm.xlu0 %1074, %v989
        %v1076 = vpop.permute.xlu0 %1075
        %1079 = vset.pattern.permute.xlu0 0
        %1080 = vperm.xlu0 %1079, %v990
        %v1081 = vpop.permute.xlu0 %1080
        %1084 = vset.pattern.permute.xlu0 0
        %1085 = vperm.xlu0 %1084, %v991
        %v1086 = vpop.permute.xlu0 %1085
        %1089 = vset.pattern.permute.xlu0 0
        %1090 = vperm.xlu0 %1089, %v992
        %v1091 = vpop.permute.xlu0 %1090
        %1094 = vset.pattern.permute.xlu0 0
        %1095 = vperm.xlu0 %1094, %v993
        %v1096 = vpop.permute.xlu0 %1095
        %1099 = vset.pattern.permute.xlu0 0
        %1100 = vperm.xlu0 %1099, %v994
        %v1101 = vpop.permute.xlu0 %1100
        %1104 = vset.pattern.permute.xlu0 0
        %1105 = vperm.xlu0 %1104, %v995
        %v1106 = vpop.permute.xlu0 %1105
        %1109 = vset.pattern.permute.xlu0 0
        %1110 = vperm.xlu0 %1109, %v996
        %v1111 = vpop.permute.xlu0 %1110
        %1114 = vset.pattern.permute.xlu0 0
        %1115 = vperm.xlu0 %1114, %v997
        %v1116 = vpop.permute.xlu0 %1115
        %1119 = vset.pattern.permute.xlu0 0
        %1120 = vperm.xlu0 %1119, %v998
        %v1121 = vpop.permute.xlu0 %1120
        %1124 = vset.pattern.permute.xlu0 0
        %1125 = vperm.xlu0 %1124, %v999
        %v1126 = vpop.permute.xlu0 %1125
        %1129 = vset.pattern.permute.xlu0 0
        %1130 = vperm.xlu0 %1129, %v1000
        %v1131 = vpop.permute.xlu0 %1130
        %1134 = vset.pattern.permute.xlu0 0
        %1135 = vperm.xlu0 %1134, %v1001
        %v1136 = vpop.permute.xlu0 %1135
        %1139 = vset.pattern.permute.xlu0 0
        %1140 = vperm.xlu0 %1139, %v1002
        %v1141 = vpop.permute.xlu0 %1140
        %1144 = vset.pattern.permute.xlu0 0
        %1145 = vperm.xlu0 %1144, %v1003
        %v1146 = vpop.permute.xlu0 %1145
        %1149 = vset.pattern.permute.xlu0 0
        %1150 = vperm.xlu0 %1149, %v1004
        %v1151 = vpop.permute.xlu0 %1150
        %1154 = vset.pattern.permute.xlu0 0
        %1155 = vperm.xlu0 %1154, %v1005
        %v1156 = vpop.permute.xlu0 %1155
        %1159 = vset.pattern.permute.xlu0 0
        %1160 = vperm.xlu0 %1159, %v1006
        %v1161 = vpop.permute.xlu0 %1160
        %1164 = vset.pattern.permute.xlu0 0
        %1165 = vperm.xlu0 %1164, %v1007
        %v1166 = vpop.permute.xlu0 %1165
        %1168 = vmatprep.subr.mxu0 %v849
        %1169 = vmatpush1.msra.mxu0 %v848
        %1170 = vmatprep.subr.mxu0 %v851
        %1171 = vmatpush1.msra.mxu0 %v850
        %1172 = vmatprep.subr.mxu0 %v853
        %1173 = vmatpush1.msra.mxu0 %v852
        %1174 = vmatprep.subr.mxu0 %v855
        %1175 = vmatpush1.msra.mxu0 %v854
        %1176 = vmatprep.subr.mxu0 %v857
        %1177 = vmatpush1.msra.mxu0 %v856
        %1178 = vmatprep.subr.mxu0 %v859
        %1179 = vmatpush1.msra.mxu0 %v858
        %1180 = vmatprep.subr.mxu0 %v861
        %1181 = vmatpush1.msra.mxu0 %v860
        %1182 = vmatprep.subr.mxu0 %v863
        %1183 = vmatpush1.msra.mxu0 %v862
        %1184 = vmatprep.subr.mxu0 %v865
        %1185 = vmatpush1.msra.mxu0 %v864
        %1186 = vmatprep.subr.mxu0 %v867
        %1187 = vmatpush1.msra.mxu0 %v866
        %1188 = vmatprep.subr.mxu0 %v869
        %1189 = vmatpush1.msra.mxu0 %v868
        %1190 = vmatprep.subr.mxu0 %v871
        %1191 = vmatpush1.msra.mxu0 %v870
        %1192 = vmatprep.subr.mxu0 %v873
        %1193 = vmatpush1.msra.mxu0 %v872
        %1194 = vmatprep.subr.mxu0 %v875
        %1195 = vmatpush1.msra.mxu0 %v874
        %1196 = vmatprep.subr.mxu0 %v877
        %1197 = vmatpush1.msra.mxu0 %v876
        %1198 = vmatprep.subr.mxu0 %v879
        %1199 = vmatpush1.msra.mxu0 %v878
        %1200 = vmatprep.subr.mxu0 %v881
        %1201 = vmatpush1.msra.mxu0 %v880
        %1202 = vmatprep.subr.mxu0 %v883
        %1203 = vmatpush1.msra.mxu0 %v882
        %1204 = vmatprep.subr.mxu0 %v885
        %1205 = vmatpush1.msra.mxu0 %v884
        %1206 = vmatprep.subr.mxu0 %v887
        %1207 = vmatpush1.msra.mxu0 %v886
        %1208 = vmatprep.subr.mxu0 %v889
        %1209 = vmatpush1.msra.mxu0 %v888
        %1210 = vmatprep.subr.mxu0 %v891
        %1211 = vmatpush1.msra.mxu0 %v890
        %1212 = vmatprep.subr.mxu0 %v893
        %1213 = vmatpush1.msra.mxu0 %v892
        %1214 = vmatprep.subr.mxu0 %v895
        %1215 = vmatpush1.msra.mxu0 %v894
        %1216 = vmatprep.subr.mxu0 %v897
        %1217 = vmatpush1.msra.mxu0 %v896
        %1218 = vmatprep.subr.mxu0 %v899
        %1219 = vmatpush1.msra.mxu0 %v898
        %1220 = vmatprep.subr.mxu0 %v901
        %1221 = vmatpush1.msra.mxu0 %v900
        %1222 = vmatprep.subr.mxu0 %v903
        %1223 = vmatpush1.msra.mxu0 %v902
        %1224 = vmatprep.subr.mxu0 %v905
        %1225 = vmatpush1.msra.mxu0 %v904
        %1226 = vmatprep.subr.mxu0 %v907
        %1227 = vmatpush1.msra.mxu0 %v906
        %1228 = vmatprep.subr.mxu0 %v909
        %1229 = vmatpush1.msra.mxu0 %v908
        %1230 = vmatprep.subr.mxu0 %v911
        %1231 = vmatpush1.msra.mxu0 %v910
        %1232 = vmatprep.mubr.f32.mxu0 %v913
        %1233 = vmatmul.mubr.f32.gmra.mrb[0].mxu0 %v912
        %v1234 = vpop.f32.mrb[0].mxu0
        %v1235 = vadd.f32 %v1011, %v1234
        %v1236 = vpop.f32.mrb[0].mxu0
        %v1237 = vadd.f32 %v1011, %v1236
        %1238 = vmatprep.mubr.f32.mxu0 %v915
        %1239 = vmatmul.mubr.f32.gmra.mrb[0].mxu0 %v914
        %v1240 = vpop.f32.mrb[0].mxu0
        %v1241 = vadd.f32 %v1016, %v1240
        %v1242 = vpop.f32.mrb[0].mxu0
        %v1243 = vadd.f32 %v1016, %v1242
        %1244 = vmatprep.mubr.f32.mxu0 %v917
        %1245 = vmatmul.mubr.f32.gmra.mrb[0].mxu0 %v916
        %v1246 = vpop.f32.mrb[0].mxu0
        %v1247 = vadd.f32 %v1021, %v1246
        %v1248 = vpop.f32.mrb[0].mxu0
        %v1249 = vadd.f32 %v1021, %v1248
        %1250 = vmatprep.mubr.f32.mxu0 %v919
        %1251 = vmatmul.mubr.f32.gmra.mrb[0].mxu0 %v918
        %v1252 = vpop.f32.mrb[0].mxu0
        %v1253 = vadd.f32 %v1026, %v1252
        %v1254 = vpop.f32.mrb[0].mxu0
        %v1255 = vadd.f32 %v1026, %v1254
        %1256 = vmatprep.mubr.f32.mxu0 %v921
        %1257 = vmatmul.mubr.f32.gmra.mrb[0].mxu0 %v920
        %v1258 = vpop.f32.mrb[0].mxu0
        %v1259 = vadd.f32 %v1031, %v1258
        %v1260 = vpop.f32.mrb[0].mxu0
        %v1261 = vadd.f32 %v1031, %v1260
        %1262 = vmatprep.mubr.f32.mxu0 %v923
        %1263 = vmatmul.mubr.f32.gmra.mrb[0].mxu0 %v922
        %v1264 = vpop.f32.mrb[0].mxu0
        %v1265 = vadd.f32 %v1036, %v1264
        %v1266 = vpop.f32.mrb[0].mxu0
        %v1267 = vadd.f32 %v1036, %v1266
        %1268 = vmatprep.mubr.f32.mxu0 %v925
        %1269 = vmatmul.mubr.f32.gmra.mrb[0].mxu0 %v924
        %v1270 = vpop.f32.mrb[0].mxu0
        %v1271 = vadd.f32 %v1041, %v1270
        %v1272 = vpop.f32.mrb[0].mxu0
        %v1273 = vadd.f32 %v1041, %v1272
        %1274 = vmatprep.mubr.f32.mxu0 %v927
        %1275 = vmatmul.mubr.f32.gmra.mrb[0].mxu0 %v926
        %v1276 = vpop.f32.mrb[0].mxu0
        %v1277 = vadd.f32 %v1046, %v1276
        %v1278 = vpop.f32.mrb[0].mxu0
        %v1279 = vadd.f32 %v1046, %v1278
        %1280 = vmatprep.mubr.f32.mxu0 %v929
        %1281 = vmatmul.mubr.f32.gmra.mrb[0].mxu0 %v928
        %v1282 = vpop.f32.mrb[0].mxu0
        %v1283 = vadd.f32 %v1051, %v1282
        %v1284 = vpop.f32.mrb[0].mxu0
        %v1285 = vadd.f32 %v1051, %v1284
        %1286 = vmatprep.mubr.f32.mxu0 %v931
        %1287 = vmatmul.mubr.f32.gmra.mrb[0].mxu0 %v930
        %v1288 = vpop.f32.mrb[0].mxu0
        %v1289 = vadd.f32 %v1056, %v1288
        %v1290 = vpop.f32.mrb[0].mxu0
        %v1291 = vadd.f32 %v1056, %v1290
        %1292 = vmatprep.mubr.f32.mxu0 %v933
        %1293 = vmatmul.mubr.f32.gmra.mrb[0].mxu0 %v932
        %v1294 = vpop.f32.mrb[0].mxu0
        %v1295 = vadd.f32 %v1061, %v1294
        %v1296 = vpop.f32.mrb[0].mxu0
        %v1297 = vadd.f32 %v1061, %v1296
        %1298 = vmatprep.mubr.f32.mxu0 %v935
        %1299 = vmatmul.mubr.f32.gmra.mrb[0].mxu0 %v934
        %v1300 = vpop.f32.mrb[0].mxu0
        %v1301 = vadd.f32 %v1066, %v1300
        %v1302 = vpop.f32.mrb[0].mxu0
        %v1303 = vadd.f32 %v1066, %v1302
        %1304 = vmatprep.mubr.f32.mxu0 %v937
        %1305 = vmatmul.mubr.f32.gmra.mrb[0].mxu0 %v936
        %v1306 = vpop.f32.mrb[0].mxu0
        %v1307 = vadd.f32 %v1071, %v1306
        %v1308 = vpop.f32.mrb[0].mxu0
        %v1309 = vadd.f32 %v1071, %v1308
        %1310 = vmatprep.mubr.f32.mxu0 %v939
        %1311 = vmatmul.mubr.f32.gmra.mrb[0].mxu0 %v938
        %v1312 = vpop.f32.mrb[0].mxu0
        %v1313 = vadd.f32 %v1076, %v1312
        %v1314 = vpop.f32.mrb[0].mxu0
        %v1315 = vadd.f32 %v1076, %v1314
        %1316 = vmatprep.mubr.f32.mxu0 %v941
        %1317 = vmatmul.mubr.f32.gmra.mrb[0].mxu0 %v940
        %v1318 = vpop.f32.mrb[0].mxu0
        %v1319 = vadd.f32 %v1081, %v1318
        %v1320 = vpop.f32.mrb[0].mxu0
        %v1321 = vadd.f32 %v1081, %v1320
        %1322 = vmatprep.mubr.f32.mxu0 %v943
        %1323 = vmatmul.mubr.f32.gmra.mrb[0].mxu0 %v942
        %v1324 = vpop.f32.mrb[0].mxu0
        %v1325 = vadd.f32 %v1086, %v1324
        %v1326 = vpop.f32.mrb[0].mxu0
        %v1327 = vadd.f32 %v1086, %v1326
        %1328 = vmatprep.mubr.f32.mxu0 %v945
        %1329 = vmatmul.mubr.f32.gmra.mrb[0].mxu0 %v944
        %v1330 = vpop.f32.mrb[0].mxu0
        %v1331 = vadd.f32 %v1091, %v1330
        %v1332 = vpop.f32.mrb[0].mxu0
        %v1333 = vadd.f32 %v1091, %v1332
        %1334 = vmatprep.mubr.f32.mxu0 %v947
        %1335 = vmatmul.mubr.f32.gmra.mrb[0].mxu0 %v946
        %v1336 = vpop.f32.mrb[0].mxu0
        %v1337 = vadd.f32 %v1096, %v1336
        %v1338 = vpop.f32.mrb[0].mxu0
        %v1339 = vadd.f32 %v1096, %v1338
        %1340 = vmatprep.mubr.f32.mxu0 %v949
        %1341 = vmatmul.mubr.f32.gmra.mrb[0].mxu0 %v948
        %v1342 = vpop.f32.mrb[0].mxu0
        %v1343 = vadd.f32 %v1101, %v1342
        %v1344 = vpop.f32.mrb[0].mxu0
        %v1345 = vadd.f32 %v1101, %v1344
        %1346 = vmatprep.mubr.f32.mxu0 %v951
        %1347 = vmatmul.mubr.f32.gmra.mrb[0].mxu0 %v950
        %v1348 = vpop.f32.mrb[0].mxu0
        %v1349 = vadd.f32 %v1106, %v1348
        %v1350 = vpop.f32.mrb[0].mxu0
        %v1351 = vadd.f32 %v1106, %v1350
        %1352 = vmatprep.mubr.f32.mxu0 %v953
        %1353 = vmatmul.mubr.f32.gmra.mrb[0].mxu0 %v952
        %v1354 = vpop.f32.mrb[0].mxu0
        %v1355 = vadd.f32 %v1111, %v1354
        %v1356 = vpop.f32.mrb[0].mxu0
        %v1357 = vadd.f32 %v1111, %v1356
        %1358 = vmatprep.mubr.f32.mxu0 %v955
        %1359 = vmatmul.mubr.f32.gmra.mrb[0].mxu0 %v954
        %v1360 = vpop.f32.mrb[0].mxu0
        %v1361 = vadd.f32 %v1116, %v1360
        %v1362 = vpop.f32.mrb[0].mxu0
        %v1363 = vadd.f32 %v1116, %v1362
        %1364 = vmatprep.mubr.f32.mxu0 %v957
        %1365 = vmatmul.mubr.f32.gmra.mrb[0].mxu0 %v956
        %v1366 = vpop.f32.mrb[0].mxu0
        %v1367 = vadd.f32 %v1121, %v1366
        %v1368 = vpop.f32.mrb[0].mxu0
        %v1369 = vadd.f32 %v1121, %v1368
        %1370 = vmatprep.mubr.f32.mxu0 %v959
        %1371 = vmatmul.mubr.f32.gmra.mrb[0].mxu0 %v958
        %v1372 = vpop.f32.mrb[0].mxu0
        %v1373 = vadd.f32 %v1126, %v1372
        %v1374 = vpop.f32.mrb[0].mxu0
        %v1375 = vadd.f32 %v1126, %v1374
        %1376 = vmatprep.mubr.f32.mxu0 %v961
        %1377 = vmatmul.mubr.f32.gmra.mrb[0].mxu0 %v960
        %v1378 = vpop.f32.mrb[0].mxu0
        %v1379 = vadd.f32 %v1131, %v1378
        %v1380 = vpop.f32.mrb[0].mxu0
        %v1381 = vadd.f32 %v1131, %v1380
        %1382 = vmatprep.mubr.f32.mxu0 %v963
        %1383 = vmatmul.mubr.f32.gmra.mrb[0].mxu0 %v962
        %v1384 = vpop.f32.mrb[0].mxu0
        %v1385 = vadd.f32 %v1136, %v1384
        %v1386 = vpop.f32.mrb[0].mxu0
        %v1387 = vadd.f32 %v1136, %v1386
        %1388 = vmatprep.mubr.f32.mxu0 %v965
        %1389 = vmatmul.mubr.f32.gmra.mrb[0].mxu0 %v964
        %v1390 = vpop.f32.mrb[0].mxu0
        %v1391 = vadd.f32 %v1141, %v1390
        %v1392 = vpop.f32.mrb[0].mxu0
        %v1393 = vadd.f32 %v1141, %v1392
        %1394 = vmatprep.mubr.f32.mxu0 %v967
        %1395 = vmatmul.mubr.f32.gmra.mrb[0].mxu0 %v966
        %v1396 = vpop.f32.mrb[0].mxu0
        %v1397 = vadd.f32 %v1146, %v1396
        %v1398 = vpop.f32.mrb[0].mxu0
        %v1399 = vadd.f32 %v1146, %v1398
        %1400 = vmatprep.mubr.f32.mxu0 %v969
        %1401 = vmatmul.mubr.f32.gmra.mrb[0].mxu0 %v968
        %v1402 = vpop.f32.mrb[0].mxu0
        %v1403 = vadd.f32 %v1151, %v1402
        %v1404 = vpop.f32.mrb[0].mxu0
        %v1405 = vadd.f32 %v1151, %v1404
        %1406 = vmatprep.mubr.f32.mxu0 %v971
        %1407 = vmatmul.mubr.f32.gmra.mrb[0].mxu0 %v970
        %v1408 = vpop.f32.mrb[0].mxu0
        %v1409 = vadd.f32 %v1156, %v1408
        %v1410 = vpop.f32.mrb[0].mxu0
        %v1411 = vadd.f32 %v1156, %v1410
        %1412 = vmatprep.mubr.f32.mxu0 %v973
        %1413 = vmatmul.mubr.f32.gmra.mrb[0].mxu0 %v972
        %v1414 = vpop.f32.mrb[0].mxu0
        %v1415 = vadd.f32 %v1161, %v1414
        %v1416 = vpop.f32.mrb[0].mxu0
        %v1417 = vadd.f32 %v1161, %v1416
        %1418 = vmatprep.mubr.f32.mxu0 %v975
        %1419 = vmatmul.mubr.f32.gmra.mrb[0].mxu0 %v974
        %v1420 = vpop.f32.mrb[0].mxu0
        %v1421 = vadd.f32 %v1166, %v1420
        %v1422 = vpop.f32.mrb[0].mxu0
        %v1423 = vadd.f32 %v1166, %v1422
        %1424 = vdwg.mxu0
        %v1425 = vld [vmem:[%s3] sm:$0xff]
        %v1426 = vld [vmem:[%s3 + $0x8] sm:$0xff]
        %v1427 = vld [vmem:[%s3 + $0x10] sm:$0xff]
        %v1428 = vld [vmem:[%s3 + $0x18] sm:$0xff]
        %v1429 = vld [vmem:[%s3 + $0x20] sm:$0xff]
        %v1430 = vld [vmem:[%s3 + $0x28] sm:$0xff]
        %v1431 = vld [vmem:[%s3 + $0x30] sm:$0xff]
        %v1432 = vld [vmem:[%s3 + $0x38] sm:$0xff]
        %v1433 = vld [vmem:[%s4] sm:$0xff]
        %v1434 = vld [vmem:[%s4 + $0x8] sm:$0xff]
        %v1435 = vld [vmem:[%s4 + $0x10] sm:$0xff]
        %v1436 = vld [vmem:[%s4 + $0x18] sm:$0xff]
        %v1437 = vld [vmem:[%s4 + $0x20] sm:$0xff]
        %v1438 = vld [vmem:[%s4 + $0x28] sm:$0xff]
        %v1439 = vld [vmem:[%s4 + $0x30] sm:$0xff]
        %v1440 = vld [vmem:[%s4 + $0x38] sm:$0xff]
        %v1441 = vld [vmem:[%s5] sm:$0xff]
        %v1442 = vld [vmem:[%s5 + $0x8] sm:$0xff]
        %v1443 = vld [vmem:[%s5 + $0x10] sm:$0xff]
        %v1444 = vld [vmem:[%s5 + $0x18] sm:$0xff]
        %v1445 = vld [vmem:[%s5 + $0x20] sm:$0xff]
        %v1446 = vld [vmem:[%s5 + $0x28] sm:$0xff]
        %v1447 = vld [vmem:[%s5 + $0x30] sm:$0xff]
        %v1448 = vld [vmem:[%s5 + $0x38] sm:$0xff]
        %v1449 = vld [vmem:[%s6] sm:$0xff]
        %v1450 = vld [vmem:[%s6 + $0x8] sm:$0xff]
        %v1451 = vld [vmem:[%s6 + $0x10] sm:$0xff]
        %v1452 = vld [vmem:[%s6 + $0x18] sm:$0xff]
        %v1453 = vld [vmem:[%s6 + $0x20] sm:$0xff]
        %v1454 = vld [vmem:[%s6 + $0x28] sm:$0xff]
        %v1455 = vld [vmem:[%s6 + $0x30] sm:$0xff]
        %v1456 = vld [vmem:[%s6 + $0x38] sm:$0xff]
        %v1457 = vld [vmem:[%s7] sm:$0xff]
        %v1458 = vld [vmem:[%s7 + $0x8] sm:$0xff]
        %v1459 = vld [vmem:[%s7 + $0x10] sm:$0xff]
        %v1460 = vld [vmem:[%s7 + $0x18] sm:$0xff]
        %v1461 = vld [vmem:[%s7 + $0x20] sm:$0xff]
        %v1462 = vld [vmem:[%s7 + $0x28] sm:$0xff]
        %v1463 = vld [vmem:[%s7 + $0x30] sm:$0xff]
        %v1464 = vld [vmem:[%s7 + $0x38] sm:$0xff]
        %v1465 = vld [vmem:[%s8] sm:$0xff]
        %v1466 = vld [vmem:[%s8 + $0x8] sm:$0xff]
        %v1467 = vld [vmem:[%s8 + $0x10] sm:$0xff]
        %v1468 = vld [vmem:[%s8 + $0x18] sm:$0xff]
        %v1469 = vld [vmem:[%s8 + $0x20] sm:$0xff]
        %v1470 = vld [vmem:[%s8 + $0x28] sm:$0xff]
        %v1471 = vld [vmem:[%s8 + $0x30] sm:$0xff]
        %v1472 = vld [vmem:[%s8 + $0x38] sm:$0xff]
        %v1473 = vld [vmem:[%s9] sm:$0xff]
        %v1474 = vld [vmem:[%s9 + $0x8] sm:$0xff]
        %v1475 = vld [vmem:[%s9 + $0x10] sm:$0xff]
        %v1476 = vld [vmem:[%s9 + $0x18] sm:$0xff]
        %v1477 = vld [vmem:[%s9 + $0x20] sm:$0xff]
        %v1478 = vld [vmem:[%s9 + $0x28] sm:$0xff]
        %v1479 = vld [vmem:[%s9 + $0x30] sm:$0xff]
        %v1480 = vld [vmem:[%s9 + $0x38] sm:$0xff]
        %v1481 = vld [vmem:[%s10] sm:$0xff]
        %v1482 = vld [vmem:[%s10 + $0x8] sm:$0xff]
        %v1483 = vld [vmem:[%s10 + $0x10] sm:$0xff]
        %v1484 = vld [vmem:[%s10 + $0x18] sm:$0xff]
        %v1485 = vld [vmem:[%s10 + $0x20] sm:$0xff]
        %v1486 = vld [vmem:[%s10 + $0x28] sm:$0xff]
        %v1487 = vld [vmem:[%s10 + $0x30] sm:$0xff]
        %v1488 = vld [vmem:[%s10 + $0x38] sm:$0xff]
        %1490 = vset.pattern.permute.xlu0 0
        %1491 = vperm.xlu0 %1490, %v1433
        %v1492 = vpop.permute.xlu0 %1491
        %1495 = vset.pattern.permute.xlu0 0
        %1496 = vperm.xlu0 %1495, %v1434
        %v1497 = vpop.permute.xlu0 %1496
        %1500 = vset.pattern.permute.xlu0 0
        %1501 = vperm.xlu0 %1500, %v1435
        %v1502 = vpop.permute.xlu0 %1501
        %1505 = vset.pattern.permute.xlu0 0
        %1506 = vperm.xlu0 %1505, %v1436
        %v1507 = vpop.permute.xlu0 %1506
        %1510 = vset.pattern.permute.xlu0 0
        %1511 = vperm.xlu0 %1510, %v1437
        %v1512 = vpop.permute.xlu0 %1511
        %1515 = vset.pattern.permute.xlu0 0
        %1516 = vperm.xlu0 %1515, %v1438
        %v1517 = vpop.permute.xlu0 %1516
        %1520 = vset.pattern.permute.xlu0 0
        %1521 = vperm.xlu0 %1520, %v1439
        %v1522 = vpop.permute.xlu0 %1521
        %1525 = vset.pattern.permute.xlu0 0
        %1526 = vperm.xlu0 %1525, %v1440
        %v1527 = vpop.permute.xlu0 %1526
        %vm1529 = vcmask 523264
        %v1531 = vsel %vm1529, %v1425, 0
        %v1534 = vsel %vm1529, %v1426, 0
        %v1537 = vsel %vm1529, %v1427, 0
        %v1540 = vsel %vm1529, %v1428, 0
        %v1543 = vsel %vm1529, %v1429, 0
        %v1546 = vsel %vm1529, %v1430, 0
        %v1549 = vsel %vm1529, %v1431, 0
        %v1552 = vsel %vm1529, %v1432, 0
        %1554 = vmatprep.subr.mxu0 %v1237
        %1555 = vmatpush1.msra.mxu0 %v1235
        %1556 = vmatprep.subr.mxu0 %v1243
        %1557 = vmatpush1.msra.mxu0 %v1241
        %1558 = vmatprep.subr.mxu0 %v1249
        %1559 = vmatpush1.msra.mxu0 %v1247
        %1560 = vmatprep.subr.mxu0 %v1255
        %1561 = vmatpush1.msra.mxu0 %v1253
        %1562 = vmatprep.subr.mxu0 %v1261
        %1563 = vmatpush1.msra.mxu0 %v1259
        %1564 = vmatprep.subr.mxu0 %v1267
        %1565 = vmatpush1.msra.mxu0 %v1265
        %1566 = vmatprep.subr.mxu0 %v1273
        %1567 = vmatpush1.msra.mxu0 %v1271
        %1568 = vmatprep.subr.mxu0 %v1279
        %1569 = vmatpush1.msra.mxu0 %v1277
        %1570 = vmatprep.subr.mxu0 0.0
        %1571 = vmatpush1.msra.mxu0 0.0
        %1572 = vmatprep.subr.mxu0 0.0
        %1573 = vmatpush1.msra.mxu0 0.0
        %1574 = vmatprep.subr.mxu0 0.0
        %1575 = vmatpush1.msra.mxu0 0.0
        %1576 = vmatprep.subr.mxu0 0.0
        %1577 = vmatpush1.msra.mxu0 0.0
        %1578 = vmatprep.subr.mxu0 0.0
        %1579 = vmatpush1.msra.mxu0 0.0
        %1580 = vmatprep.subr.mxu0 0.0
        %1581 = vmatpush1.msra.mxu0 0.0
        %1582 = vmatprep.subr.mxu0 0.0
        %1583 = vmatpush1.msra.mxu0 0.0
        %1584 = vmatprep.subr.mxu0 0.0
        %1585 = vmatpush1.msra.mxu0 0.0
        %1586 = vmatprep.subr.mxu0 0.0
        %1587 = vmatpush1.msra.mxu0 0.0
        %1588 = vmatprep.subr.mxu0 0.0
        %1589 = vmatpush1.msra.mxu0 0.0
        %1590 = vmatprep.subr.mxu0 0.0
        %1591 = vmatpush1.msra.mxu0 0.0
        %1592 = vmatprep.subr.mxu0 0.0
        %1593 = vmatpush1.msra.mxu0 0.0
        %1594 = vmatprep.subr.mxu0 0.0
        %1595 = vmatpush1.msra.mxu0 0.0
        %1596 = vmatprep.subr.mxu0 0.0
        %1597 = vmatpush1.msra.mxu0 0.0
        %1598 = vmatprep.subr.mxu0 0.0
        %1599 = vmatpush1.msra.mxu0 0.0
        %1600 = vmatprep.subr.mxu0 0.0
        %1601 = vmatpush1.msra.mxu0 0.0
        %1602 = vmatprep.subr.mxu0 0.0
        %1603 = vmatpush1.msra.mxu0 0.0
        %1604 = vmatprep.subr.mxu0 0.0
        %1605 = vmatpush1.msra.mxu0 0.0
        %1606 = vmatprep.subr.mxu0 0.0
        %1607 = vmatpush1.msra.mxu0 0.0
        %1608 = vmatprep.subr.mxu0 0.0
        %1609 = vmatpush1.msra.mxu0 0.0
        %1610 = vmatprep.subr.mxu0 0.0
        %1611 = vmatpush1.msra.mxu0 0.0
        %1612 = vmatprep.subr.mxu0 0.0
        %1613 = vmatpush1.msra.mxu0 0.0
        %1614 = vmatprep.subr.mxu0 0.0
        %1615 = vmatpush1.msra.mxu0 0.0
        %1616 = vmatprep.subr.mxu0 0.0
        %1617 = vmatpush1.msra.mxu0 0.0
        %1618 = vmatprep.mubr.f32.mxu0 0.0
        %1619 = vmatmul.mubr.f32.gmra.mrb[0].mxu0 %v1531
        %v1620 = vpop.f32.mrb[0].mxu0
        %v1621 = vadd.f32 %v1492, %v1620
        %v1622 = vpop.f32.mrb[0].mxu0
        %v1623 = vadd.f32 %v1492, %v1622
        %1624 = vmatprep.mubr.f32.mxu0 0.0
        %1625 = vmatmul.mubr.f32.gmra.mrb[0].mxu0 %v1534
        %v1626 = vpop.f32.mrb[0].mxu0
        %v1627 = vadd.f32 %v1497, %v1626
        %v1628 = vpop.f32.mrb[0].mxu0
        %v1629 = vadd.f32 %v1497, %v1628
        %1630 = vmatprep.mubr.f32.mxu0 0.0
        %1631 = vmatmul.mubr.f32.gmra.mrb[0].mxu0 %v1537
        %v1632 = vpop.f32.mrb[0].mxu0
        %v1633 = vadd.f32 %v1502, %v1632
        %v1634 = vpop.f32.mrb[0].mxu0
        %v1635 = vadd.f32 %v1502, %v1634
        %1636 = vmatprep.mubr.f32.mxu0 0.0
        %1637 = vmatmul.mubr.f32.gmra.mrb[0].mxu0 %v1540
        %v1638 = vpop.f32.mrb[0].mxu0
        %v1639 = vadd.f32 %v1507, %v1638
        %v1640 = vpop.f32.mrb[0].mxu0
        %v1641 = vadd.f32 %v1507, %v1640
        %1642 = vmatprep.mubr.f32.mxu0 0.0
        %1643 = vmatmul.mubr.f32.gmra.mrb[0].mxu0 %v1543
        %v1644 = vpop.f32.mrb[0].mxu0
        %v1645 = vadd.f32 %v1512, %v1644
        %v1646 = vpop.f32.mrb[0].mxu0
        %v1647 = vadd.f32 %v1512, %v1646
        %1648 = vmatprep.mubr.f32.mxu0 0.0
        %1649 = vmatmul.mubr.f32.gmra.mrb[0].mxu0 %v1546
        %v1650 = vpop.f32.mrb[0].mxu0
        %v1651 = vadd.f32 %v1517, %v1650
        %v1652 = vpop.f32.mrb[0].mxu0
        %v1653 = vadd.f32 %v1517, %v1652
        %1654 = vmatprep.mubr.f32.mxu0 0.0
        %1655 = vmatmul.mubr.f32.gmra.mrb[0].mxu0 %v1549
        %v1656 = vpop.f32.mrb[0].mxu0
        %v1657 = vadd.f32 %v1522, %v1656
        %v1658 = vpop.f32.mrb[0].mxu0
        %v1659 = vadd.f32 %v1522, %v1658
        %1660 = vmatprep.mubr.f32.mxu0 0.0
        %1661 = vmatmul.mubr.f32.gmra.mrb[0].mxu0 %v1552
        %v1662 = vpop.f32.mrb[0].mxu0
        %v1663 = vadd.f32 %v1527, %v1662
        %v1664 = vpop.f32.mrb[0].mxu0
        %v1665 = vadd.f32 %v1527, %v1664
        %1666 = vdwg.mxu0
        %1667 = vmatprep.subr.mxu0 %v1285
        %1668 = vmatpush1.msra.mxu0 %v1283
        %1669 = vmatprep.subr.mxu0 %v1291
        %1670 = vmatpush1.msra.mxu0 %v1289
        %1671 = vmatprep.subr.mxu0 %v1297
        %1672 = vmatpush1.msra.mxu0 %v1295
        %1673 = vmatprep.subr.mxu0 %v1303
        %1674 = vmatpush1.msra.mxu0 %v1301
        %1675 = vmatprep.subr.mxu0 %v1309
        %1676 = vmatpush1.msra.mxu0 %v1307
        %1677 = vmatprep.subr.mxu0 %v1315
        %1678 = vmatpush1.msra.mxu0 %v1313
        %1679 = vmatprep.subr.mxu0 %v1321
        %1680 = vmatpush1.msra.mxu0 %v1319
        %1681 = vmatprep.subr.mxu0 %v1327
        %1682 = vmatpush1.msra.mxu0 %v1325
        %1683 = vmatprep.subr.mxu0 0.0
        %1684 = vmatpush1.msra.mxu0 0.0
        %1685 = vmatprep.subr.mxu0 0.0
        %1686 = vmatpush1.msra.mxu0 0.0
        %1687 = vmatprep.subr.mxu0 0.0
        %1688 = vmatpush1.msra.mxu0 0.0
        %1689 = vmatprep.subr.mxu0 0.0
        %1690 = vmatpush1.msra.mxu0 0.0
        %1691 = vmatprep.subr.mxu0 0.0
        %1692 = vmatpush1.msra.mxu0 0.0
        %1693 = vmatprep.subr.mxu0 0.0
        %1694 = vmatpush1.msra.mxu0 0.0
        %1695 = vmatprep.subr.mxu0 0.0
        %1696 = vmatpush1.msra.mxu0 0.0
        %1697 = vmatprep.subr.mxu0 0.0
        %1698 = vmatpush1.msra.mxu0 0.0
        %1699 = vmatprep.subr.mxu0 0.0
        %1700 = vmatpush1.msra.mxu0 0.0
        %1701 = vmatprep.subr.mxu0 0.0
        %1702 = vmatpush1.msra.mxu0 0.0
        %1703 = vmatprep.subr.mxu0 0.0
        %1704 = vmatpush1.msra.mxu0 0.0
        %1705 = vmatprep.subr.mxu0 0.0
        %1706 = vmatpush1.msra.mxu0 0.0
        %1707 = vmatprep.subr.mxu0 0.0
        %1708 = vmatpush1.msra.mxu0 0.0
        %1709 = vmatprep.subr.mxu0 0.0
        %1710 = vmatpush1.msra.mxu0 0.0
        %1711 = vmatprep.subr.mxu0 0.0
        %1712 = vmatpush1.msra.mxu0 0.0
        %1713 = vmatprep.subr.mxu0 0.0
        %1714 = vmatpush1.msra.mxu0 0.0
        %1715 = vmatprep.subr.mxu0 0.0
        %1716 = vmatpush1.msra.mxu0 0.0
        %1717 = vmatprep.subr.mxu0 0.0
        %1718 = vmatpush1.msra.mxu0 0.0
        %1719 = vmatprep.subr.mxu0 0.0
        %1720 = vmatpush1.msra.mxu0 0.0
        %1721 = vmatprep.subr.mxu0 0.0
        %1722 = vmatpush1.msra.mxu0 0.0
        %1723 = vmatprep.subr.mxu0 0.0
        %1724 = vmatpush1.msra.mxu0 0.0
        %1725 = vmatprep.subr.mxu0 0.0
        %1726 = vmatpush1.msra.mxu0 0.0
        %1727 = vmatprep.subr.mxu0 0.0
        %1728 = vmatpush1.msra.mxu0 0.0
        %1729 = vmatprep.subr.mxu0 0.0
        %1730 = vmatpush1.msra.mxu0 0.0
        %1731 = vmatprep.mubr.f32.mxu0 0.0
        %1732 = vmatmul.mubr.f32.gmra.mrb[0].mxu0 %v1531
        %v1733 = vpop.f32.mrb[0].mxu0
        %v1734 = vadd.f32 %v1492, %v1733
        %v1735 = vpop.f32.mrb[0].mxu0
        %v1736 = vadd.f32 %v1492, %v1735
        %1737 = vmatprep.mubr.f32.mxu0 0.0
        %1738 = vmatmul.mubr.f32.gmra.mrb[0].mxu0 %v1534
        %v1739 = vpop.f32.mrb[0].mxu0
        %v1740 = vadd.f32 %v1497, %v1739
        %v1741 = vpop.f32.mrb[0].mxu0
        %v1742 = vadd.f32 %v1497, %v1741
        %1743 = vmatprep.mubr.f32.mxu0 0.0
        %1744 = vmatmul.mubr.f32.gmra.mrb[0].mxu0 %v1537
        %v1745 = vpop.f32.mrb[0].mxu0
        %v1746 = vadd.f32 %v1502, %v1745
        %v1747 = vpop.f32.mrb[0].mxu0
        %v1748 = vadd.f32 %v1502, %v1747
        %1749 = vmatprep.mubr.f32.mxu0 0.0
        %1750 = vmatmul.mubr.f32.gmra.mrb[0].mxu0 %v1540
        %v1751 = vpop.f32.mrb[0].mxu0
        %v1752 = vadd.f32 %v1507, %v1751
        %v1753 = vpop.f32.mrb[0].mxu0
        %v1754 = vadd.f32 %v1507, %v1753
        %1755 = vmatprep.mubr.f32.mxu0 0.0
        %1756 = vmatmul.mubr.f32.gmra.mrb[0].mxu0 %v1543
        %v1757 = vpop.f32.mrb[0].mxu0
        %v1758 = vadd.f32 %v1512, %v1757
        %v1759 = vpop.f32.mrb[0].mxu0
        %v1760 = vadd.f32 %v1512, %v1759
        %1761 = vmatprep.mubr.f32.mxu0 0.0
        %1762 = vmatmul.mubr.f32.gmra.mrb[0].mxu0 %v1546
        %v1763 = vpop.f32.mrb[0].mxu0
        %v1764 = vadd.f32 %v1517, %v1763
        %v1765 = vpop.f32.mrb[0].mxu0
        %v1766 = vadd.f32 %v1517, %v1765
        %1767 = vmatprep.mubr.f32.mxu0 0.0
        %1768 = vmatmul.mubr.f32.gmra.mrb[0].mxu0 %v1549
        %v1769 = vpop.f32.mrb[0].mxu0
        %v1770 = vadd.f32 %v1522, %v1769
        %v1771 = vpop.f32.mrb[0].mxu0
        %v1772 = vadd.f32 %v1522, %v1771
        %1773 = vmatprep.mubr.f32.mxu0 0.0
        %1774 = vmatmul.mubr.f32.gmra.mrb[0].mxu0 %v1552
        %v1775 = vpop.f32.mrb[0].mxu0
        %v1776 = vadd.f32 %v1527, %v1775
        %v1777 = vpop.f32.mrb[0].mxu0
        %v1778 = vadd.f32 %v1527, %v1777
        %1779 = vdwg.mxu0
        %1780 = vmatprep.subr.mxu0 %v1333
        %1781 = vmatpush1.msra.mxu0 %v1331
        %1782 = vmatprep.subr.mxu0 %v1339
        %1783 = vmatpush1.msra.mxu0 %v1337
        %1784 = vmatprep.subr.mxu0 %v1345
        %1785 = vmatpush1.msra.mxu0 %v1343
        %1786 = vmatprep.subr.mxu0 %v1351
        %1787 = vmatpush1.msra.mxu0 %v1349
        %1788 = vmatprep.subr.mxu0 %v1357
        %1789 = vmatpush1.msra.mxu0 %v1355
        %1790 = vmatprep.subr.mxu0 %v1363
        %1791 = vmatpush1.msra.mxu0 %v1361
        %1792 = vmatprep.subr.mxu0 %v1369
        %1793 = vmatpush1.msra.mxu0 %v1367
        %1794 = vmatprep.subr.mxu0 %v1375
        %1795 = vmatpush1.msra.mxu0 %v1373
        %1796 = vmatprep.subr.mxu0 0.0
        %1797 = vmatpush1.msra.mxu0 0.0
        %1798 = vmatprep.subr.mxu0 0.0
        %1799 = vmatpush1.msra.mxu0 0.0
        %1800 = vmatprep.subr.mxu0 0.0
        %1801 = vmatpush1.msra.mxu0 0.0
        %1802 = vmatprep.subr.mxu0 0.0
        %1803 = vmatpush1.msra.mxu0 0.0
        %1804 = vmatprep.subr.mxu0 0.0
        %1805 = vmatpush1.msra.mxu0 0.0
        %1806 = vmatprep.subr.mxu0 0.0
        %1807 = vmatpush1.msra.mxu0 0.0
        %1808 = vmatprep.subr.mxu0 0.0
        %1809 = vmatpush1.msra.mxu0 0.0
        %1810 = vmatprep.subr.mxu0 0.0
        %1811 = vmatpush1.msra.mxu0 0.0
        %1812 = vmatprep.subr.mxu0 0.0
        %1813 = vmatpush1.msra.mxu0 0.0
        %1814 = vmatprep.subr.mxu0 0.0
        %1815 = vmatpush1.msra.mxu0 0.0
        %1816 = vmatprep.subr.mxu0 0.0
        %1817 = vmatpush1.msra.mxu0 0.0
        %1818 = vmatprep.subr.mxu0 0.0
        %1819 = vmatpush1.msra.mxu0 0.0
        %1820 = vmatprep.subr.mxu0 0.0
        %1821 = vmatpush1.msra.mxu0 0.0
        %1822 = vmatprep.subr.mxu0 0.0
        %1823 = vmatpush1.msra.mxu0 0.0
        %1824 = vmatprep.subr.mxu0 0.0
        %1825 = vmatpush1.msra.mxu0 0.0
        %1826 = vmatprep.subr.mxu0 0.0
        %1827 = vmatpush1.msra.mxu0 0.0
        %1828 = vmatprep.subr.mxu0 0.0
        %1829 = vmatpush1.msra.mxu0 0.0
        %1830 = vmatprep.subr.mxu0 0.0
        %1831 = vmatpush1.msra.mxu0 0.0
        %1832 = vmatprep.subr.mxu0 0.0
        %1833 = vmatpush1.msra.mxu0 0.0
        %1834 = vmatprep.subr.mxu0 0.0
        %1835 = vmatpush1.msra.mxu0 0.0
        %1836 = vmatprep.subr.mxu0 0.0
        %1837 = vmatpush1.msra.mxu0 0.0
        %1838 = vmatprep.subr.mxu0 0.0
        %1839 = vmatpush1.msra.mxu0 0.0
        %1840 = vmatprep.subr.mxu0 0.0
        %1841 = vmatpush1.msra.mxu0 0.0
        %1842 = vmatprep.subr.mxu0 0.0
        %1843 = vmatpush1.msra.mxu0 0.0
        %1844 = vmatprep.mubr.f32.mxu0 0.0
        %1845 = vmatmul.mubr.f32.gmra.mrb[0].mxu0 %v1531
        %v1846 = vpop.f32.mrb[0].mxu0
        %v1847 = vadd.f32 %v1492, %v1846
        %v1848 = vpop.f32.mrb[0].mxu0
        %v1849 = vadd.f32 %v1492, %v1848
        %1850 = vmatprep.mubr.f32.mxu0 0.0
        %1851 = vmatmul.mubr.f32.gmra.mrb[0].mxu0 %v1534
        %v1852 = vpop.f32.mrb[0].mxu0
        %v1853 = vadd.f32 %v1497, %v1852
        %v1854 = vpop.f32.mrb[0].mxu0
        %v1855 = vadd.f32 %v1497, %v1854
        %1856 = vmatprep.mubr.f32.mxu0 0.0
        %1857 = vmatmul.mubr.f32.gmra.mrb[0].mxu0 %v1537
        %v1858 = vpop.f32.mrb[0].mxu0
        %v1859 = vadd.f32 %v1502, %v1858
        %v1860 = vpop.f32.mrb[0].mxu0
        %v1861 = vadd.f32 %v1502, %v1860
        %1862 = vmatprep.mubr.f32.mxu0 0.0
        %1863 = vmatmul.mubr.f32.gmra.mrb[0].mxu0 %v1540
        %v1864 = vpop.f32.mrb[0].mxu0
        %v1865 = vadd.f32 %v1507, %v1864
        %v1866 = vpop.f32.mrb[0].mxu0
        %v1867 = vadd.f32 %v1507, %v1866
        %1868 = vmatprep.mubr.f32.mxu0 0.0
        %1869 = vmatmul.mubr.f32.gmra.mrb[0].mxu0 %v1543
        %v1870 = vpop.f32.mrb[0].mxu0
        %v1871 = vadd.f32 %v1512, %v1870
        %v1872 = vpop.f32.mrb[0].mxu0
        %v1873 = vadd.f32 %v1512, %v1872
        %1874 = vmatprep.mubr.f32.mxu0 0.0
        %1875 = vmatmul.mubr.f32.gmra.mrb[0].mxu0 %v1546
        %v1876 = vpop.f32.mrb[0].mxu0
        %v1877 = vadd.f32 %v1517, %v1876
        %v1878 = vpop.f32.mrb[0].mxu0
        %v1879 = vadd.f32 %v1517, %v1878
        %1880 = vmatprep.mubr.f32.mxu0 0.0
        %1881 = vmatmul.mubr.f32.gmra.mrb[0].mxu0 %v1549
        %v1882 = vpop.f32.mrb[0].mxu0
        %v1883 = vadd.f32 %v1522, %v1882
        %v1884 = vpop.f32.mrb[0].mxu0
        %v1885 = vadd.f32 %v1522, %v1884
        %1886 = vmatprep.mubr.f32.mxu0 0.0
        %1887 = vmatmul.mubr.f32.gmra.mrb[0].mxu0 %v1552
        %v1888 = vpop.f32.mrb[0].mxu0
        %v1889 = vadd.f32 %v1527, %v1888
        %v1890 = vpop.f32.mrb[0].mxu0
        %v1891 = vadd.f32 %v1527, %v1890
        %1892 = vdwg.mxu0
        %1893 = vmatprep.subr.mxu0 %v1381
        %1894 = vmatpush1.msra.mxu0 %v1379
        %1895 = vmatprep.subr.mxu0 %v1387
        %1896 = vmatpush1.msra.mxu0 %v1385
        %1897 = vmatprep.subr.mxu0 %v1393
        %1898 = vmatpush1.msra.mxu0 %v1391
        %1899 = vmatprep.subr.mxu0 %v1399
        %1900 = vmatpush1.msra.mxu0 %v1397
        %1901 = vmatprep.subr.mxu0 %v1405
        %1902 = vmatpush1.msra.mxu0 %v1403
        %1903 = vmatprep.subr.mxu0 %v1411
        %1904 = vmatpush1.msra.mxu0 %v1409
        %1905 = vmatprep.subr.mxu0 %v1417
        %1906 = vmatpush1.msra.mxu0 %v1415
        %1907 = vmatprep.subr.mxu0 %v1423
        %1908 = vmatpush1.msra.mxu0 %v1421
        %1909 = vmatprep.subr.mxu0 0.0
        %1910 = vmatpush1.msra.mxu0 0.0
        %1911 = vmatprep.subr.mxu0 0.0
        %1912 = vmatpush1.msra.mxu0 0.0
        %1913 = vmatprep.subr.mxu0 0.0
        %1914 = vmatpush1.msra.mxu0 0.0
        %1915 = vmatprep.subr.mxu0 0.0
        %1916 = vmatpush1.msra.mxu0 0.0
        %1917 = vmatprep.subr.mxu0 0.0
        %1918 = vmatpush1.msra.mxu0 0.0
        %1919 = vmatprep.subr.mxu0 0.0
        %1920 = vmatpush1.msra.mxu0 0.0
        %1921 = vmatprep.subr.mxu0 0.0
        %1922 = vmatpush1.msra.mxu0 0.0
        %1923 = vmatprep.subr.mxu0 0.0
        %1924 = vmatpush1.msra.mxu0 0.0
        %1925 = vmatprep.subr.mxu0 0.0
        %1926 = vmatpush1.msra.mxu0 0.0
        %1927 = vmatprep.subr.mxu0 0.0
        %1928 = vmatpush1.msra.mxu0 0.0
        %1929 = vmatprep.subr.mxu0 0.0
        %1930 = vmatpush1.msra.mxu0 0.0
        %1931 = vmatprep.subr.mxu0 0.0
        %1932 = vmatpush1.msra.mxu0 0.0
        %1933 = vmatprep.subr.mxu0 0.0
        %1934 = vmatpush1.msra.mxu0 0.0
        %1935 = vmatprep.subr.mxu0 0.0
        %1936 = vmatpush1.msra.mxu0 0.0
        %1937 = vmatprep.subr.mxu0 0.0
        %1938 = vmatpush1.msra.mxu0 0.0
        %1939 = vmatprep.subr.mxu0 0.0
        %1940 = vmatpush1.msra.mxu0 0.0
        %1941 = vmatprep.subr.mxu0 0.0
        %1942 = vmatpush1.msra.mxu0 0.0
        %1943 = vmatprep.subr.mxu0 0.0
        %1944 = vmatpush1.msra.mxu0 0.0
        %1945 = vmatprep.subr.mxu0 0.0
        %1946 = vmatpush1.msra.mxu0 0.0
        %1947 = vmatprep.subr.mxu0 0.0
        %1948 = vmatpush1.msra.mxu0 0.0
        %1949 = vmatprep.subr.mxu0 0.0
        %1950 = vmatpush1.msra.mxu0 0.0
        %1951 = vmatprep.subr.mxu0 0.0
        %1952 = vmatpush1.msra.mxu0 0.0
        %1953 = vmatprep.subr.mxu0 0.0
        %1954 = vmatpush1.msra.mxu0 0.0
        %1955 = vmatprep.subr.mxu0 0.0
        %1956 = vmatpush1.msra.mxu0 0.0
        %1957 = vmatprep.mubr.f32.mxu0 0.0
        %1958 = vmatmul.mubr.f32.gmra.mrb[0].mxu0 %v1531
        %v1959 = vpop.f32.mrb[0].mxu0
        %v1960 = vadd.f32 %v1492, %v1959
        %v1961 = vpop.f32.mrb[0].mxu0
        %v1962 = vadd.f32 %v1492, %v1961
        %1963 = vmatprep.mubr.f32.mxu0 0.0
        %1964 = vmatmul.mubr.f32.gmra.mrb[0].mxu0 %v1534
        %v1965 = vpop.f32.mrb[0].mxu0
        %v1966 = vadd.f32 %v1497, %v1965
        %v1967 = vpop.f32.mrb[0].mxu0
        %v1968 = vadd.f32 %v1497, %v1967
        %1969 = vmatprep.mubr.f32.mxu0 0.0
        %1970 = vmatmul.mubr.f32.gmra.mrb[0].mxu0 %v1537
        %v1971 = vpop.f32.mrb[0].mxu0
        %v1972 = vadd.f32 %v1502, %v1971
        %v1973 = vpop.f32.mrb[0].mxu0
        %v1974 = vadd.f32 %v1502, %v1973
        %1975 = vmatprep.mubr.f32.mxu0 0.0
        %1976 = vmatmul.mubr.f32.gmra.mrb[0].mxu0 %v1540
        %v1977 = vpop.f32.mrb[0].mxu0
        %v1978 = vadd.f32 %v1507, %v1977
        %v1979 = vpop.f32.mrb[0].mxu0
        %v1980 = vadd.f32 %v1507, %v1979
        %1981 = vmatprep.mubr.f32.mxu0 0.0
        %1982 = vmatmul.mubr.f32.gmra.mrb[0].mxu0 %v1543
        %v1983 = vpop.f32.mrb[0].mxu0
        %v1984 = vadd.f32 %v1512, %v1983
        %v1985 = vpop.f32.mrb[0].mxu0
        %v1986 = vadd.f32 %v1512, %v1985
        %1987 = vmatprep.mubr.f32.mxu0 0.0
        %1988 = vmatmul.mubr.f32.gmra.mrb[0].mxu0 %v1546
        %v1989 = vpop.f32.mrb[0].mxu0
        %v1990 = vadd.f32 %v1517, %v1989
        %v1991 = vpop.f32.mrb[0].mxu0
        %v1992 = vadd.f32 %v1517, %v1991
        %1993 = vmatprep.mubr.f32.mxu0 0.0
        %1994 = vmatmul.mubr.f32.gmra.mrb[0].mxu0 %v1549
        %v1995 = vpop.f32.mrb[0].mxu0
        %v1996 = vadd.f32 %v1522, %v1995
        %v1997 = vpop.f32.mrb[0].mxu0
        %v1998 = vadd.f32 %v1522, %v1997
        %1999 = vmatprep.mubr.f32.mxu0 0.0
        %2000 = vmatmul.mubr.f32.gmra.mrb[0].mxu0 %v1552
        %v2001 = vpop.f32.mrb[0].mxu0
        %v2002 = vadd.f32 %v1527, %v2001
        %v2003 = vpop.f32.mrb[0].mxu0
        %v2004 = vadd.f32 %v1527, %v2003
        %2005 = vdwg.mxu0
        %2007 = vset.pattern.permute.xlu0 0
        %2008 = vperm.xlu0 %2007, %v1449
        %v2009 = vpop.permute.xlu0 %2008
        %2012 = vset.pattern.permute.xlu0 0
        %2013 = vperm.xlu0 %2012, %v1450
        %v2014 = vpop.permute.xlu0 %2013
        %2017 = vset.pattern.permute.xlu0 0
        %2018 = vperm.xlu0 %2017, %v1451
        %v2019 = vpop.permute.xlu0 %2018
        %2022 = vset.pattern.permute.xlu0 0
        %2023 = vperm.xlu0 %2022, %v1452
        %v2024 = vpop.permute.xlu0 %2023
        %2027 = vset.pattern.permute.xlu0 0
        %2028 = vperm.xlu0 %2027, %v1453
        %v2029 = vpop.permute.xlu0 %2028
        %2032 = vset.pattern.permute.xlu0 0
        %2033 = vperm.xlu0 %2032, %v1454
        %v2034 = vpop.permute.xlu0 %2033
        %2037 = vset.pattern.permute.xlu0 0
        %2038 = vperm.xlu0 %2037, %v1455
        %v2039 = vpop.permute.xlu0 %2038
        %2042 = vset.pattern.permute.xlu0 0
        %2043 = vperm.xlu0 %2042, %v1456
        %v2044 = vpop.permute.xlu0 %2043
        %v2047 = vsel %vm1529, %v1441, 0
        %v2050 = vsel %vm1529, %v1442, 0
        %v2053 = vsel %vm1529, %v1443, 0
        %v2056 = vsel %vm1529, %v1444, 0
        %v2059 = vsel %vm1529, %v1445, 0
        %v2062 = vsel %vm1529, %v1446, 0
        %v2065 = vsel %vm1529, %v1447, 0
        %v2068 = vsel %vm1529, %v1448, 0
        %2070 = vmatprep.subr.mxu0 %v1237
        %2071 = vmatpush1.msra.mxu0 %v1235
        %2072 = vmatprep.subr.mxu0 %v1243
        %2073 = vmatpush1.msra.mxu0 %v1241
        %2074 = vmatprep.subr.mxu0 %v1249
        %2075 = vmatpush1.msra.mxu0 %v1247
        %2076 = vmatprep.subr.mxu0 %v1255
        %2077 = vmatpush1.msra.mxu0 %v1253
        %2078 = vmatprep.subr.mxu0 %v1261
        %2079 = vmatpush1.msra.mxu0 %v1259
        %2080 = vmatprep.subr.mxu0 %v1267
        %2081 = vmatpush1.msra.mxu0 %v1265
        %2082 = vmatprep.subr.mxu0 %v1273
        %2083 = vmatpush1.msra.mxu0 %v1271
        %2084 = vmatprep.subr.mxu0 %v1279
        %2085 = vmatpush1.msra.mxu0 %v1277
        %2086 = vmatprep.subr.mxu0 0.0
        %2087 = vmatpush1.msra.mxu0 0.0
        %2088 = vmatprep.subr.mxu0 0.0
        %2089 = vmatpush1.msra.mxu0 0.0
        %2090 = vmatprep.subr.mxu0 0.0
        %2091 = vmatpush1.msra.mxu0 0.0
        %2092 = vmatprep.subr.mxu0 0.0
        %2093 = vmatpush1.msra.mxu0 0.0
        %2094 = vmatprep.subr.mxu0 0.0
        %2095 = vmatpush1.msra.mxu0 0.0
        %2096 = vmatprep.subr.mxu0 0.0
        %2097 = vmatpush1.msra.mxu0 0.0
        %2098 = vmatprep.subr.mxu0 0.0
        %2099 = vmatpush1.msra.mxu0 0.0
        %2100 = vmatprep.subr.mxu0 0.0
        %2101 = vmatpush1.msra.mxu0 0.0
        %2102 = vmatprep.subr.mxu0 0.0
        %2103 = vmatpush1.msra.mxu0 0.0
        %2104 = vmatprep.subr.mxu0 0.0
        %2105 = vmatpush1.msra.mxu0 0.0
        %2106 = vmatprep.subr.mxu0 0.0
        %2107 = vmatpush1.msra.mxu0 0.0
        %2108 = vmatprep.subr.mxu0 0.0
        %2109 = vmatpush1.msra.mxu0 0.0
        %2110 = vmatprep.subr.mxu0 0.0
        %2111 = vmatpush1.msra.mxu0 0.0
        %2112 = vmatprep.subr.mxu0 0.0
        %2113 = vmatpush1.msra.mxu0 0.0
        %2114 = vmatprep.subr.mxu0 0.0
        %2115 = vmatpush1.msra.mxu0 0.0
        %2116 = vmatprep.subr.mxu0 0.0
        %2117 = vmatpush1.msra.mxu0 0.0
        %2118 = vmatprep.subr.mxu0 0.0
        %2119 = vmatpush1.msra.mxu0 0.0
        %2120 = vmatprep.subr.mxu0 0.0
        %2121 = vmatpush1.msra.mxu0 0.0
        %2122 = vmatprep.subr.mxu0 0.0
        %2123 = vmatpush1.msra.mxu0 0.0
        %2124 = vmatprep.subr.mxu0 0.0
        %2125 = vmatpush1.msra.mxu0 0.0
        %2126 = vmatprep.subr.mxu0 0.0
        %2127 = vmatpush1.msra.mxu0 0.0
        %2128 = vmatprep.subr.mxu0 0.0
        %2129 = vmatpush1.msra.mxu0 0.0
        %2130 = vmatprep.subr.mxu0 0.0
        %2131 = vmatpush1.msra.mxu0 0.0
        %2132 = vmatprep.subr.mxu0 0.0
        %2133 = vmatpush1.msra.mxu0 0.0
        %2134 = vmatprep.mubr.f32.mxu0 0.0
        %2135 = vmatmul.mubr.f32.gmra.mrb[0].mxu0 %v2047
        %v2136 = vpop.f32.mrb[0].mxu0
        %v2137 = vadd.f32 %v2009, %v2136
        %v2138 = vpop.f32.mrb[0].mxu0
        %v2139 = vadd.f32 %v2009, %v2138
        %2140 = vmatprep.mubr.f32.mxu0 0.0
        %2141 = vmatmul.mubr.f32.gmra.mrb[0].mxu0 %v2050
        %v2142 = vpop.f32.mrb[0].mxu0
        %v2143 = vadd.f32 %v2014, %v2142
        %v2144 = vpop.f32.mrb[0].mxu0
        %v2145 = vadd.f32 %v2014, %v2144
        %2146 = vmatprep.mubr.f32.mxu0 0.0
        %2147 = vmatmul.mubr.f32.gmra.mrb[0].mxu0 %v2053
        %v2148 = vpop.f32.mrb[0].mxu0
        %v2149 = vadd.f32 %v2019, %v2148
        %v2150 = vpop.f32.mrb[0].mxu0
        %v2151 = vadd.f32 %v2019, %v2150
        %2152 = vmatprep.mubr.f32.mxu0 0.0
        %2153 = vmatmul.mubr.f32.gmra.mrb[0].mxu0 %v2056
        %v2154 = vpop.f32.mrb[0].mxu0
        %v2155 = vadd.f32 %v2024, %v2154
        %v2156 = vpop.f32.mrb[0].mxu0
        %v2157 = vadd.f32 %v2024, %v2156
        %2158 = vmatprep.mubr.f32.mxu0 0.0
        %2159 = vmatmul.mubr.f32.gmra.mrb[0].mxu0 %v2059
        %v2160 = vpop.f32.mrb[0].mxu0
        %v2161 = vadd.f32 %v2029, %v2160
        %v2162 = vpop.f32.mrb[0].mxu0
        %v2163 = vadd.f32 %v2029, %v2162
        %2164 = vmatprep.mubr.f32.mxu0 0.0
        %2165 = vmatmul.mubr.f32.gmra.mrb[0].mxu0 %v2062
        %v2166 = vpop.f32.mrb[0].mxu0
        %v2167 = vadd.f32 %v2034, %v2166
        %v2168 = vpop.f32.mrb[0].mxu0
        %v2169 = vadd.f32 %v2034, %v2168
        %2170 = vmatprep.mubr.f32.mxu0 0.0
        %2171 = vmatmul.mubr.f32.gmra.mrb[0].mxu0 %v2065
        %v2172 = vpop.f32.mrb[0].mxu0
        %v2173 = vadd.f32 %v2039, %v2172
        %v2174 = vpop.f32.mrb[0].mxu0
        %v2175 = vadd.f32 %v2039, %v2174
        %2176 = vmatprep.mubr.f32.mxu0 0.0
        %2177 = vmatmul.mubr.f32.gmra.mrb[0].mxu0 %v2068
        %v2178 = vpop.f32.mrb[0].mxu0
        %v2179 = vadd.f32 %v2044, %v2178
        %v2180 = vpop.f32.mrb[0].mxu0
        %v2181 = vadd.f32 %v2044, %v2180
        %2182 = vdwg.mxu0
        %2183 = vmatprep.subr.mxu0 %v1285
        %2184 = vmatpush1.msra.mxu0 %v1283
        %2185 = vmatprep.subr.mxu0 %v1291
        %2186 = vmatpush1.msra.mxu0 %v1289
        %2187 = vmatprep.subr.mxu0 %v1297
        %2188 = vmatpush1.msra.mxu0 %v1295
        %2189 = vmatprep.subr.mxu0 %v1303
        %2190 = vmatpush1.msra.mxu0 %v1301
        %2191 = vmatprep.subr.mxu0 %v1309
        %2192 = vmatpush1.msra.mxu0 %v1307
        %2193 = vmatprep.subr.mxu0 %v1315
        %2194 = vmatpush1.msra.mxu0 %v1313
        %2195 = vmatprep.subr.mxu0 %v1321
        %2196 = vmatpush1.msra.mxu0 %v1319
        %2197 = vmatprep.subr.mxu0 %v1327
        %2198 = vmatpush1.msra.mxu0 %v1325
        %2199 = vmatprep.subr.mxu0 0.0
        %2200 = vmatpush1.msra.mxu0 0.0
        %2201 = vmatprep.subr.mxu0 0.0
        %2202 = vmatpush1.msra.mxu0 0.0
        %2203 = vmatprep.subr.mxu0 0.0
        %2204 = vmatpush1.msra.mxu0 0.0
        %2205 = vmatprep.subr.mxu0 0.0
        %2206 = vmatpush1.msra.mxu0 0.0
        %2207 = vmatprep.subr.mxu0 0.0
        %2208 = vmatpush1.msra.mxu0 0.0
        %2209 = vmatprep.subr.mxu0 0.0
        %2210 = vmatpush1.msra.mxu0 0.0
        %2211 = vmatprep.subr.mxu0 0.0
        %2212 = vmatpush1.msra.mxu0 0.0
        %2213 = vmatprep.subr.mxu0 0.0
        %2214 = vmatpush1.msra.mxu0 0.0
        %2215 = vmatprep.subr.mxu0 0.0
        %2216 = vmatpush1.msra.mxu0 0.0
        %2217 = vmatprep.subr.mxu0 0.0
        %2218 = vmatpush1.msra.mxu0 0.0
        %2219 = vmatprep.subr.mxu0 0.0
        %2220 = vmatpush1.msra.mxu0 0.0
        %2221 = vmatprep.subr.mxu0 0.0
        %2222 = vmatpush1.msra.mxu0 0.0
        %2223 = vmatprep.subr.mxu0 0.0
        %2224 = vmatpush1.msra.mxu0 0.0
        %2225 = vmatprep.subr.mxu0 0.0
        %2226 = vmatpush1.msra.mxu0 0.0
        %2227 = vmatprep.subr.mxu0 0.0
        %2228 = vmatpush1.msra.mxu0 0.0
        %2229 = vmatprep.subr.mxu0 0.0
        %2230 = vmatpush1.msra.mxu0 0.0
        %2231 = vmatprep.subr.mxu0 0.0
        %2232 = vmatpush1.msra.mxu0 0.0
        %2233 = vmatprep.subr.mxu0 0.0
        %2234 = vmatpush1.msra.mxu0 0.0
        %2235 = vmatprep.subr.mxu0 0.0
        %2236 = vmatpush1.msra.mxu0 0.0
        %2237 = vmatprep.subr.mxu0 0.0
        %2238 = vmatpush1.msra.mxu0 0.0
        %2239 = vmatprep.subr.mxu0 0.0
        %2240 = vmatpush1.msra.mxu0 0.0
        %2241 = vmatprep.subr.mxu0 0.0
        %2242 = vmatpush1.msra.mxu0 0.0
        %2243 = vmatprep.subr.mxu0 0.0
        %2244 = vmatpush1.msra.mxu0 0.0
        %2245 = vmatprep.subr.mxu0 0.0
        %2246 = vmatpush1.msra.mxu0 0.0
        %2247 = vmatprep.mubr.f32.mxu0 0.0
        %2248 = vmatmul.mubr.f32.gmra.mrb[0].mxu0 %v2047
        %v2249 = vpop.f32.mrb[0].mxu0
        %v2250 = vadd.f32 %v2009, %v2249
        %v2251 = vpop.f32.mrb[0].mxu0
        %v2252 = vadd.f32 %v2009, %v2251
        %2253 = vmatprep.mubr.f32.mxu0 0.0
        %2254 = vmatmul.mubr.f32.gmra.mrb[0].mxu0 %v2050
        %v2255 = vpop.f32.mrb[0].mxu0
        %v2256 = vadd.f32 %v2014, %v2255
        %v2257 = vpop.f32.mrb[0].mxu0
        %v2258 = vadd.f32 %v2014, %v2257
        %2259 = vmatprep.mubr.f32.mxu0 0.0
        %2260 = vmatmul.mubr.f32.gmra.mrb[0].mxu0 %v2053
        %v2261 = vpop.f32.mrb[0].mxu0
        %v2262 = vadd.f32 %v2019, %v2261
        %v2263 = vpop.f32.mrb[0].mxu0
        %v2264 = vadd.f32 %v2019, %v2263
        %2265 = vmatprep.mubr.f32.mxu0 0.0
        %2266 = vmatmul.mubr.f32.gmra.mrb[0].mxu0 %v2056
        %v2267 = vpop.f32.mrb[0].mxu0
        %v2268 = vadd.f32 %v2024, %v2267
        %v2269 = vpop.f32.mrb[0].mxu0
        %v2270 = vadd.f32 %v2024, %v2269
        %2271 = vmatprep.mubr.f32.mxu0 0.0
        %2272 = vmatmul.mubr.f32.gmra.mrb[0].mxu0 %v2059
        %v2273 = vpop.f32.mrb[0].mxu0
        %v2274 = vadd.f32 %v2029, %v2273
        %v2275 = vpop.f32.mrb[0].mxu0
        %v2276 = vadd.f32 %v2029, %v2275
        %2277 = vmatprep.mubr.f32.mxu0 0.0
        %2278 = vmatmul.mubr.f32.gmra.mrb[0].mxu0 %v2062
        %v2279 = vpop.f32.mrb[0].mxu0
        %v2280 = vadd.f32 %v2034, %v2279
        %v2281 = vpop.f32.mrb[0].mxu0
        %v2282 = vadd.f32 %v2034, %v2281
        %2283 = vmatprep.mubr.f32.mxu0 0.0
        %2284 = vmatmul.mubr.f32.gmra.mrb[0].mxu0 %v2065
        %v2285 = vpop.f32.mrb[0].mxu0
        %v2286 = vadd.f32 %v2039, %v2285
        %v2287 = vpop.f32.mrb[0].mxu0
        %v2288 = vadd.f32 %v2039, %v2287
        %2289 = vmatprep.mubr.f32.mxu0 0.0
        %2290 = vmatmul.mubr.f32.gmra.mrb[0].mxu0 %v2068
        %v2291 = vpop.f32.mrb[0].mxu0
        %v2292 = vadd.f32 %v2044, %v2291
        %v2293 = vpop.f32.mrb[0].mxu0
        %v2294 = vadd.f32 %v2044, %v2293
        %2295 = vdwg.mxu0
        %2296 = vmatprep.subr.mxu0 %v1333
        %2297 = vmatpush1.msra.mxu0 %v1331
        %2298 = vmatprep.subr.mxu0 %v1339
        %2299 = vmatpush1.msra.mxu0 %v1337
        %2300 = vmatprep.subr.mxu0 %v1345
        %2301 = vmatpush1.msra.mxu0 %v1343
        %2302 = vmatprep.subr.mxu0 %v1351
        %2303 = vmatpush1.msra.mxu0 %v1349
        %2304 = vmatprep.subr.mxu0 %v1357
        %2305 = vmatpush1.msra.mxu0 %v1355
        %2306 = vmatprep.subr.mxu0 %v1363
        %2307 = vmatpush1.msra.mxu0 %v1361
        %2308 = vmatprep.subr.mxu0 %v1369
        %2309 = vmatpush1.msra.mxu0 %v1367
        %2310 = vmatprep.subr.mxu0 %v1375
        %2311 = vmatpush1.msra.mxu0 %v1373
        %2312 = vmatprep.subr.mxu0 0.0
        %2313 = vmatpush1.msra.mxu0 0.0
        %2314 = vmatprep.subr.mxu0 0.0
        %2315 = vmatpush1.msra.mxu0 0.0
        %2316 = vmatprep.subr.mxu0 0.0
        %2317 = vmatpush1.msra.mxu0 0.0
        %2318 = vmatprep.subr.mxu0 0.0
        %2319 = vmatpush1.msra.mxu0 0.0
        %2320 = vmatprep.subr.mxu0 0.0
        %2321 = vmatpush1.msra.mxu0 0.0
        %2322 = vmatprep.subr.mxu0 0.0
        %2323 = vmatpush1.msra.mxu0 0.0
        %2324 = vmatprep.subr.mxu0 0.0
        %2325 = vmatpush1.msra.mxu0 0.0
        %2326 = vmatprep.subr.mxu0 0.0
        %2327 = vmatpush1.msra.mxu0 0.0
        %2328 = vmatprep.subr.mxu0 0.0
        %2329 = vmatpush1.msra.mxu0 0.0
        %2330 = vmatprep.subr.mxu0 0.0
        %2331 = vmatpush1.msra.mxu0 0.0
        %2332 = vmatprep.subr.mxu0 0.0
        %2333 = vmatpush1.msra.mxu0 0.0
        %2334 = vmatprep.subr.mxu0 0.0
        %2335 = vmatpush1.msra.mxu0 0.0
        %2336 = vmatprep.subr.mxu0 0.0
        %2337 = vmatpush1.msra.mxu0 0.0
        %2338 = vmatprep.subr.mxu0 0.0
        %2339 = vmatpush1.msra.mxu0 0.0
        %2340 = vmatprep.subr.mxu0 0.0
        %2341 = vmatpush1.msra.mxu0 0.0
        %2342 = vmatprep.subr.mxu0 0.0
        %2343 = vmatpush1.msra.mxu0 0.0
        %2344 = vmatprep.subr.mxu0 0.0
        %2345 = vmatpush1.msra.mxu0 0.0
        %2346 = vmatprep.subr.mxu0 0.0
        %2347 = vmatpush1.msra.mxu0 0.0
        %2348 = vmatprep.subr.mxu0 0.0
        %2349 = vmatpush1.msra.mxu0 0.0
        %2350 = vmatprep.subr.mxu0 0.0
        %2351 = vmatpush1.msra.mxu0 0.0
        %2352 = vmatprep.subr.mxu0 0.0
        %2353 = vmatpush1.msra.mxu0 0.0
        %2354 = vmatprep.subr.mxu0 0.0
        %2355 = vmatpush1.msra.mxu0 0.0
        %2356 = vmatprep.subr.mxu0 0.0
        %2357 = vmatpush1.msra.mxu0 0.0
        %2358 = vmatprep.subr.mxu0 0.0
        %2359 = vmatpush1.msra.mxu0 0.0
        %2360 = vmatprep.mubr.f32.mxu0 0.0
        %2361 = vmatmul.mubr.f32.gmra.mrb[0].mxu0 %v2047
        %v2362 = vpop.f32.mrb[0].mxu0
        %v2363 = vadd.f32 %v2009, %v2362
        %v2364 = vpop.f32.mrb[0].mxu0
        %v2365 = vadd.f32 %v2009, %v2364
        %2366 = vmatprep.mubr.f32.mxu0 0.0
        %2367 = vmatmul.mubr.f32.gmra.mrb[0].mxu0 %v2050
        %v2368 = vpop.f32.mrb[0].mxu0
        %v2369 = vadd.f32 %v2014, %v2368
        %v2370 = vpop.f32.mrb[0].mxu0
        %v2371 = vadd.f32 %v2014, %v2370
        %2372 = vmatprep.mubr.f32.mxu0 0.0
        %2373 = vmatmul.mubr.f32.gmra.mrb[0].mxu0 %v2053
        %v2374 = vpop.f32.mrb[0].mxu0
        %v2375 = vadd.f32 %v2019, %v2374
        %v2376 = vpop.f32.mrb[0].mxu0
        %v2377 = vadd.f32 %v2019, %v2376
        %2378 = vmatprep.mubr.f32.mxu0 0.0
        %2379 = vmatmul.mubr.f32.gmra.mrb[0].mxu0 %v2056
        %v2380 = vpop.f32.mrb[0].mxu0
        %v2381 = vadd.f32 %v2024, %v2380
        %v2382 = vpop.f32.mrb[0].mxu0
        %v2383 = vadd.f32 %v2024, %v2382
        %2384 = vmatprep.mubr.f32.mxu0 0.0
        %2385 = vmatmul.mubr.f32.gmra.mrb[0].mxu0 %v2059
        %v2386 = vpop.f32.mrb[0].mxu0
        %v2387 = vadd.f32 %v2029, %v2386
        %v2388 = vpop.f32.mrb[0].mxu0
        %v2389 = vadd.f32 %v2029, %v2388
        %2390 = vmatprep.mubr.f32.mxu0 0.0
        %2391 = vmatmul.mubr.f32.gmra.mrb[0].mxu0 %v2062
        %v2392 = vpop.f32.mrb[0].mxu0
        %v2393 = vadd.f32 %v2034, %v2392
        %v2394 = vpop.f32.mrb[0].mxu0
        %v2395 = vadd.f32 %v2034, %v2394
        %2396 = vmatprep.mubr.f32.mxu0 0.0
        %2397 = vmatmul.mubr.f32.gmra.mrb[0].mxu0 %v2065
        %v2398 = vpop.f32.mrb[0].mxu0
        %v2399 = vadd.f32 %v2039, %v2398
        %v2400 = vpop.f32.mrb[0].mxu0
        %v2401 = vadd.f32 %v2039, %v2400
        %2402 = vmatprep.mubr.f32.mxu0 0.0
        %2403 = vmatmul.mubr.f32.gmra.mrb[0].mxu0 %v2068
        %v2404 = vpop.f32.mrb[0].mxu0
        %v2405 = vadd.f32 %v2044, %v2404
        %v2406 = vpop.f32.mrb[0].mxu0
        %v2407 = vadd.f32 %v2044, %v2406
        %2408 = vdwg.mxu0
        %2409 = vmatprep.subr.mxu0 %v1381
        %2410 = vmatpush1.msra.mxu0 %v1379
        %2411 = vmatprep.subr.mxu0 %v1387
        %2412 = vmatpush1.msra.mxu0 %v1385
        %2413 = vmatprep.subr.mxu0 %v1393
        %2414 = vmatpush1.msra.mxu0 %v1391
        %2415 = vmatprep.subr.mxu0 %v1399
        %2416 = vmatpush1.msra.mxu0 %v1397
        %2417 = vmatprep.subr.mxu0 %v1405
        %2418 = vmatpush1.msra.mxu0 %v1403
        %2419 = vmatprep.subr.mxu0 %v1411
        %2420 = vmatpush1.msra.mxu0 %v1409
        %2421 = vmatprep.subr.mxu0 %v1417
        %2422 = vmatpush1.msra.mxu0 %v1415
        %2423 = vmatprep.subr.mxu0 %v1423
        %2424 = vmatpush1.msra.mxu0 %v1421
        %2425 = vmatprep.subr.mxu0 0.0
        %2426 = vmatpush1.msra.mxu0 0.0
        %2427 = vmatprep.subr.mxu0 0.0
        %2428 = vmatpush1.msra.mxu0 0.0
        %2429 = vmatprep.subr.mxu0 0.0
        %2430 = vmatpush1.msra.mxu0 0.0
        %2431 = vmatprep.subr.mxu0 0.0
        %2432 = vmatpush1.msra.mxu0 0.0
        %2433 = vmatprep.subr.mxu0 0.0
        %2434 = vmatpush1.msra.mxu0 0.0
        %2435 = vmatprep.subr.mxu0 0.0
        %2436 = vmatpush1.msra.mxu0 0.0
        %2437 = vmatprep.subr.mxu0 0.0
        %2438 = vmatpush1.msra.mxu0 0.0
        %2439 = vmatprep.subr.mxu0 0.0
        %2440 = vmatpush1.msra.mxu0 0.0
        %2441 = vmatprep.subr.mxu0 0.0
        %2442 = vmatpush1.msra.mxu0 0.0
        %2443 = vmatprep.subr.mxu0 0.0
        %2444 = vmatpush1.msra.mxu0 0.0
        %2445 = vmatprep.subr.mxu0 0.0
        %2446 = vmatpush1.msra.mxu0 0.0
        %2447 = vmatprep.subr.mxu0 0.0
        %2448 = vmatpush1.msra.mxu0 0.0
        %2449 = vmatprep.subr.mxu0 0.0
        %2450 = vmatpush1.msra.mxu0 0.0
        %2451 = vmatprep.subr.mxu0 0.0
        %2452 = vmatpush1.msra.mxu0 0.0
        %2453 = vmatprep.subr.mxu0 0.0
        %2454 = vmatpush1.msra.mxu0 0.0
        %2455 = vmatprep.subr.mxu0 0.0
        %2456 = vmatpush1.msra.mxu0 0.0
        %2457 = vmatprep.subr.mxu0 0.0
        %2458 = vmatpush1.msra.mxu0 0.0
        %2459 = vmatprep.subr.mxu0 0.0
        %2460 = vmatpush1.msra.mxu0 0.0
        %2461 = vmatprep.subr.mxu0 0.0
        %2462 = vmatpush1.msra.mxu0 0.0
        %2463 = vmatprep.subr.mxu0 0.0
        %2464 = vmatpush1.msra.mxu0 0.0
        %2465 = vmatprep.subr.mxu0 0.0
        %2466 = vmatpush1.msra.mxu0 0.0
        %2467 = vmatprep.subr.mxu0 0.0
        %2468 = vmatpush1.msra.mxu0 0.0
        %2469 = vmatprep.subr.mxu0 0.0
        %2470 = vmatpush1.msra.mxu0 0.0
        %2471 = vmatprep.subr.mxu0 0.0
        %2472 = vmatpush1.msra.mxu0 0.0
        %2473 = vmatprep.mubr.f32.mxu0 0.0
        %2474 = vmatmul.mubr.f32.gmra.mrb[0].mxu0 %v2047
        %v2475 = vpop.f32.mrb[0].mxu0
        %v2476 = vadd.f32 %v2009, %v2475
        %v2477 = vpop.f32.mrb[0].mxu0
        %v2478 = vadd.f32 %v2009, %v2477
        %2479 = vmatprep.mubr.f32.mxu0 0.0
        %2480 = vmatmul.mubr.f32.gmra.mrb[0].mxu0 %v2050
        %v2481 = vpop.f32.mrb[0].mxu0
        %v2482 = vadd.f32 %v2014, %v2481
        %v2483 = vpop.f32.mrb[0].mxu0
        %v2484 = vadd.f32 %v2014, %v2483
        %2485 = vmatprep.mubr.f32.mxu0 0.0
        %2486 = vmatmul.mubr.f32.gmra.mrb[0].mxu0 %v2053
        %v2487 = vpop.f32.mrb[0].mxu0
        %v2488 = vadd.f32 %v2019, %v2487
        %v2489 = vpop.f32.mrb[0].mxu0
        %v2490 = vadd.f32 %v2019, %v2489
        %2491 = vmatprep.mubr.f32.mxu0 0.0
        %2492 = vmatmul.mubr.f32.gmra.mrb[0].mxu0 %v2056
        %v2493 = vpop.f32.mrb[0].mxu0
        %v2494 = vadd.f32 %v2024, %v2493
        %v2495 = vpop.f32.mrb[0].mxu0
        %v2496 = vadd.f32 %v2024, %v2495
        %2497 = vmatprep.mubr.f32.mxu0 0.0
        %2498 = vmatmul.mubr.f32.gmra.mrb[0].mxu0 %v2059
        %v2499 = vpop.f32.mrb[0].mxu0
        %v2500 = vadd.f32 %v2029, %v2499
        %v2501 = vpop.f32.mrb[0].mxu0
        %v2502 = vadd.f32 %v2029, %v2501
        %2503 = vmatprep.mubr.f32.mxu0 0.0
        %2504 = vmatmul.mubr.f32.gmra.mrb[0].mxu0 %v2062
        %v2505 = vpop.f32.mrb[0].mxu0
        %v2506 = vadd.f32 %v2034, %v2505
        %v2507 = vpop.f32.mrb[0].mxu0
        %v2508 = vadd.f32 %v2034, %v2507
        %2509 = vmatprep.mubr.f32.mxu0 0.0
        %2510 = vmatmul.mubr.f32.gmra.mrb[0].mxu0 %v2065
        %v2511 = vpop.f32.mrb[0].mxu0
        %v2512 = vadd.f32 %v2039, %v2511
        %v2513 = vpop.f32.mrb[0].mxu0
        %v2514 = vadd.f32 %v2039, %v2513
        %2515 = vmatprep.mubr.f32.mxu0 0.0
        %2516 = vmatmul.mubr.f32.gmra.mrb[0].mxu0 %v2068
        %v2517 = vpop.f32.mrb[0].mxu0
        %v2518 = vadd.f32 %v2044, %v2517
        %v2519 = vpop.f32.mrb[0].mxu0
        %v2520 = vadd.f32 %v2044, %v2519
        %2521 = vdwg.mxu0
        %2523 = vset.pattern.permute.xlu0 0
        %2524 = vperm.xlu0 %2523, %v1465
        %v2525 = vpop.permute.xlu0 %2524
        %2528 = vset.pattern.permute.xlu0 0
        %2529 = vperm.xlu0 %2528, %v1466
        %v2530 = vpop.permute.xlu0 %2529
        %2533 = vset.pattern.permute.xlu0 0
        %2534 = vperm.xlu0 %2533, %v1467
        %v2535 = vpop.permute.xlu0 %2534
        %2538 = vset.pattern.permute.xlu0 0
        %2539 = vperm.xlu0 %2538, %v1468
        %v2540 = vpop.permute.xlu0 %2539
        %2543 = vset.pattern.permute.xlu0 0
        %2544 = vperm.xlu0 %2543, %v1469
        %v2545 = vpop.permute.xlu0 %2544
        %2548 = vset.pattern.permute.xlu0 0
        %2549 = vperm.xlu0 %2548, %v1470
        %v2550 = vpop.permute.xlu0 %2549
        %2553 = vset.pattern.permute.xlu0 0
        %2554 = vperm.xlu0 %2553, %v1471
        %v2555 = vpop.permute.xlu0 %2554
        %2558 = vset.pattern.permute.xlu0 0
        %2559 = vperm.xlu0 %2558, %v1472
        %v2560 = vpop.permute.xlu0 %2559
        %v2563 = vsel %vm1529, %v1457, 0
        %v2566 = vsel %vm1529, %v1458, 0
        %v2569 = vsel %vm1529, %v1459, 0
        %v2572 = vsel %vm1529, %v1460, 0
        %v2575 = vsel %vm1529, %v1461, 0
        %v2578 = vsel %vm1529, %v1462, 0
        %v2581 = vsel %vm1529, %v1463, 0
        %v2584 = vsel %vm1529, %v1464, 0
        %2586 = vmatprep.subr.mxu0 %v1237
        %2587 = vmatpush1.msra.mxu0 %v1235
        %2588 = vmatprep.subr.mxu0 %v1243
        %2589 = vmatpush1.msra.mxu0 %v1241
        %2590 = vmatprep.subr.mxu0 %v1249
        %2591 = vmatpush1.msra.mxu0 %v1247
        %2592 = vmatprep.subr.mxu0 %v1255
        %2593 = vmatpush1.msra.mxu0 %v1253
        %2594 = vmatprep.subr.mxu0 %v1261
        %2595 = vmatpush1.msra.mxu0 %v1259
        %2596 = vmatprep.subr.mxu0 %v1267
        %2597 = vmatpush1.msra.mxu0 %v1265
        %2598 = vmatprep.subr.mxu0 %v1273
        %2599 = vmatpush1.msra.mxu0 %v1271
        %2600 = vmatprep.subr.mxu0 %v1279
        %2601 = vmatpush1.msra.mxu0 %v1277
        %2602 = vmatprep.subr.mxu0 0.0
        %2603 = vmatpush1.msra.mxu0 0.0
        %2604 = vmatprep.subr.mxu0 0.0
        %2605 = vmatpush1.msra.mxu0 0.0
        %2606 = vmatprep.subr.mxu0 0.0
        %2607 = vmatpush1.msra.mxu0 0.0
        %2608 = vmatprep.subr.mxu0 0.0
        %2609 = vmatpush1.msra.mxu0 0.0
        %2610 = vmatprep.subr.mxu0 0.0
        %2611 = vmatpush1.msra.mxu0 0.0
        %2612 = vmatprep.subr.mxu0 0.0
        %2613 = vmatpush1.msra.mxu0 0.0
        %2614 = vmatprep.subr.mxu0 0.0
        %2615 = vmatpush1.msra.mxu0 0.0
        %2616 = vmatprep.subr.mxu0 0.0
        %2617 = vmatpush1.msra.mxu0 0.0
        %2618 = vmatprep.subr.mxu0 0.0
        %2619 = vmatpush1.msra.mxu0 0.0
        %2620 = vmatprep.subr.mxu0 0.0
        %2621 = vmatpush1.msra.mxu0 0.0
        %2622 = vmatprep.subr.mxu0 0.0
        %2623 = vmatpush1.msra.mxu0 0.0
        %2624 = vmatprep.subr.mxu0 0.0
        %2625 = vmatpush1.msra.mxu0 0.0
        %2626 = vmatprep.subr.mxu0 0.0
        %2627 = vmatpush1.msra.mxu0 0.0
        %2628 = vmatprep.subr.mxu0 0.0
        %2629 = vmatpush1.msra.mxu0 0.0
        %2630 = vmatprep.subr.mxu0 0.0
        %2631 = vmatpush1.msra.mxu0 0.0
        %2632 = vmatprep.subr.mxu0 0.0
        %2633 = vmatpush1.msra.mxu0 0.0
        %2634 = vmatprep.subr.mxu0 0.0
        %2635 = vmatpush1.msra.mxu0 0.0
        %2636 = vmatprep.subr.mxu0 0.0
        %2637 = vmatpush1.msra.mxu0 0.0
        %2638 = vmatprep.subr.mxu0 0.0
        %2639 = vmatpush1.msra.mxu0 0.0
        %2640 = vmatprep.subr.mxu0 0.0
        %2641 = vmatpush1.msra.mxu0 0.0
        %2642 = vmatprep.subr.mxu0 0.0
        %2643 = vmatpush1.msra.mxu0 0.0
        %2644 = vmatprep.subr.mxu0 0.0
        %2645 = vmatpush1.msra.mxu0 0.0
        %2646 = vmatprep.subr.mxu0 0.0
        %2647 = vmatpush1.msra.mxu0 0.0
        %2648 = vmatprep.subr.mxu0 0.0
        %2649 = vmatpush1.msra.mxu0 0.0
        %2650 = vmatprep.mubr.f32.mxu0 0.0
        %2651 = vmatmul.mubr.f32.gmra.mrb[0].mxu0 %v2563
        %v2652 = vpop.f32.mrb[0].mxu0
        %v2653 = vadd.f32 %v2525, %v2652
        %v2654 = vpop.f32.mrb[0].mxu0
        %v2655 = vadd.f32 %v2525, %v2654
        %2656 = vmatprep.mubr.f32.mxu0 0.0
        %2657 = vmatmul.mubr.f32.gmra.mrb[0].mxu0 %v2566
        %v2658 = vpop.f32.mrb[0].mxu0
        %v2659 = vadd.f32 %v2530, %v2658
        %v2660 = vpop.f32.mrb[0].mxu0
        %v2661 = vadd.f32 %v2530, %v2660
        %2662 = vmatprep.mubr.f32.mxu0 0.0
        %2663 = vmatmul.mubr.f32.gmra.mrb[0].mxu0 %v2569
        %v2664 = vpop.f32.mrb[0].mxu0
        %v2665 = vadd.f32 %v2535, %v2664
        %v2666 = vpop.f32.mrb[0].mxu0
        %v2667 = vadd.f32 %v2535, %v2666
        %2668 = vmatprep.mubr.f32.mxu0 0.0
        %2669 = vmatmul.mubr.f32.gmra.mrb[0].mxu0 %v2572
        %v2670 = vpop.f32.mrb[0].mxu0
        %v2671 = vadd.f32 %v2540, %v2670
        %v2672 = vpop.f32.mrb[0].mxu0
        %v2673 = vadd.f32 %v2540, %v2672
        %2674 = vmatprep.mubr.f32.mxu0 0.0
        %2675 = vmatmul.mubr.f32.gmra.mrb[0].mxu0 %v2575
        %v2676 = vpop.f32.mrb[0].mxu0
        %v2677 = vadd.f32 %v2545, %v2676
        %v2678 = vpop.f32.mrb[0].mxu0
        %v2679 = vadd.f32 %v2545, %v2678
        %2680 = vmatprep.mubr.f32.mxu0 0.0
        %2681 = vmatmul.mubr.f32.gmra.mrb[0].mxu0 %v2578
        %v2682 = vpop.f32.mrb[0].mxu0
        %v2683 = vadd.f32 %v2550, %v2682
        %v2684 = vpop.f32.mrb[0].mxu0
        %v2685 = vadd.f32 %v2550, %v2684
        %2686 = vmatprep.mubr.f32.mxu0 0.0
        %2687 = vmatmul.mubr.f32.gmra.mrb[0].mxu0 %v2581
        %v2688 = vpop.f32.mrb[0].mxu0
        %v2689 = vadd.f32 %v2555, %v2688
        %v2690 = vpop.f32.mrb[0].mxu0
        %v2691 = vadd.f32 %v2555, %v2690
        %2692 = vmatprep.mubr.f32.mxu0 0.0
        %2693 = vmatmul.mubr.f32.gmra.mrb[0].mxu0 %v2584
        %v2694 = vpop.f32.mrb[0].mxu0
        %v2695 = vadd.f32 %v2560, %v2694
        %v2696 = vpop.f32.mrb[0].mxu0
        %v2697 = vadd.f32 %v2560, %v2696
        %2698 = vdwg.mxu0
        %2699 = vmatprep.subr.mxu0 %v1285
        %2700 = vmatpush1.msra.mxu0 %v1283
        %2701 = vmatprep.subr.mxu0 %v1291
        %2702 = vmatpush1.msra.mxu0 %v1289
        %2703 = vmatprep.subr.mxu0 %v1297
        %2704 = vmatpush1.msra.mxu0 %v1295
        %2705 = vmatprep.subr.mxu0 %v1303
        %2706 = vmatpush1.msra.mxu0 %v1301
        %2707 = vmatprep.subr.mxu0 %v1309
        %2708 = vmatpush1.msra.mxu0 %v1307
        %2709 = vmatprep.subr.mxu0 %v1315
        %2710 = vmatpush1.msra.mxu0 %v1313
        %2711 = vmatprep.subr.mxu0 %v1321
        %2712 = vmatpush1.msra.mxu0 %v1319
        %2713 = vmatprep.subr.mxu0 %v1327
        %2714 = vmatpush1.msra.mxu0 %v1325
        %2715 = vmatprep.subr.mxu0 0.0
        %2716 = vmatpush1.msra.mxu0 0.0
        %2717 = vmatprep.subr.mxu0 0.0
        %2718 = vmatpush1.msra.mxu0 0.0
        %2719 = vmatprep.subr.mxu0 0.0
        %2720 = vmatpush1.msra.mxu0 0.0
        %2721 = vmatprep.subr.mxu0 0.0
        %2722 = vmatpush1.msra.mxu0 0.0
        %2723 = vmatprep.subr.mxu0 0.0
        %2724 = vmatpush1.msra.mxu0 0.0
        %2725 = vmatprep.subr.mxu0 0.0
        %2726 = vmatpush1.msra.mxu0 0.0
        %2727 = vmatprep.subr.mxu0 0.0
        %2728 = vmatpush1.msra.mxu0 0.0
        %2729 = vmatprep.subr.mxu0 0.0
        %2730 = vmatpush1.msra.mxu0 0.0
        %2731 = vmatprep.subr.mxu0 0.0
        %2732 = vmatpush1.msra.mxu0 0.0
        %2733 = vmatprep.subr.mxu0 0.0
        %2734 = vmatpush1.msra.mxu0 0.0
        %2735 = vmatprep.subr.mxu0 0.0
        %2736 = vmatpush1.msra.mxu0 0.0
        %2737 = vmatprep.subr.mxu0 0.0
        %2738 = vmatpush1.msra.mxu0 0.0
        %2739 = vmatprep.subr.mxu0 0.0
        %2740 = vmatpush1.msra.mxu0 0.0
        %2741 = vmatprep.subr.mxu0 0.0
        %2742 = vmatpush1.msra.mxu0 0.0
        %2743 = vmatprep.subr.mxu0 0.0
        %2744 = vmatpush1.msra.mxu0 0.0
        %2745 = vmatprep.subr.mxu0 0.0
        %2746 = vmatpush1.msra.mxu0 0.0
        %2747 = vmatprep.subr.mxu0 0.0
        %2748 = vmatpush1.msra.mxu0 0.0
        %2749 = vmatprep.subr.mxu0 0.0
        %2750 = vmatpush1.msra.mxu0 0.0
        %2751 = vmatprep.subr.mxu0 0.0
        %2752 = vmatpush1.msra.mxu0 0.0
        %2753 = vmatprep.subr.mxu0 0.0
        %2754 = vmatpush1.msra.mxu0 0.0
        %2755 = vmatprep.subr.mxu0 0.0
        %2756 = vmatpush1.msra.mxu0 0.0
        %2757 = vmatprep.subr.mxu0 0.0
        %2758 = vmatpush1.msra.mxu0 0.0
        %2759 = vmatprep.subr.mxu0 0.0
        %2760 = vmatpush1.msra.mxu0 0.0
        %2761 = vmatprep.subr.mxu0 0.0
        %2762 = vmatpush1.msra.mxu0 0.0
        %2763 = vmatprep.mubr.f32.mxu0 0.0
        %2764 = vmatmul.mubr.f32.gmra.mrb[0].mxu0 %v2563
        %v2765 = vpop.f32.mrb[0].mxu0
        %v2766 = vadd.f32 %v2525, %v2765
        %v2767 = vpop.f32.mrb[0].mxu0
        %v2768 = vadd.f32 %v2525, %v2767
        %2769 = vmatprep.mubr.f32.mxu0 0.0
        %2770 = vmatmul.mubr.f32.gmra.mrb[0].mxu0 %v2566
        %v2771 = vpop.f32.mrb[0].mxu0
        %v2772 = vadd.f32 %v2530, %v2771
        %v2773 = vpop.f32.mrb[0].mxu0
        %v2774 = vadd.f32 %v2530, %v2773
        %2775 = vmatprep.mubr.f32.mxu0 0.0
        %2776 = vmatmul.mubr.f32.gmra.mrb[0].mxu0 %v2569
        %v2777 = vpop.f32.mrb[0].mxu0
        %v2778 = vadd.f32 %v2535, %v2777
        %v2779 = vpop.f32.mrb[0].mxu0
        %v2780 = vadd.f32 %v2535, %v2779
        %2781 = vmatprep.mubr.f32.mxu0 0.0
        %2782 = vmatmul.mubr.f32.gmra.mrb[0].mxu0 %v2572
        %v2783 = vpop.f32.mrb[0].mxu0
        %v2784 = vadd.f32 %v2540, %v2783
        %v2785 = vpop.f32.mrb[0].mxu0
        %v2786 = vadd.f32 %v2540, %v2785
        %2787 = vmatprep.mubr.f32.mxu0 0.0
        %2788 = vmatmul.mubr.f32.gmra.mrb[0].mxu0 %v2575
        %v2789 = vpop.f32.mrb[0].mxu0
        %v2790 = vadd.f32 %v2545, %v2789
        %v2791 = vpop.f32.mrb[0].mxu0
        %v2792 = vadd.f32 %v2545, %v2791
        %2793 = vmatprep.mubr.f32.mxu0 0.0
        %2794 = vmatmul.mubr.f32.gmra.mrb[0].mxu0 %v2578
        %v2795 = vpop.f32.mrb[0].mxu0
        %v2796 = vadd.f32 %v2550, %v2795
        %v2797 = vpop.f32.mrb[0].mxu0
        %v2798 = vadd.f32 %v2550, %v2797
        %2799 = vmatprep.mubr.f32.mxu0 0.0
        %2800 = vmatmul.mubr.f32.gmra.mrb[0].mxu0 %v2581
        %v2801 = vpop.f32.mrb[0].mxu0
        %v2802 = vadd.f32 %v2555, %v2801
        %v2803 = vpop.f32.mrb[0].mxu0
        %v2804 = vadd.f32 %v2555, %v2803
        %2805 = vmatprep.mubr.f32.mxu0 0.0
        %2806 = vmatmul.mubr.f32.gmra.mrb[0].mxu0 %v2584
        %v2807 = vpop.f32.mrb[0].mxu0
        %v2808 = vadd.f32 %v2560, %v2807
        %v2809 = vpop.f32.mrb[0].mxu0
        %v2810 = vadd.f32 %v2560, %v2809
        %2811 = vdwg.mxu0
        %2812 = vmatprep.subr.mxu0 %v1333
        %2813 = vmatpush1.msra.mxu0 %v1331
        %2814 = vmatprep.subr.mxu0 %v1339
        %2815 = vmatpush1.msra.mxu0 %v1337
        %2816 = vmatprep.subr.mxu0 %v1345
        %2817 = vmatpush1.msra.mxu0 %v1343
        %2818 = vmatprep.subr.mxu0 %v1351
        %2819 = vmatpush1.msra.mxu0 %v1349
        %2820 = vmatprep.subr.mxu0 %v1357
        %2821 = vmatpush1.msra.mxu0 %v1355
        %2822 = vmatprep.subr.mxu0 %v1363
        %2823 = vmatpush1.msra.mxu0 %v1361
        %2824 = vmatprep.subr.mxu0 %v1369
        %2825 = vmatpush1.msra.mxu0 %v1367
        %2826 = vmatprep.subr.mxu0 %v1375
        %2827 = vmatpush1.msra.mxu0 %v1373
        %2828 = vmatprep.subr.mxu0 0.0
        %2829 = vmatpush1.msra.mxu0 0.0
        %2830 = vmatprep.subr.mxu0 0.0
        %2831 = vmatpush1.msra.mxu0 0.0
        %2832 = vmatprep.subr.mxu0 0.0
        %2833 = vmatpush1.msra.mxu0 0.0
        %2834 = vmatprep.subr.mxu0 0.0
        %2835 = vmatpush1.msra.mxu0 0.0
        %2836 = vmatprep.subr.mxu0 0.0
        %2837 = vmatpush1.msra.mxu0 0.0
        %2838 = vmatprep.subr.mxu0 0.0
        %2839 = vmatpush1.msra.mxu0 0.0
        %2840 = vmatprep.subr.mxu0 0.0
        %2841 = vmatpush1.msra.mxu0 0.0
        %2842 = vmatprep.subr.mxu0 0.0
        %2843 = vmatpush1.msra.mxu0 0.0
        %2844 = vmatprep.subr.mxu0 0.0
        %2845 = vmatpush1.msra.mxu0 0.0
        %2846 = vmatprep.subr.mxu0 0.0
        %2847 = vmatpush1.msra.mxu0 0.0
        %2848 = vmatprep.subr.mxu0 0.0
        %2849 = vmatpush1.msra.mxu0 0.0
        %2850 = vmatprep.subr.mxu0 0.0
        %2851 = vmatpush1.msra.mxu0 0.0
        %2852 = vmatprep.subr.mxu0 0.0
        %2853 = vmatpush1.msra.mxu0 0.0
        %2854 = vmatprep.subr.mxu0 0.0
        %2855 = vmatpush1.msra.mxu0 0.0
        %2856 = vmatprep.subr.mxu0 0.0
        %2857 = vmatpush1.msra.mxu0 0.0
        %2858 = vmatprep.subr.mxu0 0.0
        %2859 = vmatpush1.msra.mxu0 0.0
        %2860 = vmatprep.subr.mxu0 0.0
        %2861 = vmatpush1.msra.mxu0 0.0
        %2862 = vmatprep.subr.mxu0 0.0
        %2863 = vmatpush1.msra.mxu0 0.0
        %2864 = vmatprep.subr.mxu0 0.0
        %2865 = vmatpush1.msra.mxu0 0.0
        %2866 = vmatprep.subr.mxu0 0.0
        %2867 = vmatpush1.msra.mxu0 0.0
        %2868 = vmatprep.subr.mxu0 0.0
        %2869 = vmatpush1.msra.mxu0 0.0
        %2870 = vmatprep.subr.mxu0 0.0
        %2871 = vmatpush1.msra.mxu0 0.0
        %2872 = vmatprep.subr.mxu0 0.0
        %2873 = vmatpush1.msra.mxu0 0.0
        %2874 = vmatprep.subr.mxu0 0.0
        %2875 = vmatpush1.msra.mxu0 0.0
        %2876 = vmatprep.mubr.f32.mxu0 0.0
        %2877 = vmatmul.mubr.f32.gmra.mrb[0].mxu0 %v2563
        %v2878 = vpop.f32.mrb[0].mxu0
        %v2879 = vadd.f32 %v2525, %v2878
        %v2880 = vpop.f32.mrb[0].mxu0
        %v2881 = vadd.f32 %v2525, %v2880
        %2882 = vmatprep.mubr.f32.mxu0 0.0
        %2883 = vmatmul.mubr.f32.gmra.mrb[0].mxu0 %v2566
        %v2884 = vpop.f32.mrb[0].mxu0
        %v2885 = vadd.f32 %v2530, %v2884
        %v2886 = vpop.f32.mrb[0].mxu0
        %v2887 = vadd.f32 %v2530, %v2886
        %2888 = vmatprep.mubr.f32.mxu0 0.0
        %2889 = vmatmul.mubr.f32.gmra.mrb[0].mxu0 %v2569
        %v2890 = vpop.f32.mrb[0].mxu0
        %v2891 = vadd.f32 %v2535, %v2890
        %v2892 = vpop.f32.mrb[0].mxu0
        %v2893 = vadd.f32 %v2535, %v2892
        %2894 = vmatprep.mubr.f32.mxu0 0.0
        %2895 = vmatmul.mubr.f32.gmra.mrb[0].mxu0 %v2572
        %v2896 = vpop.f32.mrb[0].mxu0
        %v2897 = vadd.f32 %v2540, %v2896
        %v2898 = vpop.f32.mrb[0].mxu0
        %v2899 = vadd.f32 %v2540, %v2898
        %2900 = vmatprep.mubr.f32.mxu0 0.0
        %2901 = vmatmul.mubr.f32.gmra.mrb[0].mxu0 %v2575
        %v2902 = vpop.f32.mrb[0].mxu0
        %v2903 = vadd.f32 %v2545, %v2902
        %v2904 = vpop.f32.mrb[0].mxu0
        %v2905 = vadd.f32 %v2545, %v2904
        %2906 = vmatprep.mubr.f32.mxu0 0.0
        %2907 = vmatmul.mubr.f32.gmra.mrb[0].mxu0 %v2578
        %v2908 = vpop.f32.mrb[0].mxu0
        %v2909 = vadd.f32 %v2550, %v2908
        %v2910 = vpop.f32.mrb[0].mxu0
        %v2911 = vadd.f32 %v2550, %v2910
        %2912 = vmatprep.mubr.f32.mxu0 0.0
        %2913 = vmatmul.mubr.f32.gmra.mrb[0].mxu0 %v2581
        %v2914 = vpop.f32.mrb[0].mxu0
        %v2915 = vadd.f32 %v2555, %v2914
        %v2916 = vpop.f32.mrb[0].mxu0
        %v2917 = vadd.f32 %v2555, %v2916
        %2918 = vmatprep.mubr.f32.mxu0 0.0
        %2919 = vmatmul.mubr.f32.gmra.mrb[0].mxu0 %v2584
        %v2920 = vpop.f32.mrb[0].mxu0
        %v2921 = vadd.f32 %v2560, %v2920
        %v2922 = vpop.f32.mrb[0].mxu0
        %v2923 = vadd.f32 %v2560, %v2922
        %2924 = vdwg.mxu0
        %2925 = vmatprep.subr.mxu0 %v1381
        %2926 = vmatpush1.msra.mxu0 %v1379
        %2927 = vmatprep.subr.mxu0 %v1387
        %2928 = vmatpush1.msra.mxu0 %v1385
        %2929 = vmatprep.subr.mxu0 %v1393
        %2930 = vmatpush1.msra.mxu0 %v1391
        %2931 = vmatprep.subr.mxu0 %v1399
        %2932 = vmatpush1.msra.mxu0 %v1397
        %2933 = vmatprep.subr.mxu0 %v1405
        %2934 = vmatpush1.msra.mxu0 %v1403
        %2935 = vmatprep.subr.mxu0 %v1411
        %2936 = vmatpush1.msra.mxu0 %v1409
        %2937 = vmatprep.subr.mxu0 %v1417
        %2938 = vmatpush1.msra.mxu0 %v1415
        %2939 = vmatprep.subr.mxu0 %v1423
        %2940 = vmatpush1.msra.mxu0 %v1421
        %2941 = vmatprep.subr.mxu0 0.0
        %2942 = vmatpush1.msra.mxu0 0.0
        %2943 = vmatprep.subr.mxu0 0.0
        %2944 = vmatpush1.msra.mxu0 0.0
        %2945 = vmatprep.subr.mxu0 0.0
        %2946 = vmatpush1.msra.mxu0 0.0
        %2947 = vmatprep.subr.mxu0 0.0
        %2948 = vmatpush1.msra.mxu0 0.0
        %2949 = vmatprep.subr.mxu0 0.0
        %2950 = vmatpush1.msra.mxu0 0.0
        %2951 = vmatprep.subr.mxu0 0.0
        %2952 = vmatpush1.msra.mxu0 0.0
        %2953 = vmatprep.subr.mxu0 0.0
        %2954 = vmatpush1.msra.mxu0 0.0
        %2955 = vmatprep.subr.mxu0 0.0
        %2956 = vmatpush1.msra.mxu0 0.0
        %2957 = vmatprep.subr.mxu0 0.0
        %2958 = vmatpush1.msra.mxu0 0.0
        %2959 = vmatprep.subr.mxu0 0.0
        %2960 = vmatpush1.msra.mxu0 0.0
        %2961 = vmatprep.subr.mxu0 0.0
        %2962 = vmatpush1.msra.mxu0 0.0
        %2963 = vmatprep.subr.mxu0 0.0
        %2964 = vmatpush1.msra.mxu0 0.0
        %2965 = vmatprep.subr.mxu0 0.0
        %2966 = vmatpush1.msra.mxu0 0.0
        %2967 = vmatprep.subr.mxu0 0.0
        %2968 = vmatpush1.msra.mxu0 0.0
        %2969 = vmatprep.subr.mxu0 0.0
        %2970 = vmatpush1.msra.mxu0 0.0
        %2971 = vmatprep.subr.mxu0 0.0
        %2972 = vmatpush1.msra.mxu0 0.0
        %2973 = vmatprep.subr.mxu0 0.0
        %2974 = vmatpush1.msra.mxu0 0.0
        %2975 = vmatprep.subr.mxu0 0.0
        %2976 = vmatpush1.msra.mxu0 0.0
        %2977 = vmatprep.subr.mxu0 0.0
        %2978 = vmatpush1.msra.mxu0 0.0
        %2979 = vmatprep.subr.mxu0 0.0
        %2980 = vmatpush1.msra.mxu0 0.0
        %2981 = vmatprep.subr.mxu0 0.0
        %2982 = vmatpush1.msra.mxu0 0.0
        %2983 = vmatprep.subr.mxu0 0.0
        %2984 = vmatpush1.msra.mxu0 0.0
        %2985 = vmatprep.subr.mxu0 0.0
        %2986 = vmatpush1.msra.mxu0 0.0
        %2987 = vmatprep.subr.mxu0 0.0
        %2988 = vmatpush1.msra.mxu0 0.0
        %2989 = vmatprep.mubr.f32.mxu0 0.0
        %2990 = vmatmul.mubr.f32.gmra.mrb[0].mxu0 %v2563
        %v2991 = vpop.f32.mrb[0].mxu0
        %v2992 = vadd.f32 %v2525, %v2991
        %v2993 = vpop.f32.mrb[0].mxu0
        %v2994 = vadd.f32 %v2525, %v2993
        %2995 = vmatprep.mubr.f32.mxu0 0.0
        %2996 = vmatmul.mubr.f32.gmra.mrb[0].mxu0 %v2566
        %v2997 = vpop.f32.mrb[0].mxu0
        %v2998 = vadd.f32 %v2530, %v2997
        %v2999 = vpop.f32.mrb[0].mxu0
        %v3000 = vadd.f32 %v2530, %v2999
        %3001 = vmatprep.mubr.f32.mxu0 0.0
        %3002 = vmatmul.mubr.f32.gmra.mrb[0].mxu0 %v2569
        %v3003 = vpop.f32.mrb[0].mxu0
        %v3004 = vadd.f32 %v2535, %v3003
        %v3005 = vpop.f32.mrb[0].mxu0
        %v3006 = vadd.f32 %v2535, %v3005
        %3007 = vmatprep.mubr.f32.mxu0 0.0
        %3008 = vmatmul.mubr.f32.gmra.mrb[0].mxu0 %v2572
        %v3009 = vpop.f32.mrb[0].mxu0
        %v3010 = vadd.f32 %v2540, %v3009
        %v3011 = vpop.f32.mrb[0].mxu0
        %v3012 = vadd.f32 %v2540, %v3011
        %3013 = vmatprep.mubr.f32.mxu0 0.0
        %3014 = vmatmul.mubr.f32.gmra.mrb[0].mxu0 %v2575
        %v3015 = vpop.f32.mrb[0].mxu0
        %v3016 = vadd.f32 %v2545, %v3015
        %v3017 = vpop.f32.mrb[0].mxu0
        %v3018 = vadd.f32 %v2545, %v3017
        %3019 = vmatprep.mubr.f32.mxu0 0.0
        %3020 = vmatmul.mubr.f32.gmra.mrb[0].mxu0 %v2578
        %v3021 = vpop.f32.mrb[0].mxu0
        %v3022 = vadd.f32 %v2550, %v3021
        %v3023 = vpop.f32.mrb[0].mxu0
        %v3024 = vadd.f32 %v2550, %v3023
        %3025 = vmatprep.mubr.f32.mxu0 0.0
        %3026 = vmatmul.mubr.f32.gmra.mrb[0].mxu0 %v2581
        %v3027 = vpop.f32.mrb[0].mxu0
        %v3028 = vadd.f32 %v2555, %v3027
        %v3029 = vpop.f32.mrb[0].mxu0
        %v3030 = vadd.f32 %v2555, %v3029
        %3031 = vmatprep.mubr.f32.mxu0 0.0
        %3032 = vmatmul.mubr.f32.gmra.mrb[0].mxu0 %v2584
        %v3033 = vpop.f32.mrb[0].mxu0
        %v3034 = vadd.f32 %v2560, %v3033
        %v3035 = vpop.f32.mrb[0].mxu0
        %v3036 = vadd.f32 %v2560, %v3035
        %3037 = vdwg.mxu0
        %v3038 = vld [vmem:[%s11] sm:$0xff]
        %v3039 = vld [vmem:[%s11 + $0x8] sm:$0xff]
        %v3040 = vld [vmem:[%s11 + $0x10] sm:$0xff]
        %v3041 = vld [vmem:[%s11 + $0x18] sm:$0xff]
        %v3042 = vld [vmem:[%s11 + $0x20] sm:$0xff]
        %v3043 = vld [vmem:[%s11 + $0x28] sm:$0xff]
        %v3044 = vld [vmem:[%s11 + $0x30] sm:$0xff]
        %v3045 = vld [vmem:[%s11 + $0x38] sm:$0xff]
        %v3046 = vld [vmem:[%s12] sm:$0xff]
        %v3047 = vld [vmem:[%s12 + $0x8] sm:$0xff]
        %v3048 = vld [vmem:[%s12 + $0x10] sm:$0xff]
        %v3049 = vld [vmem:[%s12 + $0x18] sm:$0xff]
        %v3050 = vld [vmem:[%s12 + $0x20] sm:$0xff]
        %v3051 = vld [vmem:[%s12 + $0x28] sm:$0xff]
        %v3052 = vld [vmem:[%s12 + $0x30] sm:$0xff]
        %v3053 = vld [vmem:[%s12 + $0x38] sm:$0xff]
        %v3054 = vmul.f32 %v1621, %v2137
        %v3055 = vmul.f32 %v1623, %v2139
        %v3056 = vmul.f32 %v1627, %v2143
        %v3057 = vmul.f32 %v1629, %v2145
        %v3058 = vmul.f32 %v1633, %v2149
        %v3059 = vmul.f32 %v1635, %v2151
        %v3060 = vmul.f32 %v1639, %v2155
        %v3061 = vmul.f32 %v1641, %v2157
        %v3062 = vmul.f32 %v1645, %v2161
        %v3063 = vmul.f32 %v1647, %v2163
        %v3064 = vmul.f32 %v1651, %v2167
        %v3065 = vmul.f32 %v1653, %v2169
        %v3066 = vmul.f32 %v1657, %v2173
        %v3067 = vmul.f32 %v1659, %v2175
        %v3068 = vmul.f32 %v1663, %v2179
        %v3069 = vmul.f32 %v1665, %v2181
        %v3070 = vadd.f32 %v3054, %v3056
        %v3071 = vadd.f32 %v3070, %v3058
        %v3072 = vadd.f32 %v3071, %v3060
        %v3073 = vadd.f32 %v3072, %v3062
        %v3074 = vadd.f32 %v3073, %v3064
        %v3075 = vadd.f32 %v3074, %v3066
        %v3076 = vadd.f32 %v3075, %v3068
        %v3077 = vrot.slane %v3076, 4
        %v3078 = vadd.f32 %v3076, %v3077
        %v3079 = vrot.slane %v3078, 2
        %v3080 = vadd.f32 %v3078, %v3079
        %v3081 = vrot.slane %v3080, 1
        %v3082 = vadd.f32 %v3080, %v3081
        %v3083 = vadd.f32 %v3055, %v3057
        %v3084 = vadd.f32 %v3083, %v3059
        %v3085 = vadd.f32 %v3084, %v3061
        %v3086 = vadd.f32 %v3085, %v3063
        %v3087 = vadd.f32 %v3086, %v3065
        %v3088 = vadd.f32 %v3087, %v3067
        %v3089 = vadd.f32 %v3088, %v3069
        %v3090 = vrot.slane %v3089, 4
        %v3091 = vadd.f32 %v3089, %v3090
        %v3092 = vrot.slane %v3091, 2
        %v3093 = vadd.f32 %v3091, %v3092
        %v3094 = vrot.slane %v3093, 1
        %v3095 = vadd.f32 %v3093, %v3094
        %v3096 = vmul.f32 %v3082, 0.125
        %v3097 = vmul.f32 %v3095, 0.125
        %v3098 = vmul.f32 %v1621, %v2250
        %v3099 = vmul.f32 %v1623, %v2252
        %v3100 = vmul.f32 %v1627, %v2256
        %v3101 = vmul.f32 %v1629, %v2258
        %v3102 = vmul.f32 %v1633, %v2262
        %v3103 = vmul.f32 %v1635, %v2264
        %v3104 = vmul.f32 %v1639, %v2268
        %v3105 = vmul.f32 %v1641, %v2270
        %v3106 = vmul.f32 %v1645, %v2274
        %v3107 = vmul.f32 %v1647, %v2276
        %v3108 = vmul.f32 %v1651, %v2280
        %v3109 = vmul.f32 %v1653, %v2282
        %v3110 = vmul.f32 %v1657, %v2286
        %v3111 = vmul.f32 %v1659, %v2288
        %v3112 = vmul.f32 %v1663, %v2292
        %v3113 = vmul.f32 %v1665, %v2294
        %v3114 = vadd.f32 %v3098, %v3100
        %v3115 = vadd.f32 %v3114, %v3102
        %v3116 = vadd.f32 %v3115, %v3104
        %v3117 = vadd.f32 %v3116, %v3106
        %v3118 = vadd.f32 %v3117, %v3108
        %v3119 = vadd.f32 %v3118, %v3110
        %v3120 = vadd.f32 %v3119, %v3112
        %v3121 = vrot.slane %v3120, 4
        %v3122 = vadd.f32 %v3120, %v3121
        %v3123 = vrot.slane %v3122, 2
        %v3124 = vadd.f32 %v3122, %v3123
        %v3125 = vrot.slane %v3124, 1
        %v3126 = vadd.f32 %v3124, %v3125
        %v3127 = vadd.f32 %v3099, %v3101
        %v3128 = vadd.f32 %v3127, %v3103
        %v3129 = vadd.f32 %v3128, %v3105
        %v3130 = vadd.f32 %v3129, %v3107
        %v3131 = vadd.f32 %v3130, %v3109
        %v3132 = vadd.f32 %v3131, %v3111
        %v3133 = vadd.f32 %v3132, %v3113
        %v3134 = vrot.slane %v3133, 4
        %v3135 = vadd.f32 %v3133, %v3134
        %v3136 = vrot.slane %v3135, 2
        %v3137 = vadd.f32 %v3135, %v3136
        %v3138 = vrot.slane %v3137, 1
        %v3139 = vadd.f32 %v3137, %v3138
        %v3140 = vmul.f32 %v3126, 0.125
        %v3141 = vmul.f32 %v3139, 0.125
        %v3142 = vmul.f32 %v1621, %v2363
        %v3143 = vmul.f32 %v1623, %v2365
        %v3144 = vmul.f32 %v1627, %v2369
        %v3145 = vmul.f32 %v1629, %v2371
        %v3146 = vmul.f32 %v1633, %v2375
        %v3147 = vmul.f32 %v1635, %v2377
        %v3148 = vmul.f32 %v1639, %v2381
        %v3149 = vmul.f32 %v1641, %v2383
        %v3150 = vmul.f32 %v1645, %v2387
        %v3151 = vmul.f32 %v1647, %v2389
        %v3152 = vmul.f32 %v1651, %v2393
        %v3153 = vmul.f32 %v1653, %v2395
        %v3154 = vmul.f32 %v1657, %v2399
        %v3155 = vmul.f32 %v1659, %v2401
        %v3156 = vmul.f32 %v1663, %v2405
        %v3157 = vmul.f32 %v1665, %v2407
        %v3158 = vadd.f32 %v3142, %v3144
        %v3159 = vadd.f32 %v3158, %v3146
        %v3160 = vadd.f32 %v3159, %v3148
        %v3161 = vadd.f32 %v3160, %v3150
        %v3162 = vadd.f32 %v3161, %v3152
        %v3163 = vadd.f32 %v3162, %v3154
        %v3164 = vadd.f32 %v3163, %v3156
        %v3165 = vrot.slane %v3164, 4
        %v3166 = vadd.f32 %v3164, %v3165
        %v3167 = vrot.slane %v3166, 2
        %v3168 = vadd.f32 %v3166, %v3167
        %v3169 = vrot.slane %v3168, 1
        %v3170 = vadd.f32 %v3168, %v3169
        %v3171 = vadd.f32 %v3143, %v3145
        %v3172 = vadd.f32 %v3171, %v3147
        %v3173 = vadd.f32 %v3172, %v3149
        %v3174 = vadd.f32 %v3173, %v3151
        %v3175 = vadd.f32 %v3174, %v3153
        %v3176 = vadd.f32 %v3175, %v3155
        %v3177 = vadd.f32 %v3176, %v3157
        %v3178 = vrot.slane %v3177, 4
        %v3179 = vadd.f32 %v3177, %v3178
        %v3180 = vrot.slane %v3179, 2
        %v3181 = vadd.f32 %v3179, %v3180
        %v3182 = vrot.slane %v3181, 1
        %v3183 = vadd.f32 %v3181, %v3182
        %v3184 = vmul.f32 %v3170, 0.125
        %v3185 = vmul.f32 %v3183, 0.125
        %v3186 = vmul.f32 %v1621, %v2476
        %v3187 = vmul.f32 %v1623, %v2478
        %v3188 = vmul.f32 %v1627, %v2482
        %v3189 = vmul.f32 %v1629, %v2484
        %v3190 = vmul.f32 %v1633, %v2488
        %v3191 = vmul.f32 %v1635, %v2490
        %v3192 = vmul.f32 %v1639, %v2494
        %v3193 = vmul.f32 %v1641, %v2496
        %v3194 = vmul.f32 %v1645, %v2500
        %v3195 = vmul.f32 %v1647, %v2502
        %v3196 = vmul.f32 %v1651, %v2506
        %v3197 = vmul.f32 %v1653, %v2508
        %v3198 = vmul.f32 %v1657, %v2512
        %v3199 = vmul.f32 %v1659, %v2514
        %v3200 = vmul.f32 %v1663, %v2518
        %v3201 = vmul.f32 %v1665, %v2520
        %v3202 = vadd.f32 %v3186, %v3188
        %v3203 = vadd.f32 %v3202, %v3190
        %v3204 = vadd.f32 %v3203, %v3192
        %v3205 = vadd.f32 %v3204, %v3194
        %v3206 = vadd.f32 %v3205, %v3196
        %v3207 = vadd.f32 %v3206, %v3198
        %v3208 = vadd.f32 %v3207, %v3200
        %v3209 = vrot.slane %v3208, 4
        %v3210 = vadd.f32 %v3208, %v3209
        %v3211 = vrot.slane %v3210, 2
        %v3212 = vadd.f32 %v3210, %v3211
        %v3213 = vrot.slane %v3212, 1
        %v3214 = vadd.f32 %v3212, %v3213
        %v3215 = vadd.f32 %v3187, %v3189
        %v3216 = vadd.f32 %v3215, %v3191
        %v3217 = vadd.f32 %v3216, %v3193
        %v3218 = vadd.f32 %v3217, %v3195
        %v3219 = vadd.f32 %v3218, %v3197
        %v3220 = vadd.f32 %v3219, %v3199
        %v3221 = vadd.f32 %v3220, %v3201
        %v3222 = vrot.slane %v3221, 4
        %v3223 = vadd.f32 %v3221, %v3222
        %v3224 = vrot.slane %v3223, 2
        %v3225 = vadd.f32 %v3223, %v3224
        %v3226 = vrot.slane %v3225, 1
        %v3227 = vadd.f32 %v3225, %v3226
        %v3228 = vmul.f32 %v3214, 0.125
        %v3229 = vmul.f32 %v3227, 0.125
        %v3230 = vmax.f32 %v3096, %v3140
        %v3231 = vmax.f32 %v3097, %v3141
        %v3232 = vmax.f32 %v3184, %v3228
        %v3233 = vmax.f32 %v3185, %v3229
        %v3234 = vmax.f32 %v3230, %v3232
        %v3235 = vmax.f32 %v3231, %v3233
        %v3236 = vsub.f32 %v3096, %v3234
        %v3237 = vsub.f32 %v3097, %v3235
        %v3238 = vmul.f32 %v3236, 1.442695
        %v3239 = vpow.pop %v3238
        %v3240 = vmul.f32 %v3237, 1.442695
        %v3241 = vpow.pop %v3240
        %v3242 = vsub.f32 %v3140, %v3234
        %v3243 = vsub.f32 %v3141, %v3235
        %v3244 = vmul.f32 %v3242, 1.442695
        %v3245 = vpow.pop %v3244
        %v3246 = vmul.f32 %v3243, 1.442695
        %v3247 = vpow.pop %v3246
        %v3248 = vsub.f32 %v3184, %v3234
        %v3249 = vsub.f32 %v3185, %v3235
        %v3250 = vmul.f32 %v3248, 1.442695
        %v3251 = vpow.pop %v3250
        %v3252 = vmul.f32 %v3249, 1.442695
        %v3253 = vpow.pop %v3252
        %v3254 = vsub.f32 %v3228, %v3234
        %v3255 = vsub.f32 %v3229, %v3235
        %v3256 = vmul.f32 %v3254, 1.442695
        %v3257 = vpow.pop %v3256
        %v3258 = vmul.f32 %v3255, 1.442695
        %v3259 = vpow.pop %v3258
        %v3260 = vadd.f32 %v3239, %v3245
        %v3261 = vadd.f32 %v3241, %v3247
        %v3262 = vadd.f32 %v3260, %v3251
        %v3263 = vadd.f32 %v3261, %v3253
        %v3264 = vadd.f32 %v3262, %v3257
        %v3265 = vadd.f32 %v3263, %v3259
        %v3266 = vrcp.pop %v3264
        %v3267 = vmul.f32 1.0, %v3266
        %v3268 = vrcp.pop %v3265
        %v3269 = vmul.f32 1.0, %v3268
        %v3270 = vmul.f32 %v3239, %v3267
        %v3271 = vmul.f32 %v3241, %v3269
        %v3272 = vmul.f32 %v3270, %v2653
        %v3273 = vmul.f32 %v3271, %v2655
        %v3274 = vmul.f32 %v3270, %v2659
        %v3275 = vmul.f32 %v3271, %v2661
        %v3276 = vmul.f32 %v3270, %v2665
        %v3277 = vmul.f32 %v3271, %v2667
        %v3278 = vmul.f32 %v3270, %v2671
        %v3279 = vmul.f32 %v3271, %v2673
        %v3280 = vmul.f32 %v3270, %v2677
        %v3281 = vmul.f32 %v3271, %v2679
        %v3282 = vmul.f32 %v3270, %v2683
        %v3283 = vmul.f32 %v3271, %v2685
        %v3284 = vmul.f32 %v3270, %v2689
        %v3285 = vmul.f32 %v3271, %v2691
        %v3286 = vmul.f32 %v3270, %v2695
        %v3287 = vmul.f32 %v3271, %v2697
        %v3288 = vmul.f32 %v3245, %v3267
        %v3289 = vmul.f32 %v3247, %v3269
        %v3290 = vmul.f32 %v3288, %v2766
        %v3291 = vmul.f32 %v3289, %v2768
        %v3292 = vmul.f32 %v3288, %v2772
        %v3293 = vmul.f32 %v3289, %v2774
        %v3294 = vmul.f32 %v3288, %v2778
        %v3295 = vmul.f32 %v3289, %v2780
        %v3296 = vmul.f32 %v3288, %v2784
        %v3297 = vmul.f32 %v3289, %v2786
        %v3298 = vmul.f32 %v3288, %v2790
        %v3299 = vmul.f32 %v3289, %v2792
        %v3300 = vmul.f32 %v3288, %v2796
        %v3301 = vmul.f32 %v3289, %v2798
        %v3302 = vmul.f32 %v3288, %v2802
        %v3303 = vmul.f32 %v3289, %v2804
        %v3304 = vmul.f32 %v3288, %v2808
        %v3305 = vmul.f32 %v3289, %v2810
        %v3306 = vadd.f32 %v3272, %v3290
        %v3307 = vadd.f32 %v3273, %v3291
        %v3308 = vadd.f32 %v3274, %v3292
        %v3309 = vadd.f32 %v3275, %v3293
        %v3310 = vadd.f32 %v3276, %v3294
        %v3311 = vadd.f32 %v3277, %v3295
        %v3312 = vadd.f32 %v3278, %v3296
        %v3313 = vadd.f32 %v3279, %v3297
        %v3314 = vadd.f32 %v3280, %v3298
        %v3315 = vadd.f32 %v3281, %v3299
        %v3316 = vadd.f32 %v3282, %v3300
        %v3317 = vadd.f32 %v3283, %v3301
        %v3318 = vadd.f32 %v3284, %v3302
        %v3319 = vadd.f32 %v3285, %v3303
        %v3320 = vadd.f32 %v3286, %v3304
        %v3321 = vadd.f32 %v3287, %v3305
        %v3322 = vmul.f32 %v3251, %v3267
        %v3323 = vmul.f32 %v3253, %v3269
        %v3324 = vmul.f32 %v3322, %v2879
        %v3325 = vmul.f32 %v3323, %v2881
        %v3326 = vmul.f32 %v3322, %v2885
        %v3327 = vmul.f32 %v3323, %v2887
        %v3328 = vmul.f32 %v3322, %v2891
        %v3329 = vmul.f32 %v3323, %v2893
        %v3330 = vmul.f32 %v3322, %v2897
        %v3331 = vmul.f32 %v3323, %v2899
        %v3332 = vmul.f32 %v3322, %v2903
        %v3333 = vmul.f32 %v3323, %v2905
        %v3334 = vmul.f32 %v3322, %v2909
        %v3335 = vmul.f32 %v3323, %v2911
        %v3336 = vmul.f32 %v3322, %v2915
        %v3337 = vmul.f32 %v3323, %v2917
        %v3338 = vmul.f32 %v3322, %v2921
        %v3339 = vmul.f32 %v3323, %v2923
        %v3340 = vadd.f32 %v3306, %v3324
        %v3341 = vadd.f32 %v3307, %v3325
        %v3342 = vadd.f32 %v3308, %v3326
        %v3343 = vadd.f32 %v3309, %v3327
        %v3344 = vadd.f32 %v3310, %v3328
        %v3345 = vadd.f32 %v3311, %v3329
        %v3346 = vadd.f32 %v3312, %v3330
        %v3347 = vadd.f32 %v3313, %v3331
        %v3348 = vadd.f32 %v3314, %v3332
        %v3349 = vadd.f32 %v3315, %v3333
        %v3350 = vadd.f32 %v3316, %v3334
        %v3351 = vadd.f32 %v3317, %v3335
        %v3352 = vadd.f32 %v3318, %v3336
        %v3353 = vadd.f32 %v3319, %v3337
        %v3354 = vadd.f32 %v3320, %v3338
        %v3355 = vadd.f32 %v3321, %v3339
        %v3356 = vmul.f32 %v3257, %v3267
        %v3357 = vmul.f32 %v3259, %v3269
        %v3358 = vmul.f32 %v3356, %v2992
        %v3359 = vmul.f32 %v3357, %v2994
        %v3360 = vmul.f32 %v3356, %v2998
        %v3361 = vmul.f32 %v3357, %v3000
        %v3362 = vmul.f32 %v3356, %v3004
        %v3363 = vmul.f32 %v3357, %v3006
        %v3364 = vmul.f32 %v3356, %v3010
        %v3365 = vmul.f32 %v3357, %v3012
        %v3366 = vmul.f32 %v3356, %v3016
        %v3367 = vmul.f32 %v3357, %v3018
        %v3368 = vmul.f32 %v3356, %v3022
        %v3369 = vmul.f32 %v3357, %v3024
        %v3370 = vmul.f32 %v3356, %v3028
        %v3371 = vmul.f32 %v3357, %v3030
        %v3372 = vmul.f32 %v3356, %v3034
        %v3373 = vmul.f32 %v3357, %v3036
        %v3374 = vadd.f32 %v3340, %v3358
        %v3375 = vadd.f32 %v3341, %v3359
        %v3376 = vadd.f32 %v3342, %v3360
        %v3377 = vadd.f32 %v3343, %v3361
        %v3378 = vadd.f32 %v3344, %v3362
        %v3379 = vadd.f32 %v3345, %v3363
        %v3380 = vadd.f32 %v3346, %v3364
        %v3381 = vadd.f32 %v3347, %v3365
        %v3382 = vadd.f32 %v3348, %v3366
        %v3383 = vadd.f32 %v3349, %v3367
        %v3384 = vadd.f32 %v3350, %v3368
        %v3385 = vadd.f32 %v3351, %v3369
        %v3386 = vadd.f32 %v3352, %v3370
        %v3387 = vadd.f32 %v3353, %v3371
        %v3388 = vadd.f32 %v3354, %v3372
        %v3389 = vadd.f32 %v3355, %v3373
        %3391 = vset.pattern.permute.xlu0 0
        %3392 = vperm.xlu0 %3391, %v1481
        %v3393 = vpop.permute.xlu0 %3392
        %3396 = vset.pattern.permute.xlu0 0
        %3397 = vperm.xlu0 %3396, %v1482
        %v3398 = vpop.permute.xlu0 %3397
        %3401 = vset.pattern.permute.xlu0 0
        %3402 = vperm.xlu0 %3401, %v1483
        %v3403 = vpop.permute.xlu0 %3402
        %3406 = vset.pattern.permute.xlu0 0
        %3407 = vperm.xlu0 %3406, %v1484
        %v3408 = vpop.permute.xlu0 %3407
        %3411 = vset.pattern.permute.xlu0 0
        %3412 = vperm.xlu0 %3411, %v1485
        %v3413 = vpop.permute.xlu0 %3412
        %3416 = vset.pattern.permute.xlu0 0
        %3417 = vperm.xlu0 %3416, %v1486
        %v3418 = vpop.permute.xlu0 %3417
        %3421 = vset.pattern.permute.xlu0 0
        %3422 = vperm.xlu0 %3421, %v1487
        %v3423 = vpop.permute.xlu0 %3422
        %3426 = vset.pattern.permute.xlu0 0
        %3427 = vperm.xlu0 %3426, %v1488
        %v3428 = vpop.permute.xlu0 %3427
        %v3431 = vsel %vm1529, %v1473, 0
        %v3434 = vsel %vm1529, %v1474, 0
        %v3437 = vsel %vm1529, %v1475, 0
        %v3440 = vsel %vm1529, %v1476, 0
        %v3443 = vsel %vm1529, %v1477, 0
        %v3446 = vsel %vm1529, %v1478, 0
        %v3449 = vsel %vm1529, %v1479, 0
        %v3452 = vsel %vm1529, %v1480, 0
        %3454 = vmatprep.subr.mxu0 %v3375
        %3455 = vmatpush1.msra.mxu0 %v3374
        %3456 = vmatprep.subr.mxu0 %v3377
        %3457 = vmatpush1.msra.mxu0 %v3376
        %3458 = vmatprep.subr.mxu0 %v3379
        %3459 = vmatpush1.msra.mxu0 %v3378
        %3460 = vmatprep.subr.mxu0 %v3381
        %3461 = vmatpush1.msra.mxu0 %v3380
        %3462 = vmatprep.subr.mxu0 %v3383
        %3463 = vmatpush1.msra.mxu0 %v3382
        %3464 = vmatprep.subr.mxu0 %v3385
        %3465 = vmatpush1.msra.mxu0 %v3384
        %3466 = vmatprep.subr.mxu0 %v3387
        %3467 = vmatpush1.msra.mxu0 %v3386
        %3468 = vmatprep.subr.mxu0 %v3389
        %3469 = vmatpush1.msra.mxu0 %v3388
        %3470 = vmatprep.subr.mxu0 0.0
        %3471 = vmatpush1.msra.mxu0 0.0
        %3472 = vmatprep.subr.mxu0 0.0
        %3473 = vmatpush1.msra.mxu0 0.0
        %3474 = vmatprep.subr.mxu0 0.0
        %3475 = vmatpush1.msra.mxu0 0.0
        %3476 = vmatprep.subr.mxu0 0.0
        %3477 = vmatpush1.msra.mxu0 0.0
        %3478 = vmatprep.subr.mxu0 0.0
        %3479 = vmatpush1.msra.mxu0 0.0
        %3480 = vmatprep.subr.mxu0 0.0
        %3481 = vmatpush1.msra.mxu0 0.0
        %3482 = vmatprep.subr.mxu0 0.0
        %3483 = vmatpush1.msra.mxu0 0.0
        %3484 = vmatprep.subr.mxu0 0.0
        %3485 = vmatpush1.msra.mxu0 0.0
        %3486 = vmatprep.subr.mxu0 0.0
        %3487 = vmatpush1.msra.mxu0 0.0
        %3488 = vmatprep.subr.mxu0 0.0
        %3489 = vmatpush1.msra.mxu0 0.0
        %3490 = vmatprep.subr.mxu0 0.0
        %3491 = vmatpush1.msra.mxu0 0.0
        %3492 = vmatprep.subr.mxu0 0.0
        %3493 = vmatpush1.msra.mxu0 0.0
        %3494 = vmatprep.subr.mxu0 0.0
        %3495 = vmatpush1.msra.mxu0 0.0
        %3496 = vmatprep.subr.mxu0 0.0
        %3497 = vmatpush1.msra.mxu0 0.0
        %3498 = vmatprep.subr.mxu0 0.0
        %3499 = vmatpush1.msra.mxu0 0.0
        %3500 = vmatprep.subr.mxu0 0.0
        %3501 = vmatpush1.msra.mxu0 0.0
        %3502 = vmatprep.subr.mxu0 0.0
        %3503 = vmatpush1.msra.mxu0 0.0
        %3504 = vmatprep.subr.mxu0 0.0
        %3505 = vmatpush1.msra.mxu0 0.0
        %3506 = vmatprep.subr.mxu0 0.0
        %3507 = vmatpush1.msra.mxu0 0.0
        %3508 = vmatprep.subr.mxu0 0.0
        %3509 = vmatpush1.msra.mxu0 0.0
        %3510 = vmatprep.subr.mxu0 0.0
        %3511 = vmatpush1.msra.mxu0 0.0
        %3512 = vmatprep.subr.mxu0 0.0
        %3513 = vmatpush1.msra.mxu0 0.0
        %3514 = vmatprep.subr.mxu0 0.0
        %3515 = vmatpush1.msra.mxu0 0.0
        %3516 = vmatprep.subr.mxu0 0.0
        %3517 = vmatpush1.msra.mxu0 0.0
        %3518 = vmatprep.mubr.f32.mxu0 0.0
        %3519 = vmatmul.mubr.f32.gmra.mrb[0].mxu0 %v3431
        %v3520 = vpop.f32.mrb[0].mxu0
        %v3521 = vadd.f32 %v3393, %v3520
        %v3522 = vpop.f32.mrb[0].mxu0
        %v3523 = vadd.f32 %v3393, %v3522
        %3524 = vmatprep.mubr.f32.mxu0 0.0
        %3525 = vmatmul.mubr.f32.gmra.mrb[0].mxu0 %v3434
        %v3526 = vpop.f32.mrb[0].mxu0
        %v3527 = vadd.f32 %v3398, %v3526
        %v3528 = vpop.f32.mrb[0].mxu0
        %v3529 = vadd.f32 %v3398, %v3528
        %3530 = vmatprep.mubr.f32.mxu0 0.0
        %3531 = vmatmul.mubr.f32.gmra.mrb[0].mxu0 %v3437
        %v3532 = vpop.f32.mrb[0].mxu0
        %v3533 = vadd.f32 %v3403, %v3532
        %v3534 = vpop.f32.mrb[0].mxu0
        %v3535 = vadd.f32 %v3403, %v3534
        %3536 = vmatprep.mubr.f32.mxu0 0.0
        %3537 = vmatmul.mubr.f32.gmra.mrb[0].mxu0 %v3440
        %v3538 = vpop.f32.mrb[0].mxu0
        %v3539 = vadd.f32 %v3408, %v3538
        %v3540 = vpop.f32.mrb[0].mxu0
        %v3541 = vadd.f32 %v3408, %v3540
        %3542 = vmatprep.mubr.f32.mxu0 0.0
        %3543 = vmatmul.mubr.f32.gmra.mrb[0].mxu0 %v3443
        %v3544 = vpop.f32.mrb[0].mxu0
        %v3545 = vadd.f32 %v3413, %v3544
        %v3546 = vpop.f32.mrb[0].mxu0
        %v3547 = vadd.f32 %v3413, %v3546
        %3548 = vmatprep.mubr.f32.mxu0 0.0
        %3549 = vmatmul.mubr.f32.gmra.mrb[0].mxu0 %v3446
        %v3550 = vpop.f32.mrb[0].mxu0
        %v3551 = vadd.f32 %v3418, %v3550
        %v3552 = vpop.f32.mrb[0].mxu0
        %v3553 = vadd.f32 %v3418, %v3552
        %3554 = vmatprep.mubr.f32.mxu0 0.0
        %3555 = vmatmul.mubr.f32.gmra.mrb[0].mxu0 %v3449
        %v3556 = vpop.f32.mrb[0].mxu0
        %v3557 = vadd.f32 %v3423, %v3556
        %v3558 = vpop.f32.mrb[0].mxu0
        %v3559 = vadd.f32 %v3423, %v3558
        %3560 = vmatprep.mubr.f32.mxu0 0.0
        %3561 = vmatmul.mubr.f32.gmra.mrb[0].mxu0 %v3452
        %v3562 = vpop.f32.mrb[0].mxu0
        %v3563 = vadd.f32 %v3428, %v3562
        %v3564 = vpop.f32.mrb[0].mxu0
        %v3565 = vadd.f32 %v3428, %v3564
        %3566 = vdwg.mxu0
        %v3567 = vadd.f32 %v1235, %v3521
        %v3568 = vadd.f32 %v1237, %v3523
        %v3569 = vadd.f32 %v1241, %v3527
        %v3570 = vadd.f32 %v1243, %v3529
        %v3571 = vadd.f32 %v1247, %v3533
        %v3572 = vadd.f32 %v1249, %v3535
        %v3573 = vadd.f32 %v1253, %v3539
        %v3574 = vadd.f32 %v1255, %v3541
        %v3575 = vadd.f32 %v1259, %v3545
        %v3576 = vadd.f32 %v1261, %v3547
        %v3577 = vadd.f32 %v1265, %v3551
        %v3578 = vadd.f32 %v1267, %v3553
        %v3579 = vadd.f32 %v1271, %v3557
        %v3580 = vadd.f32 %v1273, %v3559
        %v3581 = vadd.f32 %v1277, %v3563
        %v3582 = vadd.f32 %v1279, %v3565
        %v3583 = vadd.f32 %v3567, %v3569
        %v3584 = vadd.f32 %v3583, %v3571
        %v3585 = vadd.f32 %v3584, %v3573
        %v3586 = vadd.f32 %v3585, %v3575
        %v3587 = vadd.f32 %v3586, %v3577
        %v3588 = vadd.f32 %v3587, %v3579
        %v3589 = vadd.f32 %v3588, %v3581
        %v3590 = vrot.slane %v3589, 4
        %v3591 = vadd.f32 %v3589, %v3590
        %v3592 = vrot.slane %v3591, 2
        %v3593 = vadd.f32 %v3591, %v3592
        %v3594 = vrot.slane %v3593, 1
        %v3595 = vadd.f32 %v3593, %v3594
        %v3596 = vadd.f32 %v3568, %v3570
        %v3597 = vadd.f32 %v3596, %v3572
        %v3598 = vadd.f32 %v3597, %v3574
        %v3599 = vadd.f32 %v3598, %v3576
        %v3600 = vadd.f32 %v3599, %v3578
        %v3601 = vadd.f32 %v3600, %v3580
        %v3602 = vadd.f32 %v3601, %v3582
        %v3603 = vrot.slane %v3602, 4
        %v3604 = vadd.f32 %v3602, %v3603
        %v3605 = vrot.slane %v3604, 2
        %v3606 = vadd.f32 %v3604, %v3605
        %v3607 = vrot.slane %v3606, 1
        %v3608 = vadd.f32 %v3606, %v3607
        %v3609 = vrcp.pop 64.0
        %v3610 = vmul.f32 %v3595, %v3609
        %v3611 = vmul.f32 %v3608, %v3609
        %v3612 = vsub.f32 %v3567, %v3610
        %v3613 = vsub.f32 %v3568, %v3611
        %v3614 = vsub.f32 %v3569, %v3610
        %v3615 = vsub.f32 %v3570, %v3611
        %v3616 = vsub.f32 %v3571, %v3610
        %v3617 = vsub.f32 %v3572, %v3611
        %v3618 = vsub.f32 %v3573, %v3610
        %v3619 = vsub.f32 %v3574, %v3611
        %v3620 = vsub.f32 %v3575, %v3610
        %v3621 = vsub.f32 %v3576, %v3611
        %v3622 = vsub.f32 %v3577, %v3610
        %v3623 = vsub.f32 %v3578, %v3611
        %v3624 = vsub.f32 %v3579, %v3610
        %v3625 = vsub.f32 %v3580, %v3611
        %v3626 = vsub.f32 %v3581, %v3610
        %v3627 = vsub.f32 %v3582, %v3611
        %v3628 = vmul.f32 %v3612, %v3612
        %v3629 = vmul.f32 %v3613, %v3613
        %v3630 = vmul.f32 %v3614, %v3614
        %v3631 = vmul.f32 %v3615, %v3615
        %v3632 = vmul.f32 %v3616, %v3616
        %v3633 = vmul.f32 %v3617, %v3617
        %v3634 = vmul.f32 %v3618, %v3618
        %v3635 = vmul.f32 %v3619, %v3619
        %v3636 = vmul.f32 %v3620, %v3620
        %v3637 = vmul.f32 %v3621, %v3621
        %v3638 = vmul.f32 %v3622, %v3622
        %v3639 = vmul.f32 %v3623, %v3623
        %v3640 = vmul.f32 %v3624, %v3624
        %v3641 = vmul.f32 %v3625, %v3625
        %v3642 = vmul.f32 %v3626, %v3626
        %v3643 = vmul.f32 %v3627, %v3627
        %v3644 = vadd.f32 %v3628, %v3630
        %v3645 = vadd.f32 %v3644, %v3632
        %v3646 = vadd.f32 %v3645, %v3634
        %v3647 = vadd.f32 %v3646, %v3636
        %v3648 = vadd.f32 %v3647, %v3638
        %v3649 = vadd.f32 %v3648, %v3640
        %v3650 = vadd.f32 %v3649, %v3642
        %v3651 = vrot.slane %v3650, 4
        %v3652 = vadd.f32 %v3650, %v3651
        %v3653 = vrot.slane %v3652, 2
        %v3654 = vadd.f32 %v3652, %v3653
        %v3655 = vrot.slane %v3654, 1
        %v3656 = vadd.f32 %v3654, %v3655
        %v3657 = vadd.f32 %v3629, %v3631
        %v3658 = vadd.f32 %v3657, %v3633
        %v3659 = vadd.f32 %v3658, %v3635
        %v3660 = vadd.f32 %v3659, %v3637
        %v3661 = vadd.f32 %v3660, %v3639
        %v3662 = vadd.f32 %v3661, %v3641
        %v3663 = vadd.f32 %v3662, %v3643
        %v3664 = vrot.slane %v3663, 4
        %v3665 = vadd.f32 %v3663, %v3664
        %v3666 = vrot.slane %v3665, 2
        %v3667 = vadd.f32 %v3665, %v3666
        %v3668 = vrot.slane %v3667, 1
        %v3669 = vadd.f32 %v3667, %v3668
        %v3670 = vmul.f32 %v3656, %v3609
        %v3671 = vmul.f32 %v3669, %v3609
        %v3672 = vadd.f32 %v3670, 1e-05
        %v3673 = vadd.f32 %v3671, 1e-05
        %v3674 = vrsqrt.pop %v3672
        %v3675 = vrsqrt.pop %v3673
        %v3676 = vmul.f32 %v3612, %v3674
        %v3677 = vmul.f32 %v3613, %v3675
        %v3678 = vmul.f32 %v3614, %v3674
        %v3679 = vmul.f32 %v3615, %v3675
        %v3680 = vmul.f32 %v3616, %v3674
        %v3681 = vmul.f32 %v3617, %v3675
        %v3682 = vmul.f32 %v3618, %v3674
        %v3683 = vmul.f32 %v3619, %v3675
        %v3684 = vmul.f32 %v3620, %v3674
        %v3685 = vmul.f32 %v3621, %v3675
        %v3686 = vmul.f32 %v3622, %v3674
        %v3687 = vmul.f32 %v3623, %v3675
        %v3688 = vmul.f32 %v3624, %v3674
        %v3689 = vmul.f32 %v3625, %v3675
        %v3690 = vmul.f32 %v3626, %v3674
        %v3691 = vmul.f32 %v3627, %v3675
        %3693 = vset.pattern.permute.xlu0 0
        %3694 = vperm.xlu0 %3693, %v3038
        %v3695 = vpop.permute.xlu0 %3694
        %3698 = vset.pattern.permute.xlu0 0
        %3699 = vperm.xlu0 %3698, %v3039
        %v3700 = vpop.permute.xlu0 %3699
        %3703 = vset.pattern.permute.xlu0 0
        %3704 = vperm.xlu0 %3703, %v3040
        %v3705 = vpop.permute.xlu0 %3704
        %3708 = vset.pattern.permute.xlu0 0
        %3709 = vperm.xlu0 %3708, %v3041
        %v3710 = vpop.permute.xlu0 %3709
        %3713 = vset.pattern.permute.xlu0 0
        %3714 = vperm.xlu0 %3713, %v3042
        %v3715 = vpop.permute.xlu0 %3714
        %3718 = vset.pattern.permute.xlu0 0
        %3719 = vperm.xlu0 %3718, %v3043
        %v3720 = vpop.permute.xlu0 %3719
        %3723 = vset.pattern.permute.xlu0 0
        %3724 = vperm.xlu0 %3723, %v3044
        %v3725 = vpop.permute.xlu0 %3724
        %3728 = vset.pattern.permute.xlu0 0
        %3729 = vperm.xlu0 %3728, %v3045
        %v3730 = vpop.permute.xlu0 %3729
        %v3732 = vmul.f32 %v3676, %v3695
        %v3733 = vmul.f32 %v3677, %v3695
        %v3734 = vmul.f32 %v3678, %v3700
        %v3735 = vmul.f32 %v3679, %v3700
        %v3736 = vmul.f32 %v3680, %v3705
        %v3737 = vmul.f32 %v3681, %v3705
        %v3738 = vmul.f32 %v3682, %v3710
        %v3739 = vmul.f32 %v3683, %v3710
        %v3740 = vmul.f32 %v3684, %v3715
        %v3741 = vmul.f32 %v3685, %v3715
        %v3742 = vmul.f32 %v3686, %v3720
        %v3743 = vmul.f32 %v3687, %v3720
        %v3744 = vmul.f32 %v3688, %v3725
        %v3745 = vmul.f32 %v3689, %v3725
        %v3746 = vmul.f32 %v3690, %v3730
        %v3747 = vmul.f32 %v3691, %v3730
        %3749 = vset.pattern.permute.xlu0 0
        %3750 = vperm.xlu0 %3749, %v3046
        %v3751 = vpop.permute.xlu0 %3750
        %3754 = vset.pattern.permute.xlu0 0
        %3755 = vperm.xlu0 %3754, %v3047
        %v3756 = vpop.permute.xlu0 %3755
        %3759 = vset.pattern.permute.xlu0 0
        %3760 = vperm.xlu0 %3759, %v3048
        %v3761 = vpop.permute.xlu0 %3760
        %3764 = vset.pattern.permute.xlu0 0
        %3765 = vperm.xlu0 %3764, %v3049
        %v3766 = vpop.permute.xlu0 %3765
        %3769 = vset.pattern.permute.xlu0 0
        %3770 = vperm.xlu0 %3769, %v3050
        %v3771 = vpop.permute.xlu0 %3770
        %3774 = vset.pattern.permute.xlu0 0
        %3775 = vperm.xlu0 %3774, %v3051
        %v3776 = vpop.permute.xlu0 %3775
        %3779 = vset.pattern.permute.xlu0 0
        %3780 = vperm.xlu0 %3779, %v3052
        %v3781 = vpop.permute.xlu0 %3780
        %3784 = vset.pattern.permute.xlu0 0
        %3785 = vperm.xlu0 %3784, %v3053
        %v3786 = vpop.permute.xlu0 %3785
        %v3788 = vadd.f32 %v3732, %v3751
        %v3789 = vadd.f32 %v3733, %v3751
        %v3790 = vadd.f32 %v3734, %v3756
        %v3791 = vadd.f32 %v3735, %v3756
        %v3792 = vadd.f32 %v3736, %v3761
        %v3793 = vadd.f32 %v3737, %v3761
        %v3794 = vadd.f32 %v3738, %v3766
        %v3795 = vadd.f32 %v3739, %v3766
        %v3796 = vadd.f32 %v3740, %v3771
        %v3797 = vadd.f32 %v3741, %v3771
        %v3798 = vadd.f32 %v3742, %v3776
        %v3799 = vadd.f32 %v3743, %v3776
        %v3800 = vadd.f32 %v3744, %v3781
        %v3801 = vadd.f32 %v3745, %v3781
        %v3802 = vadd.f32 %v3746, %v3786
        %v3803 = vadd.f32 %v3747, %v3786
        %v3804 = vmul.f32 %v1734, %v2137
        %v3805 = vmul.f32 %v1736, %v2139
        %v3806 = vmul.f32 %v1740, %v2143
        %v3807 = vmul.f32 %v1742, %v2145
        %v3808 = vmul.f32 %v1746, %v2149
        %v3809 = vmul.f32 %v1748, %v2151
        %v3810 = vmul.f32 %v1752, %v2155
        %v3811 = vmul.f32 %v1754, %v2157
        %v3812 = vmul.f32 %v1758, %v2161
        %v3813 = vmul.f32 %v1760, %v2163
        %v3814 = vmul.f32 %v1764, %v2167
        %v3815 = vmul.f32 %v1766, %v2169
        %v3816 = vmul.f32 %v1770, %v2173
        %v3817 = vmul.f32 %v1772, %v2175
        %v3818 = vmul.f32 %v1776, %v2179
        %v3819 = vmul.f32 %v1778, %v2181
        %v3820 = vadd.f32 %v3804, %v3806
        %v3821 = vadd.f32 %v3820, %v3808
        %v3822 = vadd.f32 %v3821, %v3810
        %v3823 = vadd.f32 %v3822, %v3812
        %v3824 = vadd.f32 %v3823, %v3814
        %v3825 = vadd.f32 %v3824, %v3816
        %v3826 = vadd.f32 %v3825, %v3818
        %v3827 = vrot.slane %v3826, 4
        %v3828 = vadd.f32 %v3826, %v3827
        %v3829 = vrot.slane %v3828, 2
        %v3830 = vadd.f32 %v3828, %v3829
        %v3831 = vrot.slane %v3830, 1
        %v3832 = vadd.f32 %v3830, %v3831
        %v3833 = vadd.f32 %v3805, %v3807
        %v3834 = vadd.f32 %v3833, %v3809
        %v3835 = vadd.f32 %v3834, %v3811
        %v3836 = vadd.f32 %v3835, %v3813
        %v3837 = vadd.f32 %v3836, %v3815
        %v3838 = vadd.f32 %v3837, %v3817
        %v3839 = vadd.f32 %v3838, %v3819
        %v3840 = vrot.slane %v3839, 4
        %v3841 = vadd.f32 %v3839, %v3840
        %v3842 = vrot.slane %v3841, 2
        %v3843 = vadd.f32 %v3841, %v3842
        %v3844 = vrot.slane %v3843, 1
        %v3845 = vadd.f32 %v3843, %v3844
        %v3846 = vmul.f32 %v3832, 0.125
        %v3847 = vmul.f32 %v3845, 0.125
        %v3848 = vmul.f32 %v1734, %v2250
        %v3849 = vmul.f32 %v1736, %v2252
        %v3850 = vmul.f32 %v1740, %v2256
        %v3851 = vmul.f32 %v1742, %v2258
        %v3852 = vmul.f32 %v1746, %v2262
        %v3853 = vmul.f32 %v1748, %v2264
        %v3854 = vmul.f32 %v1752, %v2268
        %v3855 = vmul.f32 %v1754, %v2270
        %v3856 = vmul.f32 %v1758, %v2274
        %v3857 = vmul.f32 %v1760, %v2276
        %v3858 = vmul.f32 %v1764, %v2280
        %v3859 = vmul.f32 %v1766, %v2282
        %v3860 = vmul.f32 %v1770, %v2286
        %v3861 = vmul.f32 %v1772, %v2288
        %v3862 = vmul.f32 %v1776, %v2292
        %v3863 = vmul.f32 %v1778, %v2294
        %v3864 = vadd.f32 %v3848, %v3850
        %v3865 = vadd.f32 %v3864, %v3852
        %v3866 = vadd.f32 %v3865, %v3854
        %v3867 = vadd.f32 %v3866, %v3856
        %v3868 = vadd.f32 %v3867, %v3858
        %v3869 = vadd.f32 %v3868, %v3860
        %v3870 = vadd.f32 %v3869, %v3862
        %v3871 = vrot.slane %v3870, 4
        %v3872 = vadd.f32 %v3870, %v3871
        %v3873 = vrot.slane %v3872, 2
        %v3874 = vadd.f32 %v3872, %v3873
        %v3875 = vrot.slane %v3874, 1
        %v3876 = vadd.f32 %v3874, %v3875
        %v3877 = vadd.f32 %v3849, %v3851
        %v3878 = vadd.f32 %v3877, %v3853
        %v3879 = vadd.f32 %v3878, %v3855
        %v3880 = vadd.f32 %v3879, %v3857
        %v3881 = vadd.f32 %v3880, %v3859
        %v3882 = vadd.f32 %v3881, %v3861
        %v3883 = vadd.f32 %v3882, %v3863
        %v3884 = vrot.slane %v3883, 4
        %v3885 = vadd.f32 %v3883, %v3884
        %v3886 = vrot.slane %v3885, 2
        %v3887 = vadd.f32 %v3885, %v3886
        %v3888 = vrot.slane %v3887, 1
        %v3889 = vadd.f32 %v3887, %v3888
        %v3890 = vmul.f32 %v3876, 0.125
        %v3891 = vmul.f32 %v3889, 0.125
        %v3892 = vmul.f32 %v1734, %v2363
        %v3893 = vmul.f32 %v1736, %v2365
        %v3894 = vmul.f32 %v1740, %v2369
        %v3895 = vmul.f32 %v1742, %v2371
        %v3896 = vmul.f32 %v1746, %v2375
        %v3897 = vmul.f32 %v1748, %v2377
        %v3898 = vmul.f32 %v1752, %v2381
        %v3899 = vmul.f32 %v1754, %v2383
        %v3900 = vmul.f32 %v1758, %v2387
        %v3901 = vmul.f32 %v1760, %v2389
        %v3902 = vmul.f32 %v1764, %v2393
        %v3903 = vmul.f32 %v1766, %v2395
        %v3904 = vmul.f32 %v1770, %v2399
        %v3905 = vmul.f32 %v1772, %v2401
        %v3906 = vmul.f32 %v1776, %v2405
        %v3907 = vmul.f32 %v1778, %v2407
        %v3908 = vadd.f32 %v3892, %v3894
        %v3909 = vadd.f32 %v3908, %v3896
        %v3910 = vadd.f32 %v3909, %v3898
        %v3911 = vadd.f32 %v3910, %v3900
        %v3912 = vadd.f32 %v3911, %v3902
        %v3913 = vadd.f32 %v3912, %v3904
        %v3914 = vadd.f32 %v3913, %v3906
        %v3915 = vrot.slane %v3914, 4
        %v3916 = vadd.f32 %v3914, %v3915
        %v3917 = vrot.slane %v3916, 2
        %v3918 = vadd.f32 %v3916, %v3917
        %v3919 = vrot.slane %v3918, 1
        %v3920 = vadd.f32 %v3918, %v3919
        %v3921 = vadd.f32 %v3893, %v3895
        %v3922 = vadd.f32 %v3921, %v3897
        %v3923 = vadd.f32 %v3922, %v3899
        %v3924 = vadd.f32 %v3923, %v3901
        %v3925 = vadd.f32 %v3924, %v3903
        %v3926 = vadd.f32 %v3925, %v3905
        %v3927 = vadd.f32 %v3926, %v3907
        %v3928 = vrot.slane %v3927, 4
        %v3929 = vadd.f32 %v3927, %v3928
        %v3930 = vrot.slane %v3929, 2
        %v3931 = vadd.f32 %v3929, %v3930
        %v3932 = vrot.slane %v3931, 1
        %v3933 = vadd.f32 %v3931, %v3932
        %v3934 = vmul.f32 %v3920, 0.125
        %v3935 = vmul.f32 %v3933, 0.125
        %v3936 = vmul.f32 %v1734, %v2476
        %v3937 = vmul.f32 %v1736, %v2478
        %v3938 = vmul.f32 %v1740, %v2482
        %v3939 = vmul.f32 %v1742, %v2484
        %v3940 = vmul.f32 %v1746, %v2488
        %v3941 = vmul.f32 %v1748, %v2490
        %v3942 = vmul.f32 %v1752, %v2494
        %v3943 = vmul.f32 %v1754, %v2496
        %v3944 = vmul.f32 %v1758, %v2500
        %v3945 = vmul.f32 %v1760, %v2502
        %v3946 = vmul.f32 %v1764, %v2506
        %v3947 = vmul.f32 %v1766, %v2508
        %v3948 = vmul.f32 %v1770, %v2512
        %v3949 = vmul.f32 %v1772, %v2514
        %v3950 = vmul.f32 %v1776, %v2518
        %v3951 = vmul.f32 %v1778, %v2520
        %v3952 = vadd.f32 %v3936, %v3938
        %v3953 = vadd.f32 %v3952, %v3940
        %v3954 = vadd.f32 %v3953, %v3942
        %v3955 = vadd.f32 %v3954, %v3944
        %v3956 = vadd.f32 %v3955, %v3946
        %v3957 = vadd.f32 %v3956, %v3948
        %v3958 = vadd.f32 %v3957, %v3950
        %v3959 = vrot.slane %v3958, 4
        %v3960 = vadd.f32 %v3958, %v3959
        %v3961 = vrot.slane %v3960, 2
        %v3962 = vadd.f32 %v3960, %v3961
        %v3963 = vrot.slane %v3962, 1
        %v3964 = vadd.f32 %v3962, %v3963
        %v3965 = vadd.f32 %v3937, %v3939
        %v3966 = vadd.f32 %v3965, %v3941
        %v3967 = vadd.f32 %v3966, %v3943
        %v3968 = vadd.f32 %v3967, %v3945
        %v3969 = vadd.f32 %v3968, %v3947
        %v3970 = vadd.f32 %v3969, %v3949
        %v3971 = vadd.f32 %v3970, %v3951
        %v3972 = vrot.slane %v3971, 4
        %v3973 = vadd.f32 %v3971, %v3972
        %v3974 = vrot.slane %v3973, 2
        %v3975 = vadd.f32 %v3973, %v3974
        %v3976 = vrot.slane %v3975, 1
        %v3977 = vadd.f32 %v3975, %v3976
        %v3978 = vmul.f32 %v3964, 0.125
        %v3979 = vmul.f32 %v3977, 0.125
        %v3980 = vmax.f32 %v3846, %v3890
        %v3981 = vmax.f32 %v3847, %v3891
        %v3982 = vmax.f32 %v3934, %v3978
        %v3983 = vmax.f32 %v3935, %v3979
        %v3984 = vmax.f32 %v3980, %v3982
        %v3985 = vmax.f32 %v3981, %v3983
        %v3986 = vsub.f32 %v3846, %v3984
        %v3987 = vsub.f32 %v3847, %v3985
        %v3988 = vmul.f32 %v3986, 1.442695
        %v3989 = vpow.pop %v3988
        %v3990 = vmul.f32 %v3987, 1.442695
        %v3991 = vpow.pop %v3990
        %v3992 = vsub.f32 %v3890, %v3984
        %v3993 = vsub.f32 %v3891, %v3985
        %v3994 = vmul.f32 %v3992, 1.442695
        %v3995 = vpow.pop %v3994
        %v3996 = vmul.f32 %v3993, 1.442695
        %v3997 = vpow.pop %v3996
        %v3998 = vsub.f32 %v3934, %v3984
        %v3999 = vsub.f32 %v3935, %v3985
        %v4000 = vmul.f32 %v3998, 1.442695
        %v4001 = vpow.pop %v4000
        %v4002 = vmul.f32 %v3999, 1.442695
        %v4003 = vpow.pop %v4002
        %v4004 = vsub.f32 %v3978, %v3984
        %v4005 = vsub.f32 %v3979, %v3985
        %v4006 = vmul.f32 %v4004, 1.442695
        %v4007 = vpow.pop %v4006
        %v4008 = vmul.f32 %v4005, 1.442695
        %v4009 = vpow.pop %v4008
        %v4010 = vadd.f32 %v3989, %v3995
        %v4011 = vadd.f32 %v3991, %v3997
        %v4012 = vadd.f32 %v4010, %v4001
        %v4013 = vadd.f32 %v4011, %v4003
        %v4014 = vadd.f32 %v4012, %v4007
        %v4015 = vadd.f32 %v4013, %v4009
        %v4016 = vrcp.pop %v4014
        %v4017 = vmul.f32 1.0, %v4016
        %v4018 = vrcp.pop %v4015
        %v4019 = vmul.f32 1.0, %v4018
        %v4020 = vmul.f32 %v3989, %v4017
        %v4021 = vmul.f32 %v3991, %v4019
        %v4022 = vmul.f32 %v4020, %v2653
        %v4023 = vmul.f32 %v4021, %v2655
        %v4024 = vmul.f32 %v4020, %v2659
        %v4025 = vmul.f32 %v4021, %v2661
        %v4026 = vmul.f32 %v4020, %v2665
        %v4027 = vmul.f32 %v4021, %v2667
        %v4028 = vmul.f32 %v4020, %v2671
        %v4029 = vmul.f32 %v4021, %v2673
        %v4030 = vmul.f32 %v4020, %v2677
        %v4031 = vmul.f32 %v4021, %v2679
        %v4032 = vmul.f32 %v4020, %v2683
        %v4033 = vmul.f32 %v4021, %v2685
        %v4034 = vmul.f32 %v4020, %v2689
        %v4035 = vmul.f32 %v4021, %v2691
        %v4036 = vmul.f32 %v4020, %v2695
        %v4037 = vmul.f32 %v4021, %v2697
        %v4038 = vmul.f32 %v3995, %v4017
        %v4039 = vmul.f32 %v3997, %v4019
        %v4040 = vmul.f32 %v4038, %v2766
        %v4041 = vmul.f32 %v4039, %v2768
        %v4042 = vmul.f32 %v4038, %v2772
        %v4043 = vmul.f32 %v4039, %v2774
        %v4044 = vmul.f32 %v4038, %v2778
        %v4045 = vmul.f32 %v4039, %v2780
        %v4046 = vmul.f32 %v4038, %v2784
        %v4047 = vmul.f32 %v4039, %v2786
        %v4048 = vmul.f32 %v4038, %v2790
        %v4049 = vmul.f32 %v4039, %v2792
        %v4050 = vmul.f32 %v4038, %v2796
        %v4051 = vmul.f32 %v4039, %v2798
        %v4052 = vmul.f32 %v4038, %v2802
        %v4053 = vmul.f32 %v4039, %v2804
        %v4054 = vmul.f32 %v4038, %v2808
        %v4055 = vmul.f32 %v4039, %v2810
        %v4056 = vadd.f32 %v4022, %v4040
        %v4057 = vadd.f32 %v4023, %v4041
        %v4058 = vadd.f32 %v4024, %v4042
        %v4059 = vadd.f32 %v4025, %v4043
        %v4060 = vadd.f32 %v4026, %v4044
        %v4061 = vadd.f32 %v4027, %v4045
        %v4062 = vadd.f32 %v4028, %v4046
        %v4063 = vadd.f32 %v4029, %v4047
        %v4064 = vadd.f32 %v4030, %v4048
        %v4065 = vadd.f32 %v4031, %v4049
        %v4066 = vadd.f32 %v4032, %v4050
        %v4067 = vadd.f32 %v4033, %v4051
        %v4068 = vadd.f32 %v4034, %v4052
        %v4069 = vadd.f32 %v4035, %v4053
        %v4070 = vadd.f32 %v4036, %v4054
        %v4071 = vadd.f32 %v4037, %v4055
        %v4072 = vmul.f32 %v4001, %v4017
        %v4073 = vmul.f32 %v4003, %v4019
        %v4074 = vmul.f32 %v4072, %v2879
        %v4075 = vmul.f32 %v4073, %v2881
        %v4076 = vmul.f32 %v4072, %v2885
        %v4077 = vmul.f32 %v4073, %v2887
        %v4078 = vmul.f32 %v4072, %v2891
        %v4079 = vmul.f32 %v4073, %v2893
        %v4080 = vmul.f32 %v4072, %v2897
        %v4081 = vmul.f32 %v4073, %v2899
        %v4082 = vmul.f32 %v4072, %v2903
        %v4083 = vmul.f32 %v4073, %v2905
        %v4084 = vmul.f32 %v4072, %v2909
        %v4085 = vmul.f32 %v4073, %v2911
        %v4086 = vmul.f32 %v4072, %v2915
        %v4087 = vmul.f32 %v4073, %v2917
        %v4088 = vmul.f32 %v4072, %v2921
        %v4089 = vmul.f32 %v4073, %v2923
        %v4090 = vadd.f32 %v4056, %v4074
        %v4091 = vadd.f32 %v4057, %v4075
        %v4092 = vadd.f32 %v4058, %v4076
        %v4093 = vadd.f32 %v4059, %v4077
        %v4094 = vadd.f32 %v4060, %v4078
        %v4095 = vadd.f32 %v4061, %v4079
        %v4096 = vadd.f32 %v4062, %v4080
        %v4097 = vadd.f32 %v4063, %v4081
        %v4098 = vadd.f32 %v4064, %v4082
        %v4099 = vadd.f32 %v4065, %v4083
        %v4100 = vadd.f32 %v4066, %v4084
        %v4101 = vadd.f32 %v4067, %v4085
        %v4102 = vadd.f32 %v4068, %v4086
        %v4103 = vadd.f32 %v4069, %v4087
        %v4104 = vadd.f32 %v4070, %v4088
        %v4105 = vadd.f32 %v4071, %v4089
        %v4106 = vmul.f32 %v4007, %v4017
        %v4107 = vmul.f32 %v4009, %v4019
        %v4108 = vmul.f32 %v4106, %v2992
        %v4109 = vmul.f32 %v4107, %v2994
        %v4110 = vmul.f32 %v4106, %v2998
        %v4111 = vmul.f32 %v4107, %v3000
        %v4112 = vmul.f32 %v4106, %v3004
        %v4113 = vmul.f32 %v4107, %v3006
        %v4114 = vmul.f32 %v4106, %v3010
        %v4115 = vmul.f32 %v4107, %v3012
        %v4116 = vmul.f32 %v4106, %v3016
        %v4117 = vmul.f32 %v4107, %v3018
        %v4118 = vmul.f32 %v4106, %v3022
        %v4119 = vmul.f32 %v4107, %v3024
        %v4120 = vmul.f32 %v4106, %v3028
        %v4121 = vmul.f32 %v4107, %v3030
        %v4122 = vmul.f32 %v4106, %v3034
        %v4123 = vmul.f32 %v4107, %v3036
        %v4124 = vadd.f32 %v4090, %v4108
        %v4125 = vadd.f32 %v4091, %v4109
        %v4126 = vadd.f32 %v4092, %v4110
        %v4127 = vadd.f32 %v4093, %v4111
        %v4128 = vadd.f32 %v4094, %v4112
        %v4129 = vadd.f32 %v4095, %v4113
        %v4130 = vadd.f32 %v4096, %v4114
        %v4131 = vadd.f32 %v4097, %v4115
        %v4132 = vadd.f32 %v4098, %v4116
        %v4133 = vadd.f32 %v4099, %v4117
        %v4134 = vadd.f32 %v4100, %v4118
        %v4135 = vadd.f32 %v4101, %v4119
        %v4136 = vadd.f32 %v4102, %v4120
        %v4137 = vadd.f32 %v4103, %v4121
        %v4138 = vadd.f32 %v4104, %v4122
        %v4139 = vadd.f32 %v4105, %v4123
        %4140 = vmatprep.subr.mxu0 %v4125
        %4141 = vmatpush1.msra.mxu0 %v4124
        %4142 = vmatprep.subr.mxu0 %v4127
        %4143 = vmatpush1.msra.mxu0 %v4126
        %4144 = vmatprep.subr.mxu0 %v4129
        %4145 = vmatpush1.msra.mxu0 %v4128
        %4146 = vmatprep.subr.mxu0 %v4131
        %4147 = vmatpush1.msra.mxu0 %v4130
        %4148 = vmatprep.subr.mxu0 %v4133
        %4149 = vmatpush1.msra.mxu0 %v4132
        %4150 = vmatprep.subr.mxu0 %v4135
        %4151 = vmatpush1.msra.mxu0 %v4134
        %4152 = vmatprep.subr.mxu0 %v4137
        %4153 = vmatpush1.msra.mxu0 %v4136
        %4154 = vmatprep.subr.mxu0 %v4139
        %4155 = vmatpush1.msra.mxu0 %v4138
        %4156 = vmatprep.subr.mxu0 0.0
        %4157 = vmatpush1.msra.mxu0 0.0
        %4158 = vmatprep.subr.mxu0 0.0
        %4159 = vmatpush1.msra.mxu0 0.0
        %4160 = vmatprep.subr.mxu0 0.0
        %4161 = vmatpush1.msra.mxu0 0.0
        %4162 = vmatprep.subr.mxu0 0.0
        %4163 = vmatpush1.msra.mxu0 0.0
        %4164 = vmatprep.subr.mxu0 0.0
        %4165 = vmatpush1.msra.mxu0 0.0
        %4166 = vmatprep.subr.mxu0 0.0
        %4167 = vmatpush1.msra.mxu0 0.0
        %4168 = vmatprep.subr.mxu0 0.0
        %4169 = vmatpush1.msra.mxu0 0.0
        %4170 = vmatprep.subr.mxu0 0.0
        %4171 = vmatpush1.msra.mxu0 0.0
        %4172 = vmatprep.subr.mxu0 0.0
        %4173 = vmatpush1.msra.mxu0 0.0
        %4174 = vmatprep.subr.mxu0 0.0
        %4175 = vmatpush1.msra.mxu0 0.0
        %4176 = vmatprep.subr.mxu0 0.0
        %4177 = vmatpush1.msra.mxu0 0.0
        %4178 = vmatprep.subr.mxu0 0.0
        %4179 = vmatpush1.msra.mxu0 0.0
        %4180 = vmatprep.subr.mxu0 0.0
        %4181 = vmatpush1.msra.mxu0 0.0
        %4182 = vmatprep.subr.mxu0 0.0
        %4183 = vmatpush1.msra.mxu0 0.0
        %4184 = vmatprep.subr.mxu0 0.0
        %4185 = vmatpush1.msra.mxu0 0.0
        %4186 = vmatprep.subr.mxu0 0.0
        %4187 = vmatpush1.msra.mxu0 0.0
        %4188 = vmatprep.subr.mxu0 0.0
        %4189 = vmatpush1.msra.mxu0 0.0
        %4190 = vmatprep.subr.mxu0 0.0
        %4191 = vmatpush1.msra.mxu0 0.0
        %4192 = vmatprep.subr.mxu0 0.0
        %4193 = vmatpush1.msra.mxu0 0.0
        %4194 = vmatprep.subr.mxu0 0.0
        %4195 = vmatpush1.msra.mxu0 0.0
        %4196 = vmatprep.subr.mxu0 0.0
        %4197 = vmatpush1.msra.mxu0 0.0
        %4198 = vmatprep.subr.mxu0 0.0
        %4199 = vmatpush1.msra.mxu0 0.0
        %4200 = vmatprep.subr.mxu0 0.0
        %4201 = vmatpush1.msra.mxu0 0.0
        %4202 = vmatprep.subr.mxu0 0.0
        %4203 = vmatpush1.msra.mxu0 0.0
        %4204 = vmatprep.mubr.f32.mxu0 0.0
        %4205 = vmatmul.mubr.f32.gmra.mrb[0].mxu0 %v3431
        %v4206 = vpop.f32.mrb[0].mxu0
        %v4207 = vadd.f32 %v3393, %v4206
        %v4208 = vpop.f32.mrb[0].mxu0
        %v4209 = vadd.f32 %v3393, %v4208
        %4210 = vmatprep.mubr.f32.mxu0 0.0
        %4211 = vmatmul.mubr.f32.gmra.mrb[0].mxu0 %v3434
        %v4212 = vpop.f32.mrb[0].mxu0
        %v4213 = vadd.f32 %v3398, %v4212
        %v4214 = vpop.f32.mrb[0].mxu0
        %v4215 = vadd.f32 %v3398, %v4214
        %4216 = vmatprep.mubr.f32.mxu0 0.0
        %4217 = vmatmul.mubr.f32.gmra.mrb[0].mxu0 %v3437
        %v4218 = vpop.f32.mrb[0].mxu0
        %v4219 = vadd.f32 %v3403, %v4218
        %v4220 = vpop.f32.mrb[0].mxu0
        %v4221 = vadd.f32 %v3403, %v4220
        %4222 = vmatprep.mubr.f32.mxu0 0.0
        %4223 = vmatmul.mubr.f32.gmra.mrb[0].mxu0 %v3440
        %v4224 = vpop.f32.mrb[0].mxu0
        %v4225 = vadd.f32 %v3408, %v4224
        %v4226 = vpop.f32.mrb[0].mxu0
        %v4227 = vadd.f32 %v3408, %v4226
        %4228 = vmatprep.mubr.f32.mxu0 0.0
        %4229 = vmatmul.mubr.f32.gmra.mrb[0].mxu0 %v3443
        %v4230 = vpop.f32.mrb[0].mxu0
        %v4231 = vadd.f32 %v3413, %v4230
        %v4232 = vpop.f32.mrb[0].mxu0
        %v4233 = vadd.f32 %v3413, %v4232
        %4234 = vmatprep.mubr.f32.mxu0 0.0
        %4235 = vmatmul.mubr.f32.gmra.mrb[0].mxu0 %v3446
        %v4236 = vpop.f32.mrb[0].mxu0
        %v4237 = vadd.f32 %v3418, %v4236
        %v4238 = vpop.f32.mrb[0].mxu0
        %v4239 = vadd.f32 %v3418, %v4238
        %4240 = vmatprep.mubr.f32.mxu0 0.0
        %4241 = vmatmul.mubr.f32.gmra.mrb[0].mxu0 %v3449
        %v4242 = vpop.f32.mrb[0].mxu0
        %v4243 = vadd.f32 %v3423, %v4242
        %v4244 = vpop.f32.mrb[0].mxu0
        %v4245 = vadd.f32 %v3423, %v4244
        %4246 = vmatprep.mubr.f32.mxu0 0.0
        %4247 = vmatmul.mubr.f32.gmra.mrb[0].mxu0 %v3452
        %v4248 = vpop.f32.mrb[0].mxu0
        %v4249 = vadd.f32 %v3428, %v4248
        %v4250 = vpop.f32.mrb[0].mxu0
        %v4251 = vadd.f32 %v3428, %v4250
        %4252 = vdwg.mxu0
        %v4253 = vadd.f32 %v1283, %v4207
        %v4254 = vadd.f32 %v1285, %v4209
        %v4255 = vadd.f32 %v1289, %v4213
        %v4256 = vadd.f32 %v1291, %v4215
        %v4257 = vadd.f32 %v1295, %v4219
        %v4258 = vadd.f32 %v1297, %v4221
        %v4259 = vadd.f32 %v1301, %v4225
        %v4260 = vadd.f32 %v1303, %v4227
        %v4261 = vadd.f32 %v1307, %v4231
        %v4262 = vadd.f32 %v1309, %v4233
        %v4263 = vadd.f32 %v1313, %v4237
        %v4264 = vadd.f32 %v1315, %v4239
        %v4265 = vadd.f32 %v1319, %v4243
        %v4266 = vadd.f32 %v1321, %v4245
        %v4267 = vadd.f32 %v1325, %v4249
        %v4268 = vadd.f32 %v1327, %v4251
        %v4269 = vadd.f32 %v4253, %v4255
        %v4270 = vadd.f32 %v4269, %v4257
        %v4271 = vadd.f32 %v4270, %v4259
        %v4272 = vadd.f32 %v4271, %v4261
        %v4273 = vadd.f32 %v4272, %v4263
        %v4274 = vadd.f32 %v4273, %v4265
        %v4275 = vadd.f32 %v4274, %v4267
        %v4276 = vrot.slane %v4275, 4
        %v4277 = vadd.f32 %v4275, %v4276
        %v4278 = vrot.slane %v4277, 2
        %v4279 = vadd.f32 %v4277, %v4278
        %v4280 = vrot.slane %v4279, 1
        %v4281 = vadd.f32 %v4279, %v4280
        %v4282 = vadd.f32 %v4254, %v4256
        %v4283 = vadd.f32 %v4282, %v4258
        %v4284 = vadd.f32 %v4283, %v4260
        %v4285 = vadd.f32 %v4284, %v4262
        %v4286 = vadd.f32 %v4285, %v4264
        %v4287 = vadd.f32 %v4286, %v4266
        %v4288 = vadd.f32 %v4287, %v4268
        %v4289 = vrot.slane %v4288, 4
        %v4290 = vadd.f32 %v4288, %v4289
        %v4291 = vrot.slane %v4290, 2
        %v4292 = vadd.f32 %v4290, %v4291
        %v4293 = vrot.slane %v4292, 1
        %v4294 = vadd.f32 %v4292, %v4293
        %v4295 = vmul.f32 %v4281, %v3609
        %v4296 = vmul.f32 %v4294, %v3609
        %v4297 = vsub.f32 %v4253, %v4295
        %v4298 = vsub.f32 %v4254, %v4296
        %v4299 = vsub.f32 %v4255, %v4295
        %v4300 = vsub.f32 %v4256, %v4296
        %v4301 = vsub.f32 %v4257, %v4295
        %v4302 = vsub.f32 %v4258, %v4296
        %v4303 = vsub.f32 %v4259, %v4295
        %v4304 = vsub.f32 %v4260, %v4296
        %v4305 = vsub.f32 %v4261, %v4295
        %v4306 = vsub.f32 %v4262, %v4296
        %v4307 = vsub.f32 %v4263, %v4295
        %v4308 = vsub.f32 %v4264, %v4296
        %v4309 = vsub.f32 %v4265, %v4295
        %v4310 = vsub.f32 %v4266, %v4296
        %v4311 = vsub.f32 %v4267, %v4295
        %v4312 = vsub.f32 %v4268, %v4296
        %v4313 = vmul.f32 %v4297, %v4297
        %v4314 = vmul.f32 %v4298, %v4298
        %v4315 = vmul.f32 %v4299, %v4299
        %v4316 = vmul.f32 %v4300, %v4300
        %v4317 = vmul.f32 %v4301, %v4301
        %v4318 = vmul.f32 %v4302, %v4302
        %v4319 = vmul.f32 %v4303, %v4303
        %v4320 = vmul.f32 %v4304, %v4304
        %v4321 = vmul.f32 %v4305, %v4305
        %v4322 = vmul.f32 %v4306, %v4306
        %v4323 = vmul.f32 %v4307, %v4307
        %v4324 = vmul.f32 %v4308, %v4308
        %v4325 = vmul.f32 %v4309, %v4309
        %v4326 = vmul.f32 %v4310, %v4310
        %v4327 = vmul.f32 %v4311, %v4311
        %v4328 = vmul.f32 %v4312, %v4312
        %v4329 = vadd.f32 %v4313, %v4315
        %v4330 = vadd.f32 %v4329, %v4317
        %v4331 = vadd.f32 %v4330, %v4319
        %v4332 = vadd.f32 %v4331, %v4321
        %v4333 = vadd.f32 %v4332, %v4323
        %v4334 = vadd.f32 %v4333, %v4325
        %v4335 = vadd.f32 %v4334, %v4327
        %v4336 = vrot.slane %v4335, 4
        %v4337 = vadd.f32 %v4335, %v4336
        %v4338 = vrot.slane %v4337, 2
        %v4339 = vadd.f32 %v4337, %v4338
        %v4340 = vrot.slane %v4339, 1
        %v4341 = vadd.f32 %v4339, %v4340
        %v4342 = vadd.f32 %v4314, %v4316
        %v4343 = vadd.f32 %v4342, %v4318
        %v4344 = vadd.f32 %v4343, %v4320
        %v4345 = vadd.f32 %v4344, %v4322
        %v4346 = vadd.f32 %v4345, %v4324
        %v4347 = vadd.f32 %v4346, %v4326
        %v4348 = vadd.f32 %v4347, %v4328
        %v4349 = vrot.slane %v4348, 4
        %v4350 = vadd.f32 %v4348, %v4349
        %v4351 = vrot.slane %v4350, 2
        %v4352 = vadd.f32 %v4350, %v4351
        %v4353 = vrot.slane %v4352, 1
        %v4354 = vadd.f32 %v4352, %v4353
        %v4355 = vmul.f32 %v4341, %v3609
        %v4356 = vmul.f32 %v4354, %v3609
        %v4357 = vadd.f32 %v4355, 1e-05
        %v4358 = vadd.f32 %v4356, 1e-05
        %v4359 = vrsqrt.pop %v4357
        %v4360 = vrsqrt.pop %v4358
        %v4361 = vmul.f32 %v4297, %v4359
        %v4362 = vmul.f32 %v4298, %v4360
        %v4363 = vmul.f32 %v4299, %v4359
        %v4364 = vmul.f32 %v4300, %v4360
        %v4365 = vmul.f32 %v4301, %v4359
        %v4366 = vmul.f32 %v4302, %v4360
        %v4367 = vmul.f32 %v4303, %v4359
        %v4368 = vmul.f32 %v4304, %v4360
        %v4369 = vmul.f32 %v4305, %v4359
        %v4370 = vmul.f32 %v4306, %v4360
        %v4371 = vmul.f32 %v4307, %v4359
        %v4372 = vmul.f32 %v4308, %v4360
        %v4373 = vmul.f32 %v4309, %v4359
        %v4374 = vmul.f32 %v4310, %v4360
        %v4375 = vmul.f32 %v4311, %v4359
        %v4376 = vmul.f32 %v4312, %v4360
        %v4377 = vmul.f32 %v4361, %v3695
        %v4378 = vmul.f32 %v4362, %v3695
        %v4379 = vmul.f32 %v4363, %v3700
        %v4380 = vmul.f32 %v4364, %v3700
        %v4381 = vmul.f32 %v4365, %v3705
        %v4382 = vmul.f32 %v4366, %v3705
        %v4383 = vmul.f32 %v4367, %v3710
        %v4384 = vmul.f32 %v4368, %v3710
        %v4385 = vmul.f32 %v4369, %v3715
        %v4386 = vmul.f32 %v4370, %v3715
        %v4387 = vmul.f32 %v4371, %v3720
        %v4388 = vmul.f32 %v4372, %v3720
        %v4389 = vmul.f32 %v4373, %v3725
        %v4390 = vmul.f32 %v4374, %v3725
        %v4391 = vmul.f32 %v4375, %v3730
        %v4392 = vmul.f32 %v4376, %v3730
        %v4393 = vadd.f32 %v4377, %v3751
        %v4394 = vadd.f32 %v4378, %v3751
        %v4395 = vadd.f32 %v4379, %v3756
        %v4396 = vadd.f32 %v4380, %v3756
        %v4397 = vadd.f32 %v4381, %v3761
        %v4398 = vadd.f32 %v4382, %v3761
        %v4399 = vadd.f32 %v4383, %v3766
        %v4400 = vadd.f32 %v4384, %v3766
        %v4401 = vadd.f32 %v4385, %v3771
        %v4402 = vadd.f32 %v4386, %v3771
        %v4403 = vadd.f32 %v4387, %v3776
        %v4404 = vadd.f32 %v4388, %v3776
        %v4405 = vadd.f32 %v4389, %v3781
        %v4406 = vadd.f32 %v4390, %v3781
        %v4407 = vadd.f32 %v4391, %v3786
        %v4408 = vadd.f32 %v4392, %v3786
        %v4409 = vmul.f32 %v1847, %v2137
        %v4410 = vmul.f32 %v1849, %v2139
        %v4411 = vmul.f32 %v1853, %v2143
        %v4412 = vmul.f32 %v1855, %v2145
        %v4413 = vmul.f32 %v1859, %v2149
        %v4414 = vmul.f32 %v1861, %v2151
        %v4415 = vmul.f32 %v1865, %v2155
        %v4416 = vmul.f32 %v1867, %v2157
        %v4417 = vmul.f32 %v1871, %v2161
        %v4418 = vmul.f32 %v1873, %v2163
        %v4419 = vmul.f32 %v1877, %v2167
        %v4420 = vmul.f32 %v1879, %v2169
        %v4421 = vmul.f32 %v1883, %v2173
        %v4422 = vmul.f32 %v1885, %v2175
        %v4423 = vmul.f32 %v1889, %v2179
        %v4424 = vmul.f32 %v1891, %v2181
        %v4425 = vadd.f32 %v4409, %v4411
        %v4426 = vadd.f32 %v4425, %v4413
        %v4427 = vadd.f32 %v4426, %v4415
        %v4428 = vadd.f32 %v4427, %v4417
        %v4429 = vadd.f32 %v4428, %v4419
        %v4430 = vadd.f32 %v4429, %v4421
        %v4431 = vadd.f32 %v4430, %v4423
        %v4432 = vrot.slane %v4431, 4
        %v4433 = vadd.f32 %v4431, %v4432
        %v4434 = vrot.slane %v4433, 2
        %v4435 = vadd.f32 %v4433, %v4434
        %v4436 = vrot.slane %v4435, 1
        %v4437 = vadd.f32 %v4435, %v4436
        %v4438 = vadd.f32 %v4410, %v4412
        %v4439 = vadd.f32 %v4438, %v4414
        %v4440 = vadd.f32 %v4439, %v4416
        %v4441 = vadd.f32 %v4440, %v4418
        %v4442 = vadd.f32 %v4441, %v4420
        %v4443 = vadd.f32 %v4442, %v4422
        %v4444 = vadd.f32 %v4443, %v4424
        %v4445 = vrot.slane %v4444, 4
        %v4446 = vadd.f32 %v4444, %v4445
        %v4447 = vrot.slane %v4446, 2
        %v4448 = vadd.f32 %v4446, %v4447
        %v4449 = vrot.slane %v4448, 1
        %v4450 = vadd.f32 %v4448, %v4449
        %v4451 = vmul.f32 %v4437, 0.125
        %v4452 = vmul.f32 %v4450, 0.125
        %v4453 = vmul.f32 %v1847, %v2250
        %v4454 = vmul.f32 %v1849, %v2252
        %v4455 = vmul.f32 %v1853, %v2256
        %v4456 = vmul.f32 %v1855, %v2258
        %v4457 = vmul.f32 %v1859, %v2262
        %v4458 = vmul.f32 %v1861, %v2264
        %v4459 = vmul.f32 %v1865, %v2268
        %v4460 = vmul.f32 %v1867, %v2270
        %v4461 = vmul.f32 %v1871, %v2274
        %v4462 = vmul.f32 %v1873, %v2276
        %v4463 = vmul.f32 %v1877, %v2280
        %v4464 = vmul.f32 %v1879, %v2282
        %v4465 = vmul.f32 %v1883, %v2286
        %v4466 = vmul.f32 %v1885, %v2288
        %v4467 = vmul.f32 %v1889, %v2292
        %v4468 = vmul.f32 %v1891, %v2294
        %v4469 = vadd.f32 %v4453, %v4455
        %v4470 = vadd.f32 %v4469, %v4457
        %v4471 = vadd.f32 %v4470, %v4459
        %v4472 = vadd.f32 %v4471, %v4461
        %v4473 = vadd.f32 %v4472, %v4463
        %v4474 = vadd.f32 %v4473, %v4465
        %v4475 = vadd.f32 %v4474, %v4467
        %v4476 = vrot.slane %v4475, 4
        %v4477 = vadd.f32 %v4475, %v4476
        %v4478 = vrot.slane %v4477, 2
        %v4479 = vadd.f32 %v4477, %v4478
        %v4480 = vrot.slane %v4479, 1
        %v4481 = vadd.f32 %v4479, %v4480
        %v4482 = vadd.f32 %v4454, %v4456
        %v4483 = vadd.f32 %v4482, %v4458
        %v4484 = vadd.f32 %v4483, %v4460
        %v4485 = vadd.f32 %v4484, %v4462
        %v4486 = vadd.f32 %v4485, %v4464
        %v4487 = vadd.f32 %v4486, %v4466
        %v4488 = vadd.f32 %v4487, %v4468
        %v4489 = vrot.slane %v4488, 4
        %v4490 = vadd.f32 %v4488, %v4489
        %v4491 = vrot.slane %v4490, 2
        %v4492 = vadd.f32 %v4490, %v4491
        %v4493 = vrot.slane %v4492, 1
        %v4494 = vadd.f32 %v4492, %v4493
        %v4495 = vmul.f32 %v4481, 0.125
        %v4496 = vmul.f32 %v4494, 0.125
        %v4497 = vmul.f32 %v1847, %v2363
        %v4498 = vmul.f32 %v1849, %v2365
        %v4499 = vmul.f32 %v1853, %v2369
        %v4500 = vmul.f32 %v1855, %v2371
        %v4501 = vmul.f32 %v1859, %v2375
        %v4502 = vmul.f32 %v1861, %v2377
        %v4503 = vmul.f32 %v1865, %v2381
        %v4504 = vmul.f32 %v1867, %v2383
        %v4505 = vmul.f32 %v1871, %v2387
        %v4506 = vmul.f32 %v1873, %v2389
        %v4507 = vmul.f32 %v1877, %v2393
        %v4508 = vmul.f32 %v1879, %v2395
        %v4509 = vmul.f32 %v1883, %v2399
        %v4510 = vmul.f32 %v1885, %v2401
        %v4511 = vmul.f32 %v1889, %v2405
        %v4512 = vmul.f32 %v1891, %v2407
        %v4513 = vadd.f32 %v4497, %v4499
        %v4514 = vadd.f32 %v4513, %v4501
        %v4515 = vadd.f32 %v4514, %v4503
        %v4516 = vadd.f32 %v4515, %v4505
        %v4517 = vadd.f32 %v4516, %v4507
        %v4518 = vadd.f32 %v4517, %v4509
        %v4519 = vadd.f32 %v4518, %v4511
        %v4520 = vrot.slane %v4519, 4
        %v4521 = vadd.f32 %v4519, %v4520
        %v4522 = vrot.slane %v4521, 2
        %v4523 = vadd.f32 %v4521, %v4522
        %v4524 = vrot.slane %v4523, 1
        %v4525 = vadd.f32 %v4523, %v4524
        %v4526 = vadd.f32 %v4498, %v4500
        %v4527 = vadd.f32 %v4526, %v4502
        %v4528 = vadd.f32 %v4527, %v4504
        %v4529 = vadd.f32 %v4528, %v4506
        %v4530 = vadd.f32 %v4529, %v4508
        %v4531 = vadd.f32 %v4530, %v4510
        %v4532 = vadd.f32 %v4531, %v4512
        %v4533 = vrot.slane %v4532, 4
        %v4534 = vadd.f32 %v4532, %v4533
        %v4535 = vrot.slane %v4534, 2
        %v4536 = vadd.f32 %v4534, %v4535
        %v4537 = vrot.slane %v4536, 1
        %v4538 = vadd.f32 %v4536, %v4537
        %v4539 = vmul.f32 %v4525, 0.125
        %v4540 = vmul.f32 %v4538, 0.125
        %v4541 = vmul.f32 %v1847, %v2476
        %v4542 = vmul.f32 %v1849, %v2478
        %v4543 = vmul.f32 %v1853, %v2482
        %v4544 = vmul.f32 %v1855, %v2484
        %v4545 = vmul.f32 %v1859, %v2488
        %v4546 = vmul.f32 %v1861, %v2490
        %v4547 = vmul.f32 %v1865, %v2494
        %v4548 = vmul.f32 %v1867, %v2496
        %v4549 = vmul.f32 %v1871, %v2500
        %v4550 = vmul.f32 %v1873, %v2502
        %v4551 = vmul.f32 %v1877, %v2506
        %v4552 = vmul.f32 %v1879, %v2508
        %v4553 = vmul.f32 %v1883, %v2512
        %v4554 = vmul.f32 %v1885, %v2514
        %v4555 = vmul.f32 %v1889, %v2518
        %v4556 = vmul.f32 %v1891, %v2520
        %v4557 = vadd.f32 %v4541, %v4543
        %v4558 = vadd.f32 %v4557, %v4545
        %v4559 = vadd.f32 %v4558, %v4547
        %v4560 = vadd.f32 %v4559, %v4549
        %v4561 = vadd.f32 %v4560, %v4551
        %v4562 = vadd.f32 %v4561, %v4553
        %v4563 = vadd.f32 %v4562, %v4555
        %v4564 = vrot.slane %v4563, 4
        %v4565 = vadd.f32 %v4563, %v4564
        %v4566 = vrot.slane %v4565, 2
        %v4567 = vadd.f32 %v4565, %v4566
        %v4568 = vrot.slane %v4567, 1
        %v4569 = vadd.f32 %v4567, %v4568
        %v4570 = vadd.f32 %v4542, %v4544
        %v4571 = vadd.f32 %v4570, %v4546
        %v4572 = vadd.f32 %v4571, %v4548
        %v4573 = vadd.f32 %v4572, %v4550
        %v4574 = vadd.f32 %v4573, %v4552
        %v4575 = vadd.f32 %v4574, %v4554
        %v4576 = vadd.f32 %v4575, %v4556
        %v4577 = vrot.slane %v4576, 4
        %v4578 = vadd.f32 %v4576, %v4577
        %v4579 = vrot.slane %v4578, 2
        %v4580 = vadd.f32 %v4578, %v4579
        %v4581 = vrot.slane %v4580, 1
        %v4582 = vadd.f32 %v4580, %v4581
        %v4583 = vmul.f32 %v4569, 0.125
        %v4584 = vmul.f32 %v4582, 0.125
        %v4585 = vmax.f32 %v4451, %v4495
        %v4586 = vmax.f32 %v4452, %v4496
        %v4587 = vmax.f32 %v4539, %v4583
        %v4588 = vmax.f32 %v4540, %v4584
        %v4589 = vmax.f32 %v4585, %v4587
        %v4590 = vmax.f32 %v4586, %v4588
        %v4591 = vsub.f32 %v4451, %v4589
        %v4592 = vsub.f32 %v4452, %v4590
        %v4593 = vmul.f32 %v4591, 1.442695
        %v4594 = vpow.pop %v4593
        %v4595 = vmul.f32 %v4592, 1.442695
        %v4596 = vpow.pop %v4595
        %v4597 = vsub.f32 %v4495, %v4589
        %v4598 = vsub.f32 %v4496, %v4590
        %v4599 = vmul.f32 %v4597, 1.442695
        %v4600 = vpow.pop %v4599
        %v4601 = vmul.f32 %v4598, 1.442695
        %v4602 = vpow.pop %v4601
        %v4603 = vsub.f32 %v4539, %v4589
        %v4604 = vsub.f32 %v4540, %v4590
        %v4605 = vmul.f32 %v4603, 1.442695
        %v4606 = vpow.pop %v4605
        %v4607 = vmul.f32 %v4604, 1.442695
        %v4608 = vpow.pop %v4607
        %v4609 = vsub.f32 %v4583, %v4589
        %v4610 = vsub.f32 %v4584, %v4590
        %v4611 = vmul.f32 %v4609, 1.442695
        %v4612 = vpow.pop %v4611
        %v4613 = vmul.f32 %v4610, 1.442695
        %v4614 = vpow.pop %v4613
        %v4615 = vadd.f32 %v4594, %v4600
        %v4616 = vadd.f32 %v4596, %v4602
        %v4617 = vadd.f32 %v4615, %v4606
        %v4618 = vadd.f32 %v4616, %v4608
        %v4619 = vadd.f32 %v4617, %v4612
        %v4620 = vadd.f32 %v4618, %v4614
        %v4621 = vrcp.pop %v4619
        %v4622 = vmul.f32 1.0, %v4621
        %v4623 = vrcp.pop %v4620
        %v4624 = vmul.f32 1.0, %v4623
        %v4625 = vmul.f32 %v4594, %v4622
        %v4626 = vmul.f32 %v4596, %v4624
        %v4627 = vmul.f32 %v4625, %v2653
        %v4628 = vmul.f32 %v4626, %v2655
        %v4629 = vmul.f32 %v4625, %v2659
        %v4630 = vmul.f32 %v4626, %v2661
        %v4631 = vmul.f32 %v4625, %v2665
        %v4632 = vmul.f32 %v4626, %v2667
        %v4633 = vmul.f32 %v4625, %v2671
        %v4634 = vmul.f32 %v4626, %v2673
        %v4635 = vmul.f32 %v4625, %v2677
        %v4636 = vmul.f32 %v4626, %v2679
        %v4637 = vmul.f32 %v4625, %v2683
        %v4638 = vmul.f32 %v4626, %v2685
        %v4639 = vmul.f32 %v4625, %v2689
        %v4640 = vmul.f32 %v4626, %v2691
        %v4641 = vmul.f32 %v4625, %v2695
        %v4642 = vmul.f32 %v4626, %v2697
        %v4643 = vmul.f32 %v4600, %v4622
        %v4644 = vmul.f32 %v4602, %v4624
        %v4645 = vmul.f32 %v4643, %v2766
        %v4646 = vmul.f32 %v4644, %v2768
        %v4647 = vmul.f32 %v4643, %v2772
        %v4648 = vmul.f32 %v4644, %v2774
        %v4649 = vmul.f32 %v4643, %v2778
        %v4650 = vmul.f32 %v4644, %v2780
        %v4651 = vmul.f32 %v4643, %v2784
        %v4652 = vmul.f32 %v4644, %v2786
        %v4653 = vmul.f32 %v4643, %v2790
        %v4654 = vmul.f32 %v4644, %v2792
        %v4655 = vmul.f32 %v4643, %v2796
        %v4656 = vmul.f32 %v4644, %v2798
        %v4657 = vmul.f32 %v4643, %v2802
        %v4658 = vmul.f32 %v4644, %v2804
        %v4659 = vmul.f32 %v4643, %v2808
        %v4660 = vmul.f32 %v4644, %v2810
        %v4661 = vadd.f32 %v4627, %v4645
        %v4662 = vadd.f32 %v4628, %v4646
        %v4663 = vadd.f32 %v4629, %v4647
        %v4664 = vadd.f32 %v4630, %v4648
        %v4665 = vadd.f32 %v4631, %v4649
        %v4666 = vadd.f32 %v4632, %v4650
        %v4667 = vadd.f32 %v4633, %v4651
        %v4668 = vadd.f32 %v4634, %v4652
        %v4669 = vadd.f32 %v4635, %v4653
        %v4670 = vadd.f32 %v4636, %v4654
        %v4671 = vadd.f32 %v4637, %v4655
        %v4672 = vadd.f32 %v4638, %v4656
        %v4673 = vadd.f32 %v4639, %v4657
        %v4674 = vadd.f32 %v4640, %v4658
        %v4675 = vadd.f32 %v4641, %v4659
        %v4676 = vadd.f32 %v4642, %v4660
        %v4677 = vmul.f32 %v4606, %v4622
        %v4678 = vmul.f32 %v4608, %v4624
        %v4679 = vmul.f32 %v4677, %v2879
        %v4680 = vmul.f32 %v4678, %v2881
        %v4681 = vmul.f32 %v4677, %v2885
        %v4682 = vmul.f32 %v4678, %v2887
        %v4683 = vmul.f32 %v4677, %v2891
        %v4684 = vmul.f32 %v4678, %v2893
        %v4685 = vmul.f32 %v4677, %v2897
        %v4686 = vmul.f32 %v4678, %v2899
        %v4687 = vmul.f32 %v4677, %v2903
        %v4688 = vmul.f32 %v4678, %v2905
        %v4689 = vmul.f32 %v4677, %v2909
        %v4690 = vmul.f32 %v4678, %v2911
        %v4691 = vmul.f32 %v4677, %v2915
        %v4692 = vmul.f32 %v4678, %v2917
        %v4693 = vmul.f32 %v4677, %v2921
        %v4694 = vmul.f32 %v4678, %v2923
        %v4695 = vadd.f32 %v4661, %v4679
        %v4696 = vadd.f32 %v4662, %v4680
        %v4697 = vadd.f32 %v4663, %v4681
        %v4698 = vadd.f32 %v4664, %v4682
        %v4699 = vadd.f32 %v4665, %v4683
        %v4700 = vadd.f32 %v4666, %v4684
        %v4701 = vadd.f32 %v4667, %v4685
        %v4702 = vadd.f32 %v4668, %v4686
        %v4703 = vadd.f32 %v4669, %v4687
        %v4704 = vadd.f32 %v4670, %v4688
        %v4705 = vadd.f32 %v4671, %v4689
        %v4706 = vadd.f32 %v4672, %v4690
        %v4707 = vadd.f32 %v4673, %v4691
        %v4708 = vadd.f32 %v4674, %v4692
        %v4709 = vadd.f32 %v4675, %v4693
        %v4710 = vadd.f32 %v4676, %v4694
        %v4711 = vmul.f32 %v4612, %v4622
        %v4712 = vmul.f32 %v4614, %v4624
        %v4713 = vmul.f32 %v4711, %v2992
        %v4714 = vmul.f32 %v4712, %v2994
        %v4715 = vmul.f32 %v4711, %v2998
        %v4716 = vmul.f32 %v4712, %v3000
        %v4717 = vmul.f32 %v4711, %v3004
        %v4718 = vmul.f32 %v4712, %v3006
        %v4719 = vmul.f32 %v4711, %v3010
        %v4720 = vmul.f32 %v4712, %v3012
        %v4721 = vmul.f32 %v4711, %v3016
        %v4722 = vmul.f32 %v4712, %v3018
        %v4723 = vmul.f32 %v4711, %v3022
        %v4724 = vmul.f32 %v4712, %v3024
        %v4725 = vmul.f32 %v4711, %v3028
        %v4726 = vmul.f32 %v4712, %v3030
        %v4727 = vmul.f32 %v4711, %v3034
        %v4728 = vmul.f32 %v4712, %v3036
        %v4729 = vadd.f32 %v4695, %v4713
        %v4730 = vadd.f32 %v4696, %v4714
        %v4731 = vadd.f32 %v4697, %v4715
        %v4732 = vadd.f32 %v4698, %v4716
        %v4733 = vadd.f32 %v4699, %v4717
        %v4734 = vadd.f32 %v4700, %v4718
        %v4735 = vadd.f32 %v4701, %v4719
        %v4736 = vadd.f32 %v4702, %v4720
        %v4737 = vadd.f32 %v4703, %v4721
        %v4738 = vadd.f32 %v4704, %v4722
        %v4739 = vadd.f32 %v4705, %v4723
        %v4740 = vadd.f32 %v4706, %v4724
        %v4741 = vadd.f32 %v4707, %v4725
        %v4742 = vadd.f32 %v4708, %v4726
        %v4743 = vadd.f32 %v4709, %v4727
        %v4744 = vadd.f32 %v4710, %v4728
        %4745 = vmatprep.subr.mxu0 %v4730
        %4746 = vmatpush1.msra.mxu0 %v4729
        %4747 = vmatprep.subr.mxu0 %v4732
        %4748 = vmatpush1.msra.mxu0 %v4731
        %4749 = vmatprep.subr.mxu0 %v4734
        %4750 = vmatpush1.msra.mxu0 %v4733
        %4751 = vmatprep.subr.mxu0 %v4736
        %4752 = vmatpush1.msra.mxu0 %v4735
        %4753 = vmatprep.subr.mxu0 %v4738
        %4754 = vmatpush1.msra.mxu0 %v4737
        %4755 = vmatprep.subr.mxu0 %v4740
        %4756 = vmatpush1.msra.mxu0 %v4739
        %4757 = vmatprep.subr.mxu0 %v4742
        %4758 = vmatpush1.msra.mxu0 %v4741
        %4759 = vmatprep.subr.mxu0 %v4744
        %4760 = vmatpush1.msra.mxu0 %v4743
        %4761 = vmatprep.subr.mxu0 0.0
        %4762 = vmatpush1.msra.mxu0 0.0
        %4763 = vmatprep.subr.mxu0 0.0
        %4764 = vmatpush1.msra.mxu0 0.0
        %4765 = vmatprep.subr.mxu0 0.0
        %4766 = vmatpush1.msra.mxu0 0.0
        %4767 = vmatprep.subr.mxu0 0.0
        %4768 = vmatpush1.msra.mxu0 0.0
        %4769 = vmatprep.subr.mxu0 0.0
        %4770 = vmatpush1.msra.mxu0 0.0
        %4771 = vmatprep.subr.mxu0 0.0
        %4772 = vmatpush1.msra.mxu0 0.0
        %4773 = vmatprep.subr.mxu0 0.0
        %4774 = vmatpush1.msra.mxu0 0.0
        %4775 = vmatprep.subr.mxu0 0.0
        %4776 = vmatpush1.msra.mxu0 0.0
        %4777 = vmatprep.subr.mxu0 0.0
        %4778 = vmatpush1.msra.mxu0 0.0
        %4779 = vmatprep.subr.mxu0 0.0
        %4780 = vmatpush1.msra.mxu0 0.0
        %4781 = vmatprep.subr.mxu0 0.0
        %4782 = vmatpush1.msra.mxu0 0.0
        %4783 = vmatprep.subr.mxu0 0.0
        %4784 = vmatpush1.msra.mxu0 0.0
        %4785 = vmatprep.subr.mxu0 0.0
        %4786 = vmatpush1.msra.mxu0 0.0
        %4787 = vmatprep.subr.mxu0 0.0
        %4788 = vmatpush1.msra.mxu0 0.0
        %4789 = vmatprep.subr.mxu0 0.0
        %4790 = vmatpush1.msra.mxu0 0.0
        %4791 = vmatprep.subr.mxu0 0.0
        %4792 = vmatpush1.msra.mxu0 0.0
        %4793 = vmatprep.subr.mxu0 0.0
        %4794 = vmatpush1.msra.mxu0 0.0
        %4795 = vmatprep.subr.mxu0 0.0
        %4796 = vmatpush1.msra.mxu0 0.0
        %4797 = vmatprep.subr.mxu0 0.0
        %4798 = vmatpush1.msra.mxu0 0.0
        %4799 = vmatprep.subr.mxu0 0.0
        %4800 = vmatpush1.msra.mxu0 0.0
        %4801 = vmatprep.subr.mxu0 0.0
        %4802 = vmatpush1.msra.mxu0 0.0
        %4803 = vmatprep.subr.mxu0 0.0
        %4804 = vmatpush1.msra.mxu0 0.0
        %4805 = vmatprep.subr.mxu0 0.0
        %4806 = vmatpush1.msra.mxu0 0.0
        %4807 = vmatprep.subr.mxu0 0.0
        %4808 = vmatpush1.msra.mxu0 0.0
        %4809 = vmatprep.mubr.f32.mxu0 0.0
        %4810 = vmatmul.mubr.f32.gmra.mrb[0].mxu0 %v3431
        %v4811 = vpop.f32.mrb[0].mxu0
        %v4812 = vadd.f32 %v3393, %v4811
        %v4813 = vpop.f32.mrb[0].mxu0
        %v4814 = vadd.f32 %v3393, %v4813
        %4815 = vmatprep.mubr.f32.mxu0 0.0
        %4816 = vmatmul.mubr.f32.gmra.mrb[0].mxu0 %v3434
        %v4817 = vpop.f32.mrb[0].mxu0
        %v4818 = vadd.f32 %v3398, %v4817
        %v4819 = vpop.f32.mrb[0].mxu0
        %v4820 = vadd.f32 %v3398, %v4819
        %4821 = vmatprep.mubr.f32.mxu0 0.0
        %4822 = vmatmul.mubr.f32.gmra.mrb[0].mxu0 %v3437
        %v4823 = vpop.f32.mrb[0].mxu0
        %v4824 = vadd.f32 %v3403, %v4823
        %v4825 = vpop.f32.mrb[0].mxu0
        %v4826 = vadd.f32 %v3403, %v4825
        %4827 = vmatprep.mubr.f32.mxu0 0.0
        %4828 = vmatmul.mubr.f32.gmra.mrb[0].mxu0 %v3440
        %v4829 = vpop.f32.mrb[0].mxu0
        %v4830 = vadd.f32 %v3408, %v4829
        %v4831 = vpop.f32.mrb[0].mxu0
        %v4832 = vadd.f32 %v3408, %v4831
        %4833 = vmatprep.mubr.f32.mxu0 0.0
        %4834 = vmatmul.mubr.f32.gmra.mrb[0].mxu0 %v3443
        %v4835 = vpop.f32.mrb[0].mxu0
        %v4836 = vadd.f32 %v3413, %v4835
        %v4837 = vpop.f32.mrb[0].mxu0
        %v4838 = vadd.f32 %v3413, %v4837
        %4839 = vmatprep.mubr.f32.mxu0 0.0
        %4840 = vmatmul.mubr.f32.gmra.mrb[0].mxu0 %v3446
        %v4841 = vpop.f32.mrb[0].mxu0
        %v4842 = vadd.f32 %v3418, %v4841
        %v4843 = vpop.f32.mrb[0].mxu0
        %v4844 = vadd.f32 %v3418, %v4843
        %4845 = vmatprep.mubr.f32.mxu0 0.0
        %4846 = vmatmul.mubr.f32.gmra.mrb[0].mxu0 %v3449
        %v4847 = vpop.f32.mrb[0].mxu0
        %v4848 = vadd.f32 %v3423, %v4847
        %v4849 = vpop.f32.mrb[0].mxu0
        %v4850 = vadd.f32 %v3423, %v4849
        %4851 = vmatprep.mubr.f32.mxu0 0.0
        %4852 = vmatmul.mubr.f32.gmra.mrb[0].mxu0 %v3452
        %v4853 = vpop.f32.mrb[0].mxu0
        %v4854 = vadd.f32 %v3428, %v4853
        %v4855 = vpop.f32.mrb[0].mxu0
        %v4856 = vadd.f32 %v3428, %v4855
        %4857 = vdwg.mxu0
        %v4858 = vadd.f32 %v1331, %v4812
        %v4859 = vadd.f32 %v1333, %v4814
        %v4860 = vadd.f32 %v1337, %v4818
        %v4861 = vadd.f32 %v1339, %v4820
        %v4862 = vadd.f32 %v1343, %v4824
        %v4863 = vadd.f32 %v1345, %v4826
        %v4864 = vadd.f32 %v1349, %v4830
        %v4865 = vadd.f32 %v1351, %v4832
        %v4866 = vadd.f32 %v1355, %v4836
        %v4867 = vadd.f32 %v1357, %v4838
        %v4868 = vadd.f32 %v1361, %v4842
        %v4869 = vadd.f32 %v1363, %v4844
        %v4870 = vadd.f32 %v1367, %v4848
        %v4871 = vadd.f32 %v1369, %v4850
        %v4872 = vadd.f32 %v1373, %v4854
        %v4873 = vadd.f32 %v1375, %v4856
        %v4874 = vadd.f32 %v4858, %v4860
        %v4875 = vadd.f32 %v4874, %v4862
        %v4876 = vadd.f32 %v4875, %v4864
        %v4877 = vadd.f32 %v4876, %v4866
        %v4878 = vadd.f32 %v4877, %v4868
        %v4879 = vadd.f32 %v4878, %v4870
        %v4880 = vadd.f32 %v4879, %v4872
        %v4881 = vrot.slane %v4880, 4
        %v4882 = vadd.f32 %v4880, %v4881
        %v4883 = vrot.slane %v4882, 2
        %v4884 = vadd.f32 %v4882, %v4883
        %v4885 = vrot.slane %v4884, 1
        %v4886 = vadd.f32 %v4884, %v4885
        %v4887 = vadd.f32 %v4859, %v4861
        %v4888 = vadd.f32 %v4887, %v4863
        %v4889 = vadd.f32 %v4888, %v4865
        %v4890 = vadd.f32 %v4889, %v4867
        %v4891 = vadd.f32 %v4890, %v4869
        %v4892 = vadd.f32 %v4891, %v4871
        %v4893 = vadd.f32 %v4892, %v4873
        %v4894 = vrot.slane %v4893, 4
        %v4895 = vadd.f32 %v4893, %v4894
        %v4896 = vrot.slane %v4895, 2
        %v4897 = vadd.f32 %v4895, %v4896
        %v4898 = vrot.slane %v4897, 1
        %v4899 = vadd.f32 %v4897, %v4898
        %v4900 = vmul.f32 %v4886, %v3609
        %v4901 = vmul.f32 %v4899, %v3609
        %v4902 = vsub.f32 %v4858, %v4900
        %v4903 = vsub.f32 %v4859, %v4901
        %v4904 = vsub.f32 %v4860, %v4900
        %v4905 = vsub.f32 %v4861, %v4901
        %v4906 = vsub.f32 %v4862, %v4900
        %v4907 = vsub.f32 %v4863, %v4901
        %v4908 = vsub.f32 %v4864, %v4900
        %v4909 = vsub.f32 %v4865, %v4901
        %v4910 = vsub.f32 %v4866, %v4900
        %v4911 = vsub.f32 %v4867, %v4901
        %v4912 = vsub.f32 %v4868, %v4900
        %v4913 = vsub.f32 %v4869, %v4901
        %v4914 = vsub.f32 %v4870, %v4900
        %v4915 = vsub.f32 %v4871, %v4901
        %v4916 = vsub.f32 %v4872, %v4900
        %v4917 = vsub.f32 %v4873, %v4901
        %v4918 = vmul.f32 %v4902, %v4902
        %v4919 = vmul.f32 %v4903, %v4903
        %v4920 = vmul.f32 %v4904, %v4904
        %v4921 = vmul.f32 %v4905, %v4905
        %v4922 = vmul.f32 %v4906, %v4906
        %v4923 = vmul.f32 %v4907, %v4907
        %v4924 = vmul.f32 %v4908, %v4908
        %v4925 = vmul.f32 %v4909, %v4909
        %v4926 = vmul.f32 %v4910, %v4910
        %v4927 = vmul.f32 %v4911, %v4911
        %v4928 = vmul.f32 %v4912, %v4912
        %v4929 = vmul.f32 %v4913, %v4913
        %v4930 = vmul.f32 %v4914, %v4914
        %v4931 = vmul.f32 %v4915, %v4915
        %v4932 = vmul.f32 %v4916, %v4916
        %v4933 = vmul.f32 %v4917, %v4917
        %v4934 = vadd.f32 %v4918, %v4920
        %v4935 = vadd.f32 %v4934, %v4922
        %v4936 = vadd.f32 %v4935, %v4924
        %v4937 = vadd.f32 %v4936, %v4926
        %v4938 = vadd.f32 %v4937, %v4928
        %v4939 = vadd.f32 %v4938, %v4930
        %v4940 = vadd.f32 %v4939, %v4932
        %v4941 = vrot.slane %v4940, 4
        %v4942 = vadd.f32 %v4940, %v4941
        %v4943 = vrot.slane %v4942, 2
        %v4944 = vadd.f32 %v4942, %v4943
        %v4945 = vrot.slane %v4944, 1
        %v4946 = vadd.f32 %v4944, %v4945
        %v4947 = vadd.f32 %v4919, %v4921
        %v4948 = vadd.f32 %v4947, %v4923
        %v4949 = vadd.f32 %v4948, %v4925
        %v4950 = vadd.f32 %v4949, %v4927
        %v4951 = vadd.f32 %v4950, %v4929
        %v4952 = vadd.f32 %v4951, %v4931
        %v4953 = vadd.f32 %v4952, %v4933
        %v4954 = vrot.slane %v4953, 4
        %v4955 = vadd.f32 %v4953, %v4954
        %v4956 = vrot.slane %v4955, 2
        %v4957 = vadd.f32 %v4955, %v4956
        %v4958 = vrot.slane %v4957, 1
        %v4959 = vadd.f32 %v4957, %v4958
        %v4960 = vmul.f32 %v4946, %v3609
        %v4961 = vmul.f32 %v4959, %v3609
        %v4962 = vadd.f32 %v4960, 1e-05
        %v4963 = vadd.f32 %v4961, 1e-05
        %v4964 = vrsqrt.pop %v4962
        %v4965 = vrsqrt.pop %v4963
        %v4966 = vmul.f32 %v4902, %v4964
        %v4967 = vmul.f32 %v4903, %v4965
        %v4968 = vmul.f32 %v4904, %v4964
        %v4969 = vmul.f32 %v4905, %v4965
        %v4970 = vmul.f32 %v4906, %v4964
        %v4971 = vmul.f32 %v4907, %v4965
        %v4972 = vmul.f32 %v4908, %v4964
        %v4973 = vmul.f32 %v4909, %v4965
        %v4974 = vmul.f32 %v4910, %v4964
        %v4975 = vmul.f32 %v4911, %v4965
        %v4976 = vmul.f32 %v4912, %v4964
        %v4977 = vmul.f32 %v4913, %v4965
        %v4978 = vmul.f32 %v4914, %v4964
        %v4979 = vmul.f32 %v4915, %v4965
        %v4980 = vmul.f32 %v4916, %v4964
        %v4981 = vmul.f32 %v4917, %v4965
        %v4982 = vmul.f32 %v4966, %v3695
        %v4983 = vmul.f32 %v4967, %v3695
        %v4984 = vmul.f32 %v4968, %v3700
        %v4985 = vmul.f32 %v4969, %v3700
        %v4986 = vmul.f32 %v4970, %v3705
        %v4987 = vmul.f32 %v4971, %v3705
        %v4988 = vmul.f32 %v4972, %v3710
        %v4989 = vmul.f32 %v4973, %v3710
        %v4990 = vmul.f32 %v4974, %v3715
        %v4991 = vmul.f32 %v4975, %v3715
        %v4992 = vmul.f32 %v4976, %v3720
        %v4993 = vmul.f32 %v4977, %v3720
        %v4994 = vmul.f32 %v4978, %v3725
        %v4995 = vmul.f32 %v4979, %v3725
        %v4996 = vmul.f32 %v4980, %v3730
        %v4997 = vmul.f32 %v4981, %v3730
        %v4998 = vadd.f32 %v4982, %v3751
        %v4999 = vadd.f32 %v4983, %v3751
        %v5000 = vadd.f32 %v4984, %v3756
        %v5001 = vadd.f32 %v4985, %v3756
        %v5002 = vadd.f32 %v4986, %v3761
        %v5003 = vadd.f32 %v4987, %v3761
        %v5004 = vadd.f32 %v4988, %v3766
        %v5005 = vadd.f32 %v4989, %v3766
        %v5006 = vadd.f32 %v4990, %v3771
        %v5007 = vadd.f32 %v4991, %v3771
        %v5008 = vadd.f32 %v4992, %v3776
        %v5009 = vadd.f32 %v4993, %v3776
        %v5010 = vadd.f32 %v4994, %v3781
        %v5011 = vadd.f32 %v4995, %v3781
        %v5012 = vadd.f32 %v4996, %v3786
        %v5013 = vadd.f32 %v4997, %v3786
        %v5014 = vmul.f32 %v1960, %v2137
        %v5015 = vmul.f32 %v1962, %v2139
        %v5016 = vmul.f32 %v1966, %v2143
        %v5017 = vmul.f32 %v1968, %v2145
        %v5018 = vmul.f32 %v1972, %v2149
        %v5019 = vmul.f32 %v1974, %v2151
        %v5020 = vmul.f32 %v1978, %v2155
        %v5021 = vmul.f32 %v1980, %v2157
        %v5022 = vmul.f32 %v1984, %v2161
        %v5023 = vmul.f32 %v1986, %v2163
        %v5024 = vmul.f32 %v1990, %v2167
        %v5025 = vmul.f32 %v1992, %v2169
        %v5026 = vmul.f32 %v1996, %v2173
        %v5027 = vmul.f32 %v1998, %v2175
        %v5028 = vmul.f32 %v2002, %v2179
        %v5029 = vmul.f32 %v2004, %v2181
        %v5030 = vadd.f32 %v5014, %v5016
        %v5031 = vadd.f32 %v5030, %v5018
        %v5032 = vadd.f32 %v5031, %v5020
        %v5033 = vadd.f32 %v5032, %v5022
        %v5034 = vadd.f32 %v5033, %v5024
        %v5035 = vadd.f32 %v5034, %v5026
        %v5036 = vadd.f32 %v5035, %v5028
        %v5037 = vrot.slane %v5036, 4
        %v5038 = vadd.f32 %v5036, %v5037
        %v5039 = vrot.slane %v5038, 2
        %v5040 = vadd.f32 %v5038, %v5039
        %v5041 = vrot.slane %v5040, 1
        %v5042 = vadd.f32 %v5040, %v5041
        %v5043 = vadd.f32 %v5015, %v5017
        %v5044 = vadd.f32 %v5043, %v5019
        %v5045 = vadd.f32 %v5044, %v5021
        %v5046 = vadd.f32 %v5045, %v5023
        %v5047 = vadd.f32 %v5046, %v5025
        %v5048 = vadd.f32 %v5047, %v5027
        %v5049 = vadd.f32 %v5048, %v5029
        %v5050 = vrot.slane %v5049, 4
        %v5051 = vadd.f32 %v5049, %v5050
        %v5052 = vrot.slane %v5051, 2
        %v5053 = vadd.f32 %v5051, %v5052
        %v5054 = vrot.slane %v5053, 1
        %v5055 = vadd.f32 %v5053, %v5054
        %v5056 = vmul.f32 %v5042, 0.125
        %v5057 = vmul.f32 %v5055, 0.125
        %v5058 = vmul.f32 %v1960, %v2250
        %v5059 = vmul.f32 %v1962, %v2252
        %v5060 = vmul.f32 %v1966, %v2256
        %v5061 = vmul.f32 %v1968, %v2258
        %v5062 = vmul.f32 %v1972, %v2262
        %v5063 = vmul.f32 %v1974, %v2264
        %v5064 = vmul.f32 %v1978, %v2268
        %v5065 = vmul.f32 %v1980, %v2270
        %v5066 = vmul.f32 %v1984, %v2274
        %v5067 = vmul.f32 %v1986, %v2276
        %v5068 = vmul.f32 %v1990, %v2280
        %v5069 = vmul.f32 %v1992, %v2282
        %v5070 = vmul.f32 %v1996, %v2286
        %v5071 = vmul.f32 %v1998, %v2288
        %v5072 = vmul.f32 %v2002, %v2292
        %v5073 = vmul.f32 %v2004, %v2294
        %v5074 = vadd.f32 %v5058, %v5060
        %v5075 = vadd.f32 %v5074, %v5062
        %v5076 = vadd.f32 %v5075, %v5064
        %v5077 = vadd.f32 %v5076, %v5066
        %v5078 = vadd.f32 %v5077, %v5068
        %v5079 = vadd.f32 %v5078, %v5070
        %v5080 = vadd.f32 %v5079, %v5072
        %v5081 = vrot.slane %v5080, 4
        %v5082 = vadd.f32 %v5080, %v5081
        %v5083 = vrot.slane %v5082, 2
        %v5084 = vadd.f32 %v5082, %v5083
        %v5085 = vrot.slane %v5084, 1
        %v5086 = vadd.f32 %v5084, %v5085
        %v5087 = vadd.f32 %v5059, %v5061
        %v5088 = vadd.f32 %v5087, %v5063
        %v5089 = vadd.f32 %v5088, %v5065
        %v5090 = vadd.f32 %v5089, %v5067
        %v5091 = vadd.f32 %v5090, %v5069
        %v5092 = vadd.f32 %v5091, %v5071
        %v5093 = vadd.f32 %v5092, %v5073
        %v5094 = vrot.slane %v5093, 4
        %v5095 = vadd.f32 %v5093, %v5094
        %v5096 = vrot.slane %v5095, 2
        %v5097 = vadd.f32 %v5095, %v5096
        %v5098 = vrot.slane %v5097, 1
        %v5099 = vadd.f32 %v5097, %v5098
        %v5100 = vmul.f32 %v5086, 0.125
        %v5101 = vmul.f32 %v5099, 0.125
        %v5102 = vmul.f32 %v1960, %v2363
        %v5103 = vmul.f32 %v1962, %v2365
        %v5104 = vmul.f32 %v1966, %v2369
        %v5105 = vmul.f32 %v1968, %v2371
        %v5106 = vmul.f32 %v1972, %v2375
        %v5107 = vmul.f32 %v1974, %v2377
        %v5108 = vmul.f32 %v1978, %v2381
        %v5109 = vmul.f32 %v1980, %v2383
        %v5110 = vmul.f32 %v1984, %v2387
        %v5111 = vmul.f32 %v1986, %v2389
        %v5112 = vmul.f32 %v1990, %v2393
        %v5113 = vmul.f32 %v1992, %v2395
        %v5114 = vmul.f32 %v1996, %v2399
        %v5115 = vmul.f32 %v1998, %v2401
        %v5116 = vmul.f32 %v2002, %v2405
        %v5117 = vmul.f32 %v2004, %v2407
        %v5118 = vadd.f32 %v5102, %v5104
        %v5119 = vadd.f32 %v5118, %v5106
        %v5120 = vadd.f32 %v5119, %v5108
        %v5121 = vadd.f32 %v5120, %v5110
        %v5122 = vadd.f32 %v5121, %v5112
        %v5123 = vadd.f32 %v5122, %v5114
        %v5124 = vadd.f32 %v5123, %v5116
        %v5125 = vrot.slane %v5124, 4
        %v5126 = vadd.f32 %v5124, %v5125
        %v5127 = vrot.slane %v5126, 2
        %v5128 = vadd.f32 %v5126, %v5127
        %v5129 = vrot.slane %v5128, 1
        %v5130 = vadd.f32 %v5128, %v5129
        %v5131 = vadd.f32 %v5103, %v5105
        %v5132 = vadd.f32 %v5131, %v5107
        %v5133 = vadd.f32 %v5132, %v5109
        %v5134 = vadd.f32 %v5133, %v5111
        %v5135 = vadd.f32 %v5134, %v5113
        %v5136 = vadd.f32 %v5135, %v5115
        %v5137 = vadd.f32 %v5136, %v5117
        %v5138 = vrot.slane %v5137, 4
        %v5139 = vadd.f32 %v5137, %v5138
        %v5140 = vrot.slane %v5139, 2
        %v5141 = vadd.f32 %v5139, %v5140
        %v5142 = vrot.slane %v5141, 1
        %v5143 = vadd.f32 %v5141, %v5142
        %v5144 = vmul.f32 %v5130, 0.125
        %v5145 = vmul.f32 %v5143, 0.125
        %v5146 = vmul.f32 %v1960, %v2476
        %v5147 = vmul.f32 %v1962, %v2478
        %v5148 = vmul.f32 %v1966, %v2482
        %v5149 = vmul.f32 %v1968, %v2484
        %v5150 = vmul.f32 %v1972, %v2488
        %v5151 = vmul.f32 %v1974, %v2490
        %v5152 = vmul.f32 %v1978, %v2494
        %v5153 = vmul.f32 %v1980, %v2496
        %v5154 = vmul.f32 %v1984, %v2500
        %v5155 = vmul.f32 %v1986, %v2502
        %v5156 = vmul.f32 %v1990, %v2506
        %v5157 = vmul.f32 %v1992, %v2508
        %v5158 = vmul.f32 %v1996, %v2512
        %v5159 = vmul.f32 %v1998, %v2514
        %v5160 = vmul.f32 %v2002, %v2518
        %v5161 = vmul.f32 %v2004, %v2520
        %v5162 = vadd.f32 %v5146, %v5148
        %v5163 = vadd.f32 %v5162, %v5150
        %v5164 = vadd.f32 %v5163, %v5152
        %v5165 = vadd.f32 %v5164, %v5154
        %v5166 = vadd.f32 %v5165, %v5156
        %v5167 = vadd.f32 %v5166, %v5158
        %v5168 = vadd.f32 %v5167, %v5160
        %v5169 = vrot.slane %v5168, 4
        %v5170 = vadd.f32 %v5168, %v5169
        %v5171 = vrot.slane %v5170, 2
        %v5172 = vadd.f32 %v5170, %v5171
        %v5173 = vrot.slane %v5172, 1
        %v5174 = vadd.f32 %v5172, %v5173
        %v5175 = vadd.f32 %v5147, %v5149
        %v5176 = vadd.f32 %v5175, %v5151
        %v5177 = vadd.f32 %v5176, %v5153
        %v5178 = vadd.f32 %v5177, %v5155
        %v5179 = vadd.f32 %v5178, %v5157
        %v5180 = vadd.f32 %v5179, %v5159
        %v5181 = vadd.f32 %v5180, %v5161
        %v5182 = vrot.slane %v5181, 4
        %v5183 = vadd.f32 %v5181, %v5182
        %v5184 = vrot.slane %v5183, 2
        %v5185 = vadd.f32 %v5183, %v5184
        %v5186 = vrot.slane %v5185, 1
        %v5187 = vadd.f32 %v5185, %v5186
        %v5188 = vmul.f32 %v5174, 0.125
        %v5189 = vmul.f32 %v5187, 0.125
        %v5190 = vmax.f32 %v5056, %v5100
        %v5191 = vmax.f32 %v5057, %v5101
        %v5192 = vmax.f32 %v5144, %v5188
        %v5193 = vmax.f32 %v5145, %v5189
        %v5194 = vmax.f32 %v5190, %v5192
        %v5195 = vmax.f32 %v5191, %v5193
        %v5196 = vsub.f32 %v5056, %v5194
        %v5197 = vsub.f32 %v5057, %v5195
        %v5198 = vmul.f32 %v5196, 1.442695
        %v5199 = vpow.pop %v5198
        %v5200 = vmul.f32 %v5197, 1.442695
        %v5201 = vpow.pop %v5200
        %v5202 = vsub.f32 %v5100, %v5194
        %v5203 = vsub.f32 %v5101, %v5195
        %v5204 = vmul.f32 %v5202, 1.442695
        %v5205 = vpow.pop %v5204
        %v5206 = vmul.f32 %v5203, 1.442695
        %v5207 = vpow.pop %v5206
        %v5208 = vsub.f32 %v5144, %v5194
        %v5209 = vsub.f32 %v5145, %v5195
        %v5210 = vmul.f32 %v5208, 1.442695
        %v5211 = vpow.pop %v5210
        %v5212 = vmul.f32 %v5209, 1.442695
        %v5213 = vpow.pop %v5212
        %v5214 = vsub.f32 %v5188, %v5194
        %v5215 = vsub.f32 %v5189, %v5195
        %v5216 = vmul.f32 %v5214, 1.442695
        %v5217 = vpow.pop %v5216
        %v5218 = vmul.f32 %v5215, 1.442695
        %v5219 = vpow.pop %v5218
        %v5220 = vadd.f32 %v5199, %v5205
        %v5221 = vadd.f32 %v5201, %v5207
        %v5222 = vadd.f32 %v5220, %v5211
        %v5223 = vadd.f32 %v5221, %v5213
        %v5224 = vadd.f32 %v5222, %v5217
        %v5225 = vadd.f32 %v5223, %v5219
        %v5226 = vrcp.pop %v5224
        %v5227 = vmul.f32 1.0, %v5226
        %v5228 = vrcp.pop %v5225
        %v5229 = vmul.f32 1.0, %v5228
        %v5230 = vmul.f32 %v5199, %v5227
        %v5231 = vmul.f32 %v5201, %v5229
        %v5232 = vmul.f32 %v5230, %v2653
        %v5233 = vmul.f32 %v5231, %v2655
        %v5234 = vmul.f32 %v5230, %v2659
        %v5235 = vmul.f32 %v5231, %v2661
        %v5236 = vmul.f32 %v5230, %v2665
        %v5237 = vmul.f32 %v5231, %v2667
        %v5238 = vmul.f32 %v5230, %v2671
        %v5239 = vmul.f32 %v5231, %v2673
        %v5240 = vmul.f32 %v5230, %v2677
        %v5241 = vmul.f32 %v5231, %v2679
        %v5242 = vmul.f32 %v5230, %v2683
        %v5243 = vmul.f32 %v5231, %v2685
        %v5244 = vmul.f32 %v5230, %v2689
        %v5245 = vmul.f32 %v5231, %v2691
        %v5246 = vmul.f32 %v5230, %v2695
        %v5247 = vmul.f32 %v5231, %v2697
        %v5248 = vmul.f32 %v5205, %v5227
        %v5249 = vmul.f32 %v5207, %v5229
        %v5250 = vmul.f32 %v5248, %v2766
        %v5251 = vmul.f32 %v5249, %v2768
        %v5252 = vmul.f32 %v5248, %v2772
        %v5253 = vmul.f32 %v5249, %v2774
        %v5254 = vmul.f32 %v5248, %v2778
        %v5255 = vmul.f32 %v5249, %v2780
        %v5256 = vmul.f32 %v5248, %v2784
        %v5257 = vmul.f32 %v5249, %v2786
        %v5258 = vmul.f32 %v5248, %v2790
        %v5259 = vmul.f32 %v5249, %v2792
        %v5260 = vmul.f32 %v5248, %v2796
        %v5261 = vmul.f32 %v5249, %v2798
        %v5262 = vmul.f32 %v5248, %v2802
        %v5263 = vmul.f32 %v5249, %v2804
        %v5264 = vmul.f32 %v5248, %v2808
        %v5265 = vmul.f32 %v5249, %v2810
        %v5266 = vadd.f32 %v5232, %v5250
        %v5267 = vadd.f32 %v5233, %v5251
        %v5268 = vadd.f32 %v5234, %v5252
        %v5269 = vadd.f32 %v5235, %v5253
        %v5270 = vadd.f32 %v5236, %v5254
        %v5271 = vadd.f32 %v5237, %v5255
        %v5272 = vadd.f32 %v5238, %v5256
        %v5273 = vadd.f32 %v5239, %v5257
        %v5274 = vadd.f32 %v5240, %v5258
        %v5275 = vadd.f32 %v5241, %v5259
        %v5276 = vadd.f32 %v5242, %v5260
        %v5277 = vadd.f32 %v5243, %v5261
        %v5278 = vadd.f32 %v5244, %v5262
        %v5279 = vadd.f32 %v5245, %v5263
        %v5280 = vadd.f32 %v5246, %v5264
        %v5281 = vadd.f32 %v5247, %v5265
        %v5282 = vmul.f32 %v5211, %v5227
        %v5283 = vmul.f32 %v5213, %v5229
        %v5284 = vmul.f32 %v5282, %v2879
        %v5285 = vmul.f32 %v5283, %v2881
        %v5286 = vmul.f32 %v5282, %v2885
        %v5287 = vmul.f32 %v5283, %v2887
        %v5288 = vmul.f32 %v5282, %v2891
        %v5289 = vmul.f32 %v5283, %v2893
        %v5290 = vmul.f32 %v5282, %v2897
        %v5291 = vmul.f32 %v5283, %v2899
        %v5292 = vmul.f32 %v5282, %v2903
        %v5293 = vmul.f32 %v5283, %v2905
        %v5294 = vmul.f32 %v5282, %v2909
        %v5295 = vmul.f32 %v5283, %v2911
        %v5296 = vmul.f32 %v5282, %v2915
        %v5297 = vmul.f32 %v5283, %v2917
        %v5298 = vmul.f32 %v5282, %v2921
        %v5299 = vmul.f32 %v5283, %v2923
        %v5300 = vadd.f32 %v5266, %v5284
        %v5301 = vadd.f32 %v5267, %v5285
        %v5302 = vadd.f32 %v5268, %v5286
        %v5303 = vadd.f32 %v5269, %v5287
        %v5304 = vadd.f32 %v5270, %v5288
        %v5305 = vadd.f32 %v5271, %v5289
        %v5306 = vadd.f32 %v5272, %v5290
        %v5307 = vadd.f32 %v5273, %v5291
        %v5308 = vadd.f32 %v5274, %v5292
        %v5309 = vadd.f32 %v5275, %v5293
        %v5310 = vadd.f32 %v5276, %v5294
        %v5311 = vadd.f32 %v5277, %v5295
        %v5312 = vadd.f32 %v5278, %v5296
        %v5313 = vadd.f32 %v5279, %v5297
        %v5314 = vadd.f32 %v5280, %v5298
        %v5315 = vadd.f32 %v5281, %v5299
        %v5316 = vmul.f32 %v5217, %v5227
        %v5317 = vmul.f32 %v5219, %v5229
        %v5318 = vmul.f32 %v5316, %v2992
        %v5319 = vmul.f32 %v5317, %v2994
        %v5320 = vmul.f32 %v5316, %v2998
        %v5321 = vmul.f32 %v5317, %v3000
        %v5322 = vmul.f32 %v5316, %v3004
        %v5323 = vmul.f32 %v5317, %v3006
        %v5324 = vmul.f32 %v5316, %v3010
        %v5325 = vmul.f32 %v5317, %v3012
        %v5326 = vmul.f32 %v5316, %v3016
        %v5327 = vmul.f32 %v5317, %v3018
        %v5328 = vmul.f32 %v5316, %v3022
        %v5329 = vmul.f32 %v5317, %v3024
        %v5330 = vmul.f32 %v5316, %v3028
        %v5331 = vmul.f32 %v5317, %v3030
        %v5332 = vmul.f32 %v5316, %v3034
        %v5333 = vmul.f32 %v5317, %v3036
        %v5334 = vadd.f32 %v5300, %v5318
        %v5335 = vadd.f32 %v5301, %v5319
        %v5336 = vadd.f32 %v5302, %v5320
        %v5337 = vadd.f32 %v5303, %v5321
        %v5338 = vadd.f32 %v5304, %v5322
        %v5339 = vadd.f32 %v5305, %v5323
        %v5340 = vadd.f32 %v5306, %v5324
        %v5341 = vadd.f32 %v5307, %v5325
        %v5342 = vadd.f32 %v5308, %v5326
        %v5343 = vadd.f32 %v5309, %v5327
        %v5344 = vadd.f32 %v5310, %v5328
        %v5345 = vadd.f32 %v5311, %v5329
        %v5346 = vadd.f32 %v5312, %v5330
        %v5347 = vadd.f32 %v5313, %v5331
        %v5348 = vadd.f32 %v5314, %v5332
        %v5349 = vadd.f32 %v5315, %v5333
        %5350 = vmatprep.subr.mxu0 %v5335
        %5351 = vmatpush1.msra.mxu0 %v5334
        %5352 = vmatprep.subr.mxu0 %v5337
        %5353 = vmatpush1.msra.mxu0 %v5336
        %5354 = vmatprep.subr.mxu0 %v5339
        %5355 = vmatpush1.msra.mxu0 %v5338
        %5356 = vmatprep.subr.mxu0 %v5341
        %5357 = vmatpush1.msra.mxu0 %v5340
        %5358 = vmatprep.subr.mxu0 %v5343
        %5359 = vmatpush1.msra.mxu0 %v5342
        %5360 = vmatprep.subr.mxu0 %v5345
        %5361 = vmatpush1.msra.mxu0 %v5344
        %5362 = vmatprep.subr.mxu0 %v5347
        %5363 = vmatpush1.msra.mxu0 %v5346
        %5364 = vmatprep.subr.mxu0 %v5349
        %5365 = vmatpush1.msra.mxu0 %v5348
        %5366 = vmatprep.subr.mxu0 0.0
        %5367 = vmatpush1.msra.mxu0 0.0
        %5368 = vmatprep.subr.mxu0 0.0
        %5369 = vmatpush1.msra.mxu0 0.0
        %5370 = vmatprep.subr.mxu0 0.0
        %5371 = vmatpush1.msra.mxu0 0.0
        %5372 = vmatprep.subr.mxu0 0.0
        %5373 = vmatpush1.msra.mxu0 0.0
        %5374 = vmatprep.subr.mxu0 0.0
        %5375 = vmatpush1.msra.mxu0 0.0
        %5376 = vmatprep.subr.mxu0 0.0
        %5377 = vmatpush1.msra.mxu0 0.0
        %5378 = vmatprep.subr.mxu0 0.0
        %5379 = vmatpush1.msra.mxu0 0.0
        %5380 = vmatprep.subr.mxu0 0.0
        %5381 = vmatpush1.msra.mxu0 0.0
        %5382 = vmatprep.subr.mxu0 0.0
        %5383 = vmatpush1.msra.mxu0 0.0
        %5384 = vmatprep.subr.mxu0 0.0
        %5385 = vmatpush1.msra.mxu0 0.0
        %5386 = vmatprep.subr.mxu0 0.0
        %5387 = vmatpush1.msra.mxu0 0.0
        %5388 = vmatprep.subr.mxu0 0.0
        %5389 = vmatpush1.msra.mxu0 0.0
        %5390 = vmatprep.subr.mxu0 0.0
        %5391 = vmatpush1.msra.mxu0 0.0
        %5392 = vmatprep.subr.mxu0 0.0
        %5393 = vmatpush1.msra.mxu0 0.0
        %5394 = vmatprep.subr.mxu0 0.0
        %5395 = vmatpush1.msra.mxu0 0.0
        %5396 = vmatprep.subr.mxu0 0.0
        %5397 = vmatpush1.msra.mxu0 0.0
        %5398 = vmatprep.subr.mxu0 0.0
        %5399 = vmatpush1.msra.mxu0 0.0
        %5400 = vmatprep.subr.mxu0 0.0
        %5401 = vmatpush1.msra.mxu0 0.0
        %5402 = vmatprep.subr.mxu0 0.0
        %5403 = vmatpush1.msra.mxu0 0.0
        %5404 = vmatprep.subr.mxu0 0.0
        %5405 = vmatpush1.msra.mxu0 0.0
        %5406 = vmatprep.subr.mxu0 0.0
        %5407 = vmatpush1.msra.mxu0 0.0
        %5408 = vmatprep.subr.mxu0 0.0
        %5409 = vmatpush1.msra.mxu0 0.0
        %5410 = vmatprep.subr.mxu0 0.0
        %5411 = vmatpush1.msra.mxu0 0.0
        %5412 = vmatprep.subr.mxu0 0.0
        %5413 = vmatpush1.msra.mxu0 0.0
        %5414 = vmatprep.mubr.f32.mxu0 0.0
        %5415 = vmatmul.mubr.f32.gmra.mrb[0].mxu0 %v3431
        %v5416 = vpop.f32.mrb[0].mxu0
        %v5417 = vadd.f32 %v3393, %v5416
        %v5418 = vpop.f32.mrb[0].mxu0
        %v5419 = vadd.f32 %v3393, %v5418
        %5420 = vmatprep.mubr.f32.mxu0 0.0
        %5421 = vmatmul.mubr.f32.gmra.mrb[0].mxu0 %v3434
        %v5422 = vpop.f32.mrb[0].mxu0
        %v5423 = vadd.f32 %v3398, %v5422
        %v5424 = vpop.f32.mrb[0].mxu0
        %v5425 = vadd.f32 %v3398, %v5424
        %5426 = vmatprep.mubr.f32.mxu0 0.0
        %5427 = vmatmul.mubr.f32.gmra.mrb[0].mxu0 %v3437
        %v5428 = vpop.f32.mrb[0].mxu0
        %v5429 = vadd.f32 %v3403, %v5428
        %v5430 = vpop.f32.mrb[0].mxu0
        %v5431 = vadd.f32 %v3403, %v5430
        %5432 = vmatprep.mubr.f32.mxu0 0.0
        %5433 = vmatmul.mubr.f32.gmra.mrb[0].mxu0 %v3440
        %v5434 = vpop.f32.mrb[0].mxu0
        %v5435 = vadd.f32 %v3408, %v5434
        %v5436 = vpop.f32.mrb[0].mxu0
        %v5437 = vadd.f32 %v3408, %v5436
        %5438 = vmatprep.mubr.f32.mxu0 0.0
        %5439 = vmatmul.mubr.f32.gmra.mrb[0].mxu0 %v3443
        %v5440 = vpop.f32.mrb[0].mxu0
        %v5441 = vadd.f32 %v3413, %v5440
        %v5442 = vpop.f32.mrb[0].mxu0
        %v5443 = vadd.f32 %v3413, %v5442
        %5444 = vmatprep.mubr.f32.mxu0 0.0
        %5445 = vmatmul.mubr.f32.gmra.mrb[0].mxu0 %v3446
        %v5446 = vpop.f32.mrb[0].mxu0
        %v5447 = vadd.f32 %v3418, %v5446
        %v5448 = vpop.f32.mrb[0].mxu0
        %v5449 = vadd.f32 %v3418, %v5448
        %5450 = vmatprep.mubr.f32.mxu0 0.0
        %5451 = vmatmul.mubr.f32.gmra.mrb[0].mxu0 %v3449
        %v5452 = vpop.f32.mrb[0].mxu0
        %v5453 = vadd.f32 %v3423, %v5452
        %v5454 = vpop.f32.mrb[0].mxu0
        %v5455 = vadd.f32 %v3423, %v5454
        %5456 = vmatprep.mubr.f32.mxu0 0.0
        %5457 = vmatmul.mubr.f32.gmra.mrb[0].mxu0 %v3452
        %v5458 = vpop.f32.mrb[0].mxu0
        %v5459 = vadd.f32 %v3428, %v5458
        %v5460 = vpop.f32.mrb[0].mxu0
        %v5461 = vadd.f32 %v3428, %v5460
        %5462 = vdwg.mxu0
        %v5463 = vadd.f32 %v1379, %v5417
        %v5464 = vadd.f32 %v1381, %v5419
        %v5465 = vadd.f32 %v1385, %v5423
        %v5466 = vadd.f32 %v1387, %v5425
        %v5467 = vadd.f32 %v1391, %v5429
        %v5468 = vadd.f32 %v1393, %v5431
        %v5469 = vadd.f32 %v1397, %v5435
        %v5470 = vadd.f32 %v1399, %v5437
        %v5471 = vadd.f32 %v1403, %v5441
        %v5472 = vadd.f32 %v1405, %v5443
        %v5473 = vadd.f32 %v1409, %v5447
        %v5474 = vadd.f32 %v1411, %v5449
        %v5475 = vadd.f32 %v1415, %v5453
        %v5476 = vadd.f32 %v1417, %v5455
        %v5477 = vadd.f32 %v1421, %v5459
        %v5478 = vadd.f32 %v1423, %v5461
        %v5479 = vadd.f32 %v5463, %v5465
        %v5480 = vadd.f32 %v5479, %v5467
        %v5481 = vadd.f32 %v5480, %v5469
        %v5482 = vadd.f32 %v5481, %v5471
        %v5483 = vadd.f32 %v5482, %v5473
        %v5484 = vadd.f32 %v5483, %v5475
        %v5485 = vadd.f32 %v5484, %v5477
        %v5486 = vrot.slane %v5485, 4
        %v5487 = vadd.f32 %v5485, %v5486
        %v5488 = vrot.slane %v5487, 2
        %v5489 = vadd.f32 %v5487, %v5488
        %v5490 = vrot.slane %v5489, 1
        %v5491 = vadd.f32 %v5489, %v5490
        %v5492 = vadd.f32 %v5464, %v5466
        %v5493 = vadd.f32 %v5492, %v5468
        %v5494 = vadd.f32 %v5493, %v5470
        %v5495 = vadd.f32 %v5494, %v5472
        %v5496 = vadd.f32 %v5495, %v5474
        %v5497 = vadd.f32 %v5496, %v5476
        %v5498 = vadd.f32 %v5497, %v5478
        %v5499 = vrot.slane %v5498, 4
        %v5500 = vadd.f32 %v5498, %v5499
        %v5501 = vrot.slane %v5500, 2
        %v5502 = vadd.f32 %v5500, %v5501
        %v5503 = vrot.slane %v5502, 1
        %v5504 = vadd.f32 %v5502, %v5503
        %v5505 = vmul.f32 %v5491, %v3609
        %v5506 = vmul.f32 %v5504, %v3609
        %v5507 = vsub.f32 %v5463, %v5505
        %v5508 = vsub.f32 %v5464, %v5506
        %v5509 = vsub.f32 %v5465, %v5505
        %v5510 = vsub.f32 %v5466, %v5506
        %v5511 = vsub.f32 %v5467, %v5505
        %v5512 = vsub.f32 %v5468, %v5506
        %v5513 = vsub.f32 %v5469, %v5505
        %v5514 = vsub.f32 %v5470, %v5506
        %v5515 = vsub.f32 %v5471, %v5505
        %v5516 = vsub.f32 %v5472, %v5506
        %v5517 = vsub.f32 %v5473, %v5505
        %v5518 = vsub.f32 %v5474, %v5506
        %v5519 = vsub.f32 %v5475, %v5505
        %v5520 = vsub.f32 %v5476, %v5506
        %v5521 = vsub.f32 %v5477, %v5505
        %v5522 = vsub.f32 %v5478, %v5506
        %v5523 = vmul.f32 %v5507, %v5507
        %v5524 = vmul.f32 %v5508, %v5508
        %v5525 = vmul.f32 %v5509, %v5509
        %v5526 = vmul.f32 %v5510, %v5510
        %v5527 = vmul.f32 %v5511, %v5511
        %v5528 = vmul.f32 %v5512, %v5512
        %v5529 = vmul.f32 %v5513, %v5513
        %v5530 = vmul.f32 %v5514, %v5514
        %v5531 = vmul.f32 %v5515, %v5515
        %v5532 = vmul.f32 %v5516, %v5516
        %v5533 = vmul.f32 %v5517, %v5517
        %v5534 = vmul.f32 %v5518, %v5518
        %v5535 = vmul.f32 %v5519, %v5519
        %v5536 = vmul.f32 %v5520, %v5520
        %v5537 = vmul.f32 %v5521, %v5521
        %v5538 = vmul.f32 %v5522, %v5522
        %v5539 = vadd.f32 %v5523, %v5525
        %v5540 = vadd.f32 %v5539, %v5527
        %v5541 = vadd.f32 %v5540, %v5529
        %v5542 = vadd.f32 %v5541, %v5531
        %v5543 = vadd.f32 %v5542, %v5533
        %v5544 = vadd.f32 %v5543, %v5535
        %v5545 = vadd.f32 %v5544, %v5537
        %v5546 = vrot.slane %v5545, 4
        %v5547 = vadd.f32 %v5545, %v5546
        %v5548 = vrot.slane %v5547, 2
        %v5549 = vadd.f32 %v5547, %v5548
        %v5550 = vrot.slane %v5549, 1
        %v5551 = vadd.f32 %v5549, %v5550
        %v5552 = vadd.f32 %v5524, %v5526
        %v5553 = vadd.f32 %v5552, %v5528
        %v5554 = vadd.f32 %v5553, %v5530
        %v5555 = vadd.f32 %v5554, %v5532
        %v5556 = vadd.f32 %v5555, %v5534
        %v5557 = vadd.f32 %v5556, %v5536
        %v5558 = vadd.f32 %v5557, %v5538
        %v5559 = vrot.slane %v5558, 4
        %v5560 = vadd.f32 %v5558, %v5559
        %v5561 = vrot.slane %v5560, 2
        %v5562 = vadd.f32 %v5560, %v5561
        %v5563 = vrot.slane %v5562, 1
        %v5564 = vadd.f32 %v5562, %v5563
        %v5565 = vmul.f32 %v5551, %v3609
        %v5566 = vmul.f32 %v5564, %v3609
        %v5567 = vadd.f32 %v5565, 1e-05
        %v5568 = vadd.f32 %v5566, 1e-05
        %v5569 = vrsqrt.pop %v5567
        %v5570 = vrsqrt.pop %v5568
        %v5571 = vmul.f32 %v5507, %v5569
        %v5572 = vmul.f32 %v5508, %v5570
        %v5573 = vmul.f32 %v5509, %v5569
        %v5574 = vmul.f32 %v5510, %v5570
        %v5575 = vmul.f32 %v5511, %v5569
        %v5576 = vmul.f32 %v5512, %v5570
        %v5577 = vmul.f32 %v5513, %v5569
        %v5578 = vmul.f32 %v5514, %v5570
        %v5579 = vmul.f32 %v5515, %v5569
        %v5580 = vmul.f32 %v5516, %v5570
        %v5581 = vmul.f32 %v5517, %v5569
        %v5582 = vmul.f32 %v5518, %v5570
        %v5583 = vmul.f32 %v5519, %v5569
        %v5584 = vmul.f32 %v5520, %v5570
        %v5585 = vmul.f32 %v5521, %v5569
        %v5586 = vmul.f32 %v5522, %v5570
        %v5587 = vmul.f32 %v5571, %v3695
        %v5588 = vmul.f32 %v5572, %v3695
        %v5589 = vmul.f32 %v5573, %v3700
        %v5590 = vmul.f32 %v5574, %v3700
        %v5591 = vmul.f32 %v5575, %v3705
        %v5592 = vmul.f32 %v5576, %v3705
        %v5593 = vmul.f32 %v5577, %v3710
        %v5594 = vmul.f32 %v5578, %v3710
        %v5595 = vmul.f32 %v5579, %v3715
        %v5596 = vmul.f32 %v5580, %v3715
        %v5597 = vmul.f32 %v5581, %v3720
        %v5598 = vmul.f32 %v5582, %v3720
        %v5599 = vmul.f32 %v5583, %v3725
        %v5600 = vmul.f32 %v5584, %v3725
        %v5601 = vmul.f32 %v5585, %v3730
        %v5602 = vmul.f32 %v5586, %v3730
        %v5603 = vadd.f32 %v5587, %v3751
        %v5604 = vadd.f32 %v5588, %v3751
        %v5605 = vadd.f32 %v5589, %v3756
        %v5606 = vadd.f32 %v5590, %v3756
        %v5607 = vadd.f32 %v5591, %v3761
        %v5608 = vadd.f32 %v5592, %v3761
        %v5609 = vadd.f32 %v5593, %v3766
        %v5610 = vadd.f32 %v5594, %v3766
        %v5611 = vadd.f32 %v5595, %v3771
        %v5612 = vadd.f32 %v5596, %v3771
        %v5613 = vadd.f32 %v5597, %v3776
        %v5614 = vadd.f32 %v5598, %v3776
        %v5615 = vadd.f32 %v5599, %v3781
        %v5616 = vadd.f32 %v5600, %v3781
        %v5617 = vadd.f32 %v5601, %v3786
        %v5618 = vadd.f32 %v5602, %v3786
        %v5619 = vld [vmem:[%s13] sm:$0xff]
        %v5620 = vld [vmem:[%s13 + $0x8] sm:$0x1f]
        %v5621 = vld [vmem:[%s14] sm:$0xff]
        %v5622 = vld [vmem:[%s14 + $0x8] sm:$0x1f]
        %5624 = vset.pattern.permute.xlu0 0
        %5625 = vperm.xlu0 %5624, %v5621
        %v5626 = vpop.permute.xlu0 %5625
        %5629 = vset.pattern.permute.xlu0 0
        %5630 = vperm.xlu0 %5629, %v5622
        %v5631 = vpop.permute.xlu0 %5630
        %v5634 = vsel %vm1529, %v5619, 0
        %v5637 = vsel %vm1529, %v5620, 0
        %5639 = vmatprep.subr.mxu0 %v3789
        %5640 = vmatpush1.msra.mxu0 %v3788
        %5641 = vmatprep.subr.mxu0 %v3791
        %5642 = vmatpush1.msra.mxu0 %v3790
        %5643 = vmatprep.subr.mxu0 %v3793
        %5644 = vmatpush1.msra.mxu0 %v3792
        %5645 = vmatprep.subr.mxu0 %v3795
        %5646 = vmatpush1.msra.mxu0 %v3794
        %5647 = vmatprep.subr.mxu0 %v3797
        %5648 = vmatpush1.msra.mxu0 %v3796
        %5649 = vmatprep.subr.mxu0 %v3799
        %5650 = vmatpush1.msra.mxu0 %v3798
        %5651 = vmatprep.subr.mxu0 %v3801
        %5652 = vmatpush1.msra.mxu0 %v3800
        %5653 = vmatprep.subr.mxu0 %v3803
        %5654 = vmatpush1.msra.mxu0 %v3802
        %5655 = vmatprep.subr.mxu0 0.0
        %5656 = vmatpush1.msra.mxu0 0.0
        %5657 = vmatprep.subr.mxu0 0.0
        %5658 = vmatpush1.msra.mxu0 0.0
        %5659 = vmatprep.subr.mxu0 0.0
        %5660 = vmatpush1.msra.mxu0 0.0
        %5661 = vmatprep.subr.mxu0 0.0
        %5662 = vmatpush1.msra.mxu0 0.0
        %5663 = vmatprep.subr.mxu0 0.0
        %5664 = vmatpush1.msra.mxu0 0.0
        %5665 = vmatprep.subr.mxu0 0.0
        %5666 = vmatpush1.msra.mxu0 0.0
        %5667 = vmatprep.subr.mxu0 0.0
        %5668 = vmatpush1.msra.mxu0 0.0
        %5669 = vmatprep.subr.mxu0 0.0
        %5670 = vmatpush1.msra.mxu0 0.0
        %5671 = vmatprep.subr.mxu0 0.0
        %5672 = vmatpush1.msra.mxu0 0.0
        %5673 = vmatprep.subr.mxu0 0.0
        %5674 = vmatpush1.msra.mxu0 0.0
        %5675 = vmatprep.subr.mxu0 0.0
        %5676 = vmatpush1.msra.mxu0 0.0
        %5677 = vmatprep.subr.mxu0 0.0
        %5678 = vmatpush1.msra.mxu0 0.0
        %5679 = vmatprep.subr.mxu0 0.0
        %5680 = vmatpush1.msra.mxu0 0.0
        %5681 = vmatprep.subr.mxu0 0.0
        %5682 = vmatpush1.msra.mxu0 0.0
        %5683 = vmatprep.subr.mxu0 0.0
        %5684 = vmatpush1.msra.mxu0 0.0
        %5685 = vmatprep.subr.mxu0 0.0
        %5686 = vmatpush1.msra.mxu0 0.0
        %5687 = vmatprep.subr.mxu0 0.0
        %5688 = vmatpush1.msra.mxu0 0.0
        %5689 = vmatprep.subr.mxu0 0.0
        %5690 = vmatpush1.msra.mxu0 0.0
        %5691 = vmatprep.subr.mxu0 0.0
        %5692 = vmatpush1.msra.mxu0 0.0
        %5693 = vmatprep.subr.mxu0 0.0
        %5694 = vmatpush1.msra.mxu0 0.0
        %5695 = vmatprep.subr.mxu0 0.0
        %5696 = vmatpush1.msra.mxu0 0.0
        %5697 = vmatprep.subr.mxu0 0.0
        %5698 = vmatpush1.msra.mxu0 0.0
        %5699 = vmatprep.subr.mxu0 0.0
        %5700 = vmatpush1.msra.mxu0 0.0
        %5701 = vmatprep.subr.mxu0 0.0
        %5702 = vmatpush1.msra.mxu0 0.0
        %5703 = vmatprep.mubr.f32.mxu0 0.0
        %5704 = vmatmul.mubr.f32.gmra.mrb[0].mxu0 %v5634
        %v5705 = vpop.f32.mrb[0].mxu0
        %v5706 = vadd.f32 %v5626, %v5705
        %v5707 = vpop.f32.mrb[0].mxu0
        %v5708 = vadd.f32 %v5626, %v5707
        %5709 = vmatprep.mubr.f32.mxu0 0.0
        %5710 = vmatmul.mubr.f32.gmra.mrb[0].mxu0 %v5637
        %v5711 = vpop.f32.mrb[0].mxu0
        %v5712 = vadd.f32 %v5631, %v5711
        %v5713 = vpop.f32.mrb[0].mxu0
        %v5714 = vadd.f32 %v5631, %v5713
        %5715 = vdwg.mxu0
        %5716 = vst [vmem:[%s825] sm:$0xff] %v5706
        %5717 = vst [vmem:[%s825 + $0x8] sm:$0xff] %v5708
        %5718 = vst [vmem:[%s825 + $0x10] sm:$0x1f] %v5712
        %5719 = vst [vmem:[%s825 + $0x18] sm:$0x1f] %v5714
        %v5720 = vld [vmem:[%s15] sm:$0x1f]
        %v5721 = vld [vmem:[%s16] sm:$0x1f]
        %5723 = vset.pattern.permute.xlu0 0
        %5724 = vperm.xlu0 %5723, %v5721
        %v5725 = vpop.permute.xlu0 %5724
        %v5728 = vsel %vm1529, %v5720, 0
        %5730 = vmatprep.subr.mxu0 %v4394
        %5731 = vmatpush1.msra.mxu0 %v4393
        %5732 = vmatprep.subr.mxu0 %v4396
        %5733 = vmatpush1.msra.mxu0 %v4395
        %5734 = vmatprep.subr.mxu0 %v4398
        %5735 = vmatpush1.msra.mxu0 %v4397
        %5736 = vmatprep.subr.mxu0 %v4400
        %5737 = vmatpush1.msra.mxu0 %v4399
        %5738 = vmatprep.subr.mxu0 %v4402
        %5739 = vmatpush1.msra.mxu0 %v4401
        %5740 = vmatprep.subr.mxu0 %v4404
        %5741 = vmatpush1.msra.mxu0 %v4403
        %5742 = vmatprep.subr.mxu0 %v4406
        %5743 = vmatpush1.msra.mxu0 %v4405
        %5744 = vmatprep.subr.mxu0 %v4408
        %5745 = vmatpush1.msra.mxu0 %v4407
        %5746 = vmatprep.subr.mxu0 0.0
        %5747 = vmatpush1.msra.mxu0 0.0
        %5748 = vmatprep.subr.mxu0 0.0
        %5749 = vmatpush1.msra.mxu0 0.0
        %5750 = vmatprep.subr.mxu0 0.0
        %5751 = vmatpush1.msra.mxu0 0.0
        %5752 = vmatprep.subr.mxu0 0.0
        %5753 = vmatpush1.msra.mxu0 0.0
        %5754 = vmatprep.subr.mxu0 0.0
        %5755 = vmatpush1.msra.mxu0 0.0
        %5756 = vmatprep.subr.mxu0 0.0
        %5757 = vmatpush1.msra.mxu0 0.0
        %5758 = vmatprep.subr.mxu0 0.0
        %5759 = vmatpush1.msra.mxu0 0.0
        %5760 = vmatprep.subr.mxu0 0.0
        %5761 = vmatpush1.msra.mxu0 0.0
        %5762 = vmatprep.subr.mxu0 0.0
        %5763 = vmatpush1.msra.mxu0 0.0
        %5764 = vmatprep.subr.mxu0 0.0
        %5765 = vmatpush1.msra.mxu0 0.0
        %5766 = vmatprep.subr.mxu0 0.0
        %5767 = vmatpush1.msra.mxu0 0.0
        %5768 = vmatprep.subr.mxu0 0.0
        %5769 = vmatpush1.msra.mxu0 0.0
        %5770 = vmatprep.subr.mxu0 0.0
        %5771 = vmatpush1.msra.mxu0 0.0
        %5772 = vmatprep.subr.mxu0 0.0
        %5773 = vmatpush1.msra.mxu0 0.0
        %5774 = vmatprep.subr.mxu0 0.0
        %5775 = vmatpush1.msra.mxu0 0.0
        %5776 = vmatprep.subr.mxu0 0.0
        %5777 = vmatpush1.msra.mxu0 0.0
        %5778 = vmatprep.subr.mxu0 0.0
        %5779 = vmatpush1.msra.mxu0 0.0
        %5780 = vmatprep.subr.mxu0 0.0
        %5781 = vmatpush1.msra.mxu0 0.0
        %5782 = vmatprep.subr.mxu0 0.0
        %5783 = vmatpush1.msra.mxu0 0.0
        %5784 = vmatprep.subr.mxu0 0.0
        %5785 = vmatpush1.msra.mxu0 0.0
        %5786 = vmatprep.subr.mxu0 0.0
        %5787 = vmatpush1.msra.mxu0 0.0
        %5788 = vmatprep.subr.mxu0 0.0
        %5789 = vmatpush1.msra.mxu0 0.0
        %5790 = vmatprep.subr.mxu0 0.0
        %5791 = vmatpush1.msra.mxu0 0.0
        %5792 = vmatprep.subr.mxu0 0.0
        %5793 = vmatpush1.msra.mxu0 0.0
        %5794 = vmatprep.mubr.f32.mxu0 0.0
        %5795 = vmatmul.mubr.f32.gmra.mrb[0].mxu0 %v5728
        %v5796 = vpop.f32.mrb[0].mxu0
        %v5797 = vadd.f32 %v5725, %v5796
        %v5798 = vpop.f32.mrb[0].mxu0
        %v5799 = vadd.f32 %v5725, %v5798
        %5800 = vdwg.mxu0
        %5801 = vst [vmem:[%s835] sm:$0x1f] %v5797
        %5802 = vst [vmem:[%s835 + $0x8] sm:$0x1f] %v5799
        %v5803 = vld [vmem:[%s17] sm:$0xff]
        %v5804 = vld [vmem:[%s17 + $0x8] sm:$0xff]
        %v5805 = vld [vmem:[%s17 + $0x10] sm:$0xff]
        %v5806 = vld [vmem:[%s17 + $0x18] sm:$0xff]
        %v5807 = vld [vmem:[%s17 + $0x20] sm:$0xff]
        %v5808 = vld [vmem:[%s17 + $0x28] sm:$0xff]
        %v5809 = vld [vmem:[%s17 + $0x30] sm:$0xff]
        %v5810 = vld [vmem:[%s17 + $0x38] sm:$0xff]
        %5812 = vset.pattern.permute.xlu0 0
        %5813 = vperm.xlu0 %5812, %v5803
        %v5814 = vpop.permute.xlu0 %5813
        %5817 = vset.pattern.permute.xlu0 0
        %5818 = vperm.xlu0 %5817, %v5804
        %v5819 = vpop.permute.xlu0 %5818
        %5822 = vset.pattern.permute.xlu0 0
        %5823 = vperm.xlu0 %5822, %v5805
        %v5824 = vpop.permute.xlu0 %5823
        %5827 = vset.pattern.permute.xlu0 0
        %5828 = vperm.xlu0 %5827, %v5806
        %v5829 = vpop.permute.xlu0 %5828
        %5832 = vset.pattern.permute.xlu0 0
        %5833 = vperm.xlu0 %5832, %v5807
        %v5834 = vpop.permute.xlu0 %5833
        %5837 = vset.pattern.permute.xlu0 0
        %5838 = vperm.xlu0 %5837, %v5808
        %v5839 = vpop.permute.xlu0 %5838
        %5842 = vset.pattern.permute.xlu0 0
        %5843 = vperm.xlu0 %5842, %v5809
        %v5844 = vpop.permute.xlu0 %5843
        %5847 = vset.pattern.permute.xlu0 0
        %5848 = vperm.xlu0 %5847, %v5810
        %v5849 = vpop.permute.xlu0 %5848
        %v5851 = vmul.f32 %v5814, %v4998
        %v5852 = vmul.f32 %v5814, %v4999
        %v5853 = vmul.f32 %v5819, %v5000
        %v5854 = vmul.f32 %v5819, %v5001
        %v5855 = vmul.f32 %v5824, %v5002
        %v5856 = vmul.f32 %v5824, %v5003
        %v5857 = vmul.f32 %v5829, %v5004
        %v5858 = vmul.f32 %v5829, %v5005
        %v5859 = vmul.f32 %v5834, %v5006
        %v5860 = vmul.f32 %v5834, %v5007
        %v5861 = vmul.f32 %v5839, %v5008
        %v5862 = vmul.f32 %v5839, %v5009
        %v5863 = vmul.f32 %v5844, %v5010
        %v5864 = vmul.f32 %v5844, %v5011
        %v5865 = vmul.f32 %v5849, %v5012
        %v5866 = vmul.f32 %v5849, %v5013
        %v5867 = vadd.f32 %v5851, %v5853
        %v5868 = vadd.f32 %v5867, %v5855
        %v5869 = vadd.f32 %v5868, %v5857
        %v5870 = vadd.f32 %v5869, %v5859
        %v5871 = vadd.f32 %v5870, %v5861
        %v5872 = vadd.f32 %v5871, %v5863
        %v5873 = vadd.f32 %v5872, %v5865
        %v5874 = vrot.slane %v5873, 4
        %v5875 = vadd.f32 %v5873, %v5874
        %v5876 = vrot.slane %v5875, 2
        %v5877 = vadd.f32 %v5875, %v5876
        %v5878 = vrot.slane %v5877, 1
        %v5879 = vadd.f32 %v5877, %v5878
        %v5880 = vadd.f32 %v5852, %v5854
        %v5881 = vadd.f32 %v5880, %v5856
        %v5882 = vadd.f32 %v5881, %v5858
        %v5883 = vadd.f32 %v5882, %v5860
        %v5884 = vadd.f32 %v5883, %v5862
        %v5885 = vadd.f32 %v5884, %v5864
        %v5886 = vadd.f32 %v5885, %v5866
        %v5887 = vrot.slane %v5886, 4
        %v5888 = vadd.f32 %v5886, %v5887
        %v5889 = vrot.slane %v5888, 2
        %v5890 = vadd.f32 %v5888, %v5889
        %v5891 = vrot.slane %v5890, 1
        %v5892 = vadd.f32 %v5890, %v5891
        %v5893 = vld [vmem:[#allocation2] sm:$0x1]
        %5895 = vset.pattern.permute.xlu0 0
        %5896 = vperm.xlu0 %5895, %v5893
        %v5897 = vpop.permute.xlu0 %5896
        %v5899 = vlaneseq
        %v5900 = vshrl.u32 %v5899, 7
        %v5901 = vsub.s32 0, %v5900
        %v5902 = vrot.slane %v5897, %v5901
        %v5903 = vadd.f32 %v5879, %v5902
        %v5904 = vadd.f32 %v5892, %v5902
        %v5907 = vcombine.low %v5903, %v5904
        %v5909 = vunpack.c.l.s4 1966171168
        %v5910 = vunpack.c.0.s8 %v5909
        %v5911 = vlaneseq
        %v5912 = vshrl.u32 %v5911, 7
        %v5913 = vsub.s32 %v5910, %v5912
        %v5914 = vrot.slane %v5907, %v5913
        %v5916 = vunpack.c.l.s4 1966171168
        %v5917 = vunpack.c.0.s8 %v5916
        %v5918 = vlaneseq
        %v5919 = vshrl.u32 %v5918, 7
        %v5920 = vsub.s32 %v5917, %v5919
        %v5921 = vrot.slane %v5914, %v5920
        %v5923 = vlaneseq
        %vm5924 = vcmp.ge.s32.totalorder %v5923, 0
        %vm5925 = vcmp.lt.s32.totalorder %v5923, 256
        %vm5926 = vmand %vm5924, %vm5925
        %5927 = vst.msk [vmem:[%s804] sm:$0x3] %vm5926, %v5921
        %v5928 = vld [vmem:[%s19] sm:$0x3f]
        %v5929 = vld [vmem:[%s20] sm:$0x3f]
        %5931 = vset.pattern.permute.xlu0 0
        %5932 = vperm.xlu0 %5931, %v5929
        %v5933 = vpop.permute.xlu0 %5932
        %v5936 = vsel %vm1529, %v5928, 0
        %5938 = vmatprep.subr.mxu0 %v5604
        %5939 = vmatpush1.msra.mxu0 %v5603
        %5940 = vmatprep.subr.mxu0 %v5606
        %5941 = vmatpush1.msra.mxu0 %v5605
        %5942 = vmatprep.subr.mxu0 %v5608
        %5943 = vmatpush1.msra.mxu0 %v5607
        %5944 = vmatprep.subr.mxu0 %v5610
        %5945 = vmatpush1.msra.mxu0 %v5609
        %5946 = vmatprep.subr.mxu0 %v5612
        %5947 = vmatpush1.msra.mxu0 %v5611
        %5948 = vmatprep.subr.mxu0 %v5614
        %5949 = vmatpush1.msra.mxu0 %v5613
        %5950 = vmatprep.subr.mxu0 %v5616
        %5951 = vmatpush1.msra.mxu0 %v5615
        %5952 = vmatprep.subr.mxu0 %v5618
        %5953 = vmatpush1.msra.mxu0 %v5617
        %5954 = vmatprep.subr.mxu0 0.0
        %5955 = vmatpush1.msra.mxu0 0.0
        %5956 = vmatprep.subr.mxu0 0.0
        %5957 = vmatpush1.msra.mxu0 0.0
        %5958 = vmatprep.subr.mxu0 0.0
        %5959 = vmatpush1.msra.mxu0 0.0
        %5960 = vmatprep.subr.mxu0 0.0
        %5961 = vmatpush1.msra.mxu0 0.0
        %5962 = vmatprep.subr.mxu0 0.0
        %5963 = vmatpush1.msra.mxu0 0.0
        %5964 = vmatprep.subr.mxu0 0.0
        %5965 = vmatpush1.msra.mxu0 0.0
        %5966 = vmatprep.subr.mxu0 0.0
        %5967 = vmatpush1.msra.mxu0 0.0
        %5968 = vmatprep.subr.mxu0 0.0
        %5969 = vmatpush1.msra.mxu0 0.0
        %5970 = vmatprep.subr.mxu0 0.0
        %5971 = vmatpush1.msra.mxu0 0.0
        %5972 = vmatprep.subr.mxu0 0.0
        %5973 = vmatpush1.msra.mxu0 0.0
        %5974 = vmatprep.subr.mxu0 0.0
        %5975 = vmatpush1.msra.mxu0 0.0
        %5976 = vmatprep.subr.mxu0 0.0
        %5977 = vmatpush1.msra.mxu0 0.0
        %5978 = vmatprep.subr.mxu0 0.0
        %5979 = vmatpush1.msra.mxu0 0.0
        %5980 = vmatprep.subr.mxu0 0.0
        %5981 = vmatpush1.msra.mxu0 0.0
        %5982 = vmatprep.subr.mxu0 0.0
        %5983 = vmatpush1.msra.mxu0 0.0
        %5984 = vmatprep.subr.mxu0 0.0
        %5985 = vmatpush1.msra.mxu0 0.0
        %5986 = vmatprep.subr.mxu0 0.0
        %5987 = vmatpush1.msra.mxu0 0.0
        %5988 = vmatprep.subr.mxu0 0.0
        %5989 = vmatpush1.msra.mxu0 0.0
        %5990 = vmatprep.subr.mxu0 0.0
        %5991 = vmatpush1.msra.mxu0 0.0
        %5992 = vmatprep.subr.mxu0 0.0
        %5993 = vmatpush1.msra.mxu0 0.0
        %5994 = vmatprep.subr.mxu0 0.0
        %5995 = vmatpush1.msra.mxu0 0.0
        %5996 = vmatprep.subr.mxu0 0.0
        %5997 = vmatpush1.msra.mxu0 0.0
        %5998 = vmatprep.subr.mxu0 0.0
        %5999 = vmatpush1.msra.mxu0 0.0
        %6000 = vmatprep.subr.mxu0 0.0
        %6001 = vmatpush1.msra.mxu0 0.0
        %6002 = vmatprep.mubr.f32.mxu0 0.0
        %6003 = vmatmul.mubr.f32.gmra.mrb[0].mxu0 %v5936
        %v6004 = vpop.f32.mrb[0].mxu0
        %v6005 = vadd.f32 %v5933, %v6004
        %v6006 = vpop.f32.mrb[0].mxu0
        %v6007 = vadd.f32 %v5933, %v6006
        %6008 = vdwg.mxu0
        %6009 = vst [vmem:[%s846] sm:$0x3f] %v6005
        %6010 = vst [vmem:[%s846 + $0x8] sm:$0x3f] %v6007
        %s6011 = smul.u32 2, %s49
        %p6012 = scmp.lt.s32.totalorder %s48, 1
        %s6013 = scalar_select %p6012, %s48, 1
        %p6014 = scmp.lt.s32.totalorder %s6011, 1
        %s6015 = scalar_select %p6014, %s6011, 1
        %s6016 = smul.addr %s6013, 4
        %s6017 = sadd.s32 %s6015, %s6016
        %s6018 = smul.addr %s6017, 8
        %s6019 = scalar_lea.vmem %s21, %s6018
        %s6020 = smul.u32 2, %s49
        %p6021 = scmp.lt.s32.totalorder %s48, 1
        %s6022 = scalar_select %p6021, %s48, 1
        %p6023 = scmp.lt.s32.totalorder %s6020, 1
        %s6024 = scalar_select %p6023, %s6020, 1
        %s6025 = smul.addr %s6022, 2
        %s6026 = sadd.s32 %s6024, %s6025
        %s6027 = smul.addr %s6026, 8
        %s6028 = scalar_lea.vmem %s22, %s6027
        %s6029 = sand.u32 %s570, 1
        %s6030 = scalar_lea.sflag [#allocation5], %s6029
        %s6031 = sand.u32 %s570, 1
        %s6032 = smul.addr %s6031, 2
        %s6033 = scalar_lea.vmem [#allocation6], %s6032
        %s6034 = smul.u32 2, %s49
        %p6035 = scmp.lt.s32.totalorder %s48, 1
        %s6036 = scalar_select %p6035, %s48, 1
        %p6037 = scmp.lt.s32.totalorder %s6034, 1
        %s6038 = scalar_select %p6037, %s6034, 1
        %s6039 = smul.addr %s6036, 2
        %s6040 = sadd.s32 %s6038, %s6039
        %s6041 = smul.addr %s6040, 8
        %s6042 = scalar_lea.vmem %s24, %s6041
        // Predicated region
        $region109: #{tpu_custom_call.1} parent=103 // pred_check
          %p6043 = pneg %p524
        $region110: #{tpu_custom_call.1} parent=103 // pred_check_branch
          %6045 = sbr.rel (%p6043) target = $region112
        $region111: #{tpu_custom_call.1} parent=103 // pred_region
          %s6046 = smul.u32 2, %s49
        $region112: #{tpu_custom_call.1} parent=103 // pred_fallthru
          _
        // Predicated region
        $region113: #{tpu_custom_call.1} parent=103 // pred_check
          %p6047 = pneg %p552
        $region114: #{tpu_custom_call.1} parent=103 // pred_check_branch
          %6049 = sbr.rel (%p6047) target = $region116
        $region115: #{tpu_custom_call.1} parent=103 // pred_region
          %s6050 = smul.u32 2, %s49
        $region116: #{tpu_custom_call.1} parent=103 // pred_fallthru
          _
        // Predicated region
        $region117: #{tpu_custom_call.1} parent=103 // pred_check
          %p6051 = pneg %p580
        $region118: #{tpu_custom_call.1} parent=103 // pred_check_branch
          %6053 = sbr.rel (%p6051) target = $region120
        $region119: #{tpu_custom_call.1} parent=103 // pred_region
          %s6054 = smul.u32 2, %s49
          %s6056 = ssub.s32 32, 32
          %6057 = vsyncadd %s6030, %s6056
          %s6058 = smul.addr %s48, 2
          %s6059 = sadd.s32 %s6054, %s6058
          %s6060 = smul.addr %s6059, 16
          %s6061 = scalar_lea.hbm %s23, %s6060
          %s6063 = sshll.u32 %s6033, 4
          %s6064 = int_to_ptr.vmem [resolvable:$true] %s6063
          %6066 = dma.vmem_to_hbm [thread:$0]  %s6064, 32, %s6061, %s6030
        $region120: #{tpu_custom_call.1} parent=103 // pred_fallthru
          _
        // Predicated region
        $region121: #{tpu_custom_call.1} parent=103 // pred_check
          %p6067 = pneg %p608
        $region122: #{tpu_custom_call.1} parent=103 // pred_check_branch
          %6069 = sbr.rel (%p6067) target = $region124
        $region123: #{tpu_custom_call.1} parent=103 // pred_region
          %s6070 = smul.u32 2, %s49
        $region124: #{tpu_custom_call.1} parent=103 // pred_fallthru
          _
      $region104: #{tpu_custom_call.1} parent=5 // pred_fallthru
        _
      %p6071 = scmp.le.s32.totalorder 2, %s39
      // Predicated region
      $region125: #{tpu_custom_call.1} parent=5 // pred_check
        %p6072 = pneg %p6071
      $region126: #{tpu_custom_call.1} parent=5 // pred_check_branch
        %6074 = sbr.rel (%p6072) target = $region128
      $region127: #{tpu_custom_call.1} parent=5 // pred_region
        %s6075 = ssub.s32 %s39, 2
        // Predicated region
        $region129: #{tpu_custom_call.1} parent=127 // pred_check
          %p6076 = pneg %p530
        $region130: #{tpu_custom_call.1} parent=127 // pred_check_branch
          %6078 = sbr.rel (%p6076) target = $region132
        $region131: #{tpu_custom_call.1} parent=127 // pred_region
          %s6079 = smul.u32 2, %s51
          %p6080 = scmp.lt.s32.totalorder %s50, 1
          %s6081 = scalar_select %p6080, %s50, 1
          %p6082 = scmp.lt.s32.totalorder %s6079, 1
          %s6083 = scalar_select %p6082, %s6079, 1
          %s6084 = smul.addr %s6081, 4
          %s6085 = sadd.s32 %s6083, %s6084
          %s6086 = smul.addr %s6085, 8
          %s6087 = scalar_lea.vmem %s21, %s6086
        $region132: #{tpu_custom_call.1} parent=127 // pred_fallthru
          _
        // Predicated region
        $region133: #{tpu_custom_call.1} parent=127 // pred_check
          %p6088 = pneg %p558
        $region134: #{tpu_custom_call.1} parent=127 // pred_check_branch
          %6090 = sbr.rel (%p6088) target = $region136
        $region135: #{tpu_custom_call.1} parent=127 // pred_region
          %s6091 = smul.u32 2, %s51
          %p6092 = scmp.lt.s32.totalorder %s50, 1
          %s6093 = scalar_select %p6092, %s50, 1
          %p6094 = scmp.lt.s32.totalorder %s6091, 1
          %s6095 = scalar_select %p6094, %s6091, 1
          %s6096 = smul.addr %s6093, 2
          %s6097 = sadd.s32 %s6095, %s6096
          %s6098 = smul.addr %s6097, 8
          %s6099 = scalar_lea.vmem %s22, %s6098
        $region136: #{tpu_custom_call.1} parent=127 // pred_fallthru
          _
        // Predicated region
        $region137: #{tpu_custom_call.1} parent=127 // pred_check
          %p6100 = pneg %p586
        $region138: #{tpu_custom_call.1} parent=127 // pred_check_branch
          %6102 = sbr.rel (%p6100) target = $region140
        $region139: #{tpu_custom_call.1} parent=127 // pred_region
          %s6103 = sand.u32 %s571, 1
          %s6104 = scalar_lea.sflag [#allocation5], %s6103
          %s6105 = sand.u32 %s571, 1
          %s6106 = smul.addr %s6105, 2
          %s6107 = scalar_lea.vmem [#allocation6], %s6106
          %6108 = dma.done %s6104, 32
        $region140: #{tpu_custom_call.1} parent=127 // pred_fallthru
          _
        // Predicated region
        $region141: #{tpu_custom_call.1} parent=127 // pred_check
          %p6109 = pneg %p614
        $region142: #{tpu_custom_call.1} parent=127 // pred_check_branch
          %6111 = sbr.rel (%p6109) target = $region144
        $region143: #{tpu_custom_call.1} parent=127 // pred_region
          %s6112 = smul.u32 2, %s51
          %p6113 = scmp.lt.s32.totalorder %s50, 1
          %s6114 = scalar_select %p6113, %s50, 1
          %p6115 = scmp.lt.s32.totalorder %s6112, 1
          %s6116 = scalar_select %p6115, %s6112, 1
          %s6117 = smul.addr %s6114, 2
          %s6118 = sadd.s32 %s6116, %s6117
          %s6119 = smul.addr %s6118, 8
          %s6120 = scalar_lea.vmem %s24, %s6119
        $region144: #{tpu_custom_call.1} parent=127 // pred_fallthru
          _
      $region128: #{tpu_custom_call.1} parent=5 // pred_fallthru
        _
    $region6: #{tpu_custom_call.1} parent=1 // loop_footer
      %s43 = sadd.s32 1, %s39
    $region7: #{tpu_custom_call.1} parent=1 // loop_footer_branch
      %38 = sbr.rel target = $region3
    $region8: #{tpu_custom_call.1} parent=1 // loop_exit
      _
    %6121 = vsyncpa [#allocation4], 1
    %s6122 = scalar_lea.sflag [#allocation4], 1
    %6123 = vsyncpa %s6122, 1
    %6124 = vsyncpa [#allocation5], 1
    %s6125 = scalar_lea.sflag [#allocation5], 1
    %6126 = vsyncpa %s6125, 1

</llo_original>
